<compile_context>
chip_gen: v5e
topology: v5e:2x2
jax: 0.10.0
libtpu: 0.0.40
codegen_flags: <defaults>
</compile_context>

<pallas_src>
import functools

import numpy as np
import jax
import jax.numpy as jnp
from jax import lax
from jax.experimental import pallas as pl
from jax.experimental.pallas import tpu as pltpu

# ----------------------------- small config -----------------------------
CUT = 4                 # children kept from resnet50: conv1, bn1, relu, maxpool
RESIZE_ROI = 16         # must equal feature-map height Hf
RESNET_OUT = 64         # stem output channels (resnet_OutPut)
DECODER_HID = 32        # decoder_hiddenState (fc1/fc2 exist in __init__, unused in forward)
BN_EPS = 1e-5
N_GROUPS = 9            # (row-shift dv, col-shift ds) in {0,1,2}^2
K_IN = 49               # 48 phase rows (c, row%4, col%4) + 1 all-ones bias row


# --------------------- fused conv+BN+ReLU+maxpool+pooling kernel ---------------------
def _fused_kernel(x_ref, w_ref, m1_ref, s_ref, scr_ref, *,
                  sw, pool_m, conv_m, base_off, cout):
    """Per-image fused stem + structured pooling.

    x_ref  : (49, SRC_W) bf16  -- mod-4 phase-split padded image (rows k = c*16+a*4+b,
             lane v*sw + s = pixel (4v+a, 4s+b)), front-padded by `base_off+sw+1` lanes,
             plus an all-ones row (k=48) carrying the folded BN shift.
    w_ref  : (9, 256, 49) bf16 -- grouped conv weights; row R = (2p+q)*64 + co.
    m1_ref : (N, pool_m) f32   -- (1/r^2) * sum_u R'[n,u,i], broadcast over pooled col j,
                                   zero on the sw-wf junk lanes of each row.
    s_ref  : (N, cout) f32     -- output S[b].
    scr_ref: (4*cout, conv_m) f32 scratch holding relu(bn(conv)) in parity-plane layout:
             row plane*cout+co, lane (sw+1) + i*sw + j  <->  conv[co, 2i+p, 2j+q].
    """
    shift = sw + 1

    # ---- conv1 + folded BN, 9 offset-group MXU matmuls (bf16 -> f32 accum) ----
    # group g = (dv, ds): RHS is the image window lane-shifted by dv*sw + ds.
    scr_ref[...] = jnp.dot(w_ref[0], x_ref[:, pl.ds(base_off, conv_m)],
                           preferred_element_type=jnp.float32)
    for g in range(1, N_GROUPS):
        off = base_off + (g // 3) * sw + (g % 3)
        scr_ref[...] += jnp.dot(w_ref[g], x_ref[:, pl.ds(off, conv_m)],
                                preferred_element_type=jnp.float32)
    scr_ref[...] = jnp.maximum(scr_ref[...], 0.0)          # ReLU

    # ---- fused 3x3/s2/p1 maxpool on the parity-plane layout ----
    # Out-of-range taps are replaced by 0, safe because values are >= 0 after ReLU and
    # every window contains the always-valid (2i, 2j) tap.  Masks at (1, pool_m) and
    # broadcast along sublanes (review item 4).
    mu = lax.broadcasted_iota(jnp.int32, (1, pool_m), 1)
    jmask = (mu % sw) == 0              # pooled col j == 0 -> conv col -1 (padding)
    imask = mu < sw                     # pooled row i == 0 -> conv row -1 (padding)

    def tap(plane, neg):                # static, near-aligned VMEM window (item 2)
        return scr_ref[pl.ds(plane * cout, cout), pl.ds(shift - neg, pool_m)]

    pooled = tap(0, 0)                                                    # (2i  , 2j  )
    pooled = jnp.maximum(pooled, tap(1, 0))                               # (2i  , 2j+1)
    pooled = jnp.maximum(pooled, tap(2, 0))                               # (2i+1, 2j  )
    pooled = jnp.maximum(pooled, tap(3, 0))                               # (2i+1, 2j+1)
    pooled = jnp.maximum(pooled, jnp.where(jmask, 0.0, tap(1, 1)))        # (2i  , 2j-1)
    pooled = jnp.maximum(pooled, jnp.where(jmask, 0.0, tap(3, 1)))        # (2i+1, 2j-1)
    pooled = jnp.maximum(pooled, jnp.where(imask, 0.0, tap(2, sw)))       # (2i-1, 2j  )
    pooled = jnp.maximum(pooled, jnp.where(imask, 0.0, tap(3, sw)))       # (2i-1, 2j+1)
    pooled = jnp.maximum(pooled,
                         jnp.where(imask | jmask, 0.0, tap(3, sw + 1)))   # (2i-1, 2j-1)

    # ---- structured pooling: S[n, c] = sum_mu M1rep[n, mu] * pooled[c, mu] (item 3) ----
    s_ref[...] = lax.dot_general(m1_ref[...], pooled, (((1,), (1,)), ((), ())),
                                 preferred_element_type=jnp.float32)


# --------------------------- grouped conv-weight construction ---------------------------
def _build_grouped_weights(conv_w, bn_scale, bn_shift):
    """(Cout,3,7,7) conv weights -> (9, 4*Cout, 49) bf16 grouped weights.

    Group g = (dv, ds) in {0,1,2}^2, row R = (2p+q)*Cout + co, column k = c*16+a*4+b
    with a = (2p+kh)%4, dv = (2p+kh)//4, b = (2q+kw)%4, ds = (2q+kw)//4.
    Column 48 of group 0 carries the BN shift (pairs with the all-ones image row).
    """
    cout = conv_w.shape[0]
    wf = np.asarray(conv_w * bn_scale[:, None, None, None], np.float32)   # scale folded
    shift = np.asarray(bn_shift, np.float32)
    w = np.zeros((N_GROUPS, 4, cout, K_IN), np.float32)
    for p in range(2):
        for q in range(2):
            plane = 2 * p + q
            for kh in range(7):
                t = 2 * p + kh
                a, dv = t % 4, t // 4
                for kw in range(7):
                    u = 2 * q + kw
                    b, ds = u % 4, u // 4
                    g = dv * 3 + ds
                    for c in range(3):
                        w[g, plane, :, c * 16 + a * 4 + b] = wf[:, c, kh, kw]
    w[0, :, :, 48] = shift[None, :]
    return jnp.asarray(w.reshape(N_GROUPS, 4 * cout, K_IN), dtype=jnp.bfloat16)


# ----------------------------- module wrapper -----------------------------
def init_params(key):
    ks = jax.random.split(key, 7)
    conv_w = 0.05 * jax.random.normal(ks[0], (RESNET_OUT, 3, 7, 7), jnp.float32)
    gamma = 1.0 + 0.1 * jax.random.normal(ks[1], (RESNET_OUT,), jnp.float32)
    beta = 0.1 * jax.random.normal(ks[2], (RESNET_OUT,), jnp.float32)
    running_mean = 0.1 * jax.random.normal(ks[3], (RESNET_OUT,), jnp.float32)
    running_var = jnp.abs(1.0 + 0.1 * jax.random.normal(ks[4], (RESNET_OUT,), jnp.float32))
    bn_scale = gamma / jnp.sqrt(running_var + BN_EPS)
    bn_shift = beta - running_mean * bn_scale
    w_grouped = _build_grouped_weights(conv_w, bn_scale, bn_shift)      # (9, 256, 49) bf16
    # fc1 / fc2 exist in the module's __init__ but are NOT used in forward.
    fc1_w = 0.05 * jax.random.normal(ks[5], (DECODER_HID, RESNET_OUT), jnp.float32)
    fc1_b = jnp.zeros((DECODER_HID,), jnp.float32)
    fc2_w = 0.05 * jax.random.normal(ks[6], (DECODER_HID, RESNET_OUT), jnp.float32)
    fc2_b = jnp.zeros((DECODER_HID,), jnp.float32)
    return dict(conv_w=conv_w, bn_scale=bn_scale, bn_shift=bn_shift,
                w_grouped=w_grouped,
                fc1_w=fc1_w, fc1_b=fc1_b, fc2_w=fc2_w, fc2_b=fc2_b)


@jax.jit
def forward(params, images, masks):
    """images: (B, 3, H, W) float; masks: (B, N, h, w) float (numpy-sourced)."""
    B, _, H, W = images.shape
    N = masks.shape[1]
    assert H % 4 == 0 and W % 4 == 0, "stem requires H, W divisible by 4"
    hf, wf = H // 4, W // 4                       # conv1 (/2) then maxpool (/2)
    assert hf == RESIZE_ROI, "resize_ROI must equal the feature-map height"
    cout = RESNET_OUT

    # --- geometry of the phase-plane layout ---
    sv, sw = hf + 2, wf + 2                       # mod-4 phase-plane extents
    shift = sw + 1                                # pooled-lane offset inside the scratch
    pool_m = hf * sw                              # pooled lanes (stride sw, 2 junk cols/row)
    conv_m = pool_m + shift                       # conv lanes computed per parity plane
    max_off = 2 * sw + 2                          # largest (dv, ds) lane offset
    front = ((shift + 31) // 32) * 32             # front zero-pad of the source lanes
    base_off = front - shift
    need = max(front + sv * sw, base_off + max_off + conv_m)
    src_w = int(-(-need // 128) * 128)            # lane-padded source width

    # --- image prep: pad, bf16, mod-4 phase split + all-ones bias row (review item 1) ---
    hp, wp = 4 * sv, 4 * sw
    x = jnp.pad(images.astype(jnp.bfloat16),
                ((0, 0), (0, 0), (3, hp - H - 3), (3, wp - W - 3)))       # (B,3,hp,wp)
    x = x.reshape(B, 3, sv, 4, sw, 4).transpose(0, 1, 3, 5, 2, 4)
    x = x.reshape(B, 48, sv * sw)
    x = jnp.pad(x, ((0, 0), (0, 0), (front, src_w - front - sv * sw)))
    ones = jnp.ones((B, 1, src_w), jnp.bfloat16)                          # bias row
    ximg = jnp.concatenate([x, ones], axis=1)                             # (B, 49, src_w)

    # --- mask prep: resize, row-sum, broadcast to the pooled-lane layout (item 3) ---
    rp = jax.image.resize(masks.astype(jnp.float32),
                          (B, N, RESIZE_ROI, RESIZE_ROI),
                          method="bilinear", antialias=True)
    m1 = jnp.sum(rp, axis=2) * (1.0 / float(RESIZE_ROI * RESIZE_ROI))     # (B, N, hf)
    m1rep = jnp.pad(jnp.broadcast_to(m1[:, :, :, None], (B, N, hf, wf)),
                    ((0, 0), (0, 0), (0, 0), (0, sw - wf)))
    m1rep = m1rep.reshape(B, N, pool_m)                                   # (B, N, pool_m)

    kernel = functools.partial(_fused_kernel, sw=sw, pool_m=pool_m, conv_m=conv_m,
                               base_off=base_off, cout=cout)
    return pl.pallas_call(
        kernel,
        out_shape=jax.ShapeDtypeStruct((B, N, cout), jnp.float32),
        grid=(B,),
        in_specs=[
            pl.BlockSpec((None, K_IN, src_w), lambda b: (b, 0, 0)),
            pl.BlockSpec((N_GROUPS, 4 * cout, K_IN), lambda b: (0, 0, 0)),
            pl.BlockSpec((None, N, pool_m), lambda b: (b, 0, 0)),
        ],
        out_specs=pl.BlockSpec((None, N, cout), lambda b: (b, 0, 0)),
        scratch_shapes=[pltpu.VMEM((4 * cout, conv_m), jnp.float32)],
        compiler_params=pltpu.CompilerParams(
            dimension_semantics=("parallel",),        # B steps -> both TCs on v7x
            vmem_limit_bytes=32 * 1024 * 1024),
    )(ximg, params["w_grouped"], m1rep)


# --------------------------- pure-JAX reference (for validation) ---------------------------
def reference_forward(params, images, masks):
    conv = lax.conv_general_dilated(images.astype(jnp.float32), params["conv_w"],
                                    (2, 2), ((3, 3), (3, 3)),
                                    dimension_numbers=("NCHW", "OIHW", "NCHW"))
    f = conv * params["bn_scale"][None, :, None, None] + params["bn_shift"][None, :, None, None]
    f = jnp.maximum(f, 0.0)
    f = lax.reduce_window(f, -jnp.inf, lax.max, (1, 1, 3, 3), (1, 1, 2, 2),
                          ((0, 0), (0, 0), (1, 1), (1, 1)))
    rp = jax.image.resize(masks.astype(jnp.float32),
                          (masks.shape[0], masks.shape[1], RESIZE_ROI, RESIZE_ROI),
                          method="bilinear", antialias=True)
    return jnp.einsum("bnuj,bcjw->bnc", rp, f) / float(RESIZE_ROI * RESIZE_ROI)


if __name__ == "__main__":
    key = jax.random.PRNGKey(0)
    pkey, ikey, mkey = jax.random.split(key, 3)
    params = init_params(pkey)

    images = jax.random.normal(ikey, (2, 3, 64, 64), jnp.float32)
    # The PyTorch module receives Masks as numpy (torch.from_numpy); mimic that.
    masks_np = np.asarray(
        jax.random.uniform(mkey, (2, 8, 64, 64), jnp.float32) > 0.5, dtype=np.float32)
    masks = jnp.asarray(masks_np)

    S = jax.block_until_ready(forward(params, images, masks))
    assert S.shape == (2, 8, RESNET_OUT) and S.dtype == jnp.float32

    S_ref = jax.block_until_ready(reference_forward(params, images, masks))
    np.testing.assert_allclose(np.asarray(S), np.asarray(S_ref), rtol=2e-2, atol=5e-2)
    print("KERNEL_OK")
</pallas_src>

<mosaic_0001>
module attributes {stable_mosaic.version = 11 : i64} {
  func.func @_fused_kernel(%arg0: i32, %arg1: memref<1x49x384xbf16, #tpu.memory_space<vmem>>, %arg2: memref<9x256x49xbf16, #tpu.memory_space<vmem>>, %arg3: memref<1x8x288xf32, #tpu.memory_space<vmem>>, %arg4: memref<1x8x64xf32, #tpu.memory_space<vmem>>, %arg5: memref<256x307xf32, #tpu.memory_space<vmem>>) attributes {dimension_semantics = [#tpu.dimension_semantics<parallel>], iteration_bounds = array<i64: 2>, scalar_prefetch = 0 : i64, scratch_operands = 1 : i64, tpu.core_type = #tpu.core_type<tc>, window_params = [{transform_indices = @transform_0, window_bounds = array<i64: 1, 49, 384>}, {pipeline_mode = #tpu.pipeline_mode<synchronous>, transform_indices = @transform_1, window_bounds = array<i64: 9, 256, 49>}, {transform_indices = @transform_2, window_bounds = array<i64: 1, 8, 288>}, {transform_indices = @transform_3, window_bounds = array<i64: 1, 8, 64>}]} {
    %c0 = arith.constant 0 : index
    %c0_0 = arith.constant 0 : index
    %c0_1 = arith.constant 0 : index
    %0 = vector.load %arg2[%c0, %c0_0, %c0_1] : memref<9x256x49xbf16, #tpu.memory_space<vmem>>, vector<1x256x49xbf16>
    %1 = vector.shape_cast %0 : vector<1x256x49xbf16> to vector<256x49xbf16>
    %c0_2 = arith.constant 0 : index
    %c0_3 = arith.constant 0 : index
    %c13 = arith.constant 13 : index
    %2 = vector.load %arg1[%c0_2, %c0_3, %c13] : memref<1x49x384xbf16, #tpu.memory_space<vmem>>, vector<1x49x307xbf16>
    %3 = vector.shape_cast %2 : vector<1x49x307xbf16> to vector<49x307xbf16>
    %cst = arith.constant dense<0.000000e+00> : vector<256x307xf32>
    %4 = tpu.matmul %1, %3, %cst {dimension_numbers = #tpu.dot_dimension_numbers<[1], [0], [0], [1], [0, 0, 1, 1], [], []>} : vector<256x49xbf16>, vector<49x307xbf16>, vector<256x307xf32> -> vector<256x307xf32>
    %c0_4 = arith.constant 0 : index
    %c0_5 = arith.constant 0 : index
    %5 = vector.load %arg5[%c0_4, %c0_5] : memref<256x307xf32, #tpu.memory_space<vmem>>, vector<256x307xf32>
    tpu.vector_store %arg5[%c0_4, %c0_5], %4 {strides = array<i32>} : memref<256x307xf32, #tpu.memory_space<vmem>>, vector<256x307xf32>,
    %c0_6 = arith.constant 0 : index
    %c0_7 = arith.constant 0 : index
    %6 = vector.load %arg5[%c0_6, %c0_7] : memref<256x307xf32, #tpu.memory_space<vmem>>, vector<256x307xf32>
    %c1 = arith.constant 1 : index
    %c0_8 = arith.constant 0 : index
    %c0_9 = arith.constant 0 : index
    %7 = vector.load %arg2[%c1, %c0_8, %c0_9] : memref<9x256x49xbf16, #tpu.memory_space<vmem>>, vector<1x256x49xbf16>
    %8 = vector.shape_cast %7 : vector<1x256x49xbf16> to vector<256x49xbf16>
    %c0_10 = arith.constant 0 : index
    %c0_11 = arith.constant 0 : index
    %c14 = arith.constant 14 : index
    %9 = vector.load %arg1[%c0_10, %c0_11, %c14] : memref<1x49x384xbf16, #tpu.memory_space<vmem>>, vector<1x49x307xbf16>
    %10 = vector.shape_cast %9 : vector<1x49x307xbf16> to vector<49x307xbf16>
    %cst_12 = arith.constant dense<0.000000e+00> : vector<256x307xf32>
    %11 = tpu.matmul %8, %10, %cst_12 {dimension_numbers = #tpu.dot_dimension_numbers<[1], [0], [0], [1], [0, 0, 1, 1], [], []>} : vector<256x49xbf16>, vector<49x307xbf16>, vector<256x307xf32> -> vector<256x307xf32>
    %12 = arith.addf %6, %11 : vector<256x307xf32>
    %c0_13 = arith.constant 0 : index
    %c0_14 = arith.constant 0 : index
    %13 = vector.load %arg5[%c0_13, %c0_14] : memref<256x307xf32, #tpu.memory_space<vmem>>, vector<256x307xf32>
    tpu.vector_store %arg5[%c0_13, %c0_14], %12 {strides = array<i32>} : memref<256x307xf32, #tpu.memory_space<vmem>>, vector<256x307xf32>,
    %c0_15 = arith.constant 0 : index
    %c0_16 = arith.constant 0 : index
    %14 = vector.load %arg5[%c0_15, %c0_16] : memref<256x307xf32, #tpu.memory_space<vmem>>, vector<256x307xf32>
    %c2 = arith.constant 2 : index
    %c0_17 = arith.constant 0 : index
    %c0_18 = arith.constant 0 : index
    %15 = vector.load %arg2[%c2, %c0_17, %c0_18] : memref<9x256x49xbf16, #tpu.memory_space<vmem>>, vector<1x256x49xbf16>
    %16 = vector.shape_cast %15 : vector<1x256x49xbf16> to vector<256x49xbf16>
    %c0_19 = arith.constant 0 : index
    %c0_20 = arith.constant 0 : index
    %c15 = arith.constant 15 : index
    %17 = vector.load %arg1[%c0_19, %c0_20, %c15] : memref<1x49x384xbf16, #tpu.memory_space<vmem>>, vector<1x49x307xbf16>
    %18 = vector.shape_cast %17 : vector<1x49x307xbf16> to vector<49x307xbf16>
    %cst_21 = arith.constant dense<0.000000e+00> : vector<256x307xf32>
    %19 = tpu.matmul %16, %18, %cst_21 {dimension_numbers = #tpu.dot_dimension_numbers<[1], [0], [0], [1], [0, 0, 1, 1], [], []>} : vector<256x49xbf16>, vector<49x307xbf16>, vector<256x307xf32> -> vector<256x307xf32>
    %20 = arith.addf %14, %19 : vector<256x307xf32>
    %c0_22 = arith.constant 0 : index
    %c0_23 = arith.constant 0 : index
    %21 = vector.load %arg5[%c0_22, %c0_23] : memref<256x307xf32, #tpu.memory_space<vmem>>, vector<256x307xf32>
    tpu.vector_store %arg5[%c0_22, %c0_23], %20 {strides = array<i32>} : memref<256x307xf32, #tpu.memory_space<vmem>>, vector<256x307xf32>,
    %c0_24 = arith.constant 0 : index
    %c0_25 = arith.constant 0 : index
    %22 = vector.load %arg5[%c0_24, %c0_25] : memref<256x307xf32, #tpu.memory_space<vmem>>, vector<256x307xf32>
    %c3 = arith.constant 3 : index
    %c0_26 = arith.constant 0 : index
    %c0_27 = arith.constant 0 : index
    %23 = vector.load %arg2[%c3, %c0_26, %c0_27] : memref<9x256x49xbf16, #tpu.memory_space<vmem>>, vector<1x256x49xbf16>
    %24 = vector.shape_cast %23 : vector<1x256x49xbf16> to vector<256x49xbf16>
    %c0_28 = arith.constant 0 : index
    %c0_29 = arith.constant 0 : index
    %c31 = arith.constant 31 : index
    %25 = vector.load %arg1[%c0_28, %c0_29, %c31] : memref<1x49x384xbf16, #tpu.memory_space<vmem>>, vector<1x49x307xbf16>
    %26 = vector.shape_cast %25 : vector<1x49x307xbf16> to vector<49x307xbf16>
    %cst_30 = arith.constant dense<0.000000e+00> : vector<256x307xf32>
    %27 = tpu.matmul %24, %26, %cst_30 {dimension_numbers = #tpu.dot_dimension_numbers<[1], [0], [0], [1], [0, 0, 1, 1], [], []>} : vector<256x49xbf16>, vector<49x307xbf16>, vector<256x307xf32> -> vector<256x307xf32>
    %28 = arith.addf %22, %27 : vector<256x307xf32>
    %c0_31 = arith.constant 0 : index
    %c0_32 = arith.constant 0 : index
    %29 = vector.load %arg5[%c0_31, %c0_32] : memref<256x307xf32, #tpu.memory_space<vmem>>, vector<256x307xf32>
    tpu.vector_store %arg5[%c0_31, %c0_32], %28 {strides = array<i32>} : memref<256x307xf32, #tpu.memory_space<vmem>>, vector<256x307xf32>,
    %c0_33 = arith.constant 0 : index
    %c0_34 = arith.constant 0 : index
    %30 = vector.load %arg5[%c0_33, %c0_34] : memref<256x307xf32, #tpu.memory_space<vmem>>, vector<256x307xf32>
    %c4 = arith.constant 4 : index
    %c0_35 = arith.constant 0 : index
    %c0_36 = arith.constant 0 : index
    %31 = vector.load %arg2[%c4, %c0_35, %c0_36] : memref<9x256x49xbf16, #tpu.memory_space<vmem>>, vector<1x256x49xbf16>
    %32 = vector.shape_cast %31 : vector<1x256x49xbf16> to vector<256x49xbf16>
    %c0_37 = arith.constant 0 : index
    %c0_38 = arith.constant 0 : index
    %c32 = arith.constant 32 : index
    %33 = vector.load %arg1[%c0_37, %c0_38, %c32] : memref<1x49x384xbf16, #tpu.memory_space<vmem>>, vector<1x49x307xbf16>
    %34 = vector.shape_cast %33 : vector<1x49x307xbf16> to vector<49x307xbf16>
    %cst_39 = arith.constant dense<0.000000e+00> : vector<256x307xf32>
    %35 = tpu.matmul %32, %34, %cst_39 {dimension_numbers = #tpu.dot_dimension_numbers<[1], [0], [0], [1], [0, 0, 1, 1], [], []>} : vector<256x49xbf16>, vector<49x307xbf16>, vector<256x307xf32> -> vector<256x307xf32>
    %36 = arith.addf %30, %35 : vector<256x307xf32>
    %c0_40 = arith.constant 0 : index
    %c0_41 = arith.constant 0 : index
    %37 = vector.load %arg5[%c0_40, %c0_41] : memref<256x307xf32, #tpu.memory_space<vmem>>, vector<256x307xf32>
    tpu.vector_store %arg5[%c0_40, %c0_41], %36 {strides = array<i32>} : memref<256x307xf32, #tpu.memory_space<vmem>>, vector<256x307xf32>,
    %c0_42 = arith.constant 0 : index
    %c0_43 = arith.constant 0 : index
    %38 = vector.load %arg5[%c0_42, %c0_43] : memref<256x307xf32, #tpu.memory_space<vmem>>, vector<256x307xf32>
    %c5 = arith.constant 5 : index
    %c0_44 = arith.constant 0 : index
    %c0_45 = arith.constant 0 : index
    %39 = vector.load %arg2[%c5, %c0_44, %c0_45] : memref<9x256x49xbf16, #tpu.memory_space<vmem>>, vector<1x256x49xbf16>
    %40 = vector.shape_cast %39 : vector<1x256x49xbf16> to vector<256x49xbf16>
    %c0_46 = arith.constant 0 : index
    %c0_47 = arith.constant 0 : index
    %c33 = arith.constant 33 : index
    %41 = vector.load %arg1[%c0_46, %c0_47, %c33] : memref<1x49x384xbf16, #tpu.memory_space<vmem>>, vector<1x49x307xbf16>
    %42 = vector.shape_cast %41 : vector<1x49x307xbf16> to vector<49x307xbf16>
    %cst_48 = arith.constant dense<0.000000e+00> : vector<256x307xf32>
    %43 = tpu.matmul %40, %42, %cst_48 {dimension_numbers = #tpu.dot_dimension_numbers<[1], [0], [0], [1], [0, 0, 1, 1], [], []>} : vector<256x49xbf16>, vector<49x307xbf16>, vector<256x307xf32> -> vector<256x307xf32>
    %44 = arith.addf %38, %43 : vector<256x307xf32>
    %c0_49 = arith.constant 0 : index
    %c0_50 = arith.constant 0 : index
    %45 = vector.load %arg5[%c0_49, %c0_50] : memref<256x307xf32, #tpu.memory_space<vmem>>, vector<256x307xf32>
    tpu.vector_store %arg5[%c0_49, %c0_50], %44 {strides = array<i32>} : memref<256x307xf32, #tpu.memory_space<vmem>>, vector<256x307xf32>,
    %c0_51 = arith.constant 0 : index
    %c0_52 = arith.constant 0 : index
    %46 = vector.load %arg5[%c0_51, %c0_52] : memref<256x307xf32, #tpu.memory_space<vmem>>, vector<256x307xf32>
    %c6 = arith.constant 6 : index
    %c0_53 = arith.constant 0 : index
    %c0_54 = arith.constant 0 : index
    %47 = vector.load %arg2[%c6, %c0_53, %c0_54] : memref<9x256x49xbf16, #tpu.memory_space<vmem>>, vector<1x256x49xbf16>
    %48 = vector.shape_cast %47 : vector<1x256x49xbf16> to vector<256x49xbf16>
    %c0_55 = arith.constant 0 : index
    %c0_56 = arith.constant 0 : index
    %c49 = arith.constant 49 : index
    %49 = vector.load %arg1[%c0_55, %c0_56, %c49] : memref<1x49x384xbf16, #tpu.memory_space<vmem>>, vector<1x49x307xbf16>
    %50 = vector.shape_cast %49 : vector<1x49x307xbf16> to vector<49x307xbf16>
    %cst_57 = arith.constant dense<0.000000e+00> : vector<256x307xf32>
    %51 = tpu.matmul %48, %50, %cst_57 {dimension_numbers = #tpu.dot_dimension_numbers<[1], [0], [0], [1], [0, 0, 1, 1], [], []>} : vector<256x49xbf16>, vector<49x307xbf16>, vector<256x307xf32> -> vector<256x307xf32>
    %52 = arith.addf %46, %51 : vector<256x307xf32>
    %c0_58 = arith.constant 0 : index
    %c0_59 = arith.constant 0 : index
    %53 = vector.load %arg5[%c0_58, %c0_59] : memref<256x307xf32, #tpu.memory_space<vmem>>, vector<256x307xf32>
    tpu.vector_store %arg5[%c0_58, %c0_59], %52 {strides = array<i32>} : memref<256x307xf32, #tpu.memory_space<vmem>>, vector<256x307xf32>,
    %c0_60 = arith.constant 0 : index
    %c0_61 = arith.constant 0 : index
    %54 = vector.load %arg5[%c0_60, %c0_61] : memref<256x307xf32, #tpu.memory_space<vmem>>, vector<256x307xf32>
    %c7 = arith.constant 7 : index
    %c0_62 = arith.constant 0 : index
    %c0_63 = arith.constant 0 : index
    %55 = vector.load %arg2[%c7, %c0_62, %c0_63] : memref<9x256x49xbf16, #tpu.memory_space<vmem>>, vector<1x256x49xbf16>
    %56 = vector.shape_cast %55 : vector<1x256x49xbf16> to vector<256x49xbf16>
    %c0_64 = arith.constant 0 : index
    %c0_65 = arith.constant 0 : index
    %c50 = arith.constant 50 : index
    %57 = vector.load %arg1[%c0_64, %c0_65, %c50] : memref<1x49x384xbf16, #tpu.memory_space<vmem>>, vector<1x49x307xbf16>
    %58 = vector.shape_cast %57 : vector<1x49x307xbf16> to vector<49x307xbf16>
    %cst_66 = arith.constant dense<0.000000e+00> : vector<256x307xf32>
    %59 = tpu.matmul %56, %58, %cst_66 {dimension_numbers = #tpu.dot_dimension_numbers<[1], [0], [0], [1], [0, 0, 1, 1], [], []>} : vector<256x49xbf16>, vector<49x307xbf16>, vector<256x307xf32> -> vector<256x307xf32>
    %60 = arith.addf %54, %59 : vector<256x307xf32>
    %c0_67 = arith.constant 0 : index
    %c0_68 = arith.constant 0 : index
    %61 = vector.load %arg5[%c0_67, %c0_68] : memref<256x307xf32, #tpu.memory_space<vmem>>, vector<256x307xf32>
    tpu.vector_store %arg5[%c0_67, %c0_68], %60 {strides = array<i32>} : memref<256x307xf32, #tpu.memory_space<vmem>>, vector<256x307xf32>,
    %c0_69 = arith.constant 0 : index
    %c0_70 = arith.constant 0 : index
    %62 = vector.load %arg5[%c0_69, %c0_70] : memref<256x307xf32, #tpu.memory_space<vmem>>, vector<256x307xf32>
    %c8 = arith.constant 8 : index
    %c0_71 = arith.constant 0 : index
    %c0_72 = arith.constant 0 : index
    %63 = vector.load %arg2[%c8, %c0_71, %c0_72] : memref<9x256x49xbf16, #tpu.memory_space<vmem>>, vector<1x256x49xbf16>
    %64 = vector.shape_cast %63 : vector<1x256x49xbf16> to vector<256x49xbf16>
    %c0_73 = arith.constant 0 : index
    %c0_74 = arith.constant 0 : index
    %c51 = arith.constant 51 : index
    %65 = vector.load %arg1[%c0_73, %c0_74, %c51] : memref<1x49x384xbf16, #tpu.memory_space<vmem>>, vector<1x49x307xbf16>
    %66 = vector.shape_cast %65 : vector<1x49x307xbf16> to vector<49x307xbf16>
    %cst_75 = arith.constant dense<0.000000e+00> : vector<256x307xf32>
    %67 = tpu.matmul %64, %66, %cst_75 {dimension_numbers = #tpu.dot_dimension_numbers<[1], [0], [0], [1], [0, 0, 1, 1], [], []>} : vector<256x49xbf16>, vector<49x307xbf16>, vector<256x307xf32> -> vector<256x307xf32>
    %68 = arith.addf %62, %67 : vector<256x307xf32>
    %c0_76 = arith.constant 0 : index
    %c0_77 = arith.constant 0 : index
    %69 = vector.load %arg5[%c0_76, %c0_77] : memref<256x307xf32, #tpu.memory_space<vmem>>, vector<256x307xf32>
    tpu.vector_store %arg5[%c0_76, %c0_77], %68 {strides = array<i32>} : memref<256x307xf32, #tpu.memory_space<vmem>>, vector<256x307xf32>,
    %c0_78 = arith.constant 0 : index
    %c0_79 = arith.constant 0 : index
    %70 = vector.load %arg5[%c0_78, %c0_79] : memref<256x307xf32, #tpu.memory_space<vmem>>, vector<256x307xf32>
    %cst_80 = arith.constant 0.000000e+00 : f32
    %71 = vector.broadcast %cst_80 : f32 to vector<256x307xf32>
    %72 = arith.maximumf %70, %71 : vector<256x307xf32>
    %c0_81 = arith.constant 0 : index
    %c0_82 = arith.constant 0 : index
    %73 = vector.load %arg5[%c0_81, %c0_82] : memref<256x307xf32, #tpu.memory_space<vmem>>, vector<256x307xf32>
    tpu.vector_store %arg5[%c0_81, %c0_82], %72 {strides = array<i32>} : memref<256x307xf32, #tpu.memory_space<vmem>>, vector<256x307xf32>,
    %74 = tpu.iota {dimensions = array<i32: 1>} : vector<1x288xi32>
    %c18_i32 = arith.constant 18 : i32
    %c0_i32 = arith.constant 0 : i32
    %75 = arith.cmpi eq, %c18_i32, %c0_i32 : i32
    %c1_i32 = arith.constant 1 : i32
    %76 = arith.select %75, %c1_i32, %c18_i32 : i32
    %77 = vector.broadcast %76 : i32 to vector<1x288xi32>
    %78 = arith.remsi %74, %77 : vector<1x288xi32>
    %c0_i32_83 = arith.constant 0 : i32
    %79 = vector.broadcast %c0_i32_83 : i32 to vector<1x288xi32>
    %80 = arith.cmpi ne, %78, %79 : vector<1x288xi32>
    %c0_i32_84 = arith.constant 0 : i32
    %81 = vector.broadcast %c0_i32_84 : i32 to vector<1x288xi32>
    %82 = arith.cmpi slt, %78, %81 : vector<1x288xi32>
    %c0_i32_85 = arith.constant 0 : i32
    %83 = arith.cmpi slt, %76, %c0_i32_85 : i32
    %84 = vector.broadcast %83 : i1 to vector<1x288xi1>
    %85 = vector.broadcast %84 : vector<1x288xi1> to vector<1x288xi1>
    %86 = arith.xori %82, %85 : vector<1x288xi1>
    %87 = arith.andi %86, %80 : vector<1x288xi1>
    %88 = vector.broadcast %76 : i32 to vector<1x288xi32>
    %89 = arith.addi %78, %88 : vector<1x288xi32>
    %90 = arith.select %87, %89, %78 : vector<1x288xi1>, vector<1x288xi32>
    %c0_i32_86 = arith.constant 0 : i32
    %91 = vector.broadcast %c0_i32_86 : i32 to vector<1x288xi32>
    %92 = arith.cmpi eq, %90, %91 : vector<1x288xi32>
    %c18_i32_87 = arith.constant 18 : i32
    %93 = vector.broadcast %c18_i32_87 : i32 to vector<1x288xi32>
    %94 = arith.cmpi slt, %74, %93 : vector<1x288xi32>
    %c0_88 = arith.constant 0 : index
    %c19 = arith.constant 19 : index
    %95 = vector.load %arg5[%c0_88, %c19] : memref<256x307xf32, #tpu.memory_space<vmem>>, vector<64x288xf32>
    %c64 = arith.constant 64 : index
    %c19_89 = arith.constant 19 : index
    %96 = vector.load %arg5[%c64, %c19_89] : memref<256x307xf32, #tpu.memory_space<vmem>>, vector<64x288xf32>
    %97 = arith.maximumf %95, %96 : vector<64x288xf32>
    %c128 = arith.constant 128 : index
    %c19_90 = arith.constant 19 : index
    %98 = vector.load %arg5[%c128, %c19_90] : memref<256x307xf32, #tpu.memory_space<vmem>>, vector<64x288xf32>
    %99 = arith.maximumf %97, %98 : vector<64x288xf32>
    %c192 = arith.constant 192 : index
    %c19_91 = arith.constant 19 : index
    %100 = vector.load %arg5[%c192, %c19_91] : memref<256x307xf32, #tpu.memory_space<vmem>>, vector<64x288xf32>
    %101 = arith.maximumf %99, %100 : vector<64x288xf32>
    %c64_92 = arith.constant 64 : index
    %c18 = arith.constant 18 : index
    %102 = vector.load %arg5[%c64_92, %c18] : memref<256x307xf32, #tpu.memory_space<vmem>>, vector<64x288xf32>
    %cst_93 = arith.constant 0.000000e+00 : f32
    %103 = vector.shape_cast %92 : vector<1x288xi1> to vector<1x288xi1>
    %104 = vector.broadcast %103 : vector<1x288xi1> to vector<64x288xi1>
    %105 = vector.broadcast %cst_93 : f32 to vector<64x288xf32>
    %106 = arith.select %104, %105, %102 : vector<64x288xi1>, vector<64x288xf32>
    %107 = arith.maximumf %101, %106 : vector<64x288xf32>
    %c192_94 = arith.constant 192 : index
    %c18_95 = arith.constant 18 : index
    %108 = vector.load %arg5[%c192_94, %c18_95] : memref<256x307xf32, #tpu.memory_space<vmem>>, vector<64x288xf32>
    %cst_96 = arith.constant 0.000000e+00 : f32
    %109 = vector.shape_cast %92 : vector<1x288xi1> to vector<1x288xi1>
    %110 = vector.broadcast %109 : vector<1x288xi1> to vector<64x288xi1>
    %111 = vector.broadcast %cst_96 : f32 to vector<64x288xf32>
    %112 = arith.select %110, %111, %108 : vector<64x288xi1>, vector<64x288xf32>
    %113 = arith.maximumf %107, %112 : vector<64x288xf32>
    %c128_97 = arith.constant 128 : index
    %c1_98 = arith.constant 1 : index
    %114 = vector.load %arg5[%c128_97, %c1_98] : memref<256x307xf32, #tpu.memory_space<vmem>>, vector<64x288xf32>
    %cst_99 = arith.constant 0.000000e+00 : f32
    %115 = vector.shape_cast %94 : vector<1x288xi1> to vector<1x288xi1>
    %116 = vector.broadcast %115 : vector<1x288xi1> to vector<64x288xi1>
    %117 = vector.broadcast %cst_99 : f32 to vector<64x288xf32>
    %118 = arith.select %116, %117, %114 : vector<64x288xi1>, vector<64x288xf32>
    %119 = arith.maximumf %113, %118 : vector<64x288xf32>
    %c192_100 = arith.constant 192 : index
    %c1_101 = arith.constant 1 : index
    %120 = vector.load %arg5[%c192_100, %c1_101] : memref<256x307xf32, #tpu.memory_space<vmem>>, vector<64x288xf32>
    %cst_102 = arith.constant 0.000000e+00 : f32
    %121 = vector.shape_cast %94 : vector<1x288xi1> to vector<1x288xi1>
    %122 = vector.broadcast %121 : vector<1x288xi1> to vector<64x288xi1>
    %123 = vector.broadcast %cst_102 : f32 to vector<64x288xf32>
    %124 = arith.select %122, %123, %120 : vector<64x288xi1>, vector<64x288xf32>
    %125 = arith.maximumf %119, %124 : vector<64x288xf32>
    %126 = arith.ori %94, %92 : vector<1x288xi1>
    %c192_103 = arith.constant 192 : index
    %c0_104 = arith.constant 0 : index
    %127 = vector.load %arg5[%c192_103, %c0_104] : memref<256x307xf32, #tpu.memory_space<vmem>>, vector<64x288xf32>
    %cst_105 = arith.constant 0.000000e+00 : f32
    %128 = vector.shape_cast %126 : vector<1x288xi1> to vector<1x288xi1>
    %129 = vector.broadcast %128 : vector<1x288xi1> to vector<64x288xi1>
    %130 = vector.broadcast %cst_105 : f32 to vector<64x288xf32>
    %131 = arith.select %129, %130, %127 : vector<64x288xi1>, vector<64x288xf32>
    %132 = arith.maximumf %125, %131 : vector<64x288xf32>
    %c0_106 = arith.constant 0 : index
    %c0_107 = arith.constant 0 : index
    %c0_108 = arith.constant 0 : index
    %133 = vector.load %arg3[%c0_106, %c0_107, %c0_108] : memref<1x8x288xf32, #tpu.memory_space<vmem>>, vector<1x8x288xf32>
    %134 = vector.shape_cast %133 : vector<1x8x288xf32> to vector<8x288xf32>
    %cst_109 = arith.constant dense<0.000000e+00> : vector<8x64xf32>
    %135 = tpu.matmul %134, %132, %cst_109 {dimension_numbers = #tpu.dot_dimension_numbers<[1], [1], [0], [0], [0, 0, 1, 0], [], []>} : vector<8x288xf32>, vector<64x288xf32>, vector<8x64xf32> -> vector<8x64xf32>
    %c0_110 = arith.constant 0 : index
    %c0_111 = arith.constant 0 : index
    %c0_112 = arith.constant 0 : index
    %136 = vector.load %arg4[%c0_110, %c0_111, %c0_112] : memref<1x8x64xf32, #tpu.memory_space<vmem>>, vector<1x8x64xf32>
    %137 = vector.shape_cast %136 : vector<1x8x64xf32> to vector<8x64xf32>
    %138 = vector.shape_cast %135 : vector<8x64xf32> to vector<1x8x64xf32>
    tpu.vector_store %arg4[%c0_110, %c0_111, %c0_112], %138 {strides = array<i32>} : memref<1x8x64xf32, #tpu.memory_space<vmem>>, vector<1x8x64xf32>,
    return
  }
  func.func @transform_0(%arg0: i32) -> (i32, i32, i32) {
    %c0_i32 = arith.constant 0 : i32
    %c0_i32_0 = arith.constant 0 : i32
    %c0_i32_1 = arith.constant 0 : i32
    return %arg0, %c0_i32, %c0_i32_0 : i32, i32, i32
  }
  func.func @transform_1(%arg0: i32) -> (i32, i32, i32) {
    %c0_i32 = arith.constant 0 : i32
    %c0_i32_0 = arith.constant 0 : i32
    %c0_i32_1 = arith.constant 0 : i32
    %c0_i32_2 = arith.constant 0 : i32
    return %c0_i32, %c0_i32_0, %c0_i32_1 : i32, i32, i32
  }
  func.func @transform_2(%arg0: i32) -> (i32, i32, i32) {
    %c0_i32 = arith.constant 0 : i32
    %c0_i32_0 = arith.constant 0 : i32
    %c0_i32_1 = arith.constant 0 : i32
    return %arg0, %c0_i32, %c0_i32_0 : i32, i32, i32
  }
  func.func @transform_3(%arg0: i32) -> (i32, i32, i32) {
    %c0_i32 = arith.constant 0 : i32
    %c0_i32_0 = arith.constant 0 : i32
    %c0_i32_1 = arith.constant 0 : i32
    return %arg0, %c0_i32, %c0_i32_0 : i32, i32, i32
  }
}

</mosaic_0001>

<llo_original>
// kernel: forward.1
$region0: #{forward.1}
  #allocation0 [shape = 'u32[]', space=smem, size = 0x4, offset = 0x4, fixed_abs, tag = 'smem constant byte address 0x4 - core index']
  #allocation1 [shape = 'u32[72,128]{1,0:T(1,128)}', space=vmem, size = 0x9000, scoped, tag = 'internal scratch']
  #allocation2 [shape = 'f32[256,307]{1,0:T(8,128)}', space=vmem, size = 0x60000, scoped, tag = 'scratch operand']
  %s0 = inlined_call_operand.vmem [shape: bf16[2,49,384], index: 0, kind: input, shape index: {}]
  %s1 = inlined_call_operand.vmem [shape: bf16[9,256,49], index: 1, kind: input, shape index: {}]
  %s2 = inlined_call_operand.vmem [shape: f32[2,8,288], index: 2, kind: input, shape index: {}]
  %s3 = inlined_call_operand.hbm [shape: f32[2,8,64], index: 3, kind: output, shape index: {}]
  %s4 = sld [smem:[#allocation0]]
  $region45: #{forward.1} parent=0
    _
  %s6 = ssub.s32 1, %s4
  %s7 = scalar_select 0, %s6, %s4
  $region1: #{forward.1} parent=0
    #allocation3 [shape = 'u8[8192]{0}', space=vmem, size = 0x2000, scoped, tag = 'output window, operand 0']
    #allocation4 [shape = 's32[2]{0}', space=sflag, size = 0x8, scoped, tag = 'scoped memory for forward.1']
    %8 = vsyncpa [#allocation4], 0
    %s9 = scalar_lea.sflag [#allocation4], 1
    %10 = vsyncpa %s9, 0
    loop: start=0, step=1, limit=4
    $region2: #{forward.1} parent=1 // loop_pre_header
      _
    $region3: #{forward.1} parent=1 // loop_header
      %s12 = sphi 0, %s16
      %p13 = scmp.ge.s32.totalorder %s12, 4
      %s22 = sphi 0, %s24
      %s25 = sphi 0, %s22
      %s26 = sphi 0, %s25
      %s42 = sphi 0, %s26
      %s46 = sphi 0, %s46
      %s48 = sphi 0, %s46
      %s49 = sphi 0, %s48
      %s63 = sphi 0, %s49
      %s69 = sphi 0, %s71
      %s72 = sphi 0, %s69
      %s73 = sphi 0, %s72
      %s89 = sphi 0, %s73
      %s95 = sphi 0, %s97
      %s98 = sphi 0, %s95
      %s99 = sphi 0, %s98
      %s115 = sphi 0, %s99
    $region4: #{forward.1} parent=1 // loop_header_branch
      %15 = sbr.rel (%p13) target = $region8
    $region5: #{forward.1} parent=1 // loop_body
      %s17 = ssub.s32 %s12, 1
      %s18 = ssub.s32 %s12, 2
      %s19 = sadd.s32 %s12, 1
      %s20 = ssub.s32 %s12, %s19
      %p21 = scmp.eq.s32.totalorder %s20, 0
      %s23 = sadd.s32 %s22, 1
      %s24 = scalar_select %p21, %s22, %s23
      %p27 = pneg %p21
      %p28 = scmp.eq.s32.totalorder %s12, 1
      %p29 = por %p27, %p28
      %p30 = scmp.ne.s32.totalorder %s22, %s25
      %p31 = scmp.eq.s32.totalorder %s12, 0
      %p32 = por %p30, %p31
      %p33 = scmp.ne.s32.totalorder %s22, %s25
      %p34 = scmp.eq.s32.totalorder %s17, 1
      %p35 = por %p33, %p34
      %p36 = scmp.ne.s32.totalorder %s25, %s26
      %p37 = scmp.eq.s32.totalorder %s17, 0
      %p38 = por %p36, %p37
      %p39 = scmp.ne.s32.totalorder %s25, %s26
      %p40 = scmp.eq.s32.totalorder %s18, 1
      %p41 = por %p39, %p40
      %p43 = scmp.ne.s32.totalorder %s26, %s42
      %p44 = scmp.eq.s32.totalorder %s18, 0
      %p45 = por %p43, %p44
      %s47 = sadd.s32 %s46, 1
      %p50 = scmp.eq.s32.totalorder %s12, 1
      %p51 = scmp.ne.s32.totalorder %s46, %s48
      %p52 = scmp.eq.s32.totalorder %s12, 0
      %p53 = por %p51, %p52
      %p54 = scmp.ne.s32.totalorder %s46, %s48
      %p55 = scmp.eq.s32.totalorder %s17, 1
      %p56 = por %p54, %p55
      %p57 = scmp.ne.s32.totalorder %s48, %s49
      %p58 = scmp.eq.s32.totalorder %s17, 0
      %p59 = por %p57, %p58
      %p60 = scmp.ne.s32.totalorder %s48, %s49
      %p61 = scmp.eq.s32.totalorder %s18, 1
      %p62 = por %p60, %p61
      %p64 = scmp.ne.s32.totalorder %s49, %s63
      %p65 = scmp.eq.s32.totalorder %s18, 0
      %p66 = por %p64, %p65
      %s67 = ssub.s32 %s12, %s19
      %p68 = scmp.eq.s32.totalorder %s67, 0
      %s70 = sadd.s32 %s69, 1
      %s71 = scalar_select %p68, %s69, %s70
      %p74 = pneg %p68
      %p75 = scmp.eq.s32.totalorder %s12, 1
      %p76 = por %p74, %p75
      %p77 = scmp.ne.s32.totalorder %s69, %s72
      %p78 = scmp.eq.s32.totalorder %s12, 0
      %p79 = por %p77, %p78
      %p80 = scmp.ne.s32.totalorder %s69, %s72
      %p81 = scmp.eq.s32.totalorder %s17, 1
      %p82 = por %p80, %p81
      %p83 = scmp.ne.s32.totalorder %s72, %s73
      %p84 = scmp.eq.s32.totalorder %s17, 0
      %p85 = por %p83, %p84
      %p86 = scmp.ne.s32.totalorder %s72, %s73
      %p87 = scmp.eq.s32.totalorder %s18, 1
      %p88 = por %p86, %p87
      %p90 = scmp.ne.s32.totalorder %s73, %s89
      %p91 = scmp.eq.s32.totalorder %s18, 0
      %p92 = por %p90, %p91
      %s93 = ssub.s32 %s12, %s19
      %p94 = scmp.eq.s32.totalorder %s93, 0
      %s96 = sadd.s32 %s95, 1
      %s97 = scalar_select %p94, %s95, %s96
      %p100 = pneg %p94
      %p101 = scmp.eq.s32.totalorder %s12, 1
      %p102 = por %p100, %p101
      %p103 = scmp.ne.s32.totalorder %s95, %s98
      %p104 = scmp.eq.s32.totalorder %s12, 0
      %p105 = por %p103, %p104
      %p106 = scmp.ne.s32.totalorder %s95, %s98
      %p107 = scmp.eq.s32.totalorder %s17, 1
      %p108 = por %p106, %p107
      %p109 = scmp.ne.s32.totalorder %s98, %s99
      %p110 = scmp.eq.s32.totalorder %s17, 0
      %p111 = por %p109, %p110
      %p112 = scmp.ne.s32.totalorder %s98, %s99
      %p113 = scmp.eq.s32.totalorder %s18, 1
      %p114 = por %p112, %p113
      %p116 = scmp.ne.s32.totalorder %s99, %s115
      %p117 = scmp.eq.s32.totalorder %s18, 0
      %p118 = por %p116, %p117
      %p119 = scmp.le.s32.totalorder 1, %s12
      %p120 = scmp.lt.s32.totalorder %s12, 3
      %p121 = pnand %p119, %p120
      %p122 = pneg %p121
      // Predicated region
      $region9: #{forward.1} parent=5 // pred_check
        _
      $region10: #{forward.1} parent=5 // pred_check_branch
        %124 = sbr.rel (%p121) target = $region12
      $region11: #{forward.1} parent=5 // pred_region
        %s125 = ssub.s32 %s12, 1
        // Predicated region
        $region13: #{forward.1} parent=11 // pred_check
          %p126 = pneg %p59
        $region14: #{forward.1} parent=11 // pred_check_branch
          %128 = sbr.rel (%p126) target = $region16
        $region15: #{forward.1} parent=11 // pred_region
          _
        $region16: #{forward.1} parent=11 // pred_fallthru
          _
      $region12: #{forward.1} parent=5 // pred_fallthru
        _
      %p129 = scmp.lt.s32.totalorder %s12, 2
      // Predicated region
      $region17: #{forward.1} parent=5 // pred_check
        %p130 = pneg %p129
      $region18: #{forward.1} parent=5 // pred_check_branch
        %132 = sbr.rel (%p130) target = $region20
      $region19: #{forward.1} parent=5 // pred_region
        // Predicated region
        $region21: #{forward.1} parent=19 // pred_check
          %p133 = pneg %p32
        $region22: #{forward.1} parent=19 // pred_check_branch
          %135 = sbr.rel (%p133) target = $region24
        $region23: #{forward.1} parent=19 // pred_region
          %p136 = scmp.lt.s32.totalorder %s12, 1
          %s137 = scalar_select %p136, %s12, 1
          %s138 = smul.addr %s137, 21
          %s139 = smul.addr %s138, 4
          %s140 = scalar_lea.vmem %s0, %s139
        $region24: #{forward.1} parent=19 // pred_fallthru
          _
        // Predicated region
        $region25: #{forward.1} parent=19 // pred_check
          %p141 = pneg %p79
        $region26: #{forward.1} parent=19 // pred_check_branch
          %143 = sbr.rel (%p141) target = $region28
        $region27: #{forward.1} parent=19 // pred_region
          %p144 = scmp.lt.s32.totalorder %s12, 1
          %s145 = scalar_select %p144, %s12, 1
          %s146 = smul.addr %s145, 3
          %s147 = smul.addr %s146, 8
          %s148 = scalar_lea.vmem %s2, %s147
        $region28: #{forward.1} parent=19 // pred_fallthru
          _
      $region20: #{forward.1} parent=5 // pred_fallthru
        _
      %p149 = scmp.le.s32.totalorder 1, %s12
      %p150 = scmp.lt.s32.totalorder %s12, 3
      %p151 = pnand %p149, %p150
      %p152 = pneg %p151
      // Predicated region
      $region29: #{forward.1} parent=5 // pred_check
        _
      $region30: #{forward.1} parent=5 // pred_check_branch
        %154 = sbr.rel (%p151) target = $region32
      $region31: #{forward.1} parent=5 // pred_region
        %s155 = ssub.s32 %s12, 1
        %p156 = scmp.lt.s32.totalorder %s17, 1
        %s157 = scalar_select %p156, %s17, 1
        %s158 = smul.addr %s157, 21
        %s159 = smul.addr %s158, 4
        %s160 = scalar_lea.vmem %s0, %s159
        %p161 = pneg %p38
        %p162 = pneg %p35
        %p163 = pneg %p59
        %p164 = pneg %p56
        %p165 = scmp.lt.s32.totalorder %s17, 1
        %s166 = scalar_select %p165, %s17, 1
        %s167 = smul.addr %s166, 3
        %s168 = smul.addr %s167, 8
        %s169 = scalar_lea.vmem %s2, %s168
        %p170 = pneg %p85
        %p171 = pneg %p82
        %p172 = pneg %p111
        %p173 = pneg %p108
        %s174 = sand.u32 %s98, 1
        %s175 = scalar_lea.sflag [#allocation4], %s174
        %s176 = sand.u32 %s98, 1
        %s177 = smul.addr %s176, 8
        %s178 = scalar_lea.vmem [#allocation3], %s177
        %p179 = scmp.lt.s32.totalorder %s17, 1
        %s180 = scalar_select %p179, %s17, 1
        %s181 = smul.addr %s180, 21
        %s182 = smul.addr %s181, 4
        %s183 = scalar_lea.vmem %s0, %s182
        %p184 = scmp.lt.s32.totalorder %s17, 1
        %s185 = scalar_select %p184, %s17, 1
        %s186 = smul.addr %s185, 3
        %s187 = smul.addr %s186, 8
        %s188 = scalar_lea.vmem %s2, %s187
        %v190 = vld [vmem:[%s1] sm:$0xf]
        %v191 = vld [vmem:[%s1 + $0x4] sm:$0xf]
        %v192 = vld [vmem:[%s1 + $0x8] sm:$0xf]
        %v193 = vld [vmem:[%s1 + $0xc] sm:$0xf]
        %v194 = vld [vmem:[%s1 + $0x10] sm:$0xf]
        %v195 = vld [vmem:[%s1 + $0x14] sm:$0xf]
        %v196 = vld [vmem:[%s1 + $0x18] sm:$0xf]
        %v197 = vld [vmem:[%s1 + $0x1c] sm:$0xf]
        %v198 = vld [vmem:[%s1 + $0x20] sm:$0xf]
        %v199 = vld [vmem:[%s1 + $0x24] sm:$0xf]
        %v200 = vld [vmem:[%s1 + $0x28] sm:$0xf]
        %v201 = vld [vmem:[%s1 + $0x2c] sm:$0xf]
        %v202 = vld [vmem:[%s1 + $0x30] sm:$0xf]
        %v203 = vld [vmem:[%s1 + $0x34] sm:$0xf]
        %v204 = vld [vmem:[%s1 + $0x38] sm:$0xf]
        %v205 = vld [vmem:[%s1 + $0x3c] sm:$0xf]
        %v206 = vld [vmem:[%s1 + $0x40] sm:$0xf]
        %v207 = vld [vmem:[%s1 + $0x44] sm:$0xf]
        %v208 = vld [vmem:[%s1 + $0x48] sm:$0xf]
        %v209 = vld [vmem:[%s1 + $0x4c] sm:$0xf]
        %v210 = vld [vmem:[%s1 + $0x50] sm:$0xf]
        %v211 = vld [vmem:[%s1 + $0x54] sm:$0xf]
        %v212 = vld [vmem:[%s1 + $0x58] sm:$0xf]
        %v213 = vld [vmem:[%s1 + $0x5c] sm:$0xf]
        %v214 = vld [vmem:[%s1 + $0x60] sm:$0xf]
        %v215 = vld [vmem:[%s1 + $0x64] sm:$0xf]
        %v216 = vld [vmem:[%s1 + $0x68] sm:$0xf]
        %v217 = vld [vmem:[%s1 + $0x6c] sm:$0xf]
        %v218 = vld [vmem:[%s1 + $0x70] sm:$0xf]
        %v219 = vld [vmem:[%s1 + $0x74] sm:$0xf]
        %v220 = vld [vmem:[%s1 + $0x78] sm:$0xf]
        %v221 = vld [vmem:[%s1 + $0x7c] sm:$0xf]
        %v222 = vld [vmem:[%s183] sm:$0xff]
        %v223 = vld [vmem:[%s183 + $0x8] sm:$0xf]
        %v224 = vld [vmem:[%s183 + $0xc] sm:$0xff]
        %v225 = vld [vmem:[%s183 + $0x14] sm:$0xf]
        %v226 = vld [vmem:[%s183 + $0x18] sm:$0xff]
        %v227 = vld [vmem:[%s183 + $0x20] sm:$0xf]
        %v228 = vld [vmem:[%s183 + $0x24] sm:$0xff]
        %v229 = vld [vmem:[%s183 + $0x2c] sm:$0xf]
        %v230 = vld [vmem:[%s183 + $0x30] sm:$0xff]
        %v231 = vld [vmem:[%s183 + $0x38] sm:$0xf]
        %v232 = vld [vmem:[%s183 + $0x3c] sm:$0xff]
        %v233 = vld [vmem:[%s183 + $0x44] sm:$0xf]
        %v234 = vld [vmem:[%s183 + $0x48] sm:$0x11]
        %v235 = vld [vmem:[%s183 + $0x50] sm:$0x1]
        %v268 = vunpack.c.l.b16 %v190
        %v269 = vunpack.c.l.b16 %v191
        %v270 = vunpack.c.l.b16 %v192
        %v271 = vunpack.c.l.b16 %v193
        %v272 = vunpack.c.l.b16 %v194
        %v273 = vunpack.c.l.b16 %v195
        %v274 = vunpack.c.l.b16 %v196
        %v275 = vunpack.c.l.b16 %v197
        %v276 = vunpack.c.l.b16 %v198
        %v277 = vunpack.c.l.b16 %v199
        %v278 = vunpack.c.l.b16 %v200
        %v279 = vunpack.c.l.b16 %v201
        %v280 = vunpack.c.l.b16 %v202
        %v281 = vunpack.c.l.b16 %v203
        %v282 = vunpack.c.l.b16 %v204
        %v283 = vunpack.c.l.b16 %v205
        %v284 = vunpack.c.l.b16 %v206
        %v285 = vunpack.c.l.b16 %v207
        %v286 = vunpack.c.l.b16 %v208
        %v287 = vunpack.c.l.b16 %v209
        %v288 = vunpack.c.l.b16 %v210
        %v289 = vunpack.c.l.b16 %v211
        %v290 = vunpack.c.l.b16 %v212
        %v291 = vunpack.c.l.b16 %v213
        %v292 = vunpack.c.l.b16 %v214
        %v293 = vunpack.c.l.b16 %v215
        %v294 = vunpack.c.l.b16 %v216
        %v295 = vunpack.c.l.b16 %v217
        %v296 = vunpack.c.l.b16 %v218
        %v297 = vunpack.c.l.b16 %v219
        %v298 = vunpack.c.l.b16 %v220
        %v299 = vunpack.c.l.b16 %v221
        %v300 = vpack.c.b16 %v269, %v268
        %v301 = vpack.c.b16 %v271, %v270
        %v302 = vpack.c.b16 %v273, %v272
        %v303 = vpack.c.b16 %v275, %v274
        %v304 = vpack.c.b16 %v277, %v276
        %v305 = vpack.c.b16 %v279, %v278
        %v306 = vpack.c.b16 %v281, %v280
        %v307 = vpack.c.b16 %v283, %v282
        %v308 = vpack.c.b16 %v285, %v284
        %v309 = vpack.c.b16 %v287, %v286
        %v310 = vpack.c.b16 %v289, %v288
        %v311 = vpack.c.b16 %v291, %v290
        %v312 = vpack.c.b16 %v293, %v292
        %v313 = vpack.c.b16 %v295, %v294
        %v314 = vpack.c.b16 %v297, %v296
        %v315 = vpack.c.b16 %v299, %v298
        %v330 = vunpack.c.l.b16 %v222
        %v331 = vunpack.c.h.b16 %v222
        %v332 = vunpack.c.l.b16 %v223
        %v333 = vunpack.c.l.b16 %v224
        %v334 = vunpack.c.h.b16 %v224
        %v335 = vunpack.c.l.b16 %v225
        %v336 = vunpack.c.l.b16 %v226
        %v337 = vunpack.c.h.b16 %v226
        %v338 = vunpack.c.l.b16 %v227
        %v339 = vunpack.c.l.b16 %v228
        %v340 = vunpack.c.h.b16 %v228
        %v341 = vunpack.c.l.b16 %v229
        %v342 = vunpack.c.l.b16 %v230
        %v343 = vunpack.c.h.b16 %v230
        %v344 = vunpack.c.l.b16 %v231
        %v345 = vunpack.c.l.b16 %v232
        %v346 = vunpack.c.h.b16 %v232
        %v347 = vunpack.c.l.b16 %v233
        %v348 = vunpack.c.l.b16 %v234
        %v349 = vunpack.c.h.b16 %v234
        %v350 = vunpack.c.l.b16 %v235
        %v351 = vpack.c.b16 %v333, %v330
        %v352 = vpack.c.b16 %v334, %v331
        %v353 = vpack.c.b16 %v335, %v332
        %v354 = vpack.c.b16 %v339, %v336
        %v355 = vpack.c.b16 %v340, %v337
        %v356 = vpack.c.b16 %v341, %v338
        %v357 = vpack.c.b16 %v345, %v342
        %v358 = vpack.c.b16 %v346, %v343
        %v359 = vpack.c.b16 %v347, %v344
        %v360 = vpack.c.b16 %v348, %v348
        %v361 = vpack.c.b16 %v349, %v349
        %v362 = vpack.c.b16 %v350, %v350
        %363 = vrot.lane.b32.xlu0 %v351, 115
        %v364 = vpop.permute.xlu0 %363
        %365 = vrot.lane.b32.xlu0 %v352, 115
        %v366 = vpop.permute.xlu0 %365
        %367 = vrot.lane.b32.xlu0 %v353, 115
        %v368 = vpop.permute.xlu0 %367
        %369 = vrot.lane.b32.xlu0 %v354, 115
        %v370 = vpop.permute.xlu0 %369
        %371 = vrot.lane.b32.xlu0 %v355, 115
        %v372 = vpop.permute.xlu0 %371
        %373 = vrot.lane.b32.xlu0 %v356, 115
        %v374 = vpop.permute.xlu0 %373
        %375 = vrot.lane.b32.xlu0 %v357, 115
        %v376 = vpop.permute.xlu0 %375
        %377 = vrot.lane.b32.xlu0 %v358, 115
        %v378 = vpop.permute.xlu0 %377
        %379 = vrot.lane.b32.xlu0 %v359, 115
        %v380 = vpop.permute.xlu0 %379
        %381 = vrot.lane.b32.xlu0 %v360, 115
        %v382 = vpop.permute.xlu0 %381
        %383 = vrot.lane.b32.xlu0 %v361, 115
        %v384 = vpop.permute.xlu0 %383
        %385 = vrot.lane.b32.xlu0 %v362, 115
        %v386 = vpop.permute.xlu0 %385
        %vm387 = vcmask 941056
        %v388 = vsel %vm387, %v364, %v366
        %v389 = vsel %vm387, %v366, %v368
        %v390 = vsel %vm387, %v370, %v372
        %v391 = vsel %vm387, %v372, %v374
        %v392 = vsel %vm387, %v376, %v378
        %v393 = vsel %vm387, %v378, %v380
        %v394 = vsel %vm387, %v382, %v384
        %v395 = vsel %vm387, %v384, %v386
        %vm405 = vcmask 400384
        %v407 = vsel %vm405, %v300, 0
        %v410 = vsel %vm405, %v301, 0
        %v413 = vsel %vm405, %v302, 0
        %v416 = vsel %vm405, %v303, 0
        %v419 = vsel %vm405, %v304, 0
        %v422 = vsel %vm405, %v305, 0
        %v425 = vsel %vm405, %v306, 0
        %v428 = vsel %vm405, %v307, 0
        %v431 = vsel %vm405, %v308, 0
        %v434 = vsel %vm405, %v309, 0
        %v437 = vsel %vm405, %v310, 0
        %v440 = vsel %vm405, %v311, 0
        %v443 = vsel %vm405, %v312, 0
        %v446 = vsel %vm405, %v313, 0
        %v449 = vsel %vm405, %v314, 0
        %v452 = vsel %vm405, %v315, 0
        %vm454 = vcmask 1040384
        %v455 = vsel 0, 4294967295, 65535
        %v456 = vsel %vm454, %v455, 0
        %v458 = vand.u32 %v394, %v456
        %v461 = vand.u32 %v395, %v456
        %v464 = vand.u32 %v386, %v456
        %466 = vmatpush.bf16.msra.mxu0 0
        %467 = vmatpush.bf16.msra.mxu0 0
        %468 = vmatpush.bf16.msra.mxu0 0
        %469 = vmatpush.bf16.msra.mxu0 0
        %470 = vmatpush.bf16.msra.mxu0 %v458
        %471 = vmatpush.bf16.msra.mxu0 %v392
        %472 = vmatpush.bf16.msra.mxu0 %v390
        %473 = vmatpush.bf16.msra.mxu0 %v388
        %474 = vmatmul.bf16.gmra.mxu0 %v407
        %v475 = vpop.f32.mrf.mxu0
        %v476 = vadd.f32 0.0, %v475
        %v477 = vpop.f32.mrf.mxu0
        %v478 = vadd.f32 0.0, %v477
        %479 = vmatmul.bf16.gmra.mxu0 %v410
        %v480 = vpop.f32.mrf.mxu0
        %v481 = vadd.f32 0.0, %v480
        %v482 = vpop.f32.mrf.mxu0
        %v483 = vadd.f32 0.0, %v482
        %484 = vmatmul.bf16.gmra.mxu0 %v413
        %v485 = vpop.f32.mrf.mxu0
        %v486 = vadd.f32 0.0, %v485
        %v487 = vpop.f32.mrf.mxu0
        %v488 = vadd.f32 0.0, %v487
        %489 = vmatmul.bf16.gmra.mxu0 %v416
        %v490 = vpop.f32.mrf.mxu0
        %v491 = vadd.f32 0.0, %v490
        %v492 = vpop.f32.mrf.mxu0
        %v493 = vadd.f32 0.0, %v492
        %494 = vmatmul.bf16.gmra.mxu0 %v419
        %v495 = vpop.f32.mrf.mxu0
        %v496 = vadd.f32 0.0, %v495
        %v497 = vpop.f32.mrf.mxu0
        %v498 = vadd.f32 0.0, %v497
        %499 = vmatmul.bf16.gmra.mxu0 %v422
        %v500 = vpop.f32.mrf.mxu0
        %v501 = vadd.f32 0.0, %v500
        %v502 = vpop.f32.mrf.mxu0
        %v503 = vadd.f32 0.0, %v502
        %504 = vmatmul.bf16.gmra.mxu0 %v425
        %v505 = vpop.f32.mrf.mxu0
        %v506 = vadd.f32 0.0, %v505
        %v507 = vpop.f32.mrf.mxu0
        %v508 = vadd.f32 0.0, %v507
        %509 = vmatmul.bf16.gmra.mxu0 %v428
        %v510 = vpop.f32.mrf.mxu0
        %v511 = vadd.f32 0.0, %v510
        %v512 = vpop.f32.mrf.mxu0
        %v513 = vadd.f32 0.0, %v512
        %514 = vmatmul.bf16.gmra.mxu0 %v431
        %v515 = vpop.f32.mrf.mxu0
        %v516 = vadd.f32 0.0, %v515
        %v517 = vpop.f32.mrf.mxu0
        %v518 = vadd.f32 0.0, %v517
        %519 = vmatmul.bf16.gmra.mxu0 %v434
        %v520 = vpop.f32.mrf.mxu0
        %v521 = vadd.f32 0.0, %v520
        %v522 = vpop.f32.mrf.mxu0
        %v523 = vadd.f32 0.0, %v522
        %524 = vmatmul.bf16.gmra.mxu0 %v437
        %v525 = vpop.f32.mrf.mxu0
        %v526 = vadd.f32 0.0, %v525
        %v527 = vpop.f32.mrf.mxu0
        %v528 = vadd.f32 0.0, %v527
        %529 = vmatmul.bf16.gmra.mxu0 %v440
        %v530 = vpop.f32.mrf.mxu0
        %v531 = vadd.f32 0.0, %v530
        %v532 = vpop.f32.mrf.mxu0
        %v533 = vadd.f32 0.0, %v532
        %534 = vmatmul.bf16.gmra.mxu0 %v443
        %v535 = vpop.f32.mrf.mxu0
        %v536 = vadd.f32 0.0, %v535
        %v537 = vpop.f32.mrf.mxu0
        %v538 = vadd.f32 0.0, %v537
        %539 = vmatmul.bf16.gmra.mxu0 %v446
        %v540 = vpop.f32.mrf.mxu0
        %v541 = vadd.f32 0.0, %v540
        %v542 = vpop.f32.mrf.mxu0
        %v543 = vadd.f32 0.0, %v542
        %544 = vmatmul.bf16.gmra.mxu0 %v449
        %v545 = vpop.f32.mrf.mxu0
        %v546 = vadd.f32 0.0, %v545
        %v547 = vpop.f32.mrf.mxu0
        %v548 = vadd.f32 0.0, %v547
        %549 = vmatmul.bf16.gmra.mxu0 %v452
        %v550 = vpop.f32.mrf.mxu0
        %v551 = vadd.f32 0.0, %v550
        %v552 = vpop.f32.mrf.mxu0
        %v553 = vadd.f32 0.0, %v552
        %554 = vdwg.mxu0
        %555 = vmatpush.bf16.msra.mxu0 0
        %556 = vmatpush.bf16.msra.mxu0 0
        %557 = vmatpush.bf16.msra.mxu0 0
        %558 = vmatpush.bf16.msra.mxu0 0
        %559 = vmatpush.bf16.msra.mxu0 %v461
        %560 = vmatpush.bf16.msra.mxu0 %v393
        %561 = vmatpush.bf16.msra.mxu0 %v391
        %562 = vmatpush.bf16.msra.mxu0 %v389
        %563 = vmatmul.bf16.gmra.mxu0 %v407
        %v564 = vpop.f32.mrf.mxu0
        %v565 = vadd.f32 0.0, %v564
        %v566 = vpop.f32.mrf.mxu0
        %v567 = vadd.f32 0.0, %v566
        %568 = vmatmul.bf16.gmra.mxu0 %v410
        %v569 = vpop.f32.mrf.mxu0
        %v570 = vadd.f32 0.0, %v569
        %v571 = vpop.f32.mrf.mxu0
        %v572 = vadd.f32 0.0, %v571
        %573 = vmatmul.bf16.gmra.mxu0 %v413
        %v574 = vpop.f32.mrf.mxu0
        %v575 = vadd.f32 0.0, %v574
        %v576 = vpop.f32.mrf.mxu0
        %v577 = vadd.f32 0.0, %v576
        %578 = vmatmul.bf16.gmra.mxu0 %v416
        %v579 = vpop.f32.mrf.mxu0
        %v580 = vadd.f32 0.0, %v579
        %v581 = vpop.f32.mrf.mxu0
        %v582 = vadd.f32 0.0, %v581
        %583 = vmatmul.bf16.gmra.mxu0 %v419
        %v584 = vpop.f32.mrf.mxu0
        %v585 = vadd.f32 0.0, %v584
        %v586 = vpop.f32.mrf.mxu0
        %v587 = vadd.f32 0.0, %v586
        %588 = vmatmul.bf16.gmra.mxu0 %v422
        %v589 = vpop.f32.mrf.mxu0
        %v590 = vadd.f32 0.0, %v589
        %v591 = vpop.f32.mrf.mxu0
        %v592 = vadd.f32 0.0, %v591
        %593 = vmatmul.bf16.gmra.mxu0 %v425
        %v594 = vpop.f32.mrf.mxu0
        %v595 = vadd.f32 0.0, %v594
        %v596 = vpop.f32.mrf.mxu0
        %v597 = vadd.f32 0.0, %v596
        %598 = vmatmul.bf16.gmra.mxu0 %v428
        %v599 = vpop.f32.mrf.mxu0
        %v600 = vadd.f32 0.0, %v599
        %v601 = vpop.f32.mrf.mxu0
        %v602 = vadd.f32 0.0, %v601
        %603 = vmatmul.bf16.gmra.mxu0 %v431
        %v604 = vpop.f32.mrf.mxu0
        %v605 = vadd.f32 0.0, %v604
        %v606 = vpop.f32.mrf.mxu0
        %v607 = vadd.f32 0.0, %v606
        %608 = vmatmul.bf16.gmra.mxu0 %v434
        %v609 = vpop.f32.mrf.mxu0
        %v610 = vadd.f32 0.0, %v609
        %v611 = vpop.f32.mrf.mxu0
        %v612 = vadd.f32 0.0, %v611
        %613 = vmatmul.bf16.gmra.mxu0 %v437
        %v614 = vpop.f32.mrf.mxu0
        %v615 = vadd.f32 0.0, %v614
        %v616 = vpop.f32.mrf.mxu0
        %v617 = vadd.f32 0.0, %v616
        %618 = vmatmul.bf16.gmra.mxu0 %v440
        %v619 = vpop.f32.mrf.mxu0
        %v620 = vadd.f32 0.0, %v619
        %v621 = vpop.f32.mrf.mxu0
        %v622 = vadd.f32 0.0, %v621
        %623 = vmatmul.bf16.gmra.mxu0 %v443
        %v624 = vpop.f32.mrf.mxu0
        %v625 = vadd.f32 0.0, %v624
        %v626 = vpop.f32.mrf.mxu0
        %v627 = vadd.f32 0.0, %v626
        %628 = vmatmul.bf16.gmra.mxu0 %v446
        %v629 = vpop.f32.mrf.mxu0
        %v630 = vadd.f32 0.0, %v629
        %v631 = vpop.f32.mrf.mxu0
        %v632 = vadd.f32 0.0, %v631
        %633 = vmatmul.bf16.gmra.mxu0 %v449
        %v634 = vpop.f32.mrf.mxu0
        %v635 = vadd.f32 0.0, %v634
        %v636 = vpop.f32.mrf.mxu0
        %v637 = vadd.f32 0.0, %v636
        %638 = vmatmul.bf16.gmra.mxu0 %v452
        %v639 = vpop.f32.mrf.mxu0
        %v640 = vadd.f32 0.0, %v639
        %v641 = vpop.f32.mrf.mxu0
        %v642 = vadd.f32 0.0, %v641
        %643 = vdwg.mxu0
        %644 = vmatpush.bf16.msra.mxu0 0
        %645 = vmatpush.bf16.msra.mxu0 0
        %646 = vmatpush.bf16.msra.mxu0 0
        %647 = vmatpush.bf16.msra.mxu0 0
        %648 = vmatpush.bf16.msra.mxu0 %v464
        %649 = vmatpush.bf16.msra.mxu0 %v380
        %650 = vmatpush.bf16.msra.mxu0 %v374
        %651 = vmatpush.bf16.msra.mxu0 %v368
        %652 = vmatmul.bf16.gmra.mxu0 %v407
        %v653 = vpop.f32.mrf.mxu0
        %v654 = vadd.f32 0.0, %v653
        %v655 = vpop.f32.mrf.mxu0
        %v656 = vadd.f32 0.0, %v655
        %657 = vmatmul.bf16.gmra.mxu0 %v410
        %v658 = vpop.f32.mrf.mxu0
        %v659 = vadd.f32 0.0, %v658
        %v660 = vpop.f32.mrf.mxu0
        %v661 = vadd.f32 0.0, %v660
        %662 = vmatmul.bf16.gmra.mxu0 %v413
        %v663 = vpop.f32.mrf.mxu0
        %v664 = vadd.f32 0.0, %v663
        %v665 = vpop.f32.mrf.mxu0
        %v666 = vadd.f32 0.0, %v665
        %667 = vmatmul.bf16.gmra.mxu0 %v416
        %v668 = vpop.f32.mrf.mxu0
        %v669 = vadd.f32 0.0, %v668
        %v670 = vpop.f32.mrf.mxu0
        %v671 = vadd.f32 0.0, %v670
        %672 = vmatmul.bf16.gmra.mxu0 %v419
        %v673 = vpop.f32.mrf.mxu0
        %v674 = vadd.f32 0.0, %v673
        %v675 = vpop.f32.mrf.mxu0
        %v676 = vadd.f32 0.0, %v675
        %677 = vmatmul.bf16.gmra.mxu0 %v422
        %v678 = vpop.f32.mrf.mxu0
        %v679 = vadd.f32 0.0, %v678
        %v680 = vpop.f32.mrf.mxu0
        %v681 = vadd.f32 0.0, %v680
        %682 = vmatmul.bf16.gmra.mxu0 %v425
        %v683 = vpop.f32.mrf.mxu0
        %v684 = vadd.f32 0.0, %v683
        %v685 = vpop.f32.mrf.mxu0
        %v686 = vadd.f32 0.0, %v685
        %687 = vmatmul.bf16.gmra.mxu0 %v428
        %v688 = vpop.f32.mrf.mxu0
        %v689 = vadd.f32 0.0, %v688
        %v690 = vpop.f32.mrf.mxu0
        %v691 = vadd.f32 0.0, %v690
        %692 = vmatmul.bf16.gmra.mxu0 %v431
        %v693 = vpop.f32.mrf.mxu0
        %v694 = vadd.f32 0.0, %v693
        %v695 = vpop.f32.mrf.mxu0
        %v696 = vadd.f32 0.0, %v695
        %697 = vmatmul.bf16.gmra.mxu0 %v434
        %v698 = vpop.f32.mrf.mxu0
        %v699 = vadd.f32 0.0, %v698
        %v700 = vpop.f32.mrf.mxu0
        %v701 = vadd.f32 0.0, %v700
        %702 = vmatmul.bf16.gmra.mxu0 %v437
        %v703 = vpop.f32.mrf.mxu0
        %v704 = vadd.f32 0.0, %v703
        %v705 = vpop.f32.mrf.mxu0
        %v706 = vadd.f32 0.0, %v705
        %707 = vmatmul.bf16.gmra.mxu0 %v440
        %v708 = vpop.f32.mrf.mxu0
        %v709 = vadd.f32 0.0, %v708
        %v710 = vpop.f32.mrf.mxu0
        %v711 = vadd.f32 0.0, %v710
        %712 = vmatmul.bf16.gmra.mxu0 %v443
        %v713 = vpop.f32.mrf.mxu0
        %v714 = vadd.f32 0.0, %v713
        %v715 = vpop.f32.mrf.mxu0
        %v716 = vadd.f32 0.0, %v715
        %717 = vmatmul.bf16.gmra.mxu0 %v446
        %v718 = vpop.f32.mrf.mxu0
        %v719 = vadd.f32 0.0, %v718
        %v720 = vpop.f32.mrf.mxu0
        %v721 = vadd.f32 0.0, %v720
        %722 = vmatmul.bf16.gmra.mxu0 %v449
        %v723 = vpop.f32.mrf.mxu0
        %v724 = vadd.f32 0.0, %v723
        %v725 = vpop.f32.mrf.mxu0
        %v726 = vadd.f32 0.0, %v725
        %727 = vmatmul.bf16.gmra.mxu0 %v452
        %v728 = vpop.f32.mrf.mxu0
        %v729 = vadd.f32 0.0, %v728
        %v730 = vpop.f32.mrf.mxu0
        %v731 = vadd.f32 0.0, %v730
        %732 = vdwg.mxu0
        %733 = vst [vmem:[#allocation2] sm:$0xff] %v476
        %734 = vst [vmem:[#allocation2 + $0x8] sm:$0xff] %v565
        %vm735 = vcmask 416768
        %736 = vst.msk [vmem:[#allocation2 + $0x10] sm:$0xff] %vm735, %v654
        %737 = vst [vmem:[#allocation2 + $0x18] sm:$0xff] %v478
        %738 = vst [vmem:[#allocation2 + $0x20] sm:$0xff] %v567
        %739 = vst.msk [vmem:[#allocation2 + $0x28] sm:$0xff] %vm735, %v656
        %740 = vst [vmem:[#allocation2 + $0x30] sm:$0xff] %v481
        %741 = vst [vmem:[#allocation2 + $0x38] sm:$0xff] %v570
        %742 = vst.msk [vmem:[#allocation2 + $0x40] sm:$0xff] %vm735, %v659
        %743 = vst [vmem:[#allocation2 + $0x48] sm:$0xff] %v483
        %744 = vst [vmem:[#allocation2 + $0x50] sm:$0xff] %v572
        %745 = vst.msk [vmem:[#allocation2 + $0x58] sm:$0xff] %vm735, %v661
        %746 = vst [vmem:[#allocation2 + $0x60] sm:$0xff] %v486
        %747 = vst [vmem:[#allocation2 + $0x68] sm:$0xff] %v575
        %748 = vst.msk [vmem:[#allocation2 + $0x70] sm:$0xff] %vm735, %v664
        %749 = vst [vmem:[#allocation2 + $0x78] sm:$0xff] %v488
        %750 = vst [vmem:[#allocation2 + $0x80] sm:$0xff] %v577
        %751 = vst.msk [vmem:[#allocation2 + $0x88] sm:$0xff] %vm735, %v666
        %752 = vst [vmem:[#allocation2 + $0x90] sm:$0xff] %v491
        %753 = vst [vmem:[#allocation2 + $0x98] sm:$0xff] %v580
        %754 = vst.msk [vmem:[#allocation2 + $0xa0] sm:$0xff] %vm735, %v669
        %755 = vst [vmem:[#allocation2 + $0xa8] sm:$0xff] %v493
        %756 = vst [vmem:[#allocation2 + $0xb0] sm:$0xff] %v582
        %757 = vst.msk [vmem:[#allocation2 + $0xb8] sm:$0xff] %vm735, %v671
        %758 = vst [vmem:[#allocation2 + $0xc0] sm:$0xff] %v496
        %759 = vst [vmem:[#allocation2 + $0xc8] sm:$0xff] %v585
        %760 = vst.msk [vmem:[#allocation2 + $0xd0] sm:$0xff] %vm735, %v674
        %761 = vst [vmem:[#allocation2 + $0xd8] sm:$0xff] %v498
        %762 = vst [vmem:[#allocation2 + $0xe0] sm:$0xff] %v587
        %763 = vst.msk [vmem:[#allocation2 + $0xe8] sm:$0xff] %vm735, %v676
        %764 = vst [vmem:[#allocation2 + $0xf0] sm:$0xff] %v501
        %765 = vst [vmem:[#allocation2 + $0xf8] sm:$0xff] %v590
        %766 = vst.msk [vmem:[#allocation2 + $0x100] sm:$0xff] %vm735, %v679
        %767 = vst [vmem:[#allocation2 + $0x108] sm:$0xff] %v503
        %768 = vst [vmem:[#allocation2 + $0x110] sm:$0xff] %v592
        %769 = vst.msk [vmem:[#allocation2 + $0x118] sm:$0xff] %vm735, %v681
        %770 = vst [vmem:[#allocation2 + $0x120] sm:$0xff] %v506
        %771 = vst [vmem:[#allocation2 + $0x128] sm:$0xff] %v595
        %772 = vst.msk [vmem:[#allocation2 + $0x130] sm:$0xff] %vm735, %v684
        %773 = vst [vmem:[#allocation2 + $0x138] sm:$0xff] %v508
        %774 = vst [vmem:[#allocation2 + $0x140] sm:$0xff] %v597
        %775 = vst.msk [vmem:[#allocation2 + $0x148] sm:$0xff] %vm735, %v686
        %776 = vst [vmem:[#allocation2 + $0x150] sm:$0xff] %v511
        %777 = vst [vmem:[#allocation2 + $0x158] sm:$0xff] %v600
        %778 = vst.msk [vmem:[#allocation2 + $0x160] sm:$0xff] %vm735, %v689
        %779 = vst [vmem:[#allocation2 + $0x168] sm:$0xff] %v513
        %780 = vst [vmem:[#allocation2 + $0x170] sm:$0xff] %v602
        %781 = vst.msk [vmem:[#allocation2 + $0x178] sm:$0xff] %vm735, %v691
        %782 = vst [vmem:[#allocation2 + $0x180] sm:$0xff] %v516
        %783 = vst [vmem:[#allocation2 + $0x188] sm:$0xff] %v605
        %784 = vst.msk [vmem:[#allocation2 + $0x190] sm:$0xff] %vm735, %v694
        %785 = vst [vmem:[#allocation2 + $0x198] sm:$0xff] %v518
        %786 = vst [vmem:[#allocation2 + $0x1a0] sm:$0xff] %v607
        %787 = vst.msk [vmem:[#allocation2 + $0x1a8] sm:$0xff] %vm735, %v696
        %788 = vst [vmem:[#allocation2 + $0x1b0] sm:$0xff] %v521
        %789 = vst [vmem:[#allocation2 + $0x1b8] sm:$0xff] %v610
        %790 = vst.msk [vmem:[#allocation2 + $0x1c0] sm:$0xff] %vm735, %v699
        %791 = vst [vmem:[#allocation2 + $0x1c8] sm:$0xff] %v523
        %792 = vst [vmem:[#allocation2 + $0x1d0] sm:$0xff] %v612
        %793 = vst.msk [vmem:[#allocation2 + $0x1d8] sm:$0xff] %vm735, %v701
        %794 = vst [vmem:[#allocation2 + $0x1e0] sm:$0xff] %v526
        %795 = vst [vmem:[#allocation2 + $0x1e8] sm:$0xff] %v615
        %796 = vst.msk [vmem:[#allocation2 + $0x1f0] sm:$0xff] %vm735, %v704
        %797 = vst [vmem:[#allocation2 + $0x1f8] sm:$0xff] %v528
        %798 = vst [vmem:[#allocation2 + $0x200] sm:$0xff] %v617
        %799 = vst.msk [vmem:[#allocation2 + $0x208] sm:$0xff] %vm735, %v706
        %800 = vst [vmem:[#allocation2 + $0x210] sm:$0xff] %v531
        %801 = vst [vmem:[#allocation2 + $0x218] sm:$0xff] %v620
        %802 = vst.msk [vmem:[#allocation2 + $0x220] sm:$0xff] %vm735, %v709
        %803 = vst [vmem:[#allocation2 + $0x228] sm:$0xff] %v533
        %804 = vst [vmem:[#allocation2 + $0x230] sm:$0xff] %v622
        %805 = vst.msk [vmem:[#allocation2 + $0x238] sm:$0xff] %vm735, %v711
        %806 = vst [vmem:[#allocation2 + $0x240] sm:$0xff] %v536
        %807 = vst [vmem:[#allocation2 + $0x248] sm:$0xff] %v625
        %808 = vst.msk [vmem:[#allocation2 + $0x250] sm:$0xff] %vm735, %v714
        %809 = vst [vmem:[#allocation2 + $0x258] sm:$0xff] %v538
        %810 = vst [vmem:[#allocation2 + $0x260] sm:$0xff] %v627
        %811 = vst.msk [vmem:[#allocation2 + $0x268] sm:$0xff] %vm735, %v716
        %812 = vst [vmem:[#allocation2 + $0x270] sm:$0xff] %v541
        %813 = vst [vmem:[#allocation2 + $0x278] sm:$0xff] %v630
        %814 = vst.msk [vmem:[#allocation2 + $0x280] sm:$0xff] %vm735, %v719
        %815 = vst [vmem:[#allocation2 + $0x288] sm:$0xff] %v543
        %816 = vst [vmem:[#allocation2 + $0x290] sm:$0xff] %v632
        %817 = vst.msk [vmem:[#allocation2 + $0x298] sm:$0xff] %vm735, %v721
        %818 = vst [vmem:[#allocation2 + $0x2a0] sm:$0xff] %v546
        %819 = vst [vmem:[#allocation2 + $0x2a8] sm:$0xff] %v635
        %820 = vst.msk [vmem:[#allocation2 + $0x2b0] sm:$0xff] %vm735, %v724
        %821 = vst [vmem:[#allocation2 + $0x2b8] sm:$0xff] %v548
        %822 = vst [vmem:[#allocation2 + $0x2c0] sm:$0xff] %v637
        %823 = vst.msk [vmem:[#allocation2 + $0x2c8] sm:$0xff] %vm735, %v726
        %824 = vst [vmem:[#allocation2 + $0x2d0] sm:$0xff] %v551
        %825 = vst [vmem:[#allocation2 + $0x2d8] sm:$0xff] %v640
        %826 = vst.msk [vmem:[#allocation2 + $0x2e0] sm:$0xff] %vm735, %v729
        %827 = vst [vmem:[#allocation2 + $0x2e8] sm:$0xff] %v553
        %828 = vst [vmem:[#allocation2 + $0x2f0] sm:$0xff] %v642
        %829 = vst.msk [vmem:[#allocation2 + $0x2f8] sm:$0xff] %vm735, %v731
        %v830 = vld [vmem:[#allocation2] sm:$0xff]
        %v831 = vld [vmem:[#allocation2 + $0x8] sm:$0xff]
        %v832 = vld [vmem:[#allocation2 + $0x10] sm:$0xff]
        %v833 = vld [vmem:[#allocation2 + $0x18] sm:$0xff]
        %v834 = vld [vmem:[#allocation2 + $0x20] sm:$0xff]
        %v835 = vld [vmem:[#allocation2 + $0x28] sm:$0xff]
        %v836 = vld [vmem:[#allocation2 + $0x30] sm:$0xff]
        %v837 = vld [vmem:[#allocation2 + $0x38] sm:$0xff]
        %v838 = vld [vmem:[#allocation2 + $0x40] sm:$0xff]
        %v839 = vld [vmem:[#allocation2 + $0x48] sm:$0xff]
        %v840 = vld [vmem:[#allocation2 + $0x50] sm:$0xff]
        %v841 = vld [vmem:[#allocation2 + $0x58] sm:$0xff]
        %v842 = vld [vmem:[#allocation2 + $0x60] sm:$0xff]
        %v843 = vld [vmem:[#allocation2 + $0x68] sm:$0xff]
        %v844 = vld [vmem:[#allocation2 + $0x70] sm:$0xff]
        %v845 = vld [vmem:[#allocation2 + $0x78] sm:$0xff]
        %v846 = vld [vmem:[#allocation2 + $0x80] sm:$0xff]
        %v847 = vld [vmem:[#allocation2 + $0x88] sm:$0xff]
        %v848 = vld [vmem:[#allocation2 + $0x90] sm:$0xff]
        %v849 = vld [vmem:[#allocation2 + $0x98] sm:$0xff]
        %v850 = vld [vmem:[#allocation2 + $0xa0] sm:$0xff]
        %v851 = vld [vmem:[#allocation2 + $0xa8] sm:$0xff]
        %v852 = vld [vmem:[#allocation2 + $0xb0] sm:$0xff]
        %v853 = vld [vmem:[#allocation2 + $0xb8] sm:$0xff]
        %v854 = vld [vmem:[#allocation2 + $0xc0] sm:$0xff]
        %v855 = vld [vmem:[#allocation2 + $0xc8] sm:$0xff]
        %v856 = vld [vmem:[#allocation2 + $0xd0] sm:$0xff]
        %v857 = vld [vmem:[#allocation2 + $0xd8] sm:$0xff]
        %v858 = vld [vmem:[#allocation2 + $0xe0] sm:$0xff]
        %v859 = vld [vmem:[#allocation2 + $0xe8] sm:$0xff]
        %v860 = vld [vmem:[#allocation2 + $0xf0] sm:$0xff]
        %v861 = vld [vmem:[#allocation2 + $0xf8] sm:$0xff]
        %v862 = vld [vmem:[#allocation2 + $0x100] sm:$0xff]
        %v863 = vld [vmem:[#allocation2 + $0x108] sm:$0xff]
        %v864 = vld [vmem:[#allocation2 + $0x110] sm:$0xff]
        %v865 = vld [vmem:[#allocation2 + $0x118] sm:$0xff]
        %v866 = vld [vmem:[#allocation2 + $0x120] sm:$0xff]
        %v867 = vld [vmem:[#allocation2 + $0x128] sm:$0xff]
        %v868 = vld [vmem:[#allocation2 + $0x130] sm:$0xff]
        %v869 = vld [vmem:[#allocation2 + $0x138] sm:$0xff]
        %v870 = vld [vmem:[#allocation2 + $0x140] sm:$0xff]
        %v871 = vld [vmem:[#allocation2 + $0x148] sm:$0xff]
        %v872 = vld [vmem:[#allocation2 + $0x150] sm:$0xff]
        %v873 = vld [vmem:[#allocation2 + $0x158] sm:$0xff]
        %v874 = vld [vmem:[#allocation2 + $0x160] sm:$0xff]
        %v875 = vld [vmem:[#allocation2 + $0x168] sm:$0xff]
        %v876 = vld [vmem:[#allocation2 + $0x170] sm:$0xff]
        %v877 = vld [vmem:[#allocation2 + $0x178] sm:$0xff]
        %v878 = vld [vmem:[#allocation2 + $0x180] sm:$0xff]
        %v879 = vld [vmem:[#allocation2 + $0x188] sm:$0xff]
        %v880 = vld [vmem:[#allocation2 + $0x190] sm:$0xff]
        %v881 = vld [vmem:[#allocation2 + $0x198] sm:$0xff]
        %v882 = vld [vmem:[#allocation2 + $0x1a0] sm:$0xff]
        %v883 = vld [vmem:[#allocation2 + $0x1a8] sm:$0xff]
        %v884 = vld [vmem:[#allocation2 + $0x1b0] sm:$0xff]
        %v885 = vld [vmem:[#allocation2 + $0x1b8] sm:$0xff]
        %v886 = vld [vmem:[#allocation2 + $0x1c0] sm:$0xff]
        %v887 = vld [vmem:[#allocation2 + $0x1c8] sm:$0xff]
        %v888 = vld [vmem:[#allocation2 + $0x1d0] sm:$0xff]
        %v889 = vld [vmem:[#allocation2 + $0x1d8] sm:$0xff]
        %v890 = vld [vmem:[#allocation2 + $0x1e0] sm:$0xff]
        %v891 = vld [vmem:[#allocation2 + $0x1e8] sm:$0xff]
        %v892 = vld [vmem:[#allocation2 + $0x1f0] sm:$0xff]
        %v893 = vld [vmem:[#allocation2 + $0x1f8] sm:$0xff]
        %v894 = vld [vmem:[#allocation2 + $0x200] sm:$0xff]
        %v895 = vld [vmem:[#allocation2 + $0x208] sm:$0xff]
        %v896 = vld [vmem:[#allocation2 + $0x210] sm:$0xff]
        %v897 = vld [vmem:[#allocation2 + $0x218] sm:$0xff]
        %v898 = vld [vmem:[#allocation2 + $0x220] sm:$0xff]
        %v899 = vld [vmem:[#allocation2 + $0x228] sm:$0xff]
        %v900 = vld [vmem:[#allocation2 + $0x230] sm:$0xff]
        %v901 = vld [vmem:[#allocation2 + $0x238] sm:$0xff]
        %v902 = vld [vmem:[#allocation2 + $0x240] sm:$0xff]
        %v903 = vld [vmem:[#allocation2 + $0x248] sm:$0xff]
        %v904 = vld [vmem:[#allocation2 + $0x250] sm:$0xff]
        %v905 = vld [vmem:[#allocation2 + $0x258] sm:$0xff]
        %v906 = vld [vmem:[#allocation2 + $0x260] sm:$0xff]
        %v907 = vld [vmem:[#allocation2 + $0x268] sm:$0xff]
        %v908 = vld [vmem:[#allocation2 + $0x270] sm:$0xff]
        %v909 = vld [vmem:[#allocation2 + $0x278] sm:$0xff]
        %v910 = vld [vmem:[#allocation2 + $0x280] sm:$0xff]
        %v911 = vld [vmem:[#allocation2 + $0x288] sm:$0xff]
        %v912 = vld [vmem:[#allocation2 + $0x290] sm:$0xff]
        %v913 = vld [vmem:[#allocation2 + $0x298] sm:$0xff]
        %v914 = vld [vmem:[#allocation2 + $0x2a0] sm:$0xff]
        %v915 = vld [vmem:[#allocation2 + $0x2a8] sm:$0xff]
        %v916 = vld [vmem:[#allocation2 + $0x2b0] sm:$0xff]
        %v917 = vld [vmem:[#allocation2 + $0x2b8] sm:$0xff]
        %v918 = vld [vmem:[#allocation2 + $0x2c0] sm:$0xff]
        %v919 = vld [vmem:[#allocation2 + $0x2c8] sm:$0xff]
        %v920 = vld [vmem:[#allocation2 + $0x2d0] sm:$0xff]
        %v921 = vld [vmem:[#allocation2 + $0x2d8] sm:$0xff]
        %v922 = vld [vmem:[#allocation2 + $0x2e0] sm:$0xff]
        %v923 = vld [vmem:[#allocation2 + $0x2e8] sm:$0xff]
        %v924 = vld [vmem:[#allocation2 + $0x2f0] sm:$0xff]
        %v925 = vld [vmem:[#allocation2 + $0x2f8] sm:$0xff]
        %s926 = scalar_lea.vmem %s1, 128
        %v927 = vld [vmem:[%s926] sm:$0xf]
        %v928 = vld [vmem:[%s926 + $0x4] sm:$0xf]
        %v929 = vld [vmem:[%s926 + $0x8] sm:$0xf]
        %v930 = vld [vmem:[%s926 + $0xc] sm:$0xf]
        %v931 = vld [vmem:[%s926 + $0x10] sm:$0xf]
        %v932 = vld [vmem:[%s926 + $0x14] sm:$0xf]
        %v933 = vld [vmem:[%s926 + $0x18] sm:$0xf]
        %v934 = vld [vmem:[%s926 + $0x1c] sm:$0xf]
        %v935 = vld [vmem:[%s926 + $0x20] sm:$0xf]
        %v936 = vld [vmem:[%s926 + $0x24] sm:$0xf]
        %v937 = vld [vmem:[%s926 + $0x28] sm:$0xf]
        %v938 = vld [vmem:[%s926 + $0x2c] sm:$0xf]
        %v939 = vld [vmem:[%s926 + $0x30] sm:$0xf]
        %v940 = vld [vmem:[%s926 + $0x34] sm:$0xf]
        %v941 = vld [vmem:[%s926 + $0x38] sm:$0xf]
        %v942 = vld [vmem:[%s926 + $0x3c] sm:$0xf]
        %v943 = vld [vmem:[%s926 + $0x40] sm:$0xf]
        %v944 = vld [vmem:[%s926 + $0x44] sm:$0xf]
        %v945 = vld [vmem:[%s926 + $0x48] sm:$0xf]
        %v946 = vld [vmem:[%s926 + $0x4c] sm:$0xf]
        %v947 = vld [vmem:[%s926 + $0x50] sm:$0xf]
        %v948 = vld [vmem:[%s926 + $0x54] sm:$0xf]
        %v949 = vld [vmem:[%s926 + $0x58] sm:$0xf]
        %v950 = vld [vmem:[%s926 + $0x5c] sm:$0xf]
        %v951 = vld [vmem:[%s926 + $0x60] sm:$0xf]
        %v952 = vld [vmem:[%s926 + $0x64] sm:$0xf]
        %v953 = vld [vmem:[%s926 + $0x68] sm:$0xf]
        %v954 = vld [vmem:[%s926 + $0x6c] sm:$0xf]
        %v955 = vld [vmem:[%s926 + $0x70] sm:$0xf]
        %v956 = vld [vmem:[%s926 + $0x74] sm:$0xf]
        %v957 = vld [vmem:[%s926 + $0x78] sm:$0xf]
        %v958 = vld [vmem:[%s926 + $0x7c] sm:$0xf]
        %v959 = vld [vmem:[%s183] sm:$0xff]
        %v960 = vld [vmem:[%s183 + $0x8] sm:$0xf]
        %v961 = vld [vmem:[%s183 + $0xc] sm:$0xff]
        %v962 = vld [vmem:[%s183 + $0x14] sm:$0xf]
        %v963 = vld [vmem:[%s183 + $0x18] sm:$0xff]
        %v964 = vld [vmem:[%s183 + $0x20] sm:$0xf]
        %v965 = vld [vmem:[%s183 + $0x24] sm:$0xff]
        %v966 = vld [vmem:[%s183 + $0x2c] sm:$0xf]
        %v967 = vld [vmem:[%s183 + $0x30] sm:$0xff]
        %v968 = vld [vmem:[%s183 + $0x38] sm:$0xf]
        %v969 = vld [vmem:[%s183 + $0x3c] sm:$0xff]
        %v970 = vld [vmem:[%s183 + $0x44] sm:$0xf]
        %v971 = vld [vmem:[%s183 + $0x48] sm:$0x11]
        %v972 = vld [vmem:[%s183 + $0x50] sm:$0x1]
        %v1005 = vunpack.c.l.b16 %v927
        %v1006 = vunpack.c.l.b16 %v928
        %v1007 = vunpack.c.l.b16 %v929
        %v1008 = vunpack.c.l.b16 %v930
        %v1009 = vunpack.c.l.b16 %v931
        %v1010 = vunpack.c.l.b16 %v932
        %v1011 = vunpack.c.l.b16 %v933
        %v1012 = vunpack.c.l.b16 %v934
        %v1013 = vunpack.c.l.b16 %v935
        %v1014 = vunpack.c.l.b16 %v936
        %v1015 = vunpack.c.l.b16 %v937
        %v1016 = vunpack.c.l.b16 %v938
        %v1017 = vunpack.c.l.b16 %v939
        %v1018 = vunpack.c.l.b16 %v940
        %v1019 = vunpack.c.l.b16 %v941
        %v1020 = vunpack.c.l.b16 %v942
        %v1021 = vunpack.c.l.b16 %v943
        %v1022 = vunpack.c.l.b16 %v944
        %v1023 = vunpack.c.l.b16 %v945
        %v1024 = vunpack.c.l.b16 %v946
        %v1025 = vunpack.c.l.b16 %v947
        %v1026 = vunpack.c.l.b16 %v948
        %v1027 = vunpack.c.l.b16 %v949
        %v1028 = vunpack.c.l.b16 %v950
        %v1029 = vunpack.c.l.b16 %v951
        %v1030 = vunpack.c.l.b16 %v952
        %v1031 = vunpack.c.l.b16 %v953
        %v1032 = vunpack.c.l.b16 %v954
        %v1033 = vunpack.c.l.b16 %v955
        %v1034 = vunpack.c.l.b16 %v956
        %v1035 = vunpack.c.l.b16 %v957
        %v1036 = vunpack.c.l.b16 %v958
        %v1037 = vpack.c.b16 %v1006, %v1005
        %v1038 = vpack.c.b16 %v1008, %v1007
        %v1039 = vpack.c.b16 %v1010, %v1009
        %v1040 = vpack.c.b16 %v1012, %v1011
        %v1041 = vpack.c.b16 %v1014, %v1013
        %v1042 = vpack.c.b16 %v1016, %v1015
        %v1043 = vpack.c.b16 %v1018, %v1017
        %v1044 = vpack.c.b16 %v1020, %v1019
        %v1045 = vpack.c.b16 %v1022, %v1021
        %v1046 = vpack.c.b16 %v1024, %v1023
        %v1047 = vpack.c.b16 %v1026, %v1025
        %v1048 = vpack.c.b16 %v1028, %v1027
        %v1049 = vpack.c.b16 %v1030, %v1029
        %v1050 = vpack.c.b16 %v1032, %v1031
        %v1051 = vpack.c.b16 %v1034, %v1033
        %v1052 = vpack.c.b16 %v1036, %v1035
        %v1067 = vunpack.c.l.b16 %v959
        %v1068 = vunpack.c.h.b16 %v959
        %v1069 = vunpack.c.l.b16 %v960
        %v1070 = vunpack.c.l.b16 %v961
        %v1071 = vunpack.c.h.b16 %v961
        %v1072 = vunpack.c.l.b16 %v962
        %v1073 = vunpack.c.l.b16 %v963
        %v1074 = vunpack.c.h.b16 %v963
        %v1075 = vunpack.c.l.b16 %v964
        %v1076 = vunpack.c.l.b16 %v965
        %v1077 = vunpack.c.h.b16 %v965
        %v1078 = vunpack.c.l.b16 %v966
        %v1079 = vunpack.c.l.b16 %v967
        %v1080 = vunpack.c.h.b16 %v967
        %v1081 = vunpack.c.l.b16 %v968
        %v1082 = vunpack.c.l.b16 %v969
        %v1083 = vunpack.c.h.b16 %v969
        %v1084 = vunpack.c.l.b16 %v970
        %v1085 = vunpack.c.l.b16 %v971
        %v1086 = vunpack.c.h.b16 %v971
        %v1087 = vunpack.c.l.b16 %v972
        %v1088 = vpack.c.b16 %v1070, %v1067
        %v1089 = vpack.c.b16 %v1071, %v1068
        %v1090 = vpack.c.b16 %v1072, %v1069
        %v1091 = vpack.c.b16 %v1076, %v1073
        %v1092 = vpack.c.b16 %v1077, %v1074
        %v1093 = vpack.c.b16 %v1078, %v1075
        %v1094 = vpack.c.b16 %v1082, %v1079
        %v1095 = vpack.c.b16 %v1083, %v1080
        %v1096 = vpack.c.b16 %v1084, %v1081
        %v1097 = vpack.c.b16 %v1085, %v1085
        %v1098 = vpack.c.b16 %v1086, %v1086
        %v1099 = vpack.c.b16 %v1087, %v1087
        %1100 = vrot.lane.b32.xlu0 %v1088, 114
        %v1101 = vpop.permute.xlu0 %1100
        %1102 = vrot.lane.b32.xlu0 %v1089, 114
        %v1103 = vpop.permute.xlu0 %1102
        %1104 = vrot.lane.b32.xlu0 %v1090, 114
        %v1105 = vpop.permute.xlu0 %1104
        %1106 = vrot.lane.b32.xlu0 %v1091, 114
        %v1107 = vpop.permute.xlu0 %1106
        %1108 = vrot.lane.b32.xlu0 %v1092, 114
        %v1109 = vpop.permute.xlu0 %1108
        %1110 = vrot.lane.b32.xlu0 %v1093, 114
        %v1111 = vpop.permute.xlu0 %1110
        %1112 = vrot.lane.b32.xlu0 %v1094, 114
        %v1113 = vpop.permute.xlu0 %1112
        %1114 = vrot.lane.b32.xlu0 %v1095, 114
        %v1115 = vpop.permute.xlu0 %1114
        %1116 = vrot.lane.b32.xlu0 %v1096, 114
        %v1117 = vpop.permute.xlu0 %1116
        %1118 = vrot.lane.b32.xlu0 %v1097, 114
        %v1119 = vpop.permute.xlu0 %1118
        %1120 = vrot.lane.b32.xlu0 %v1098, 114
        %v1121 = vpop.permute.xlu0 %1120
        %1122 = vrot.lane.b32.xlu0 %v1099, 114
        %v1123 = vpop.permute.xlu0 %1122
        %vm1124 = vcmask 932864
        %v1125 = vsel %vm1124, %v1101, %v1103
        %v1126 = vsel %vm1124, %v1103, %v1105
        %v1127 = vsel %vm1124, %v1107, %v1109
        %v1128 = vsel %vm1124, %v1109, %v1111
        %v1129 = vsel %vm1124, %v1113, %v1115
        %v1130 = vsel %vm1124, %v1115, %v1117
        %v1131 = vsel %vm1124, %v1119, %v1121
        %v1132 = vsel %vm1124, %v1121, %v1123
        %v1143 = vsel %vm405, %v1037, 0
        %v1146 = vsel %vm405, %v1038, 0
        %v1149 = vsel %vm405, %v1039, 0
        %v1152 = vsel %vm405, %v1040, 0
        %v1155 = vsel %vm405, %v1041, 0
        %v1158 = vsel %vm405, %v1042, 0
        %v1161 = vsel %vm405, %v1043, 0
        %v1164 = vsel %vm405, %v1044, 0
        %v1167 = vsel %vm405, %v1045, 0
        %v1170 = vsel %vm405, %v1046, 0
        %v1173 = vsel %vm405, %v1047, 0
        %v1176 = vsel %vm405, %v1048, 0
        %v1179 = vsel %vm405, %v1049, 0
        %v1182 = vsel %vm405, %v1050, 0
        %v1185 = vsel %vm405, %v1051, 0
        %v1188 = vsel %vm405, %v1052, 0
        %v1191 = vand.u32 %v1131, %v456
        %v1194 = vand.u32 %v1132, %v456
        %v1197 = vand.u32 %v1123, %v456
        %1199 = vmatpush.bf16.msra.mxu0 0
        %1200 = vmatpush.bf16.msra.mxu0 0
        %1201 = vmatpush.bf16.msra.mxu0 0
        %1202 = vmatpush.bf16.msra.mxu0 0
        %1203 = vmatpush.bf16.msra.mxu0 %v1191
        %1204 = vmatpush.bf16.msra.mxu0 %v1129
        %1205 = vmatpush.bf16.msra.mxu0 %v1127
        %1206 = vmatpush.bf16.msra.mxu0 %v1125
        %1207 = vmatmul.bf16.gmra.mxu0 %v1143
        %v1208 = vpop.f32.mrf.mxu0
        %v1209 = vadd.f32 0.0, %v1208
        %v1210 = vpop.f32.mrf.mxu0
        %v1211 = vadd.f32 0.0, %v1210
        %1212 = vmatmul.bf16.gmra.mxu0 %v1146
        %v1213 = vpop.f32.mrf.mxu0
        %v1214 = vadd.f32 0.0, %v1213
        %v1215 = vpop.f32.mrf.mxu0
        %v1216 = vadd.f32 0.0, %v1215
        %1217 = vmatmul.bf16.gmra.mxu0 %v1149
        %v1218 = vpop.f32.mrf.mxu0
        %v1219 = vadd.f32 0.0, %v1218
        %v1220 = vpop.f32.mrf.mxu0
        %v1221 = vadd.f32 0.0, %v1220
        %1222 = vmatmul.bf16.gmra.mxu0 %v1152
        %v1223 = vpop.f32.mrf.mxu0
        %v1224 = vadd.f32 0.0, %v1223
        %v1225 = vpop.f32.mrf.mxu0
        %v1226 = vadd.f32 0.0, %v1225
        %1227 = vmatmul.bf16.gmra.mxu0 %v1155
        %v1228 = vpop.f32.mrf.mxu0
        %v1229 = vadd.f32 0.0, %v1228
        %v1230 = vpop.f32.mrf.mxu0
        %v1231 = vadd.f32 0.0, %v1230
        %1232 = vmatmul.bf16.gmra.mxu0 %v1158
        %v1233 = vpop.f32.mrf.mxu0
        %v1234 = vadd.f32 0.0, %v1233
        %v1235 = vpop.f32.mrf.mxu0
        %v1236 = vadd.f32 0.0, %v1235
        %1237 = vmatmul.bf16.gmra.mxu0 %v1161
        %v1238 = vpop.f32.mrf.mxu0
        %v1239 = vadd.f32 0.0, %v1238
        %v1240 = vpop.f32.mrf.mxu0
        %v1241 = vadd.f32 0.0, %v1240
        %1242 = vmatmul.bf16.gmra.mxu0 %v1164
        %v1243 = vpop.f32.mrf.mxu0
        %v1244 = vadd.f32 0.0, %v1243
        %v1245 = vpop.f32.mrf.mxu0
        %v1246 = vadd.f32 0.0, %v1245
        %1247 = vmatmul.bf16.gmra.mxu0 %v1167
        %v1248 = vpop.f32.mrf.mxu0
        %v1249 = vadd.f32 0.0, %v1248
        %v1250 = vpop.f32.mrf.mxu0
        %v1251 = vadd.f32 0.0, %v1250
        %1252 = vmatmul.bf16.gmra.mxu0 %v1170
        %v1253 = vpop.f32.mrf.mxu0
        %v1254 = vadd.f32 0.0, %v1253
        %v1255 = vpop.f32.mrf.mxu0
        %v1256 = vadd.f32 0.0, %v1255
        %1257 = vmatmul.bf16.gmra.mxu0 %v1173
        %v1258 = vpop.f32.mrf.mxu0
        %v1259 = vadd.f32 0.0, %v1258
        %v1260 = vpop.f32.mrf.mxu0
        %v1261 = vadd.f32 0.0, %v1260
        %1262 = vmatmul.bf16.gmra.mxu0 %v1176
        %v1263 = vpop.f32.mrf.mxu0
        %v1264 = vadd.f32 0.0, %v1263
        %v1265 = vpop.f32.mrf.mxu0
        %v1266 = vadd.f32 0.0, %v1265
        %1267 = vmatmul.bf16.gmra.mxu0 %v1179
        %v1268 = vpop.f32.mrf.mxu0
        %v1269 = vadd.f32 0.0, %v1268
        %v1270 = vpop.f32.mrf.mxu0
        %v1271 = vadd.f32 0.0, %v1270
        %1272 = vmatmul.bf16.gmra.mxu0 %v1182
        %v1273 = vpop.f32.mrf.mxu0
        %v1274 = vadd.f32 0.0, %v1273
        %v1275 = vpop.f32.mrf.mxu0
        %v1276 = vadd.f32 0.0, %v1275
        %1277 = vmatmul.bf16.gmra.mxu0 %v1185
        %v1278 = vpop.f32.mrf.mxu0
        %v1279 = vadd.f32 0.0, %v1278
        %v1280 = vpop.f32.mrf.mxu0
        %v1281 = vadd.f32 0.0, %v1280
        %1282 = vmatmul.bf16.gmra.mxu0 %v1188
        %v1283 = vpop.f32.mrf.mxu0
        %v1284 = vadd.f32 0.0, %v1283
        %v1285 = vpop.f32.mrf.mxu0
        %v1286 = vadd.f32 0.0, %v1285
        %1287 = vdwg.mxu0
        %1288 = vmatpush.bf16.msra.mxu0 0
        %1289 = vmatpush.bf16.msra.mxu0 0
        %1290 = vmatpush.bf16.msra.mxu0 0
        %1291 = vmatpush.bf16.msra.mxu0 0
        %1292 = vmatpush.bf16.msra.mxu0 %v1194
        %1293 = vmatpush.bf16.msra.mxu0 %v1130
        %1294 = vmatpush.bf16.msra.mxu0 %v1128
        %1295 = vmatpush.bf16.msra.mxu0 %v1126
        %1296 = vmatmul.bf16.gmra.mxu0 %v1143
        %v1297 = vpop.f32.mrf.mxu0
        %v1298 = vadd.f32 0.0, %v1297
        %v1299 = vpop.f32.mrf.mxu0
        %v1300 = vadd.f32 0.0, %v1299
        %1301 = vmatmul.bf16.gmra.mxu0 %v1146
        %v1302 = vpop.f32.mrf.mxu0
        %v1303 = vadd.f32 0.0, %v1302
        %v1304 = vpop.f32.mrf.mxu0
        %v1305 = vadd.f32 0.0, %v1304
        %1306 = vmatmul.bf16.gmra.mxu0 %v1149
        %v1307 = vpop.f32.mrf.mxu0
        %v1308 = vadd.f32 0.0, %v1307
        %v1309 = vpop.f32.mrf.mxu0
        %v1310 = vadd.f32 0.0, %v1309
        %1311 = vmatmul.bf16.gmra.mxu0 %v1152
        %v1312 = vpop.f32.mrf.mxu0
        %v1313 = vadd.f32 0.0, %v1312
        %v1314 = vpop.f32.mrf.mxu0
        %v1315 = vadd.f32 0.0, %v1314
        %1316 = vmatmul.bf16.gmra.mxu0 %v1155
        %v1317 = vpop.f32.mrf.mxu0
        %v1318 = vadd.f32 0.0, %v1317
        %v1319 = vpop.f32.mrf.mxu0
        %v1320 = vadd.f32 0.0, %v1319
        %1321 = vmatmul.bf16.gmra.mxu0 %v1158
        %v1322 = vpop.f32.mrf.mxu0
        %v1323 = vadd.f32 0.0, %v1322
        %v1324 = vpop.f32.mrf.mxu0
        %v1325 = vadd.f32 0.0, %v1324
        %1326 = vmatmul.bf16.gmra.mxu0 %v1161
        %v1327 = vpop.f32.mrf.mxu0
        %v1328 = vadd.f32 0.0, %v1327
        %v1329 = vpop.f32.mrf.mxu0
        %v1330 = vadd.f32 0.0, %v1329
        %1331 = vmatmul.bf16.gmra.mxu0 %v1164
        %v1332 = vpop.f32.mrf.mxu0
        %v1333 = vadd.f32 0.0, %v1332
        %v1334 = vpop.f32.mrf.mxu0
        %v1335 = vadd.f32 0.0, %v1334
        %1336 = vmatmul.bf16.gmra.mxu0 %v1167
        %v1337 = vpop.f32.mrf.mxu0
        %v1338 = vadd.f32 0.0, %v1337
        %v1339 = vpop.f32.mrf.mxu0
        %v1340 = vadd.f32 0.0, %v1339
        %1341 = vmatmul.bf16.gmra.mxu0 %v1170
        %v1342 = vpop.f32.mrf.mxu0
        %v1343 = vadd.f32 0.0, %v1342
        %v1344 = vpop.f32.mrf.mxu0
        %v1345 = vadd.f32 0.0, %v1344
        %1346 = vmatmul.bf16.gmra.mxu0 %v1173
        %v1347 = vpop.f32.mrf.mxu0
        %v1348 = vadd.f32 0.0, %v1347
        %v1349 = vpop.f32.mrf.mxu0
        %v1350 = vadd.f32 0.0, %v1349
        %1351 = vmatmul.bf16.gmra.mxu0 %v1176
        %v1352 = vpop.f32.mrf.mxu0
        %v1353 = vadd.f32 0.0, %v1352
        %v1354 = vpop.f32.mrf.mxu0
        %v1355 = vadd.f32 0.0, %v1354
        %1356 = vmatmul.bf16.gmra.mxu0 %v1179
        %v1357 = vpop.f32.mrf.mxu0
        %v1358 = vadd.f32 0.0, %v1357
        %v1359 = vpop.f32.mrf.mxu0
        %v1360 = vadd.f32 0.0, %v1359
        %1361 = vmatmul.bf16.gmra.mxu0 %v1182
        %v1362 = vpop.f32.mrf.mxu0
        %v1363 = vadd.f32 0.0, %v1362
        %v1364 = vpop.f32.mrf.mxu0
        %v1365 = vadd.f32 0.0, %v1364
        %1366 = vmatmul.bf16.gmra.mxu0 %v1185
        %v1367 = vpop.f32.mrf.mxu0
        %v1368 = vadd.f32 0.0, %v1367
        %v1369 = vpop.f32.mrf.mxu0
        %v1370 = vadd.f32 0.0, %v1369
        %1371 = vmatmul.bf16.gmra.mxu0 %v1188
        %v1372 = vpop.f32.mrf.mxu0
        %v1373 = vadd.f32 0.0, %v1372
        %v1374 = vpop.f32.mrf.mxu0
        %v1375 = vadd.f32 0.0, %v1374
        %1376 = vdwg.mxu0
        %1377 = vmatpush.bf16.msra.mxu0 0
        %1378 = vmatpush.bf16.msra.mxu0 0
        %1379 = vmatpush.bf16.msra.mxu0 0
        %1380 = vmatpush.bf16.msra.mxu0 0
        %1381 = vmatpush.bf16.msra.mxu0 %v1197
        %1382 = vmatpush.bf16.msra.mxu0 %v1117
        %1383 = vmatpush.bf16.msra.mxu0 %v1111
        %1384 = vmatpush.bf16.msra.mxu0 %v1105
        %1385 = vmatmul.bf16.gmra.mxu0 %v1143
        %v1386 = vpop.f32.mrf.mxu0
        %v1387 = vadd.f32 0.0, %v1386
        %v1388 = vpop.f32.mrf.mxu0
        %v1389 = vadd.f32 0.0, %v1388
        %1390 = vmatmul.bf16.gmra.mxu0 %v1146
        %v1391 = vpop.f32.mrf.mxu0
        %v1392 = vadd.f32 0.0, %v1391
        %v1393 = vpop.f32.mrf.mxu0
        %v1394 = vadd.f32 0.0, %v1393
        %1395 = vmatmul.bf16.gmra.mxu0 %v1149
        %v1396 = vpop.f32.mrf.mxu0
        %v1397 = vadd.f32 0.0, %v1396
        %v1398 = vpop.f32.mrf.mxu0
        %v1399 = vadd.f32 0.0, %v1398
        %1400 = vmatmul.bf16.gmra.mxu0 %v1152
        %v1401 = vpop.f32.mrf.mxu0
        %v1402 = vadd.f32 0.0, %v1401
        %v1403 = vpop.f32.mrf.mxu0
        %v1404 = vadd.f32 0.0, %v1403
        %1405 = vmatmul.bf16.gmra.mxu0 %v1155
        %v1406 = vpop.f32.mrf.mxu0
        %v1407 = vadd.f32 0.0, %v1406
        %v1408 = vpop.f32.mrf.mxu0
        %v1409 = vadd.f32 0.0, %v1408
        %1410 = vmatmul.bf16.gmra.mxu0 %v1158
        %v1411 = vpop.f32.mrf.mxu0
        %v1412 = vadd.f32 0.0, %v1411
        %v1413 = vpop.f32.mrf.mxu0
        %v1414 = vadd.f32 0.0, %v1413
        %1415 = vmatmul.bf16.gmra.mxu0 %v1161
        %v1416 = vpop.f32.mrf.mxu0
        %v1417 = vadd.f32 0.0, %v1416
        %v1418 = vpop.f32.mrf.mxu0
        %v1419 = vadd.f32 0.0, %v1418
        %1420 = vmatmul.bf16.gmra.mxu0 %v1164
        %v1421 = vpop.f32.mrf.mxu0
        %v1422 = vadd.f32 0.0, %v1421
        %v1423 = vpop.f32.mrf.mxu0
        %v1424 = vadd.f32 0.0, %v1423
        %1425 = vmatmul.bf16.gmra.mxu0 %v1167
        %v1426 = vpop.f32.mrf.mxu0
        %v1427 = vadd.f32 0.0, %v1426
        %v1428 = vpop.f32.mrf.mxu0
        %v1429 = vadd.f32 0.0, %v1428
        %1430 = vmatmul.bf16.gmra.mxu0 %v1170
        %v1431 = vpop.f32.mrf.mxu0
        %v1432 = vadd.f32 0.0, %v1431
        %v1433 = vpop.f32.mrf.mxu0
        %v1434 = vadd.f32 0.0, %v1433
        %1435 = vmatmul.bf16.gmra.mxu0 %v1173
        %v1436 = vpop.f32.mrf.mxu0
        %v1437 = vadd.f32 0.0, %v1436
        %v1438 = vpop.f32.mrf.mxu0
        %v1439 = vadd.f32 0.0, %v1438
        %1440 = vmatmul.bf16.gmra.mxu0 %v1176
        %v1441 = vpop.f32.mrf.mxu0
        %v1442 = vadd.f32 0.0, %v1441
        %v1443 = vpop.f32.mrf.mxu0
        %v1444 = vadd.f32 0.0, %v1443
        %1445 = vmatmul.bf16.gmra.mxu0 %v1179
        %v1446 = vpop.f32.mrf.mxu0
        %v1447 = vadd.f32 0.0, %v1446
        %v1448 = vpop.f32.mrf.mxu0
        %v1449 = vadd.f32 0.0, %v1448
        %1450 = vmatmul.bf16.gmra.mxu0 %v1182
        %v1451 = vpop.f32.mrf.mxu0
        %v1452 = vadd.f32 0.0, %v1451
        %v1453 = vpop.f32.mrf.mxu0
        %v1454 = vadd.f32 0.0, %v1453
        %1455 = vmatmul.bf16.gmra.mxu0 %v1185
        %v1456 = vpop.f32.mrf.mxu0
        %v1457 = vadd.f32 0.0, %v1456
        %v1458 = vpop.f32.mrf.mxu0
        %v1459 = vadd.f32 0.0, %v1458
        %1460 = vmatmul.bf16.gmra.mxu0 %v1188
        %v1461 = vpop.f32.mrf.mxu0
        %v1462 = vadd.f32 0.0, %v1461
        %v1463 = vpop.f32.mrf.mxu0
        %v1464 = vadd.f32 0.0, %v1463
        %1465 = vdwg.mxu0
        %v1466 = vadd.f32 %v830, %v1209
        %v1467 = vadd.f32 %v831, %v1298
        %v1468 = vadd.f32 %v832, %v1387
        %v1469 = vadd.f32 %v833, %v1211
        %v1470 = vadd.f32 %v834, %v1300
        %v1471 = vadd.f32 %v835, %v1389
        %v1472 = vadd.f32 %v836, %v1214
        %v1473 = vadd.f32 %v837, %v1303
        %v1474 = vadd.f32 %v838, %v1392
        %v1475 = vadd.f32 %v839, %v1216
        %v1476 = vadd.f32 %v840, %v1305
        %v1477 = vadd.f32 %v841, %v1394
        %v1478 = vadd.f32 %v842, %v1219
        %v1479 = vadd.f32 %v843, %v1308
        %v1480 = vadd.f32 %v844, %v1397
        %v1481 = vadd.f32 %v845, %v1221
        %v1482 = vadd.f32 %v846, %v1310
        %v1483 = vadd.f32 %v847, %v1399
        %v1484 = vadd.f32 %v848, %v1224
        %v1485 = vadd.f32 %v849, %v1313
        %v1486 = vadd.f32 %v850, %v1402
        %v1487 = vadd.f32 %v851, %v1226
        %v1488 = vadd.f32 %v852, %v1315
        %v1489 = vadd.f32 %v853, %v1404
        %v1490 = vadd.f32 %v854, %v1229
        %v1491 = vadd.f32 %v855, %v1318
        %v1492 = vadd.f32 %v856, %v1407
        %v1493 = vadd.f32 %v857, %v1231
        %v1494 = vadd.f32 %v858, %v1320
        %v1495 = vadd.f32 %v859, %v1409
        %v1496 = vadd.f32 %v860, %v1234
        %v1497 = vadd.f32 %v861, %v1323
        %v1498 = vadd.f32 %v862, %v1412
        %v1499 = vadd.f32 %v863, %v1236
        %v1500 = vadd.f32 %v864, %v1325
        %v1501 = vadd.f32 %v865, %v1414
        %v1502 = vadd.f32 %v866, %v1239
        %v1503 = vadd.f32 %v867, %v1328
        %v1504 = vadd.f32 %v868, %v1417
        %v1505 = vadd.f32 %v869, %v1241
        %v1506 = vadd.f32 %v870, %v1330
        %v1507 = vadd.f32 %v871, %v1419
        %v1508 = vadd.f32 %v872, %v1244
        %v1509 = vadd.f32 %v873, %v1333
        %v1510 = vadd.f32 %v874, %v1422
        %v1511 = vadd.f32 %v875, %v1246
        %v1512 = vadd.f32 %v876, %v1335
        %v1513 = vadd.f32 %v877, %v1424
        %v1514 = vadd.f32 %v878, %v1249
        %v1515 = vadd.f32 %v879, %v1338
        %v1516 = vadd.f32 %v880, %v1427
        %v1517 = vadd.f32 %v881, %v1251
        %v1518 = vadd.f32 %v882, %v1340
        %v1519 = vadd.f32 %v883, %v1429
        %v1520 = vadd.f32 %v884, %v1254
        %v1521 = vadd.f32 %v885, %v1343
        %v1522 = vadd.f32 %v886, %v1432
        %v1523 = vadd.f32 %v887, %v1256
        %v1524 = vadd.f32 %v888, %v1345
        %v1525 = vadd.f32 %v889, %v1434
        %v1526 = vadd.f32 %v890, %v1259
        %v1527 = vadd.f32 %v891, %v1348
        %v1528 = vadd.f32 %v892, %v1437
        %v1529 = vadd.f32 %v893, %v1261
        %v1530 = vadd.f32 %v894, %v1350
        %v1531 = vadd.f32 %v895, %v1439
        %v1532 = vadd.f32 %v896, %v1264
        %v1533 = vadd.f32 %v897, %v1353
        %v1534 = vadd.f32 %v898, %v1442
        %v1535 = vadd.f32 %v899, %v1266
        %v1536 = vadd.f32 %v900, %v1355
        %v1537 = vadd.f32 %v901, %v1444
        %v1538 = vadd.f32 %v902, %v1269
        %v1539 = vadd.f32 %v903, %v1358
        %v1540 = vadd.f32 %v904, %v1447
        %v1541 = vadd.f32 %v905, %v1271
        %v1542 = vadd.f32 %v906, %v1360
        %v1543 = vadd.f32 %v907, %v1449
        %v1544 = vadd.f32 %v908, %v1274
        %v1545 = vadd.f32 %v909, %v1363
        %v1546 = vadd.f32 %v910, %v1452
        %v1547 = vadd.f32 %v911, %v1276
        %v1548 = vadd.f32 %v912, %v1365
        %v1549 = vadd.f32 %v913, %v1454
        %v1550 = vadd.f32 %v914, %v1279
        %v1551 = vadd.f32 %v915, %v1368
        %v1552 = vadd.f32 %v916, %v1457
        %v1553 = vadd.f32 %v917, %v1281
        %v1554 = vadd.f32 %v918, %v1370
        %v1555 = vadd.f32 %v919, %v1459
        %v1556 = vadd.f32 %v920, %v1284
        %v1557 = vadd.f32 %v921, %v1373
        %v1558 = vadd.f32 %v922, %v1462
        %v1559 = vadd.f32 %v923, %v1286
        %v1560 = vadd.f32 %v924, %v1375
        %v1561 = vadd.f32 %v925, %v1464
        %1562 = vst [vmem:[#allocation2] sm:$0xff] %v1466
        %1563 = vst [vmem:[#allocation2 + $0x8] sm:$0xff] %v1467
        %1564 = vst.msk [vmem:[#allocation2 + $0x10] sm:$0xff] %vm735, %v1468
        %1565 = vst [vmem:[#allocation2 + $0x18] sm:$0xff] %v1469
        %1566 = vst [vmem:[#allocation2 + $0x20] sm:$0xff] %v1470
        %1567 = vst.msk [vmem:[#allocation2 + $0x28] sm:$0xff] %vm735, %v1471
        %1568 = vst [vmem:[#allocation2 + $0x30] sm:$0xff] %v1472
        %1569 = vst [vmem:[#allocation2 + $0x38] sm:$0xff] %v1473
        %1570 = vst.msk [vmem:[#allocation2 + $0x40] sm:$0xff] %vm735, %v1474
        %1571 = vst [vmem:[#allocation2 + $0x48] sm:$0xff] %v1475
        %1572 = vst [vmem:[#allocation2 + $0x50] sm:$0xff] %v1476
        %1573 = vst.msk [vmem:[#allocation2 + $0x58] sm:$0xff] %vm735, %v1477
        %1574 = vst [vmem:[#allocation2 + $0x60] sm:$0xff] %v1478
        %1575 = vst [vmem:[#allocation2 + $0x68] sm:$0xff] %v1479
        %1576 = vst.msk [vmem:[#allocation2 + $0x70] sm:$0xff] %vm735, %v1480
        %1577 = vst [vmem:[#allocation2 + $0x78] sm:$0xff] %v1481
        %1578 = vst [vmem:[#allocation2 + $0x80] sm:$0xff] %v1482
        %1579 = vst.msk [vmem:[#allocation2 + $0x88] sm:$0xff] %vm735, %v1483
        %1580 = vst [vmem:[#allocation2 + $0x90] sm:$0xff] %v1484
        %1581 = vst [vmem:[#allocation2 + $0x98] sm:$0xff] %v1485
        %1582 = vst.msk [vmem:[#allocation2 + $0xa0] sm:$0xff] %vm735, %v1486
        %1583 = vst [vmem:[#allocation2 + $0xa8] sm:$0xff] %v1487
        %1584 = vst [vmem:[#allocation2 + $0xb0] sm:$0xff] %v1488
        %1585 = vst.msk [vmem:[#allocation2 + $0xb8] sm:$0xff] %vm735, %v1489
        %1586 = vst [vmem:[#allocation2 + $0xc0] sm:$0xff] %v1490
        %1587 = vst [vmem:[#allocation2 + $0xc8] sm:$0xff] %v1491
        %1588 = vst.msk [vmem:[#allocation2 + $0xd0] sm:$0xff] %vm735, %v1492
        %1589 = vst [vmem:[#allocation2 + $0xd8] sm:$0xff] %v1493
        %1590 = vst [vmem:[#allocation2 + $0xe0] sm:$0xff] %v1494
        %1591 = vst.msk [vmem:[#allocation2 + $0xe8] sm:$0xff] %vm735, %v1495
        %1592 = vst [vmem:[#allocation2 + $0xf0] sm:$0xff] %v1496
        %1593 = vst [vmem:[#allocation2 + $0xf8] sm:$0xff] %v1497
        %1594 = vst.msk [vmem:[#allocation2 + $0x100] sm:$0xff] %vm735, %v1498
        %1595 = vst [vmem:[#allocation2 + $0x108] sm:$0xff] %v1499
        %1596 = vst [vmem:[#allocation2 + $0x110] sm:$0xff] %v1500
        %1597 = vst.msk [vmem:[#allocation2 + $0x118] sm:$0xff] %vm735, %v1501
        %1598 = vst [vmem:[#allocation2 + $0x120] sm:$0xff] %v1502
        %1599 = vst [vmem:[#allocation2 + $0x128] sm:$0xff] %v1503
        %1600 = vst.msk [vmem:[#allocation2 + $0x130] sm:$0xff] %vm735, %v1504
        %1601 = vst [vmem:[#allocation2 + $0x138] sm:$0xff] %v1505
        %1602 = vst [vmem:[#allocation2 + $0x140] sm:$0xff] %v1506
        %1603 = vst.msk [vmem:[#allocation2 + $0x148] sm:$0xff] %vm735, %v1507
        %1604 = vst [vmem:[#allocation2 + $0x150] sm:$0xff] %v1508
        %1605 = vst [vmem:[#allocation2 + $0x158] sm:$0xff] %v1509
        %1606 = vst.msk [vmem:[#allocation2 + $0x160] sm:$0xff] %vm735, %v1510
        %1607 = vst [vmem:[#allocation2 + $0x168] sm:$0xff] %v1511
        %1608 = vst [vmem:[#allocation2 + $0x170] sm:$0xff] %v1512
        %1609 = vst.msk [vmem:[#allocation2 + $0x178] sm:$0xff] %vm735, %v1513
        %1610 = vst [vmem:[#allocation2 + $0x180] sm:$0xff] %v1514
        %1611 = vst [vmem:[#allocation2 + $0x188] sm:$0xff] %v1515
        %1612 = vst.msk [vmem:[#allocation2 + $0x190] sm:$0xff] %vm735, %v1516
        %1613 = vst [vmem:[#allocation2 + $0x198] sm:$0xff] %v1517
        %1614 = vst [vmem:[#allocation2 + $0x1a0] sm:$0xff] %v1518
        %1615 = vst.msk [vmem:[#allocation2 + $0x1a8] sm:$0xff] %vm735, %v1519
        %1616 = vst [vmem:[#allocation2 + $0x1b0] sm:$0xff] %v1520
        %1617 = vst [vmem:[#allocation2 + $0x1b8] sm:$0xff] %v1521
        %1618 = vst.msk [vmem:[#allocation2 + $0x1c0] sm:$0xff] %vm735, %v1522
        %1619 = vst [vmem:[#allocation2 + $0x1c8] sm:$0xff] %v1523
        %1620 = vst [vmem:[#allocation2 + $0x1d0] sm:$0xff] %v1524
        %1621 = vst.msk [vmem:[#allocation2 + $0x1d8] sm:$0xff] %vm735, %v1525
        %1622 = vst [vmem:[#allocation2 + $0x1e0] sm:$0xff] %v1526
        %1623 = vst [vmem:[#allocation2 + $0x1e8] sm:$0xff] %v1527
        %1624 = vst.msk [vmem:[#allocation2 + $0x1f0] sm:$0xff] %vm735, %v1528
        %1625 = vst [vmem:[#allocation2 + $0x1f8] sm:$0xff] %v1529
        %1626 = vst [vmem:[#allocation2 + $0x200] sm:$0xff] %v1530
        %1627 = vst.msk [vmem:[#allocation2 + $0x208] sm:$0xff] %vm735, %v1531
        %1628 = vst [vmem:[#allocation2 + $0x210] sm:$0xff] %v1532
        %1629 = vst [vmem:[#allocation2 + $0x218] sm:$0xff] %v1533
        %1630 = vst.msk [vmem:[#allocation2 + $0x220] sm:$0xff] %vm735, %v1534
        %1631 = vst [vmem:[#allocation2 + $0x228] sm:$0xff] %v1535
        %1632 = vst [vmem:[#allocation2 + $0x230] sm:$0xff] %v1536
        %1633 = vst.msk [vmem:[#allocation2 + $0x238] sm:$0xff] %vm735, %v1537
        %1634 = vst [vmem:[#allocation2 + $0x240] sm:$0xff] %v1538
        %1635 = vst [vmem:[#allocation2 + $0x248] sm:$0xff] %v1539
        %1636 = vst.msk [vmem:[#allocation2 + $0x250] sm:$0xff] %vm735, %v1540
        %1637 = vst [vmem:[#allocation2 + $0x258] sm:$0xff] %v1541
        %1638 = vst [vmem:[#allocation2 + $0x260] sm:$0xff] %v1542
        %1639 = vst.msk [vmem:[#allocation2 + $0x268] sm:$0xff] %vm735, %v1543
        %1640 = vst [vmem:[#allocation2 + $0x270] sm:$0xff] %v1544
        %1641 = vst [vmem:[#allocation2 + $0x278] sm:$0xff] %v1545
        %1642 = vst.msk [vmem:[#allocation2 + $0x280] sm:$0xff] %vm735, %v1546
        %1643 = vst [vmem:[#allocation2 + $0x288] sm:$0xff] %v1547
        %1644 = vst [vmem:[#allocation2 + $0x290] sm:$0xff] %v1548
        %1645 = vst.msk [vmem:[#allocation2 + $0x298] sm:$0xff] %vm735, %v1549
        %1646 = vst [vmem:[#allocation2 + $0x2a0] sm:$0xff] %v1550
        %1647 = vst [vmem:[#allocation2 + $0x2a8] sm:$0xff] %v1551
        %1648 = vst.msk [vmem:[#allocation2 + $0x2b0] sm:$0xff] %vm735, %v1552
        %1649 = vst [vmem:[#allocation2 + $0x2b8] sm:$0xff] %v1553
        %1650 = vst [vmem:[#allocation2 + $0x2c0] sm:$0xff] %v1554
        %1651 = vst.msk [vmem:[#allocation2 + $0x2c8] sm:$0xff] %vm735, %v1555
        %1652 = vst [vmem:[#allocation2 + $0x2d0] sm:$0xff] %v1556
        %1653 = vst [vmem:[#allocation2 + $0x2d8] sm:$0xff] %v1557
        %1654 = vst.msk [vmem:[#allocation2 + $0x2e0] sm:$0xff] %vm735, %v1558
        %1655 = vst [vmem:[#allocation2 + $0x2e8] sm:$0xff] %v1559
        %1656 = vst [vmem:[#allocation2 + $0x2f0] sm:$0xff] %v1560
        %1657 = vst.msk [vmem:[#allocation2 + $0x2f8] sm:$0xff] %vm735, %v1561
        %v1658 = vld [vmem:[#allocation2] sm:$0xff]
        %v1659 = vld [vmem:[#allocation2 + $0x8] sm:$0xff]
        %v1660 = vld [vmem:[#allocation2 + $0x10] sm:$0xff]
        %v1661 = vld [vmem:[#allocation2 + $0x18] sm:$0xff]
        %v1662 = vld [vmem:[#allocation2 + $0x20] sm:$0xff]
        %v1663 = vld [vmem:[#allocation2 + $0x28] sm:$0xff]
        %v1664 = vld [vmem:[#allocation2 + $0x30] sm:$0xff]
        %v1665 = vld [vmem:[#allocation2 + $0x38] sm:$0xff]
        %v1666 = vld [vmem:[#allocation2 + $0x40] sm:$0xff]
        %v1667 = vld [vmem:[#allocation2 + $0x48] sm:$0xff]
        %v1668 = vld [vmem:[#allocation2 + $0x50] sm:$0xff]
        %v1669 = vld [vmem:[#allocation2 + $0x58] sm:$0xff]
        %v1670 = vld [vmem:[#allocation2 + $0x60] sm:$0xff]
        %v1671 = vld [vmem:[#allocation2 + $0x68] sm:$0xff]
        %v1672 = vld [vmem:[#allocation2 + $0x70] sm:$0xff]
        %v1673 = vld [vmem:[#allocation2 + $0x78] sm:$0xff]
        %v1674 = vld [vmem:[#allocation2 + $0x80] sm:$0xff]
        %v1675 = vld [vmem:[#allocation2 + $0x88] sm:$0xff]
        %v1676 = vld [vmem:[#allocation2 + $0x90] sm:$0xff]
        %v1677 = vld [vmem:[#allocation2 + $0x98] sm:$0xff]
        %v1678 = vld [vmem:[#allocation2 + $0xa0] sm:$0xff]
        %v1679 = vld [vmem:[#allocation2 + $0xa8] sm:$0xff]
        %v1680 = vld [vmem:[#allocation2 + $0xb0] sm:$0xff]
        %v1681 = vld [vmem:[#allocation2 + $0xb8] sm:$0xff]
        %v1682 = vld [vmem:[#allocation2 + $0xc0] sm:$0xff]
        %v1683 = vld [vmem:[#allocation2 + $0xc8] sm:$0xff]
        %v1684 = vld [vmem:[#allocation2 + $0xd0] sm:$0xff]
        %v1685 = vld [vmem:[#allocation2 + $0xd8] sm:$0xff]
        %v1686 = vld [vmem:[#allocation2 + $0xe0] sm:$0xff]
        %v1687 = vld [vmem:[#allocation2 + $0xe8] sm:$0xff]
        %v1688 = vld [vmem:[#allocation2 + $0xf0] sm:$0xff]
        %v1689 = vld [vmem:[#allocation2 + $0xf8] sm:$0xff]
        %v1690 = vld [vmem:[#allocation2 + $0x100] sm:$0xff]
        %v1691 = vld [vmem:[#allocation2 + $0x108] sm:$0xff]
        %v1692 = vld [vmem:[#allocation2 + $0x110] sm:$0xff]
        %v1693 = vld [vmem:[#allocation2 + $0x118] sm:$0xff]
        %v1694 = vld [vmem:[#allocation2 + $0x120] sm:$0xff]
        %v1695 = vld [vmem:[#allocation2 + $0x128] sm:$0xff]
        %v1696 = vld [vmem:[#allocation2 + $0x130] sm:$0xff]
        %v1697 = vld [vmem:[#allocation2 + $0x138] sm:$0xff]
        %v1698 = vld [vmem:[#allocation2 + $0x140] sm:$0xff]
        %v1699 = vld [vmem:[#allocation2 + $0x148] sm:$0xff]
        %v1700 = vld [vmem:[#allocation2 + $0x150] sm:$0xff]
        %v1701 = vld [vmem:[#allocation2 + $0x158] sm:$0xff]
        %v1702 = vld [vmem:[#allocation2 + $0x160] sm:$0xff]
        %v1703 = vld [vmem:[#allocation2 + $0x168] sm:$0xff]
        %v1704 = vld [vmem:[#allocation2 + $0x170] sm:$0xff]
        %v1705 = vld [vmem:[#allocation2 + $0x178] sm:$0xff]
        %v1706 = vld [vmem:[#allocation2 + $0x180] sm:$0xff]
        %v1707 = vld [vmem:[#allocation2 + $0x188] sm:$0xff]
        %v1708 = vld [vmem:[#allocation2 + $0x190] sm:$0xff]
        %v1709 = vld [vmem:[#allocation2 + $0x198] sm:$0xff]
        %v1710 = vld [vmem:[#allocation2 + $0x1a0] sm:$0xff]
        %v1711 = vld [vmem:[#allocation2 + $0x1a8] sm:$0xff]
        %v1712 = vld [vmem:[#allocation2 + $0x1b0] sm:$0xff]
        %v1713 = vld [vmem:[#allocation2 + $0x1b8] sm:$0xff]
        %v1714 = vld [vmem:[#allocation2 + $0x1c0] sm:$0xff]
        %v1715 = vld [vmem:[#allocation2 + $0x1c8] sm:$0xff]
        %v1716 = vld [vmem:[#allocation2 + $0x1d0] sm:$0xff]
        %v1717 = vld [vmem:[#allocation2 + $0x1d8] sm:$0xff]
        %v1718 = vld [vmem:[#allocation2 + $0x1e0] sm:$0xff]
        %v1719 = vld [vmem:[#allocation2 + $0x1e8] sm:$0xff]
        %v1720 = vld [vmem:[#allocation2 + $0x1f0] sm:$0xff]
        %v1721 = vld [vmem:[#allocation2 + $0x1f8] sm:$0xff]
        %v1722 = vld [vmem:[#allocation2 + $0x200] sm:$0xff]
        %v1723 = vld [vmem:[#allocation2 + $0x208] sm:$0xff]
        %v1724 = vld [vmem:[#allocation2 + $0x210] sm:$0xff]
        %v1725 = vld [vmem:[#allocation2 + $0x218] sm:$0xff]
        %v1726 = vld [vmem:[#allocation2 + $0x220] sm:$0xff]
        %v1727 = vld [vmem:[#allocation2 + $0x228] sm:$0xff]
        %v1728 = vld [vmem:[#allocation2 + $0x230] sm:$0xff]
        %v1729 = vld [vmem:[#allocation2 + $0x238] sm:$0xff]
        %v1730 = vld [vmem:[#allocation2 + $0x240] sm:$0xff]
        %v1731 = vld [vmem:[#allocation2 + $0x248] sm:$0xff]
        %v1732 = vld [vmem:[#allocation2 + $0x250] sm:$0xff]
        %v1733 = vld [vmem:[#allocation2 + $0x258] sm:$0xff]
        %v1734 = vld [vmem:[#allocation2 + $0x260] sm:$0xff]
        %v1735 = vld [vmem:[#allocation2 + $0x268] sm:$0xff]
        %v1736 = vld [vmem:[#allocation2 + $0x270] sm:$0xff]
        %v1737 = vld [vmem:[#allocation2 + $0x278] sm:$0xff]
        %v1738 = vld [vmem:[#allocation2 + $0x280] sm:$0xff]
        %v1739 = vld [vmem:[#allocation2 + $0x288] sm:$0xff]
        %v1740 = vld [vmem:[#allocation2 + $0x290] sm:$0xff]
        %v1741 = vld [vmem:[#allocation2 + $0x298] sm:$0xff]
        %v1742 = vld [vmem:[#allocation2 + $0x2a0] sm:$0xff]
        %v1743 = vld [vmem:[#allocation2 + $0x2a8] sm:$0xff]
        %v1744 = vld [vmem:[#allocation2 + $0x2b0] sm:$0xff]
        %v1745 = vld [vmem:[#allocation2 + $0x2b8] sm:$0xff]
        %v1746 = vld [vmem:[#allocation2 + $0x2c0] sm:$0xff]
        %v1747 = vld [vmem:[#allocation2 + $0x2c8] sm:$0xff]
        %v1748 = vld [vmem:[#allocation2 + $0x2d0] sm:$0xff]
        %v1749 = vld [vmem:[#allocation2 + $0x2d8] sm:$0xff]
        %v1750 = vld [vmem:[#allocation2 + $0x2e0] sm:$0xff]
        %v1751 = vld [vmem:[#allocation2 + $0x2e8] sm:$0xff]
        %v1752 = vld [vmem:[#allocation2 + $0x2f0] sm:$0xff]
        %v1753 = vld [vmem:[#allocation2 + $0x2f8] sm:$0xff]
        %s1754 = scalar_lea.vmem %s1, 256
        %v1755 = vld [vmem:[%s1754] sm:$0xf]
        %v1756 = vld [vmem:[%s1754 + $0x4] sm:$0xf]
        %v1757 = vld [vmem:[%s1754 + $0x8] sm:$0xf]
        %v1758 = vld [vmem:[%s1754 + $0xc] sm:$0xf]
        %v1759 = vld [vmem:[%s1754 + $0x10] sm:$0xf]
        %v1760 = vld [vmem:[%s1754 + $0x14] sm:$0xf]
        %v1761 = vld [vmem:[%s1754 + $0x18] sm:$0xf]
        %v1762 = vld [vmem:[%s1754 + $0x1c] sm:$0xf]
        %v1763 = vld [vmem:[%s1754 + $0x20] sm:$0xf]
        %v1764 = vld [vmem:[%s1754 + $0x24] sm:$0xf]
        %v1765 = vld [vmem:[%s1754 + $0x28] sm:$0xf]
        %v1766 = vld [vmem:[%s1754 + $0x2c] sm:$0xf]
        %v1767 = vld [vmem:[%s1754 + $0x30] sm:$0xf]
        %v1768 = vld [vmem:[%s1754 + $0x34] sm:$0xf]
        %v1769 = vld [vmem:[%s1754 + $0x38] sm:$0xf]
        %v1770 = vld [vmem:[%s1754 + $0x3c] sm:$0xf]
        %v1771 = vld [vmem:[%s1754 + $0x40] sm:$0xf]
        %v1772 = vld [vmem:[%s1754 + $0x44] sm:$0xf]
        %v1773 = vld [vmem:[%s1754 + $0x48] sm:$0xf]
        %v1774 = vld [vmem:[%s1754 + $0x4c] sm:$0xf]
        %v1775 = vld [vmem:[%s1754 + $0x50] sm:$0xf]
        %v1776 = vld [vmem:[%s1754 + $0x54] sm:$0xf]
        %v1777 = vld [vmem:[%s1754 + $0x58] sm:$0xf]
        %v1778 = vld [vmem:[%s1754 + $0x5c] sm:$0xf]
        %v1779 = vld [vmem:[%s1754 + $0x60] sm:$0xf]
        %v1780 = vld [vmem:[%s1754 + $0x64] sm:$0xf]
        %v1781 = vld [vmem:[%s1754 + $0x68] sm:$0xf]
        %v1782 = vld [vmem:[%s1754 + $0x6c] sm:$0xf]
        %v1783 = vld [vmem:[%s1754 + $0x70] sm:$0xf]
        %v1784 = vld [vmem:[%s1754 + $0x74] sm:$0xf]
        %v1785 = vld [vmem:[%s1754 + $0x78] sm:$0xf]
        %v1786 = vld [vmem:[%s1754 + $0x7c] sm:$0xf]
        %v1787 = vld [vmem:[%s183] sm:$0xff]
        %v1788 = vld [vmem:[%s183 + $0x8] sm:$0xf]
        %v1789 = vld [vmem:[%s183 + $0xc] sm:$0xff]
        %v1790 = vld [vmem:[%s183 + $0x14] sm:$0xf]
        %v1791 = vld [vmem:[%s183 + $0x18] sm:$0xff]
        %v1792 = vld [vmem:[%s183 + $0x20] sm:$0xf]
        %v1793 = vld [vmem:[%s183 + $0x24] sm:$0xff]
        %v1794 = vld [vmem:[%s183 + $0x2c] sm:$0xf]
        %v1795 = vld [vmem:[%s183 + $0x30] sm:$0xff]
        %v1796 = vld [vmem:[%s183 + $0x38] sm:$0xf]
        %v1797 = vld [vmem:[%s183 + $0x3c] sm:$0xff]
        %v1798 = vld [vmem:[%s183 + $0x44] sm:$0xf]
        %v1799 = vld [vmem:[%s183 + $0x48] sm:$0x11]
        %v1800 = vld [vmem:[%s183 + $0x50] sm:$0x1]
        %v1833 = vunpack.c.l.b16 %v1755
        %v1834 = vunpack.c.l.b16 %v1756
        %v1835 = vunpack.c.l.b16 %v1757
        %v1836 = vunpack.c.l.b16 %v1758
        %v1837 = vunpack.c.l.b16 %v1759
        %v1838 = vunpack.c.l.b16 %v1760
        %v1839 = vunpack.c.l.b16 %v1761
        %v1840 = vunpack.c.l.b16 %v1762
        %v1841 = vunpack.c.l.b16 %v1763
        %v1842 = vunpack.c.l.b16 %v1764
        %v1843 = vunpack.c.l.b16 %v1765
        %v1844 = vunpack.c.l.b16 %v1766
        %v1845 = vunpack.c.l.b16 %v1767
        %v1846 = vunpack.c.l.b16 %v1768
        %v1847 = vunpack.c.l.b16 %v1769
        %v1848 = vunpack.c.l.b16 %v1770
        %v1849 = vunpack.c.l.b16 %v1771
        %v1850 = vunpack.c.l.b16 %v1772
        %v1851 = vunpack.c.l.b16 %v1773
        %v1852 = vunpack.c.l.b16 %v1774
        %v1853 = vunpack.c.l.b16 %v1775
        %v1854 = vunpack.c.l.b16 %v1776
        %v1855 = vunpack.c.l.b16 %v1777
        %v1856 = vunpack.c.l.b16 %v1778
        %v1857 = vunpack.c.l.b16 %v1779
        %v1858 = vunpack.c.l.b16 %v1780
        %v1859 = vunpack.c.l.b16 %v1781
        %v1860 = vunpack.c.l.b16 %v1782
        %v1861 = vunpack.c.l.b16 %v1783
        %v1862 = vunpack.c.l.b16 %v1784
        %v1863 = vunpack.c.l.b16 %v1785
        %v1864 = vunpack.c.l.b16 %v1786
        %v1865 = vpack.c.b16 %v1834, %v1833
        %v1866 = vpack.c.b16 %v1836, %v1835
        %v1867 = vpack.c.b16 %v1838, %v1837
        %v1868 = vpack.c.b16 %v1840, %v1839
        %v1869 = vpack.c.b16 %v1842, %v1841
        %v1870 = vpack.c.b16 %v1844, %v1843
        %v1871 = vpack.c.b16 %v1846, %v1845
        %v1872 = vpack.c.b16 %v1848, %v1847
        %v1873 = vpack.c.b16 %v1850, %v1849
        %v1874 = vpack.c.b16 %v1852, %v1851
        %v1875 = vpack.c.b16 %v1854, %v1853
        %v1876 = vpack.c.b16 %v1856, %v1855
        %v1877 = vpack.c.b16 %v1858, %v1857
        %v1878 = vpack.c.b16 %v1860, %v1859
        %v1879 = vpack.c.b16 %v1862, %v1861
        %v1880 = vpack.c.b16 %v1864, %v1863
        %v1895 = vunpack.c.l.b16 %v1787
        %v1896 = vunpack.c.h.b16 %v1787
        %v1897 = vunpack.c.l.b16 %v1788
        %v1898 = vunpack.c.l.b16 %v1789
        %v1899 = vunpack.c.h.b16 %v1789
        %v1900 = vunpack.c.l.b16 %v1790
        %v1901 = vunpack.c.l.b16 %v1791
        %v1902 = vunpack.c.h.b16 %v1791
        %v1903 = vunpack.c.l.b16 %v1792
        %v1904 = vunpack.c.l.b16 %v1793
        %v1905 = vunpack.c.h.b16 %v1793
        %v1906 = vunpack.c.l.b16 %v1794
        %v1907 = vunpack.c.l.b16 %v1795
        %v1908 = vunpack.c.h.b16 %v1795
        %v1909 = vunpack.c.l.b16 %v1796
        %v1910 = vunpack.c.l.b16 %v1797
        %v1911 = vunpack.c.h.b16 %v1797
        %v1912 = vunpack.c.l.b16 %v1798
        %v1913 = vunpack.c.l.b16 %v1799
        %v1914 = vunpack.c.h.b16 %v1799
        %v1915 = vunpack.c.l.b16 %v1800
        %v1916 = vpack.c.b16 %v1898, %v1895
        %v1917 = vpack.c.b16 %v1899, %v1896
        %v1918 = vpack.c.b16 %v1900, %v1897
        %v1919 = vpack.c.b16 %v1904, %v1901
        %v1920 = vpack.c.b16 %v1905, %v1902
        %v1921 = vpack.c.b16 %v1906, %v1903
        %v1922 = vpack.c.b16 %v1910, %v1907
        %v1923 = vpack.c.b16 %v1911, %v1908
        %v1924 = vpack.c.b16 %v1912, %v1909
        %v1925 = vpack.c.b16 %v1913, %v1913
        %v1926 = vpack.c.b16 %v1914, %v1914
        %v1927 = vpack.c.b16 %v1915, %v1915
        %1928 = vrot.lane.b32.xlu0 %v1916, 113
        %v1929 = vpop.permute.xlu0 %1928
        %1930 = vrot.lane.b32.xlu0 %v1917, 113
        %v1931 = vpop.permute.xlu0 %1930
        %1932 = vrot.lane.b32.xlu0 %v1918, 113
        %v1933 = vpop.permute.xlu0 %1932
        %1934 = vrot.lane.b32.xlu0 %v1919, 113
        %v1935 = vpop.permute.xlu0 %1934
        %1936 = vrot.lane.b32.xlu0 %v1920, 113
        %v1937 = vpop.permute.xlu0 %1936
        %1938 = vrot.lane.b32.xlu0 %v1921, 113
        %v1939 = vpop.permute.xlu0 %1938
        %1940 = vrot.lane.b32.xlu0 %v1922, 113
        %v1941 = vpop.permute.xlu0 %1940
        %1942 = vrot.lane.b32.xlu0 %v1923, 113
        %v1943 = vpop.permute.xlu0 %1942
        %1944 = vrot.lane.b32.xlu0 %v1924, 113
        %v1945 = vpop.permute.xlu0 %1944
        %1946 = vrot.lane.b32.xlu0 %v1925, 113
        %v1947 = vpop.permute.xlu0 %1946
        %1948 = vrot.lane.b32.xlu0 %v1926, 113
        %v1949 = vpop.permute.xlu0 %1948
        %1950 = vrot.lane.b32.xlu0 %v1927, 113
        %v1951 = vpop.permute.xlu0 %1950
        %vm1952 = vcmask 924672
        %v1953 = vsel %vm1952, %v1929, %v1931
        %v1954 = vsel %vm1952, %v1931, %v1933
        %v1955 = vsel %vm1952, %v1935, %v1937
        %v1956 = vsel %vm1952, %v1937, %v1939
        %v1957 = vsel %vm1952, %v1941, %v1943
        %v1958 = vsel %vm1952, %v1943, %v1945
        %v1959 = vsel %vm1952, %v1947, %v1949
        %v1960 = vsel %vm1952, %v1949, %v1951
        %v1971 = vsel %vm405, %v1865, 0
        %v1974 = vsel %vm405, %v1866, 0
        %v1977 = vsel %vm405, %v1867, 0
        %v1980 = vsel %vm405, %v1868, 0
        %v1983 = vsel %vm405, %v1869, 0
        %v1986 = vsel %vm405, %v1870, 0
        %v1989 = vsel %vm405, %v1871, 0
        %v1992 = vsel %vm405, %v1872, 0
        %v1995 = vsel %vm405, %v1873, 0
        %v1998 = vsel %vm405, %v1874, 0
        %v2001 = vsel %vm405, %v1875, 0
        %v2004 = vsel %vm405, %v1876, 0
        %v2007 = vsel %vm405, %v1877, 0
        %v2010 = vsel %vm405, %v1878, 0
        %v2013 = vsel %vm405, %v1879, 0
        %v2016 = vsel %vm405, %v1880, 0
        %v2019 = vand.u32 %v1959, %v456
        %v2022 = vand.u32 %v1960, %v456
        %v2025 = vand.u32 %v1951, %v456
        %2027 = vmatpush.bf16.msra.mxu0 0
        %2028 = vmatpush.bf16.msra.mxu0 0
        %2029 = vmatpush.bf16.msra.mxu0 0
        %2030 = vmatpush.bf16.msra.mxu0 0
        %2031 = vmatpush.bf16.msra.mxu0 %v2019
        %2032 = vmatpush.bf16.msra.mxu0 %v1957
        %2033 = vmatpush.bf16.msra.mxu0 %v1955
        %2034 = vmatpush.bf16.msra.mxu0 %v1953
        %2035 = vmatmul.bf16.gmra.mxu0 %v1971
        %v2036 = vpop.f32.mrf.mxu0
        %v2037 = vadd.f32 0.0, %v2036
        %v2038 = vpop.f32.mrf.mxu0
        %v2039 = vadd.f32 0.0, %v2038
        %2040 = vmatmul.bf16.gmra.mxu0 %v1974
        %v2041 = vpop.f32.mrf.mxu0
        %v2042 = vadd.f32 0.0, %v2041
        %v2043 = vpop.f32.mrf.mxu0
        %v2044 = vadd.f32 0.0, %v2043
        %2045 = vmatmul.bf16.gmra.mxu0 %v1977
        %v2046 = vpop.f32.mrf.mxu0
        %v2047 = vadd.f32 0.0, %v2046
        %v2048 = vpop.f32.mrf.mxu0
        %v2049 = vadd.f32 0.0, %v2048
        %2050 = vmatmul.bf16.gmra.mxu0 %v1980
        %v2051 = vpop.f32.mrf.mxu0
        %v2052 = vadd.f32 0.0, %v2051
        %v2053 = vpop.f32.mrf.mxu0
        %v2054 = vadd.f32 0.0, %v2053
        %2055 = vmatmul.bf16.gmra.mxu0 %v1983
        %v2056 = vpop.f32.mrf.mxu0
        %v2057 = vadd.f32 0.0, %v2056
        %v2058 = vpop.f32.mrf.mxu0
        %v2059 = vadd.f32 0.0, %v2058
        %2060 = vmatmul.bf16.gmra.mxu0 %v1986
        %v2061 = vpop.f32.mrf.mxu0
        %v2062 = vadd.f32 0.0, %v2061
        %v2063 = vpop.f32.mrf.mxu0
        %v2064 = vadd.f32 0.0, %v2063
        %2065 = vmatmul.bf16.gmra.mxu0 %v1989
        %v2066 = vpop.f32.mrf.mxu0
        %v2067 = vadd.f32 0.0, %v2066
        %v2068 = vpop.f32.mrf.mxu0
        %v2069 = vadd.f32 0.0, %v2068
        %2070 = vmatmul.bf16.gmra.mxu0 %v1992
        %v2071 = vpop.f32.mrf.mxu0
        %v2072 = vadd.f32 0.0, %v2071
        %v2073 = vpop.f32.mrf.mxu0
        %v2074 = vadd.f32 0.0, %v2073
        %2075 = vmatmul.bf16.gmra.mxu0 %v1995
        %v2076 = vpop.f32.mrf.mxu0
        %v2077 = vadd.f32 0.0, %v2076
        %v2078 = vpop.f32.mrf.mxu0
        %v2079 = vadd.f32 0.0, %v2078
        %2080 = vmatmul.bf16.gmra.mxu0 %v1998
        %v2081 = vpop.f32.mrf.mxu0
        %v2082 = vadd.f32 0.0, %v2081
        %v2083 = vpop.f32.mrf.mxu0
        %v2084 = vadd.f32 0.0, %v2083
        %2085 = vmatmul.bf16.gmra.mxu0 %v2001
        %v2086 = vpop.f32.mrf.mxu0
        %v2087 = vadd.f32 0.0, %v2086
        %v2088 = vpop.f32.mrf.mxu0
        %v2089 = vadd.f32 0.0, %v2088
        %2090 = vmatmul.bf16.gmra.mxu0 %v2004
        %v2091 = vpop.f32.mrf.mxu0
        %v2092 = vadd.f32 0.0, %v2091
        %v2093 = vpop.f32.mrf.mxu0
        %v2094 = vadd.f32 0.0, %v2093
        %2095 = vmatmul.bf16.gmra.mxu0 %v2007
        %v2096 = vpop.f32.mrf.mxu0
        %v2097 = vadd.f32 0.0, %v2096
        %v2098 = vpop.f32.mrf.mxu0
        %v2099 = vadd.f32 0.0, %v2098
        %2100 = vmatmul.bf16.gmra.mxu0 %v2010
        %v2101 = vpop.f32.mrf.mxu0
        %v2102 = vadd.f32 0.0, %v2101
        %v2103 = vpop.f32.mrf.mxu0
        %v2104 = vadd.f32 0.0, %v2103
        %2105 = vmatmul.bf16.gmra.mxu0 %v2013
        %v2106 = vpop.f32.mrf.mxu0
        %v2107 = vadd.f32 0.0, %v2106
        %v2108 = vpop.f32.mrf.mxu0
        %v2109 = vadd.f32 0.0, %v2108
        %2110 = vmatmul.bf16.gmra.mxu0 %v2016
        %v2111 = vpop.f32.mrf.mxu0
        %v2112 = vadd.f32 0.0, %v2111
        %v2113 = vpop.f32.mrf.mxu0
        %v2114 = vadd.f32 0.0, %v2113
        %2115 = vdwg.mxu0
        %2116 = vmatpush.bf16.msra.mxu0 0
        %2117 = vmatpush.bf16.msra.mxu0 0
        %2118 = vmatpush.bf16.msra.mxu0 0
        %2119 = vmatpush.bf16.msra.mxu0 0
        %2120 = vmatpush.bf16.msra.mxu0 %v2022
        %2121 = vmatpush.bf16.msra.mxu0 %v1958
        %2122 = vmatpush.bf16.msra.mxu0 %v1956
        %2123 = vmatpush.bf16.msra.mxu0 %v1954
        %2124 = vmatmul.bf16.gmra.mxu0 %v1971
        %v2125 = vpop.f32.mrf.mxu0
        %v2126 = vadd.f32 0.0, %v2125
        %v2127 = vpop.f32.mrf.mxu0
        %v2128 = vadd.f32 0.0, %v2127
        %2129 = vmatmul.bf16.gmra.mxu0 %v1974
        %v2130 = vpop.f32.mrf.mxu0
        %v2131 = vadd.f32 0.0, %v2130
        %v2132 = vpop.f32.mrf.mxu0
        %v2133 = vadd.f32 0.0, %v2132
        %2134 = vmatmul.bf16.gmra.mxu0 %v1977
        %v2135 = vpop.f32.mrf.mxu0
        %v2136 = vadd.f32 0.0, %v2135
        %v2137 = vpop.f32.mrf.mxu0
        %v2138 = vadd.f32 0.0, %v2137
        %2139 = vmatmul.bf16.gmra.mxu0 %v1980
        %v2140 = vpop.f32.mrf.mxu0
        %v2141 = vadd.f32 0.0, %v2140
        %v2142 = vpop.f32.mrf.mxu0
        %v2143 = vadd.f32 0.0, %v2142
        %2144 = vmatmul.bf16.gmra.mxu0 %v1983
        %v2145 = vpop.f32.mrf.mxu0
        %v2146 = vadd.f32 0.0, %v2145
        %v2147 = vpop.f32.mrf.mxu0
        %v2148 = vadd.f32 0.0, %v2147
        %2149 = vmatmul.bf16.gmra.mxu0 %v1986
        %v2150 = vpop.f32.mrf.mxu0
        %v2151 = vadd.f32 0.0, %v2150
        %v2152 = vpop.f32.mrf.mxu0
        %v2153 = vadd.f32 0.0, %v2152
        %2154 = vmatmul.bf16.gmra.mxu0 %v1989
        %v2155 = vpop.f32.mrf.mxu0
        %v2156 = vadd.f32 0.0, %v2155
        %v2157 = vpop.f32.mrf.mxu0
        %v2158 = vadd.f32 0.0, %v2157
        %2159 = vmatmul.bf16.gmra.mxu0 %v1992
        %v2160 = vpop.f32.mrf.mxu0
        %v2161 = vadd.f32 0.0, %v2160
        %v2162 = vpop.f32.mrf.mxu0
        %v2163 = vadd.f32 0.0, %v2162
        %2164 = vmatmul.bf16.gmra.mxu0 %v1995
        %v2165 = vpop.f32.mrf.mxu0
        %v2166 = vadd.f32 0.0, %v2165
        %v2167 = vpop.f32.mrf.mxu0
        %v2168 = vadd.f32 0.0, %v2167
        %2169 = vmatmul.bf16.gmra.mxu0 %v1998
        %v2170 = vpop.f32.mrf.mxu0
        %v2171 = vadd.f32 0.0, %v2170
        %v2172 = vpop.f32.mrf.mxu0
        %v2173 = vadd.f32 0.0, %v2172
        %2174 = vmatmul.bf16.gmra.mxu0 %v2001
        %v2175 = vpop.f32.mrf.mxu0
        %v2176 = vadd.f32 0.0, %v2175
        %v2177 = vpop.f32.mrf.mxu0
        %v2178 = vadd.f32 0.0, %v2177
        %2179 = vmatmul.bf16.gmra.mxu0 %v2004
        %v2180 = vpop.f32.mrf.mxu0
        %v2181 = vadd.f32 0.0, %v2180
        %v2182 = vpop.f32.mrf.mxu0
        %v2183 = vadd.f32 0.0, %v2182
        %2184 = vmatmul.bf16.gmra.mxu0 %v2007
        %v2185 = vpop.f32.mrf.mxu0
        %v2186 = vadd.f32 0.0, %v2185
        %v2187 = vpop.f32.mrf.mxu0
        %v2188 = vadd.f32 0.0, %v2187
        %2189 = vmatmul.bf16.gmra.mxu0 %v2010
        %v2190 = vpop.f32.mrf.mxu0
        %v2191 = vadd.f32 0.0, %v2190
        %v2192 = vpop.f32.mrf.mxu0
        %v2193 = vadd.f32 0.0, %v2192
        %2194 = vmatmul.bf16.gmra.mxu0 %v2013
        %v2195 = vpop.f32.mrf.mxu0
        %v2196 = vadd.f32 0.0, %v2195
        %v2197 = vpop.f32.mrf.mxu0
        %v2198 = vadd.f32 0.0, %v2197
        %2199 = vmatmul.bf16.gmra.mxu0 %v2016
        %v2200 = vpop.f32.mrf.mxu0
        %v2201 = vadd.f32 0.0, %v2200
        %v2202 = vpop.f32.mrf.mxu0
        %v2203 = vadd.f32 0.0, %v2202
        %2204 = vdwg.mxu0
        %2205 = vmatpush.bf16.msra.mxu0 0
        %2206 = vmatpush.bf16.msra.mxu0 0
        %2207 = vmatpush.bf16.msra.mxu0 0
        %2208 = vmatpush.bf16.msra.mxu0 0
        %2209 = vmatpush.bf16.msra.mxu0 %v2025
        %2210 = vmatpush.bf16.msra.mxu0 %v1945
        %2211 = vmatpush.bf16.msra.mxu0 %v1939
        %2212 = vmatpush.bf16.msra.mxu0 %v1933
        %2213 = vmatmul.bf16.gmra.mxu0 %v1971
        %v2214 = vpop.f32.mrf.mxu0
        %v2215 = vadd.f32 0.0, %v2214
        %v2216 = vpop.f32.mrf.mxu0
        %v2217 = vadd.f32 0.0, %v2216
        %2218 = vmatmul.bf16.gmra.mxu0 %v1974
        %v2219 = vpop.f32.mrf.mxu0
        %v2220 = vadd.f32 0.0, %v2219
        %v2221 = vpop.f32.mrf.mxu0
        %v2222 = vadd.f32 0.0, %v2221
        %2223 = vmatmul.bf16.gmra.mxu0 %v1977
        %v2224 = vpop.f32.mrf.mxu0
        %v2225 = vadd.f32 0.0, %v2224
        %v2226 = vpop.f32.mrf.mxu0
        %v2227 = vadd.f32 0.0, %v2226
        %2228 = vmatmul.bf16.gmra.mxu0 %v1980
        %v2229 = vpop.f32.mrf.mxu0
        %v2230 = vadd.f32 0.0, %v2229
        %v2231 = vpop.f32.mrf.mxu0
        %v2232 = vadd.f32 0.0, %v2231
        %2233 = vmatmul.bf16.gmra.mxu0 %v1983
        %v2234 = vpop.f32.mrf.mxu0
        %v2235 = vadd.f32 0.0, %v2234
        %v2236 = vpop.f32.mrf.mxu0
        %v2237 = vadd.f32 0.0, %v2236
        %2238 = vmatmul.bf16.gmra.mxu0 %v1986
        %v2239 = vpop.f32.mrf.mxu0
        %v2240 = vadd.f32 0.0, %v2239
        %v2241 = vpop.f32.mrf.mxu0
        %v2242 = vadd.f32 0.0, %v2241
        %2243 = vmatmul.bf16.gmra.mxu0 %v1989
        %v2244 = vpop.f32.mrf.mxu0
        %v2245 = vadd.f32 0.0, %v2244
        %v2246 = vpop.f32.mrf.mxu0
        %v2247 = vadd.f32 0.0, %v2246
        %2248 = vmatmul.bf16.gmra.mxu0 %v1992
        %v2249 = vpop.f32.mrf.mxu0
        %v2250 = vadd.f32 0.0, %v2249
        %v2251 = vpop.f32.mrf.mxu0
        %v2252 = vadd.f32 0.0, %v2251
        %2253 = vmatmul.bf16.gmra.mxu0 %v1995
        %v2254 = vpop.f32.mrf.mxu0
        %v2255 = vadd.f32 0.0, %v2254
        %v2256 = vpop.f32.mrf.mxu0
        %v2257 = vadd.f32 0.0, %v2256
        %2258 = vmatmul.bf16.gmra.mxu0 %v1998
        %v2259 = vpop.f32.mrf.mxu0
        %v2260 = vadd.f32 0.0, %v2259
        %v2261 = vpop.f32.mrf.mxu0
        %v2262 = vadd.f32 0.0, %v2261
        %2263 = vmatmul.bf16.gmra.mxu0 %v2001
        %v2264 = vpop.f32.mrf.mxu0
        %v2265 = vadd.f32 0.0, %v2264
        %v2266 = vpop.f32.mrf.mxu0
        %v2267 = vadd.f32 0.0, %v2266
        %2268 = vmatmul.bf16.gmra.mxu0 %v2004
        %v2269 = vpop.f32.mrf.mxu0
        %v2270 = vadd.f32 0.0, %v2269
        %v2271 = vpop.f32.mrf.mxu0
        %v2272 = vadd.f32 0.0, %v2271
        %2273 = vmatmul.bf16.gmra.mxu0 %v2007
        %v2274 = vpop.f32.mrf.mxu0
        %v2275 = vadd.f32 0.0, %v2274
        %v2276 = vpop.f32.mrf.mxu0
        %v2277 = vadd.f32 0.0, %v2276
        %2278 = vmatmul.bf16.gmra.mxu0 %v2010
        %v2279 = vpop.f32.mrf.mxu0
        %v2280 = vadd.f32 0.0, %v2279
        %v2281 = vpop.f32.mrf.mxu0
        %v2282 = vadd.f32 0.0, %v2281
        %2283 = vmatmul.bf16.gmra.mxu0 %v2013
        %v2284 = vpop.f32.mrf.mxu0
        %v2285 = vadd.f32 0.0, %v2284
        %v2286 = vpop.f32.mrf.mxu0
        %v2287 = vadd.f32 0.0, %v2286
        %2288 = vmatmul.bf16.gmra.mxu0 %v2016
        %v2289 = vpop.f32.mrf.mxu0
        %v2290 = vadd.f32 0.0, %v2289
        %v2291 = vpop.f32.mrf.mxu0
        %v2292 = vadd.f32 0.0, %v2291
        %2293 = vdwg.mxu0
        %v2294 = vadd.f32 %v1658, %v2037
        %v2295 = vadd.f32 %v1659, %v2126
        %v2296 = vadd.f32 %v1660, %v2215
        %v2297 = vadd.f32 %v1661, %v2039
        %v2298 = vadd.f32 %v1662, %v2128
        %v2299 = vadd.f32 %v1663, %v2217
        %v2300 = vadd.f32 %v1664, %v2042
        %v2301 = vadd.f32 %v1665, %v2131
        %v2302 = vadd.f32 %v1666, %v2220
        %v2303 = vadd.f32 %v1667, %v2044
        %v2304 = vadd.f32 %v1668, %v2133
        %v2305 = vadd.f32 %v1669, %v2222
        %v2306 = vadd.f32 %v1670, %v2047
        %v2307 = vadd.f32 %v1671, %v2136
        %v2308 = vadd.f32 %v1672, %v2225
        %v2309 = vadd.f32 %v1673, %v2049
        %v2310 = vadd.f32 %v1674, %v2138
        %v2311 = vadd.f32 %v1675, %v2227
        %v2312 = vadd.f32 %v1676, %v2052
        %v2313 = vadd.f32 %v1677, %v2141
        %v2314 = vadd.f32 %v1678, %v2230
        %v2315 = vadd.f32 %v1679, %v2054
        %v2316 = vadd.f32 %v1680, %v2143
        %v2317 = vadd.f32 %v1681, %v2232
        %v2318 = vadd.f32 %v1682, %v2057
        %v2319 = vadd.f32 %v1683, %v2146
        %v2320 = vadd.f32 %v1684, %v2235
        %v2321 = vadd.f32 %v1685, %v2059
        %v2322 = vadd.f32 %v1686, %v2148
        %v2323 = vadd.f32 %v1687, %v2237
        %v2324 = vadd.f32 %v1688, %v2062
        %v2325 = vadd.f32 %v1689, %v2151
        %v2326 = vadd.f32 %v1690, %v2240
        %v2327 = vadd.f32 %v1691, %v2064
        %v2328 = vadd.f32 %v1692, %v2153
        %v2329 = vadd.f32 %v1693, %v2242
        %v2330 = vadd.f32 %v1694, %v2067
        %v2331 = vadd.f32 %v1695, %v2156
        %v2332 = vadd.f32 %v1696, %v2245
        %v2333 = vadd.f32 %v1697, %v2069
        %v2334 = vadd.f32 %v1698, %v2158
        %v2335 = vadd.f32 %v1699, %v2247
        %v2336 = vadd.f32 %v1700, %v2072
        %v2337 = vadd.f32 %v1701, %v2161
        %v2338 = vadd.f32 %v1702, %v2250
        %v2339 = vadd.f32 %v1703, %v2074
        %v2340 = vadd.f32 %v1704, %v2163
        %v2341 = vadd.f32 %v1705, %v2252
        %v2342 = vadd.f32 %v1706, %v2077
        %v2343 = vadd.f32 %v1707, %v2166
        %v2344 = vadd.f32 %v1708, %v2255
        %v2345 = vadd.f32 %v1709, %v2079
        %v2346 = vadd.f32 %v1710, %v2168
        %v2347 = vadd.f32 %v1711, %v2257
        %v2348 = vadd.f32 %v1712, %v2082
        %v2349 = vadd.f32 %v1713, %v2171
        %v2350 = vadd.f32 %v1714, %v2260
        %v2351 = vadd.f32 %v1715, %v2084
        %v2352 = vadd.f32 %v1716, %v2173
        %v2353 = vadd.f32 %v1717, %v2262
        %v2354 = vadd.f32 %v1718, %v2087
        %v2355 = vadd.f32 %v1719, %v2176
        %v2356 = vadd.f32 %v1720, %v2265
        %v2357 = vadd.f32 %v1721, %v2089
        %v2358 = vadd.f32 %v1722, %v2178
        %v2359 = vadd.f32 %v1723, %v2267
        %v2360 = vadd.f32 %v1724, %v2092
        %v2361 = vadd.f32 %v1725, %v2181
        %v2362 = vadd.f32 %v1726, %v2270
        %v2363 = vadd.f32 %v1727, %v2094
        %v2364 = vadd.f32 %v1728, %v2183
        %v2365 = vadd.f32 %v1729, %v2272
        %v2366 = vadd.f32 %v1730, %v2097
        %v2367 = vadd.f32 %v1731, %v2186
        %v2368 = vadd.f32 %v1732, %v2275
        %v2369 = vadd.f32 %v1733, %v2099
        %v2370 = vadd.f32 %v1734, %v2188
        %v2371 = vadd.f32 %v1735, %v2277
        %v2372 = vadd.f32 %v1736, %v2102
        %v2373 = vadd.f32 %v1737, %v2191
        %v2374 = vadd.f32 %v1738, %v2280
        %v2375 = vadd.f32 %v1739, %v2104
        %v2376 = vadd.f32 %v1740, %v2193
        %v2377 = vadd.f32 %v1741, %v2282
        %v2378 = vadd.f32 %v1742, %v2107
        %v2379 = vadd.f32 %v1743, %v2196
        %v2380 = vadd.f32 %v1744, %v2285
        %v2381 = vadd.f32 %v1745, %v2109
        %v2382 = vadd.f32 %v1746, %v2198
        %v2383 = vadd.f32 %v1747, %v2287
        %v2384 = vadd.f32 %v1748, %v2112
        %v2385 = vadd.f32 %v1749, %v2201
        %v2386 = vadd.f32 %v1750, %v2290
        %v2387 = vadd.f32 %v1751, %v2114
        %v2388 = vadd.f32 %v1752, %v2203
        %v2389 = vadd.f32 %v1753, %v2292
        %2390 = vst [vmem:[#allocation2] sm:$0xff] %v2294
        %2391 = vst [vmem:[#allocation2 + $0x8] sm:$0xff] %v2295
        %2392 = vst.msk [vmem:[#allocation2 + $0x10] sm:$0xff] %vm735, %v2296
        %2393 = vst [vmem:[#allocation2 + $0x18] sm:$0xff] %v2297
        %2394 = vst [vmem:[#allocation2 + $0x20] sm:$0xff] %v2298
        %2395 = vst.msk [vmem:[#allocation2 + $0x28] sm:$0xff] %vm735, %v2299
        %2396 = vst [vmem:[#allocation2 + $0x30] sm:$0xff] %v2300
        %2397 = vst [vmem:[#allocation2 + $0x38] sm:$0xff] %v2301
        %2398 = vst.msk [vmem:[#allocation2 + $0x40] sm:$0xff] %vm735, %v2302
        %2399 = vst [vmem:[#allocation2 + $0x48] sm:$0xff] %v2303
        %2400 = vst [vmem:[#allocation2 + $0x50] sm:$0xff] %v2304
        %2401 = vst.msk [vmem:[#allocation2 + $0x58] sm:$0xff] %vm735, %v2305
        %2402 = vst [vmem:[#allocation2 + $0x60] sm:$0xff] %v2306
        %2403 = vst [vmem:[#allocation2 + $0x68] sm:$0xff] %v2307
        %2404 = vst.msk [vmem:[#allocation2 + $0x70] sm:$0xff] %vm735, %v2308
        %2405 = vst [vmem:[#allocation2 + $0x78] sm:$0xff] %v2309
        %2406 = vst [vmem:[#allocation2 + $0x80] sm:$0xff] %v2310
        %2407 = vst.msk [vmem:[#allocation2 + $0x88] sm:$0xff] %vm735, %v2311
        %2408 = vst [vmem:[#allocation2 + $0x90] sm:$0xff] %v2312
        %2409 = vst [vmem:[#allocation2 + $0x98] sm:$0xff] %v2313
        %2410 = vst.msk [vmem:[#allocation2 + $0xa0] sm:$0xff] %vm735, %v2314
        %2411 = vst [vmem:[#allocation2 + $0xa8] sm:$0xff] %v2315
        %2412 = vst [vmem:[#allocation2 + $0xb0] sm:$0xff] %v2316
        %2413 = vst.msk [vmem:[#allocation2 + $0xb8] sm:$0xff] %vm735, %v2317
        %2414 = vst [vmem:[#allocation2 + $0xc0] sm:$0xff] %v2318
        %2415 = vst [vmem:[#allocation2 + $0xc8] sm:$0xff] %v2319
        %2416 = vst.msk [vmem:[#allocation2 + $0xd0] sm:$0xff] %vm735, %v2320
        %2417 = vst [vmem:[#allocation2 + $0xd8] sm:$0xff] %v2321
        %2418 = vst [vmem:[#allocation2 + $0xe0] sm:$0xff] %v2322
        %2419 = vst.msk [vmem:[#allocation2 + $0xe8] sm:$0xff] %vm735, %v2323
        %2420 = vst [vmem:[#allocation2 + $0xf0] sm:$0xff] %v2324
        %2421 = vst [vmem:[#allocation2 + $0xf8] sm:$0xff] %v2325
        %2422 = vst.msk [vmem:[#allocation2 + $0x100] sm:$0xff] %vm735, %v2326
        %2423 = vst [vmem:[#allocation2 + $0x108] sm:$0xff] %v2327
        %2424 = vst [vmem:[#allocation2 + $0x110] sm:$0xff] %v2328
        %2425 = vst.msk [vmem:[#allocation2 + $0x118] sm:$0xff] %vm735, %v2329
        %2426 = vst [vmem:[#allocation2 + $0x120] sm:$0xff] %v2330
        %2427 = vst [vmem:[#allocation2 + $0x128] sm:$0xff] %v2331
        %2428 = vst.msk [vmem:[#allocation2 + $0x130] sm:$0xff] %vm735, %v2332
        %2429 = vst [vmem:[#allocation2 + $0x138] sm:$0xff] %v2333
        %2430 = vst [vmem:[#allocation2 + $0x140] sm:$0xff] %v2334
        %2431 = vst.msk [vmem:[#allocation2 + $0x148] sm:$0xff] %vm735, %v2335
        %2432 = vst [vmem:[#allocation2 + $0x150] sm:$0xff] %v2336
        %2433 = vst [vmem:[#allocation2 + $0x158] sm:$0xff] %v2337
        %2434 = vst.msk [vmem:[#allocation2 + $0x160] sm:$0xff] %vm735, %v2338
        %2435 = vst [vmem:[#allocation2 + $0x168] sm:$0xff] %v2339
        %2436 = vst [vmem:[#allocation2 + $0x170] sm:$0xff] %v2340
        %2437 = vst.msk [vmem:[#allocation2 + $0x178] sm:$0xff] %vm735, %v2341
        %2438 = vst [vmem:[#allocation2 + $0x180] sm:$0xff] %v2342
        %2439 = vst [vmem:[#allocation2 + $0x188] sm:$0xff] %v2343
        %2440 = vst.msk [vmem:[#allocation2 + $0x190] sm:$0xff] %vm735, %v2344
        %2441 = vst [vmem:[#allocation2 + $0x198] sm:$0xff] %v2345
        %2442 = vst [vmem:[#allocation2 + $0x1a0] sm:$0xff] %v2346
        %2443 = vst.msk [vmem:[#allocation2 + $0x1a8] sm:$0xff] %vm735, %v2347
        %2444 = vst [vmem:[#allocation2 + $0x1b0] sm:$0xff] %v2348
        %2445 = vst [vmem:[#allocation2 + $0x1b8] sm:$0xff] %v2349
        %2446 = vst.msk [vmem:[#allocation2 + $0x1c0] sm:$0xff] %vm735, %v2350
        %2447 = vst [vmem:[#allocation2 + $0x1c8] sm:$0xff] %v2351
        %2448 = vst [vmem:[#allocation2 + $0x1d0] sm:$0xff] %v2352
        %2449 = vst.msk [vmem:[#allocation2 + $0x1d8] sm:$0xff] %vm735, %v2353
        %2450 = vst [vmem:[#allocation2 + $0x1e0] sm:$0xff] %v2354
        %2451 = vst [vmem:[#allocation2 + $0x1e8] sm:$0xff] %v2355
        %2452 = vst.msk [vmem:[#allocation2 + $0x1f0] sm:$0xff] %vm735, %v2356
        %2453 = vst [vmem:[#allocation2 + $0x1f8] sm:$0xff] %v2357
        %2454 = vst [vmem:[#allocation2 + $0x200] sm:$0xff] %v2358
        %2455 = vst.msk [vmem:[#allocation2 + $0x208] sm:$0xff] %vm735, %v2359
        %2456 = vst [vmem:[#allocation2 + $0x210] sm:$0xff] %v2360
        %2457 = vst [vmem:[#allocation2 + $0x218] sm:$0xff] %v2361
        %2458 = vst.msk [vmem:[#allocation2 + $0x220] sm:$0xff] %vm735, %v2362
        %2459 = vst [vmem:[#allocation2 + $0x228] sm:$0xff] %v2363
        %2460 = vst [vmem:[#allocation2 + $0x230] sm:$0xff] %v2364
        %2461 = vst.msk [vmem:[#allocation2 + $0x238] sm:$0xff] %vm735, %v2365
        %2462 = vst [vmem:[#allocation2 + $0x240] sm:$0xff] %v2366
        %2463 = vst [vmem:[#allocation2 + $0x248] sm:$0xff] %v2367
        %2464 = vst.msk [vmem:[#allocation2 + $0x250] sm:$0xff] %vm735, %v2368
        %2465 = vst [vmem:[#allocation2 + $0x258] sm:$0xff] %v2369
        %2466 = vst [vmem:[#allocation2 + $0x260] sm:$0xff] %v2370
        %2467 = vst.msk [vmem:[#allocation2 + $0x268] sm:$0xff] %vm735, %v2371
        %2468 = vst [vmem:[#allocation2 + $0x270] sm:$0xff] %v2372
        %2469 = vst [vmem:[#allocation2 + $0x278] sm:$0xff] %v2373
        %2470 = vst.msk [vmem:[#allocation2 + $0x280] sm:$0xff] %vm735, %v2374
        %2471 = vst [vmem:[#allocation2 + $0x288] sm:$0xff] %v2375
        %2472 = vst [vmem:[#allocation2 + $0x290] sm:$0xff] %v2376
        %2473 = vst.msk [vmem:[#allocation2 + $0x298] sm:$0xff] %vm735, %v2377
        %2474 = vst [vmem:[#allocation2 + $0x2a0] sm:$0xff] %v2378
        %2475 = vst [vmem:[#allocation2 + $0x2a8] sm:$0xff] %v2379
        %2476 = vst.msk [vmem:[#allocation2 + $0x2b0] sm:$0xff] %vm735, %v2380
        %2477 = vst [vmem:[#allocation2 + $0x2b8] sm:$0xff] %v2381
        %2478 = vst [vmem:[#allocation2 + $0x2c0] sm:$0xff] %v2382
        %2479 = vst.msk [vmem:[#allocation2 + $0x2c8] sm:$0xff] %vm735, %v2383
        %2480 = vst [vmem:[#allocation2 + $0x2d0] sm:$0xff] %v2384
        %2481 = vst [vmem:[#allocation2 + $0x2d8] sm:$0xff] %v2385
        %2482 = vst.msk [vmem:[#allocation2 + $0x2e0] sm:$0xff] %vm735, %v2386
        %2483 = vst [vmem:[#allocation2 + $0x2e8] sm:$0xff] %v2387
        %2484 = vst [vmem:[#allocation2 + $0x2f0] sm:$0xff] %v2388
        %2485 = vst.msk [vmem:[#allocation2 + $0x2f8] sm:$0xff] %vm735, %v2389
        %v2486 = vld [vmem:[#allocation2] sm:$0xff]
        %v2487 = vld [vmem:[#allocation2 + $0x8] sm:$0xff]
        %v2488 = vld [vmem:[#allocation2 + $0x10] sm:$0xff]
        %v2489 = vld [vmem:[#allocation2 + $0x18] sm:$0xff]
        %v2490 = vld [vmem:[#allocation2 + $0x20] sm:$0xff]
        %v2491 = vld [vmem:[#allocation2 + $0x28] sm:$0xff]
        %v2492 = vld [vmem:[#allocation2 + $0x30] sm:$0xff]
        %v2493 = vld [vmem:[#allocation2 + $0x38] sm:$0xff]
        %v2494 = vld [vmem:[#allocation2 + $0x40] sm:$0xff]
        %v2495 = vld [vmem:[#allocation2 + $0x48] sm:$0xff]
        %v2496 = vld [vmem:[#allocation2 + $0x50] sm:$0xff]
        %v2497 = vld [vmem:[#allocation2 + $0x58] sm:$0xff]
        %v2498 = vld [vmem:[#allocation2 + $0x60] sm:$0xff]
        %v2499 = vld [vmem:[#allocation2 + $0x68] sm:$0xff]
        %v2500 = vld [vmem:[#allocation2 + $0x70] sm:$0xff]
        %v2501 = vld [vmem:[#allocation2 + $0x78] sm:$0xff]
        %v2502 = vld [vmem:[#allocation2 + $0x80] sm:$0xff]
        %v2503 = vld [vmem:[#allocation2 + $0x88] sm:$0xff]
        %v2504 = vld [vmem:[#allocation2 + $0x90] sm:$0xff]
        %v2505 = vld [vmem:[#allocation2 + $0x98] sm:$0xff]
        %v2506 = vld [vmem:[#allocation2 + $0xa0] sm:$0xff]
        %v2507 = vld [vmem:[#allocation2 + $0xa8] sm:$0xff]
        %v2508 = vld [vmem:[#allocation2 + $0xb0] sm:$0xff]
        %v2509 = vld [vmem:[#allocation2 + $0xb8] sm:$0xff]
        %v2510 = vld [vmem:[#allocation2 + $0xc0] sm:$0xff]
        %v2511 = vld [vmem:[#allocation2 + $0xc8] sm:$0xff]
        %v2512 = vld [vmem:[#allocation2 + $0xd0] sm:$0xff]
        %v2513 = vld [vmem:[#allocation2 + $0xd8] sm:$0xff]
        %v2514 = vld [vmem:[#allocation2 + $0xe0] sm:$0xff]
        %v2515 = vld [vmem:[#allocation2 + $0xe8] sm:$0xff]
        %v2516 = vld [vmem:[#allocation2 + $0xf0] sm:$0xff]
        %v2517 = vld [vmem:[#allocation2 + $0xf8] sm:$0xff]
        %v2518 = vld [vmem:[#allocation2 + $0x100] sm:$0xff]
        %v2519 = vld [vmem:[#allocation2 + $0x108] sm:$0xff]
        %v2520 = vld [vmem:[#allocation2 + $0x110] sm:$0xff]
        %v2521 = vld [vmem:[#allocation2 + $0x118] sm:$0xff]
        %v2522 = vld [vmem:[#allocation2 + $0x120] sm:$0xff]
        %v2523 = vld [vmem:[#allocation2 + $0x128] sm:$0xff]
        %v2524 = vld [vmem:[#allocation2 + $0x130] sm:$0xff]
        %v2525 = vld [vmem:[#allocation2 + $0x138] sm:$0xff]
        %v2526 = vld [vmem:[#allocation2 + $0x140] sm:$0xff]
        %v2527 = vld [vmem:[#allocation2 + $0x148] sm:$0xff]
        %v2528 = vld [vmem:[#allocation2 + $0x150] sm:$0xff]
        %v2529 = vld [vmem:[#allocation2 + $0x158] sm:$0xff]
        %v2530 = vld [vmem:[#allocation2 + $0x160] sm:$0xff]
        %v2531 = vld [vmem:[#allocation2 + $0x168] sm:$0xff]
        %v2532 = vld [vmem:[#allocation2 + $0x170] sm:$0xff]
        %v2533 = vld [vmem:[#allocation2 + $0x178] sm:$0xff]
        %v2534 = vld [vmem:[#allocation2 + $0x180] sm:$0xff]
        %v2535 = vld [vmem:[#allocation2 + $0x188] sm:$0xff]
        %v2536 = vld [vmem:[#allocation2 + $0x190] sm:$0xff]
        %v2537 = vld [vmem:[#allocation2 + $0x198] sm:$0xff]
        %v2538 = vld [vmem:[#allocation2 + $0x1a0] sm:$0xff]
        %v2539 = vld [vmem:[#allocation2 + $0x1a8] sm:$0xff]
        %v2540 = vld [vmem:[#allocation2 + $0x1b0] sm:$0xff]
        %v2541 = vld [vmem:[#allocation2 + $0x1b8] sm:$0xff]
        %v2542 = vld [vmem:[#allocation2 + $0x1c0] sm:$0xff]
        %v2543 = vld [vmem:[#allocation2 + $0x1c8] sm:$0xff]
        %v2544 = vld [vmem:[#allocation2 + $0x1d0] sm:$0xff]
        %v2545 = vld [vmem:[#allocation2 + $0x1d8] sm:$0xff]
        %v2546 = vld [vmem:[#allocation2 + $0x1e0] sm:$0xff]
        %v2547 = vld [vmem:[#allocation2 + $0x1e8] sm:$0xff]
        %v2548 = vld [vmem:[#allocation2 + $0x1f0] sm:$0xff]
        %v2549 = vld [vmem:[#allocation2 + $0x1f8] sm:$0xff]
        %v2550 = vld [vmem:[#allocation2 + $0x200] sm:$0xff]
        %v2551 = vld [vmem:[#allocation2 + $0x208] sm:$0xff]
        %v2552 = vld [vmem:[#allocation2 + $0x210] sm:$0xff]
        %v2553 = vld [vmem:[#allocation2 + $0x218] sm:$0xff]
        %v2554 = vld [vmem:[#allocation2 + $0x220] sm:$0xff]
        %v2555 = vld [vmem:[#allocation2 + $0x228] sm:$0xff]
        %v2556 = vld [vmem:[#allocation2 + $0x230] sm:$0xff]
        %v2557 = vld [vmem:[#allocation2 + $0x238] sm:$0xff]
        %v2558 = vld [vmem:[#allocation2 + $0x240] sm:$0xff]
        %v2559 = vld [vmem:[#allocation2 + $0x248] sm:$0xff]
        %v2560 = vld [vmem:[#allocation2 + $0x250] sm:$0xff]
        %v2561 = vld [vmem:[#allocation2 + $0x258] sm:$0xff]
        %v2562 = vld [vmem:[#allocation2 + $0x260] sm:$0xff]
        %v2563 = vld [vmem:[#allocation2 + $0x268] sm:$0xff]
        %v2564 = vld [vmem:[#allocation2 + $0x270] sm:$0xff]
        %v2565 = vld [vmem:[#allocation2 + $0x278] sm:$0xff]
        %v2566 = vld [vmem:[#allocation2 + $0x280] sm:$0xff]
        %v2567 = vld [vmem:[#allocation2 + $0x288] sm:$0xff]
        %v2568 = vld [vmem:[#allocation2 + $0x290] sm:$0xff]
        %v2569 = vld [vmem:[#allocation2 + $0x298] sm:$0xff]
        %v2570 = vld [vmem:[#allocation2 + $0x2a0] sm:$0xff]
        %v2571 = vld [vmem:[#allocation2 + $0x2a8] sm:$0xff]
        %v2572 = vld [vmem:[#allocation2 + $0x2b0] sm:$0xff]
        %v2573 = vld [vmem:[#allocation2 + $0x2b8] sm:$0xff]
        %v2574 = vld [vmem:[#allocation2 + $0x2c0] sm:$0xff]
        %v2575 = vld [vmem:[#allocation2 + $0x2c8] sm:$0xff]
        %v2576 = vld [vmem:[#allocation2 + $0x2d0] sm:$0xff]
        %v2577 = vld [vmem:[#allocation2 + $0x2d8] sm:$0xff]
        %v2578 = vld [vmem:[#allocation2 + $0x2e0] sm:$0xff]
        %v2579 = vld [vmem:[#allocation2 + $0x2e8] sm:$0xff]
        %v2580 = vld [vmem:[#allocation2 + $0x2f0] sm:$0xff]
        %v2581 = vld [vmem:[#allocation2 + $0x2f8] sm:$0xff]
        %s2582 = scalar_lea.vmem %s1, 384
        %v2583 = vld [vmem:[%s2582] sm:$0xf]
        %v2584 = vld [vmem:[%s2582 + $0x4] sm:$0xf]
        %v2585 = vld [vmem:[%s2582 + $0x8] sm:$0xf]
        %v2586 = vld [vmem:[%s2582 + $0xc] sm:$0xf]
        %v2587 = vld [vmem:[%s2582 + $0x10] sm:$0xf]
        %v2588 = vld [vmem:[%s2582 + $0x14] sm:$0xf]
        %v2589 = vld [vmem:[%s2582 + $0x18] sm:$0xf]
        %v2590 = vld [vmem:[%s2582 + $0x1c] sm:$0xf]
        %v2591 = vld [vmem:[%s2582 + $0x20] sm:$0xf]
        %v2592 = vld [vmem:[%s2582 + $0x24] sm:$0xf]
        %v2593 = vld [vmem:[%s2582 + $0x28] sm:$0xf]
        %v2594 = vld [vmem:[%s2582 + $0x2c] sm:$0xf]
        %v2595 = vld [vmem:[%s2582 + $0x30] sm:$0xf]
        %v2596 = vld [vmem:[%s2582 + $0x34] sm:$0xf]
        %v2597 = vld [vmem:[%s2582 + $0x38] sm:$0xf]
        %v2598 = vld [vmem:[%s2582 + $0x3c] sm:$0xf]
        %v2599 = vld [vmem:[%s2582 + $0x40] sm:$0xf]
        %v2600 = vld [vmem:[%s2582 + $0x44] sm:$0xf]
        %v2601 = vld [vmem:[%s2582 + $0x48] sm:$0xf]
        %v2602 = vld [vmem:[%s2582 + $0x4c] sm:$0xf]
        %v2603 = vld [vmem:[%s2582 + $0x50] sm:$0xf]
        %v2604 = vld [vmem:[%s2582 + $0x54] sm:$0xf]
        %v2605 = vld [vmem:[%s2582 + $0x58] sm:$0xf]
        %v2606 = vld [vmem:[%s2582 + $0x5c] sm:$0xf]
        %v2607 = vld [vmem:[%s2582 + $0x60] sm:$0xf]
        %v2608 = vld [vmem:[%s2582 + $0x64] sm:$0xf]
        %v2609 = vld [vmem:[%s2582 + $0x68] sm:$0xf]
        %v2610 = vld [vmem:[%s2582 + $0x6c] sm:$0xf]
        %v2611 = vld [vmem:[%s2582 + $0x70] sm:$0xf]
        %v2612 = vld [vmem:[%s2582 + $0x74] sm:$0xf]
        %v2613 = vld [vmem:[%s2582 + $0x78] sm:$0xf]
        %v2614 = vld [vmem:[%s2582 + $0x7c] sm:$0xf]
        %v2615 = vld [vmem:[%s183] sm:$0xff]
        %v2616 = vld [vmem:[%s183 + $0x8] sm:$0xf]
        %v2617 = vld [vmem:[%s183 + $0xc] sm:$0xff]
        %v2618 = vld [vmem:[%s183 + $0x14] sm:$0xf]
        %v2619 = vld [vmem:[%s183 + $0x18] sm:$0xff]
        %v2620 = vld [vmem:[%s183 + $0x20] sm:$0xf]
        %v2621 = vld [vmem:[%s183 + $0x24] sm:$0xff]
        %v2622 = vld [vmem:[%s183 + $0x2c] sm:$0xf]
        %v2623 = vld [vmem:[%s183 + $0x30] sm:$0xff]
        %v2624 = vld [vmem:[%s183 + $0x38] sm:$0xf]
        %v2625 = vld [vmem:[%s183 + $0x3c] sm:$0xff]
        %v2626 = vld [vmem:[%s183 + $0x44] sm:$0xf]
        %v2627 = vld [vmem:[%s183 + $0x48] sm:$0x11]
        %v2628 = vld [vmem:[%s183 + $0x50] sm:$0x1]
        %v2661 = vunpack.c.l.b16 %v2583
        %v2662 = vunpack.c.l.b16 %v2584
        %v2663 = vunpack.c.l.b16 %v2585
        %v2664 = vunpack.c.l.b16 %v2586
        %v2665 = vunpack.c.l.b16 %v2587
        %v2666 = vunpack.c.l.b16 %v2588
        %v2667 = vunpack.c.l.b16 %v2589
        %v2668 = vunpack.c.l.b16 %v2590
        %v2669 = vunpack.c.l.b16 %v2591
        %v2670 = vunpack.c.l.b16 %v2592
        %v2671 = vunpack.c.l.b16 %v2593
        %v2672 = vunpack.c.l.b16 %v2594
        %v2673 = vunpack.c.l.b16 %v2595
        %v2674 = vunpack.c.l.b16 %v2596
        %v2675 = vunpack.c.l.b16 %v2597
        %v2676 = vunpack.c.l.b16 %v2598
        %v2677 = vunpack.c.l.b16 %v2599
        %v2678 = vunpack.c.l.b16 %v2600
        %v2679 = vunpack.c.l.b16 %v2601
        %v2680 = vunpack.c.l.b16 %v2602
        %v2681 = vunpack.c.l.b16 %v2603
        %v2682 = vunpack.c.l.b16 %v2604
        %v2683 = vunpack.c.l.b16 %v2605
        %v2684 = vunpack.c.l.b16 %v2606
        %v2685 = vunpack.c.l.b16 %v2607
        %v2686 = vunpack.c.l.b16 %v2608
        %v2687 = vunpack.c.l.b16 %v2609
        %v2688 = vunpack.c.l.b16 %v2610
        %v2689 = vunpack.c.l.b16 %v2611
        %v2690 = vunpack.c.l.b16 %v2612
        %v2691 = vunpack.c.l.b16 %v2613
        %v2692 = vunpack.c.l.b16 %v2614
        %v2693 = vpack.c.b16 %v2662, %v2661
        %v2694 = vpack.c.b16 %v2664, %v2663
        %v2695 = vpack.c.b16 %v2666, %v2665
        %v2696 = vpack.c.b16 %v2668, %v2667
        %v2697 = vpack.c.b16 %v2670, %v2669
        %v2698 = vpack.c.b16 %v2672, %v2671
        %v2699 = vpack.c.b16 %v2674, %v2673
        %v2700 = vpack.c.b16 %v2676, %v2675
        %v2701 = vpack.c.b16 %v2678, %v2677
        %v2702 = vpack.c.b16 %v2680, %v2679
        %v2703 = vpack.c.b16 %v2682, %v2681
        %v2704 = vpack.c.b16 %v2684, %v2683
        %v2705 = vpack.c.b16 %v2686, %v2685
        %v2706 = vpack.c.b16 %v2688, %v2687
        %v2707 = vpack.c.b16 %v2690, %v2689
        %v2708 = vpack.c.b16 %v2692, %v2691
        %v2723 = vunpack.c.l.b16 %v2615
        %v2724 = vunpack.c.h.b16 %v2615
        %v2725 = vunpack.c.l.b16 %v2616
        %v2726 = vunpack.c.l.b16 %v2617
        %v2727 = vunpack.c.h.b16 %v2617
        %v2728 = vunpack.c.l.b16 %v2618
        %v2729 = vunpack.c.l.b16 %v2619
        %v2730 = vunpack.c.h.b16 %v2619
        %v2731 = vunpack.c.l.b16 %v2620
        %v2732 = vunpack.c.l.b16 %v2621
        %v2733 = vunpack.c.h.b16 %v2621
        %v2734 = vunpack.c.l.b16 %v2622
        %v2735 = vunpack.c.l.b16 %v2623
        %v2736 = vunpack.c.h.b16 %v2623
        %v2737 = vunpack.c.l.b16 %v2624
        %v2738 = vunpack.c.l.b16 %v2625
        %v2739 = vunpack.c.h.b16 %v2625
        %v2740 = vunpack.c.l.b16 %v2626
        %v2741 = vunpack.c.l.b16 %v2627
        %v2742 = vunpack.c.h.b16 %v2627
        %v2743 = vunpack.c.l.b16 %v2628
        %v2744 = vpack.c.b16 %v2726, %v2723
        %v2745 = vpack.c.b16 %v2727, %v2724
        %v2746 = vpack.c.b16 %v2728, %v2725
        %v2747 = vpack.c.b16 %v2732, %v2729
        %v2748 = vpack.c.b16 %v2733, %v2730
        %v2749 = vpack.c.b16 %v2734, %v2731
        %v2750 = vpack.c.b16 %v2738, %v2735
        %v2751 = vpack.c.b16 %v2739, %v2736
        %v2752 = vpack.c.b16 %v2740, %v2737
        %v2753 = vpack.c.b16 %v2741, %v2741
        %v2754 = vpack.c.b16 %v2742, %v2742
        %v2755 = vpack.c.b16 %v2743, %v2743
        %2756 = vrot.lane.b32.xlu0 %v2744, 97
        %v2757 = vpop.permute.xlu0 %2756
        %2758 = vrot.lane.b32.xlu0 %v2745, 97
        %v2759 = vpop.permute.xlu0 %2758
        %2760 = vrot.lane.b32.xlu0 %v2746, 97
        %v2761 = vpop.permute.xlu0 %2760
        %2762 = vrot.lane.b32.xlu0 %v2747, 97
        %v2763 = vpop.permute.xlu0 %2762
        %2764 = vrot.lane.b32.xlu0 %v2748, 97
        %v2765 = vpop.permute.xlu0 %2764
        %2766 = vrot.lane.b32.xlu0 %v2749, 97
        %v2767 = vpop.permute.xlu0 %2766
        %2768 = vrot.lane.b32.xlu0 %v2750, 97
        %v2769 = vpop.permute.xlu0 %2768
        %2770 = vrot.lane.b32.xlu0 %v2751, 97
        %v2771 = vpop.permute.xlu0 %2770
        %2772 = vrot.lane.b32.xlu0 %v2752, 97
        %v2773 = vpop.permute.xlu0 %2772
        %2774 = vrot.lane.b32.xlu0 %v2753, 97
        %v2775 = vpop.permute.xlu0 %2774
        %2776 = vrot.lane.b32.xlu0 %v2754, 97
        %v2777 = vpop.permute.xlu0 %2776
        %2778 = vrot.lane.b32.xlu0 %v2755, 97
        %v2779 = vpop.permute.xlu0 %2778
        %vm2780 = vcmask 793600
        %v2781 = vsel %vm2780, %v2757, %v2759
        %v2782 = vsel %vm2780, %v2759, %v2761
        %v2783 = vsel %vm2780, %v2763, %v2765
        %v2784 = vsel %vm2780, %v2765, %v2767
        %v2785 = vsel %vm2780, %v2769, %v2771
        %v2786 = vsel %vm2780, %v2771, %v2773
        %v2787 = vsel %vm2780, %v2775, %v2777
        %v2788 = vsel %vm2780, %v2777, %v2779
        %v2799 = vsel %vm405, %v2693, 0
        %v2802 = vsel %vm405, %v2694, 0
        %v2805 = vsel %vm405, %v2695, 0
        %v2808 = vsel %vm405, %v2696, 0
        %v2811 = vsel %vm405, %v2697, 0
        %v2814 = vsel %vm405, %v2698, 0
        %v2817 = vsel %vm405, %v2699, 0
        %v2820 = vsel %vm405, %v2700, 0
        %v2823 = vsel %vm405, %v2701, 0
        %v2826 = vsel %vm405, %v2702, 0
        %v2829 = vsel %vm405, %v2703, 0
        %v2832 = vsel %vm405, %v2704, 0
        %v2835 = vsel %vm405, %v2705, 0
        %v2838 = vsel %vm405, %v2706, 0
        %v2841 = vsel %vm405, %v2707, 0
        %v2844 = vsel %vm405, %v2708, 0
        %v2847 = vand.u32 %v2787, %v456
        %v2850 = vand.u32 %v2788, %v456
        %v2853 = vand.u32 %v2779, %v456
        %2855 = vmatpush.bf16.msra.mxu0 0
        %2856 = vmatpush.bf16.msra.mxu0 0
        %2857 = vmatpush.bf16.msra.mxu0 0
        %2858 = vmatpush.bf16.msra.mxu0 0
        %2859 = vmatpush.bf16.msra.mxu0 %v2847
        %2860 = vmatpush.bf16.msra.mxu0 %v2785
        %2861 = vmatpush.bf16.msra.mxu0 %v2783
        %2862 = vmatpush.bf16.msra.mxu0 %v2781
        %2863 = vmatmul.bf16.gmra.mxu0 %v2799
        %v2864 = vpop.f32.mrf.mxu0
        %v2865 = vadd.f32 0.0, %v2864
        %v2866 = vpop.f32.mrf.mxu0
        %v2867 = vadd.f32 0.0, %v2866
        %2868 = vmatmul.bf16.gmra.mxu0 %v2802
        %v2869 = vpop.f32.mrf.mxu0
        %v2870 = vadd.f32 0.0, %v2869
        %v2871 = vpop.f32.mrf.mxu0
        %v2872 = vadd.f32 0.0, %v2871
        %2873 = vmatmul.bf16.gmra.mxu0 %v2805
        %v2874 = vpop.f32.mrf.mxu0
        %v2875 = vadd.f32 0.0, %v2874
        %v2876 = vpop.f32.mrf.mxu0
        %v2877 = vadd.f32 0.0, %v2876
        %2878 = vmatmul.bf16.gmra.mxu0 %v2808
        %v2879 = vpop.f32.mrf.mxu0
        %v2880 = vadd.f32 0.0, %v2879
        %v2881 = vpop.f32.mrf.mxu0
        %v2882 = vadd.f32 0.0, %v2881
        %2883 = vmatmul.bf16.gmra.mxu0 %v2811
        %v2884 = vpop.f32.mrf.mxu0
        %v2885 = vadd.f32 0.0, %v2884
        %v2886 = vpop.f32.mrf.mxu0
        %v2887 = vadd.f32 0.0, %v2886
        %2888 = vmatmul.bf16.gmra.mxu0 %v2814
        %v2889 = vpop.f32.mrf.mxu0
        %v2890 = vadd.f32 0.0, %v2889
        %v2891 = vpop.f32.mrf.mxu0
        %v2892 = vadd.f32 0.0, %v2891
        %2893 = vmatmul.bf16.gmra.mxu0 %v2817
        %v2894 = vpop.f32.mrf.mxu0
        %v2895 = vadd.f32 0.0, %v2894
        %v2896 = vpop.f32.mrf.mxu0
        %v2897 = vadd.f32 0.0, %v2896
        %2898 = vmatmul.bf16.gmra.mxu0 %v2820
        %v2899 = vpop.f32.mrf.mxu0
        %v2900 = vadd.f32 0.0, %v2899
        %v2901 = vpop.f32.mrf.mxu0
        %v2902 = vadd.f32 0.0, %v2901
        %2903 = vmatmul.bf16.gmra.mxu0 %v2823
        %v2904 = vpop.f32.mrf.mxu0
        %v2905 = vadd.f32 0.0, %v2904
        %v2906 = vpop.f32.mrf.mxu0
        %v2907 = vadd.f32 0.0, %v2906
        %2908 = vmatmul.bf16.gmra.mxu0 %v2826
        %v2909 = vpop.f32.mrf.mxu0
        %v2910 = vadd.f32 0.0, %v2909
        %v2911 = vpop.f32.mrf.mxu0
        %v2912 = vadd.f32 0.0, %v2911
        %2913 = vmatmul.bf16.gmra.mxu0 %v2829
        %v2914 = vpop.f32.mrf.mxu0
        %v2915 = vadd.f32 0.0, %v2914
        %v2916 = vpop.f32.mrf.mxu0
        %v2917 = vadd.f32 0.0, %v2916
        %2918 = vmatmul.bf16.gmra.mxu0 %v2832
        %v2919 = vpop.f32.mrf.mxu0
        %v2920 = vadd.f32 0.0, %v2919
        %v2921 = vpop.f32.mrf.mxu0
        %v2922 = vadd.f32 0.0, %v2921
        %2923 = vmatmul.bf16.gmra.mxu0 %v2835
        %v2924 = vpop.f32.mrf.mxu0
        %v2925 = vadd.f32 0.0, %v2924
        %v2926 = vpop.f32.mrf.mxu0
        %v2927 = vadd.f32 0.0, %v2926
        %2928 = vmatmul.bf16.gmra.mxu0 %v2838
        %v2929 = vpop.f32.mrf.mxu0
        %v2930 = vadd.f32 0.0, %v2929
        %v2931 = vpop.f32.mrf.mxu0
        %v2932 = vadd.f32 0.0, %v2931
        %2933 = vmatmul.bf16.gmra.mxu0 %v2841
        %v2934 = vpop.f32.mrf.mxu0
        %v2935 = vadd.f32 0.0, %v2934
        %v2936 = vpop.f32.mrf.mxu0
        %v2937 = vadd.f32 0.0, %v2936
        %2938 = vmatmul.bf16.gmra.mxu0 %v2844
        %v2939 = vpop.f32.mrf.mxu0
        %v2940 = vadd.f32 0.0, %v2939
        %v2941 = vpop.f32.mrf.mxu0
        %v2942 = vadd.f32 0.0, %v2941
        %2943 = vdwg.mxu0
        %2944 = vmatpush.bf16.msra.mxu0 0
        %2945 = vmatpush.bf16.msra.mxu0 0
        %2946 = vmatpush.bf16.msra.mxu0 0
        %2947 = vmatpush.bf16.msra.mxu0 0
        %2948 = vmatpush.bf16.msra.mxu0 %v2850
        %2949 = vmatpush.bf16.msra.mxu0 %v2786
        %2950 = vmatpush.bf16.msra.mxu0 %v2784
        %2951 = vmatpush.bf16.msra.mxu0 %v2782
        %2952 = vmatmul.bf16.gmra.mxu0 %v2799
        %v2953 = vpop.f32.mrf.mxu0
        %v2954 = vadd.f32 0.0, %v2953
        %v2955 = vpop.f32.mrf.mxu0
        %v2956 = vadd.f32 0.0, %v2955
        %2957 = vmatmul.bf16.gmra.mxu0 %v2802
        %v2958 = vpop.f32.mrf.mxu0
        %v2959 = vadd.f32 0.0, %v2958
        %v2960 = vpop.f32.mrf.mxu0
        %v2961 = vadd.f32 0.0, %v2960
        %2962 = vmatmul.bf16.gmra.mxu0 %v2805
        %v2963 = vpop.f32.mrf.mxu0
        %v2964 = vadd.f32 0.0, %v2963
        %v2965 = vpop.f32.mrf.mxu0
        %v2966 = vadd.f32 0.0, %v2965
        %2967 = vmatmul.bf16.gmra.mxu0 %v2808
        %v2968 = vpop.f32.mrf.mxu0
        %v2969 = vadd.f32 0.0, %v2968
        %v2970 = vpop.f32.mrf.mxu0
        %v2971 = vadd.f32 0.0, %v2970
        %2972 = vmatmul.bf16.gmra.mxu0 %v2811
        %v2973 = vpop.f32.mrf.mxu0
        %v2974 = vadd.f32 0.0, %v2973
        %v2975 = vpop.f32.mrf.mxu0
        %v2976 = vadd.f32 0.0, %v2975
        %2977 = vmatmul.bf16.gmra.mxu0 %v2814
        %v2978 = vpop.f32.mrf.mxu0
        %v2979 = vadd.f32 0.0, %v2978
        %v2980 = vpop.f32.mrf.mxu0
        %v2981 = vadd.f32 0.0, %v2980
        %2982 = vmatmul.bf16.gmra.mxu0 %v2817
        %v2983 = vpop.f32.mrf.mxu0
        %v2984 = vadd.f32 0.0, %v2983
        %v2985 = vpop.f32.mrf.mxu0
        %v2986 = vadd.f32 0.0, %v2985
        %2987 = vmatmul.bf16.gmra.mxu0 %v2820
        %v2988 = vpop.f32.mrf.mxu0
        %v2989 = vadd.f32 0.0, %v2988
        %v2990 = vpop.f32.mrf.mxu0
        %v2991 = vadd.f32 0.0, %v2990
        %2992 = vmatmul.bf16.gmra.mxu0 %v2823
        %v2993 = vpop.f32.mrf.mxu0
        %v2994 = vadd.f32 0.0, %v2993
        %v2995 = vpop.f32.mrf.mxu0
        %v2996 = vadd.f32 0.0, %v2995
        %2997 = vmatmul.bf16.gmra.mxu0 %v2826
        %v2998 = vpop.f32.mrf.mxu0
        %v2999 = vadd.f32 0.0, %v2998
        %v3000 = vpop.f32.mrf.mxu0
        %v3001 = vadd.f32 0.0, %v3000
        %3002 = vmatmul.bf16.gmra.mxu0 %v2829
        %v3003 = vpop.f32.mrf.mxu0
        %v3004 = vadd.f32 0.0, %v3003
        %v3005 = vpop.f32.mrf.mxu0
        %v3006 = vadd.f32 0.0, %v3005
        %3007 = vmatmul.bf16.gmra.mxu0 %v2832
        %v3008 = vpop.f32.mrf.mxu0
        %v3009 = vadd.f32 0.0, %v3008
        %v3010 = vpop.f32.mrf.mxu0
        %v3011 = vadd.f32 0.0, %v3010
        %3012 = vmatmul.bf16.gmra.mxu0 %v2835
        %v3013 = vpop.f32.mrf.mxu0
        %v3014 = vadd.f32 0.0, %v3013
        %v3015 = vpop.f32.mrf.mxu0
        %v3016 = vadd.f32 0.0, %v3015
        %3017 = vmatmul.bf16.gmra.mxu0 %v2838
        %v3018 = vpop.f32.mrf.mxu0
        %v3019 = vadd.f32 0.0, %v3018
        %v3020 = vpop.f32.mrf.mxu0
        %v3021 = vadd.f32 0.0, %v3020
        %3022 = vmatmul.bf16.gmra.mxu0 %v2841
        %v3023 = vpop.f32.mrf.mxu0
        %v3024 = vadd.f32 0.0, %v3023
        %v3025 = vpop.f32.mrf.mxu0
        %v3026 = vadd.f32 0.0, %v3025
        %3027 = vmatmul.bf16.gmra.mxu0 %v2844
        %v3028 = vpop.f32.mrf.mxu0
        %v3029 = vadd.f32 0.0, %v3028
        %v3030 = vpop.f32.mrf.mxu0
        %v3031 = vadd.f32 0.0, %v3030
        %3032 = vdwg.mxu0
        %3033 = vmatpush.bf16.msra.mxu0 0
        %3034 = vmatpush.bf16.msra.mxu0 0
        %3035 = vmatpush.bf16.msra.mxu0 0
        %3036 = vmatpush.bf16.msra.mxu0 0
        %3037 = vmatpush.bf16.msra.mxu0 %v2853
        %3038 = vmatpush.bf16.msra.mxu0 %v2773
        %3039 = vmatpush.bf16.msra.mxu0 %v2767
        %3040 = vmatpush.bf16.msra.mxu0 %v2761
        %3041 = vmatmul.bf16.gmra.mxu0 %v2799
        %v3042 = vpop.f32.mrf.mxu0
        %v3043 = vadd.f32 0.0, %v3042
        %v3044 = vpop.f32.mrf.mxu0
        %v3045 = vadd.f32 0.0, %v3044
        %3046 = vmatmul.bf16.gmra.mxu0 %v2802
        %v3047 = vpop.f32.mrf.mxu0
        %v3048 = vadd.f32 0.0, %v3047
        %v3049 = vpop.f32.mrf.mxu0
        %v3050 = vadd.f32 0.0, %v3049
        %3051 = vmatmul.bf16.gmra.mxu0 %v2805
        %v3052 = vpop.f32.mrf.mxu0
        %v3053 = vadd.f32 0.0, %v3052
        %v3054 = vpop.f32.mrf.mxu0
        %v3055 = vadd.f32 0.0, %v3054
        %3056 = vmatmul.bf16.gmra.mxu0 %v2808
        %v3057 = vpop.f32.mrf.mxu0
        %v3058 = vadd.f32 0.0, %v3057
        %v3059 = vpop.f32.mrf.mxu0
        %v3060 = vadd.f32 0.0, %v3059
        %3061 = vmatmul.bf16.gmra.mxu0 %v2811
        %v3062 = vpop.f32.mrf.mxu0
        %v3063 = vadd.f32 0.0, %v3062
        %v3064 = vpop.f32.mrf.mxu0
        %v3065 = vadd.f32 0.0, %v3064
        %3066 = vmatmul.bf16.gmra.mxu0 %v2814
        %v3067 = vpop.f32.mrf.mxu0
        %v3068 = vadd.f32 0.0, %v3067
        %v3069 = vpop.f32.mrf.mxu0
        %v3070 = vadd.f32 0.0, %v3069
        %3071 = vmatmul.bf16.gmra.mxu0 %v2817
        %v3072 = vpop.f32.mrf.mxu0
        %v3073 = vadd.f32 0.0, %v3072
        %v3074 = vpop.f32.mrf.mxu0
        %v3075 = vadd.f32 0.0, %v3074
        %3076 = vmatmul.bf16.gmra.mxu0 %v2820
        %v3077 = vpop.f32.mrf.mxu0
        %v3078 = vadd.f32 0.0, %v3077
        %v3079 = vpop.f32.mrf.mxu0
        %v3080 = vadd.f32 0.0, %v3079
        %3081 = vmatmul.bf16.gmra.mxu0 %v2823
        %v3082 = vpop.f32.mrf.mxu0
        %v3083 = vadd.f32 0.0, %v3082
        %v3084 = vpop.f32.mrf.mxu0
        %v3085 = vadd.f32 0.0, %v3084
        %3086 = vmatmul.bf16.gmra.mxu0 %v2826
        %v3087 = vpop.f32.mrf.mxu0
        %v3088 = vadd.f32 0.0, %v3087
        %v3089 = vpop.f32.mrf.mxu0
        %v3090 = vadd.f32 0.0, %v3089
        %3091 = vmatmul.bf16.gmra.mxu0 %v2829
        %v3092 = vpop.f32.mrf.mxu0
        %v3093 = vadd.f32 0.0, %v3092
        %v3094 = vpop.f32.mrf.mxu0
        %v3095 = vadd.f32 0.0, %v3094
        %3096 = vmatmul.bf16.gmra.mxu0 %v2832
        %v3097 = vpop.f32.mrf.mxu0
        %v3098 = vadd.f32 0.0, %v3097
        %v3099 = vpop.f32.mrf.mxu0
        %v3100 = vadd.f32 0.0, %v3099
        %3101 = vmatmul.bf16.gmra.mxu0 %v2835
        %v3102 = vpop.f32.mrf.mxu0
        %v3103 = vadd.f32 0.0, %v3102
        %v3104 = vpop.f32.mrf.mxu0
        %v3105 = vadd.f32 0.0, %v3104
        %3106 = vmatmul.bf16.gmra.mxu0 %v2838
        %v3107 = vpop.f32.mrf.mxu0
        %v3108 = vadd.f32 0.0, %v3107
        %v3109 = vpop.f32.mrf.mxu0
        %v3110 = vadd.f32 0.0, %v3109
        %3111 = vmatmul.bf16.gmra.mxu0 %v2841
        %v3112 = vpop.f32.mrf.mxu0
        %v3113 = vadd.f32 0.0, %v3112
        %v3114 = vpop.f32.mrf.mxu0
        %v3115 = vadd.f32 0.0, %v3114
        %3116 = vmatmul.bf16.gmra.mxu0 %v2844
        %v3117 = vpop.f32.mrf.mxu0
        %v3118 = vadd.f32 0.0, %v3117
        %v3119 = vpop.f32.mrf.mxu0
        %v3120 = vadd.f32 0.0, %v3119
        %3121 = vdwg.mxu0
        %v3122 = vadd.f32 %v2486, %v2865
        %v3123 = vadd.f32 %v2487, %v2954
        %v3124 = vadd.f32 %v2488, %v3043
        %v3125 = vadd.f32 %v2489, %v2867
        %v3126 = vadd.f32 %v2490, %v2956
        %v3127 = vadd.f32 %v2491, %v3045
        %v3128 = vadd.f32 %v2492, %v2870
        %v3129 = vadd.f32 %v2493, %v2959
        %v3130 = vadd.f32 %v2494, %v3048
        %v3131 = vadd.f32 %v2495, %v2872
        %v3132 = vadd.f32 %v2496, %v2961
        %v3133 = vadd.f32 %v2497, %v3050
        %v3134 = vadd.f32 %v2498, %v2875
        %v3135 = vadd.f32 %v2499, %v2964
        %v3136 = vadd.f32 %v2500, %v3053
        %v3137 = vadd.f32 %v2501, %v2877
        %v3138 = vadd.f32 %v2502, %v2966
        %v3139 = vadd.f32 %v2503, %v3055
        %v3140 = vadd.f32 %v2504, %v2880
        %v3141 = vadd.f32 %v2505, %v2969
        %v3142 = vadd.f32 %v2506, %v3058
        %v3143 = vadd.f32 %v2507, %v2882
        %v3144 = vadd.f32 %v2508, %v2971
        %v3145 = vadd.f32 %v2509, %v3060
        %v3146 = vadd.f32 %v2510, %v2885
        %v3147 = vadd.f32 %v2511, %v2974
        %v3148 = vadd.f32 %v2512, %v3063
        %v3149 = vadd.f32 %v2513, %v2887
        %v3150 = vadd.f32 %v2514, %v2976
        %v3151 = vadd.f32 %v2515, %v3065
        %v3152 = vadd.f32 %v2516, %v2890
        %v3153 = vadd.f32 %v2517, %v2979
        %v3154 = vadd.f32 %v2518, %v3068
        %v3155 = vadd.f32 %v2519, %v2892
        %v3156 = vadd.f32 %v2520, %v2981
        %v3157 = vadd.f32 %v2521, %v3070
        %v3158 = vadd.f32 %v2522, %v2895
        %v3159 = vadd.f32 %v2523, %v2984
        %v3160 = vadd.f32 %v2524, %v3073
        %v3161 = vadd.f32 %v2525, %v2897
        %v3162 = vadd.f32 %v2526, %v2986
        %v3163 = vadd.f32 %v2527, %v3075
        %v3164 = vadd.f32 %v2528, %v2900
        %v3165 = vadd.f32 %v2529, %v2989
        %v3166 = vadd.f32 %v2530, %v3078
        %v3167 = vadd.f32 %v2531, %v2902
        %v3168 = vadd.f32 %v2532, %v2991
        %v3169 = vadd.f32 %v2533, %v3080
        %v3170 = vadd.f32 %v2534, %v2905
        %v3171 = vadd.f32 %v2535, %v2994
        %v3172 = vadd.f32 %v2536, %v3083
        %v3173 = vadd.f32 %v2537, %v2907
        %v3174 = vadd.f32 %v2538, %v2996
        %v3175 = vadd.f32 %v2539, %v3085
        %v3176 = vadd.f32 %v2540, %v2910
        %v3177 = vadd.f32 %v2541, %v2999
        %v3178 = vadd.f32 %v2542, %v3088
        %v3179 = vadd.f32 %v2543, %v2912
        %v3180 = vadd.f32 %v2544, %v3001
        %v3181 = vadd.f32 %v2545, %v3090
        %v3182 = vadd.f32 %v2546, %v2915
        %v3183 = vadd.f32 %v2547, %v3004
        %v3184 = vadd.f32 %v2548, %v3093
        %v3185 = vadd.f32 %v2549, %v2917
        %v3186 = vadd.f32 %v2550, %v3006
        %v3187 = vadd.f32 %v2551, %v3095
        %v3188 = vadd.f32 %v2552, %v2920
        %v3189 = vadd.f32 %v2553, %v3009
        %v3190 = vadd.f32 %v2554, %v3098
        %v3191 = vadd.f32 %v2555, %v2922
        %v3192 = vadd.f32 %v2556, %v3011
        %v3193 = vadd.f32 %v2557, %v3100
        %v3194 = vadd.f32 %v2558, %v2925
        %v3195 = vadd.f32 %v2559, %v3014
        %v3196 = vadd.f32 %v2560, %v3103
        %v3197 = vadd.f32 %v2561, %v2927
        %v3198 = vadd.f32 %v2562, %v3016
        %v3199 = vadd.f32 %v2563, %v3105
        %v3200 = vadd.f32 %v2564, %v2930
        %v3201 = vadd.f32 %v2565, %v3019
        %v3202 = vadd.f32 %v2566, %v3108
        %v3203 = vadd.f32 %v2567, %v2932
        %v3204 = vadd.f32 %v2568, %v3021
        %v3205 = vadd.f32 %v2569, %v3110
        %v3206 = vadd.f32 %v2570, %v2935
        %v3207 = vadd.f32 %v2571, %v3024
        %v3208 = vadd.f32 %v2572, %v3113
        %v3209 = vadd.f32 %v2573, %v2937
        %v3210 = vadd.f32 %v2574, %v3026
        %v3211 = vadd.f32 %v2575, %v3115
        %v3212 = vadd.f32 %v2576, %v2940
        %v3213 = vadd.f32 %v2577, %v3029
        %v3214 = vadd.f32 %v2578, %v3118
        %v3215 = vadd.f32 %v2579, %v2942
        %v3216 = vadd.f32 %v2580, %v3031
        %v3217 = vadd.f32 %v2581, %v3120
        %3218 = vst [vmem:[#allocation2] sm:$0xff] %v3122
        %3219 = vst [vmem:[#allocation2 + $0x8] sm:$0xff] %v3123
        %3220 = vst.msk [vmem:[#allocation2 + $0x10] sm:$0xff] %vm735, %v3124
        %3221 = vst [vmem:[#allocation2 + $0x18] sm:$0xff] %v3125
        %3222 = vst [vmem:[#allocation2 + $0x20] sm:$0xff] %v3126
        %3223 = vst.msk [vmem:[#allocation2 + $0x28] sm:$0xff] %vm735, %v3127
        %3224 = vst [vmem:[#allocation2 + $0x30] sm:$0xff] %v3128
        %3225 = vst [vmem:[#allocation2 + $0x38] sm:$0xff] %v3129
        %3226 = vst.msk [vmem:[#allocation2 + $0x40] sm:$0xff] %vm735, %v3130
        %3227 = vst [vmem:[#allocation2 + $0x48] sm:$0xff] %v3131
        %3228 = vst [vmem:[#allocation2 + $0x50] sm:$0xff] %v3132
        %3229 = vst.msk [vmem:[#allocation2 + $0x58] sm:$0xff] %vm735, %v3133
        %3230 = vst [vmem:[#allocation2 + $0x60] sm:$0xff] %v3134
        %3231 = vst [vmem:[#allocation2 + $0x68] sm:$0xff] %v3135
        %3232 = vst.msk [vmem:[#allocation2 + $0x70] sm:$0xff] %vm735, %v3136
        %3233 = vst [vmem:[#allocation2 + $0x78] sm:$0xff] %v3137
        %3234 = vst [vmem:[#allocation2 + $0x80] sm:$0xff] %v3138
        %3235 = vst.msk [vmem:[#allocation2 + $0x88] sm:$0xff] %vm735, %v3139
        %3236 = vst [vmem:[#allocation2 + $0x90] sm:$0xff] %v3140
        %3237 = vst [vmem:[#allocation2 + $0x98] sm:$0xff] %v3141
        %3238 = vst.msk [vmem:[#allocation2 + $0xa0] sm:$0xff] %vm735, %v3142
        %3239 = vst [vmem:[#allocation2 + $0xa8] sm:$0xff] %v3143
        %3240 = vst [vmem:[#allocation2 + $0xb0] sm:$0xff] %v3144
        %3241 = vst.msk [vmem:[#allocation2 + $0xb8] sm:$0xff] %vm735, %v3145
        %3242 = vst [vmem:[#allocation2 + $0xc0] sm:$0xff] %v3146
        %3243 = vst [vmem:[#allocation2 + $0xc8] sm:$0xff] %v3147
        %3244 = vst.msk [vmem:[#allocation2 + $0xd0] sm:$0xff] %vm735, %v3148
        %3245 = vst [vmem:[#allocation2 + $0xd8] sm:$0xff] %v3149
        %3246 = vst [vmem:[#allocation2 + $0xe0] sm:$0xff] %v3150
        %3247 = vst.msk [vmem:[#allocation2 + $0xe8] sm:$0xff] %vm735, %v3151
        %3248 = vst [vmem:[#allocation2 + $0xf0] sm:$0xff] %v3152
        %3249 = vst [vmem:[#allocation2 + $0xf8] sm:$0xff] %v3153
        %3250 = vst.msk [vmem:[#allocation2 + $0x100] sm:$0xff] %vm735, %v3154
        %3251 = vst [vmem:[#allocation2 + $0x108] sm:$0xff] %v3155
        %3252 = vst [vmem:[#allocation2 + $0x110] sm:$0xff] %v3156
        %3253 = vst.msk [vmem:[#allocation2 + $0x118] sm:$0xff] %vm735, %v3157
        %3254 = vst [vmem:[#allocation2 + $0x120] sm:$0xff] %v3158
        %3255 = vst [vmem:[#allocation2 + $0x128] sm:$0xff] %v3159
        %3256 = vst.msk [vmem:[#allocation2 + $0x130] sm:$0xff] %vm735, %v3160
        %3257 = vst [vmem:[#allocation2 + $0x138] sm:$0xff] %v3161
        %3258 = vst [vmem:[#allocation2 + $0x140] sm:$0xff] %v3162
        %3259 = vst.msk [vmem:[#allocation2 + $0x148] sm:$0xff] %vm735, %v3163
        %3260 = vst [vmem:[#allocation2 + $0x150] sm:$0xff] %v3164
        %3261 = vst [vmem:[#allocation2 + $0x158] sm:$0xff] %v3165
        %3262 = vst.msk [vmem:[#allocation2 + $0x160] sm:$0xff] %vm735, %v3166
        %3263 = vst [vmem:[#allocation2 + $0x168] sm:$0xff] %v3167
        %3264 = vst [vmem:[#allocation2 + $0x170] sm:$0xff] %v3168
        %3265 = vst.msk [vmem:[#allocation2 + $0x178] sm:$0xff] %vm735, %v3169
        %3266 = vst [vmem:[#allocation2 + $0x180] sm:$0xff] %v3170
        %3267 = vst [vmem:[#allocation2 + $0x188] sm:$0xff] %v3171
        %3268 = vst.msk [vmem:[#allocation2 + $0x190] sm:$0xff] %vm735, %v3172
        %3269 = vst [vmem:[#allocation2 + $0x198] sm:$0xff] %v3173
        %3270 = vst [vmem:[#allocation2 + $0x1a0] sm:$0xff] %v3174
        %3271 = vst.msk [vmem:[#allocation2 + $0x1a8] sm:$0xff] %vm735, %v3175
        %3272 = vst [vmem:[#allocation2 + $0x1b0] sm:$0xff] %v3176
        %3273 = vst [vmem:[#allocation2 + $0x1b8] sm:$0xff] %v3177
        %3274 = vst.msk [vmem:[#allocation2 + $0x1c0] sm:$0xff] %vm735, %v3178
        %3275 = vst [vmem:[#allocation2 + $0x1c8] sm:$0xff] %v3179
        %3276 = vst [vmem:[#allocation2 + $0x1d0] sm:$0xff] %v3180
        %3277 = vst.msk [vmem:[#allocation2 + $0x1d8] sm:$0xff] %vm735, %v3181
        %3278 = vst [vmem:[#allocation2 + $0x1e0] sm:$0xff] %v3182
        %3279 = vst [vmem:[#allocation2 + $0x1e8] sm:$0xff] %v3183
        %3280 = vst.msk [vmem:[#allocation2 + $0x1f0] sm:$0xff] %vm735, %v3184
        %3281 = vst [vmem:[#allocation2 + $0x1f8] sm:$0xff] %v3185
        %3282 = vst [vmem:[#allocation2 + $0x200] sm:$0xff] %v3186
        %3283 = vst.msk [vmem:[#allocation2 + $0x208] sm:$0xff] %vm735, %v3187
        %3284 = vst [vmem:[#allocation2 + $0x210] sm:$0xff] %v3188
        %3285 = vst [vmem:[#allocation2 + $0x218] sm:$0xff] %v3189
        %3286 = vst.msk [vmem:[#allocation2 + $0x220] sm:$0xff] %vm735, %v3190
        %3287 = vst [vmem:[#allocation2 + $0x228] sm:$0xff] %v3191
        %3288 = vst [vmem:[#allocation2 + $0x230] sm:$0xff] %v3192
        %3289 = vst.msk [vmem:[#allocation2 + $0x238] sm:$0xff] %vm735, %v3193
        %3290 = vst [vmem:[#allocation2 + $0x240] sm:$0xff] %v3194
        %3291 = vst [vmem:[#allocation2 + $0x248] sm:$0xff] %v3195
        %3292 = vst.msk [vmem:[#allocation2 + $0x250] sm:$0xff] %vm735, %v3196
        %3293 = vst [vmem:[#allocation2 + $0x258] sm:$0xff] %v3197
        %3294 = vst [vmem:[#allocation2 + $0x260] sm:$0xff] %v3198
        %3295 = vst.msk [vmem:[#allocation2 + $0x268] sm:$0xff] %vm735, %v3199
        %3296 = vst [vmem:[#allocation2 + $0x270] sm:$0xff] %v3200
        %3297 = vst [vmem:[#allocation2 + $0x278] sm:$0xff] %v3201
        %3298 = vst.msk [vmem:[#allocation2 + $0x280] sm:$0xff] %vm735, %v3202
        %3299 = vst [vmem:[#allocation2 + $0x288] sm:$0xff] %v3203
        %3300 = vst [vmem:[#allocation2 + $0x290] sm:$0xff] %v3204
        %3301 = vst.msk [vmem:[#allocation2 + $0x298] sm:$0xff] %vm735, %v3205
        %3302 = vst [vmem:[#allocation2 + $0x2a0] sm:$0xff] %v3206
        %3303 = vst [vmem:[#allocation2 + $0x2a8] sm:$0xff] %v3207
        %3304 = vst.msk [vmem:[#allocation2 + $0x2b0] sm:$0xff] %vm735, %v3208
        %3305 = vst [vmem:[#allocation2 + $0x2b8] sm:$0xff] %v3209
        %3306 = vst [vmem:[#allocation2 + $0x2c0] sm:$0xff] %v3210
        %3307 = vst.msk [vmem:[#allocation2 + $0x2c8] sm:$0xff] %vm735, %v3211
        %3308 = vst [vmem:[#allocation2 + $0x2d0] sm:$0xff] %v3212
        %3309 = vst [vmem:[#allocation2 + $0x2d8] sm:$0xff] %v3213
        %3310 = vst.msk [vmem:[#allocation2 + $0x2e0] sm:$0xff] %vm735, %v3214
        %3311 = vst [vmem:[#allocation2 + $0x2e8] sm:$0xff] %v3215
        %3312 = vst [vmem:[#allocation2 + $0x2f0] sm:$0xff] %v3216
        %3313 = vst.msk [vmem:[#allocation2 + $0x2f8] sm:$0xff] %vm735, %v3217
        %v3314 = vld [vmem:[#allocation2] sm:$0xff]
        %v3315 = vld [vmem:[#allocation2 + $0x8] sm:$0xff]
        %v3316 = vld [vmem:[#allocation2 + $0x10] sm:$0xff]
        %v3317 = vld [vmem:[#allocation2 + $0x18] sm:$0xff]
        %v3318 = vld [vmem:[#allocation2 + $0x20] sm:$0xff]
        %v3319 = vld [vmem:[#allocation2 + $0x28] sm:$0xff]
        %v3320 = vld [vmem:[#allocation2 + $0x30] sm:$0xff]
        %v3321 = vld [vmem:[#allocation2 + $0x38] sm:$0xff]
        %v3322 = vld [vmem:[#allocation2 + $0x40] sm:$0xff]
        %v3323 = vld [vmem:[#allocation2 + $0x48] sm:$0xff]
        %v3324 = vld [vmem:[#allocation2 + $0x50] sm:$0xff]
        %v3325 = vld [vmem:[#allocation2 + $0x58] sm:$0xff]
        %v3326 = vld [vmem:[#allocation2 + $0x60] sm:$0xff]
        %v3327 = vld [vmem:[#allocation2 + $0x68] sm:$0xff]
        %v3328 = vld [vmem:[#allocation2 + $0x70] sm:$0xff]
        %v3329 = vld [vmem:[#allocation2 + $0x78] sm:$0xff]
        %v3330 = vld [vmem:[#allocation2 + $0x80] sm:$0xff]
        %v3331 = vld [vmem:[#allocation2 + $0x88] sm:$0xff]
        %v3332 = vld [vmem:[#allocation2 + $0x90] sm:$0xff]
        %v3333 = vld [vmem:[#allocation2 + $0x98] sm:$0xff]
        %v3334 = vld [vmem:[#allocation2 + $0xa0] sm:$0xff]
        %v3335 = vld [vmem:[#allocation2 + $0xa8] sm:$0xff]
        %v3336 = vld [vmem:[#allocation2 + $0xb0] sm:$0xff]
        %v3337 = vld [vmem:[#allocation2 + $0xb8] sm:$0xff]
        %v3338 = vld [vmem:[#allocation2 + $0xc0] sm:$0xff]
        %v3339 = vld [vmem:[#allocation2 + $0xc8] sm:$0xff]
        %v3340 = vld [vmem:[#allocation2 + $0xd0] sm:$0xff]
        %v3341 = vld [vmem:[#allocation2 + $0xd8] sm:$0xff]
        %v3342 = vld [vmem:[#allocation2 + $0xe0] sm:$0xff]
        %v3343 = vld [vmem:[#allocation2 + $0xe8] sm:$0xff]
        %v3344 = vld [vmem:[#allocation2 + $0xf0] sm:$0xff]
        %v3345 = vld [vmem:[#allocation2 + $0xf8] sm:$0xff]
        %v3346 = vld [vmem:[#allocation2 + $0x100] sm:$0xff]
        %v3347 = vld [vmem:[#allocation2 + $0x108] sm:$0xff]
        %v3348 = vld [vmem:[#allocation2 + $0x110] sm:$0xff]
        %v3349 = vld [vmem:[#allocation2 + $0x118] sm:$0xff]
        %v3350 = vld [vmem:[#allocation2 + $0x120] sm:$0xff]
        %v3351 = vld [vmem:[#allocation2 + $0x128] sm:$0xff]
        %v3352 = vld [vmem:[#allocation2 + $0x130] sm:$0xff]
        %v3353 = vld [vmem:[#allocation2 + $0x138] sm:$0xff]
        %v3354 = vld [vmem:[#allocation2 + $0x140] sm:$0xff]
        %v3355 = vld [vmem:[#allocation2 + $0x148] sm:$0xff]
        %v3356 = vld [vmem:[#allocation2 + $0x150] sm:$0xff]
        %v3357 = vld [vmem:[#allocation2 + $0x158] sm:$0xff]
        %v3358 = vld [vmem:[#allocation2 + $0x160] sm:$0xff]
        %v3359 = vld [vmem:[#allocation2 + $0x168] sm:$0xff]
        %v3360 = vld [vmem:[#allocation2 + $0x170] sm:$0xff]
        %v3361 = vld [vmem:[#allocation2 + $0x178] sm:$0xff]
        %v3362 = vld [vmem:[#allocation2 + $0x180] sm:$0xff]
        %v3363 = vld [vmem:[#allocation2 + $0x188] sm:$0xff]
        %v3364 = vld [vmem:[#allocation2 + $0x190] sm:$0xff]
        %v3365 = vld [vmem:[#allocation2 + $0x198] sm:$0xff]
        %v3366 = vld [vmem:[#allocation2 + $0x1a0] sm:$0xff]
        %v3367 = vld [vmem:[#allocation2 + $0x1a8] sm:$0xff]
        %v3368 = vld [vmem:[#allocation2 + $0x1b0] sm:$0xff]
        %v3369 = vld [vmem:[#allocation2 + $0x1b8] sm:$0xff]
        %v3370 = vld [vmem:[#allocation2 + $0x1c0] sm:$0xff]
        %v3371 = vld [vmem:[#allocation2 + $0x1c8] sm:$0xff]
        %v3372 = vld [vmem:[#allocation2 + $0x1d0] sm:$0xff]
        %v3373 = vld [vmem:[#allocation2 + $0x1d8] sm:$0xff]
        %v3374 = vld [vmem:[#allocation2 + $0x1e0] sm:$0xff]
        %v3375 = vld [vmem:[#allocation2 + $0x1e8] sm:$0xff]
        %v3376 = vld [vmem:[#allocation2 + $0x1f0] sm:$0xff]
        %v3377 = vld [vmem:[#allocation2 + $0x1f8] sm:$0xff]
        %v3378 = vld [vmem:[#allocation2 + $0x200] sm:$0xff]
        %v3379 = vld [vmem:[#allocation2 + $0x208] sm:$0xff]
        %v3380 = vld [vmem:[#allocation2 + $0x210] sm:$0xff]
        %v3381 = vld [vmem:[#allocation2 + $0x218] sm:$0xff]
        %v3382 = vld [vmem:[#allocation2 + $0x220] sm:$0xff]
        %v3383 = vld [vmem:[#allocation2 + $0x228] sm:$0xff]
        %v3384 = vld [vmem:[#allocation2 + $0x230] sm:$0xff]
        %v3385 = vld [vmem:[#allocation2 + $0x238] sm:$0xff]
        %v3386 = vld [vmem:[#allocation2 + $0x240] sm:$0xff]
        %v3387 = vld [vmem:[#allocation2 + $0x248] sm:$0xff]
        %v3388 = vld [vmem:[#allocation2 + $0x250] sm:$0xff]
        %v3389 = vld [vmem:[#allocation2 + $0x258] sm:$0xff]
        %v3390 = vld [vmem:[#allocation2 + $0x260] sm:$0xff]
        %v3391 = vld [vmem:[#allocation2 + $0x268] sm:$0xff]
        %v3392 = vld [vmem:[#allocation2 + $0x270] sm:$0xff]
        %v3393 = vld [vmem:[#allocation2 + $0x278] sm:$0xff]
        %v3394 = vld [vmem:[#allocation2 + $0x280] sm:$0xff]
        %v3395 = vld [vmem:[#allocation2 + $0x288] sm:$0xff]
        %v3396 = vld [vmem:[#allocation2 + $0x290] sm:$0xff]
        %v3397 = vld [vmem:[#allocation2 + $0x298] sm:$0xff]
        %v3398 = vld [vmem:[#allocation2 + $0x2a0] sm:$0xff]
        %v3399 = vld [vmem:[#allocation2 + $0x2a8] sm:$0xff]
        %v3400 = vld [vmem:[#allocation2 + $0x2b0] sm:$0xff]
        %v3401 = vld [vmem:[#allocation2 + $0x2b8] sm:$0xff]
        %v3402 = vld [vmem:[#allocation2 + $0x2c0] sm:$0xff]
        %v3403 = vld [vmem:[#allocation2 + $0x2c8] sm:$0xff]
        %v3404 = vld [vmem:[#allocation2 + $0x2d0] sm:$0xff]
        %v3405 = vld [vmem:[#allocation2 + $0x2d8] sm:$0xff]
        %v3406 = vld [vmem:[#allocation2 + $0x2e0] sm:$0xff]
        %v3407 = vld [vmem:[#allocation2 + $0x2e8] sm:$0xff]
        %v3408 = vld [vmem:[#allocation2 + $0x2f0] sm:$0xff]
        %v3409 = vld [vmem:[#allocation2 + $0x2f8] sm:$0xff]
        %s3410 = scalar_lea.vmem %s1, 512
        %v3411 = vld [vmem:[%s3410] sm:$0xf]
        %v3412 = vld [vmem:[%s3410 + $0x4] sm:$0xf]
        %v3413 = vld [vmem:[%s3410 + $0x8] sm:$0xf]
        %v3414 = vld [vmem:[%s3410 + $0xc] sm:$0xf]
        %v3415 = vld [vmem:[%s3410 + $0x10] sm:$0xf]
        %v3416 = vld [vmem:[%s3410 + $0x14] sm:$0xf]
        %v3417 = vld [vmem:[%s3410 + $0x18] sm:$0xf]
        %v3418 = vld [vmem:[%s3410 + $0x1c] sm:$0xf]
        %v3419 = vld [vmem:[%s3410 + $0x20] sm:$0xf]
        %v3420 = vld [vmem:[%s3410 + $0x24] sm:$0xf]
        %v3421 = vld [vmem:[%s3410 + $0x28] sm:$0xf]
        %v3422 = vld [vmem:[%s3410 + $0x2c] sm:$0xf]
        %v3423 = vld [vmem:[%s3410 + $0x30] sm:$0xf]
        %v3424 = vld [vmem:[%s3410 + $0x34] sm:$0xf]
        %v3425 = vld [vmem:[%s3410 + $0x38] sm:$0xf]
        %v3426 = vld [vmem:[%s3410 + $0x3c] sm:$0xf]
        %v3427 = vld [vmem:[%s3410 + $0x40] sm:$0xf]
        %v3428 = vld [vmem:[%s3410 + $0x44] sm:$0xf]
        %v3429 = vld [vmem:[%s3410 + $0x48] sm:$0xf]
        %v3430 = vld [vmem:[%s3410 + $0x4c] sm:$0xf]
        %v3431 = vld [vmem:[%s3410 + $0x50] sm:$0xf]
        %v3432 = vld [vmem:[%s3410 + $0x54] sm:$0xf]
        %v3433 = vld [vmem:[%s3410 + $0x58] sm:$0xf]
        %v3434 = vld [vmem:[%s3410 + $0x5c] sm:$0xf]
        %v3435 = vld [vmem:[%s3410 + $0x60] sm:$0xf]
        %v3436 = vld [vmem:[%s3410 + $0x64] sm:$0xf]
        %v3437 = vld [vmem:[%s3410 + $0x68] sm:$0xf]
        %v3438 = vld [vmem:[%s3410 + $0x6c] sm:$0xf]
        %v3439 = vld [vmem:[%s3410 + $0x70] sm:$0xf]
        %v3440 = vld [vmem:[%s3410 + $0x74] sm:$0xf]
        %v3441 = vld [vmem:[%s3410 + $0x78] sm:$0xf]
        %v3442 = vld [vmem:[%s3410 + $0x7c] sm:$0xf]
        %v3443 = vld [vmem:[%s183] sm:$0xff]
        %v3444 = vld [vmem:[%s183 + $0x8] sm:$0xf]
        %v3445 = vld [vmem:[%s183 + $0xc] sm:$0xff]
        %v3446 = vld [vmem:[%s183 + $0x14] sm:$0xf]
        %v3447 = vld [vmem:[%s183 + $0x18] sm:$0xff]
        %v3448 = vld [vmem:[%s183 + $0x20] sm:$0xf]
        %v3449 = vld [vmem:[%s183 + $0x24] sm:$0xff]
        %v3450 = vld [vmem:[%s183 + $0x2c] sm:$0xf]
        %v3451 = vld [vmem:[%s183 + $0x30] sm:$0xff]
        %v3452 = vld [vmem:[%s183 + $0x38] sm:$0xf]
        %v3453 = vld [vmem:[%s183 + $0x3c] sm:$0xff]
        %v3454 = vld [vmem:[%s183 + $0x44] sm:$0xf]
        %v3455 = vld [vmem:[%s183 + $0x48] sm:$0x11]
        %v3456 = vld [vmem:[%s183 + $0x50] sm:$0x1]
        %v3489 = vunpack.c.l.b16 %v3411
        %v3490 = vunpack.c.l.b16 %v3412
        %v3491 = vunpack.c.l.b16 %v3413
        %v3492 = vunpack.c.l.b16 %v3414
        %v3493 = vunpack.c.l.b16 %v3415
        %v3494 = vunpack.c.l.b16 %v3416
        %v3495 = vunpack.c.l.b16 %v3417
        %v3496 = vunpack.c.l.b16 %v3418
        %v3497 = vunpack.c.l.b16 %v3419
        %v3498 = vunpack.c.l.b16 %v3420
        %v3499 = vunpack.c.l.b16 %v3421
        %v3500 = vunpack.c.l.b16 %v3422
        %v3501 = vunpack.c.l.b16 %v3423
        %v3502 = vunpack.c.l.b16 %v3424
        %v3503 = vunpack.c.l.b16 %v3425
        %v3504 = vunpack.c.l.b16 %v3426
        %v3505 = vunpack.c.l.b16 %v3427
        %v3506 = vunpack.c.l.b16 %v3428
        %v3507 = vunpack.c.l.b16 %v3429
        %v3508 = vunpack.c.l.b16 %v3430
        %v3509 = vunpack.c.l.b16 %v3431
        %v3510 = vunpack.c.l.b16 %v3432
        %v3511 = vunpack.c.l.b16 %v3433
        %v3512 = vunpack.c.l.b16 %v3434
        %v3513 = vunpack.c.l.b16 %v3435
        %v3514 = vunpack.c.l.b16 %v3436
        %v3515 = vunpack.c.l.b16 %v3437
        %v3516 = vunpack.c.l.b16 %v3438
        %v3517 = vunpack.c.l.b16 %v3439
        %v3518 = vunpack.c.l.b16 %v3440
        %v3519 = vunpack.c.l.b16 %v3441
        %v3520 = vunpack.c.l.b16 %v3442
        %v3521 = vpack.c.b16 %v3490, %v3489
        %v3522 = vpack.c.b16 %v3492, %v3491
        %v3523 = vpack.c.b16 %v3494, %v3493
        %v3524 = vpack.c.b16 %v3496, %v3495
        %v3525 = vpack.c.b16 %v3498, %v3497
        %v3526 = vpack.c.b16 %v3500, %v3499
        %v3527 = vpack.c.b16 %v3502, %v3501
        %v3528 = vpack.c.b16 %v3504, %v3503
        %v3529 = vpack.c.b16 %v3506, %v3505
        %v3530 = vpack.c.b16 %v3508, %v3507
        %v3531 = vpack.c.b16 %v3510, %v3509
        %v3532 = vpack.c.b16 %v3512, %v3511
        %v3533 = vpack.c.b16 %v3514, %v3513
        %v3534 = vpack.c.b16 %v3516, %v3515
        %v3535 = vpack.c.b16 %v3518, %v3517
        %v3536 = vpack.c.b16 %v3520, %v3519
        %v3551 = vunpack.c.l.b16 %v3443
        %v3552 = vunpack.c.h.b16 %v3443
        %v3553 = vunpack.c.l.b16 %v3444
        %v3554 = vunpack.c.l.b16 %v3445
        %v3555 = vunpack.c.h.b16 %v3445
        %v3556 = vunpack.c.l.b16 %v3446
        %v3557 = vunpack.c.l.b16 %v3447
        %v3558 = vunpack.c.h.b16 %v3447
        %v3559 = vunpack.c.l.b16 %v3448
        %v3560 = vunpack.c.l.b16 %v3449
        %v3561 = vunpack.c.h.b16 %v3449
        %v3562 = vunpack.c.l.b16 %v3450
        %v3563 = vunpack.c.l.b16 %v3451
        %v3564 = vunpack.c.h.b16 %v3451
        %v3565 = vunpack.c.l.b16 %v3452
        %v3566 = vunpack.c.l.b16 %v3453
        %v3567 = vunpack.c.h.b16 %v3453
        %v3568 = vunpack.c.l.b16 %v3454
        %v3569 = vunpack.c.l.b16 %v3455
        %v3570 = vunpack.c.h.b16 %v3455
        %v3571 = vunpack.c.l.b16 %v3456
        %v3572 = vpack.c.b16 %v3554, %v3551
        %v3573 = vpack.c.b16 %v3555, %v3552
        %v3574 = vpack.c.b16 %v3556, %v3553
        %v3575 = vpack.c.b16 %v3560, %v3557
        %v3576 = vpack.c.b16 %v3561, %v3558
        %v3577 = vpack.c.b16 %v3562, %v3559
        %v3578 = vpack.c.b16 %v3566, %v3563
        %v3579 = vpack.c.b16 %v3567, %v3564
        %v3580 = vpack.c.b16 %v3568, %v3565
        %v3581 = vpack.c.b16 %v3569, %v3569
        %v3582 = vpack.c.b16 %v3570, %v3570
        %v3583 = vpack.c.b16 %v3571, %v3571
        %3584 = vrot.lane.b32.xlu0 %v3572, 96
        %v3585 = vpop.permute.xlu0 %3584
        %3586 = vrot.lane.b32.xlu0 %v3573, 96
        %v3587 = vpop.permute.xlu0 %3586
        %3588 = vrot.lane.b32.xlu0 %v3574, 96
        %v3589 = vpop.permute.xlu0 %3588
        %3590 = vrot.lane.b32.xlu0 %v3575, 96
        %v3591 = vpop.permute.xlu0 %3590
        %3592 = vrot.lane.b32.xlu0 %v3576, 96
        %v3593 = vpop.permute.xlu0 %3592
        %3594 = vrot.lane.b32.xlu0 %v3577, 96
        %v3595 = vpop.permute.xlu0 %3594
        %3596 = vrot.lane.b32.xlu0 %v3578, 96
        %v3597 = vpop.permute.xlu0 %3596
        %3598 = vrot.lane.b32.xlu0 %v3579, 96
        %v3599 = vpop.permute.xlu0 %3598
        %3600 = vrot.lane.b32.xlu0 %v3580, 96
        %v3601 = vpop.permute.xlu0 %3600
        %3602 = vrot.lane.b32.xlu0 %v3581, 96
        %v3603 = vpop.permute.xlu0 %3602
        %3604 = vrot.lane.b32.xlu0 %v3582, 96
        %v3605 = vpop.permute.xlu0 %3604
        %3606 = vrot.lane.b32.xlu0 %v3583, 96
        %v3607 = vpop.permute.xlu0 %3606
        %vm3608 = vcmask 785408
        %v3609 = vsel %vm3608, %v3585, %v3587
        %v3610 = vsel %vm3608, %v3587, %v3589
        %v3611 = vsel %vm3608, %v3591, %v3593
        %v3612 = vsel %vm3608, %v3593, %v3595
        %v3613 = vsel %vm3608, %v3597, %v3599
        %v3614 = vsel %vm3608, %v3599, %v3601
        %v3615 = vsel %vm3608, %v3603, %v3605
        %v3616 = vsel %vm3608, %v3605, %v3607
        %v3627 = vsel %vm405, %v3521, 0
        %v3630 = vsel %vm405, %v3522, 0
        %v3633 = vsel %vm405, %v3523, 0
        %v3636 = vsel %vm405, %v3524, 0
        %v3639 = vsel %vm405, %v3525, 0
        %v3642 = vsel %vm405, %v3526, 0
        %v3645 = vsel %vm405, %v3527, 0
        %v3648 = vsel %vm405, %v3528, 0
        %v3651 = vsel %vm405, %v3529, 0
        %v3654 = vsel %vm405, %v3530, 0
        %v3657 = vsel %vm405, %v3531, 0
        %v3660 = vsel %vm405, %v3532, 0
        %v3663 = vsel %vm405, %v3533, 0
        %v3666 = vsel %vm405, %v3534, 0
        %v3669 = vsel %vm405, %v3535, 0
        %v3672 = vsel %vm405, %v3536, 0
        %v3675 = vand.u32 %v3615, %v456
        %v3678 = vand.u32 %v3616, %v456
        %v3681 = vand.u32 %v3607, %v456
        %3683 = vmatpush.bf16.msra.mxu0 0
        %3684 = vmatpush.bf16.msra.mxu0 0
        %3685 = vmatpush.bf16.msra.mxu0 0
        %3686 = vmatpush.bf16.msra.mxu0 0
        %3687 = vmatpush.bf16.msra.mxu0 %v3675
        %3688 = vmatpush.bf16.msra.mxu0 %v3613
        %3689 = vmatpush.bf16.msra.mxu0 %v3611
        %3690 = vmatpush.bf16.msra.mxu0 %v3609
        %3691 = vmatmul.bf16.gmra.mxu0 %v3627
        %v3692 = vpop.f32.mrf.mxu0
        %v3693 = vadd.f32 0.0, %v3692
        %v3694 = vpop.f32.mrf.mxu0
        %v3695 = vadd.f32 0.0, %v3694
        %3696 = vmatmul.bf16.gmra.mxu0 %v3630
        %v3697 = vpop.f32.mrf.mxu0
        %v3698 = vadd.f32 0.0, %v3697
        %v3699 = vpop.f32.mrf.mxu0
        %v3700 = vadd.f32 0.0, %v3699
        %3701 = vmatmul.bf16.gmra.mxu0 %v3633
        %v3702 = vpop.f32.mrf.mxu0
        %v3703 = vadd.f32 0.0, %v3702
        %v3704 = vpop.f32.mrf.mxu0
        %v3705 = vadd.f32 0.0, %v3704
        %3706 = vmatmul.bf16.gmra.mxu0 %v3636
        %v3707 = vpop.f32.mrf.mxu0
        %v3708 = vadd.f32 0.0, %v3707
        %v3709 = vpop.f32.mrf.mxu0
        %v3710 = vadd.f32 0.0, %v3709
        %3711 = vmatmul.bf16.gmra.mxu0 %v3639
        %v3712 = vpop.f32.mrf.mxu0
        %v3713 = vadd.f32 0.0, %v3712
        %v3714 = vpop.f32.mrf.mxu0
        %v3715 = vadd.f32 0.0, %v3714
        %3716 = vmatmul.bf16.gmra.mxu0 %v3642
        %v3717 = vpop.f32.mrf.mxu0
        %v3718 = vadd.f32 0.0, %v3717
        %v3719 = vpop.f32.mrf.mxu0
        %v3720 = vadd.f32 0.0, %v3719
        %3721 = vmatmul.bf16.gmra.mxu0 %v3645
        %v3722 = vpop.f32.mrf.mxu0
        %v3723 = vadd.f32 0.0, %v3722
        %v3724 = vpop.f32.mrf.mxu0
        %v3725 = vadd.f32 0.0, %v3724
        %3726 = vmatmul.bf16.gmra.mxu0 %v3648
        %v3727 = vpop.f32.mrf.mxu0
        %v3728 = vadd.f32 0.0, %v3727
        %v3729 = vpop.f32.mrf.mxu0
        %v3730 = vadd.f32 0.0, %v3729
        %3731 = vmatmul.bf16.gmra.mxu0 %v3651
        %v3732 = vpop.f32.mrf.mxu0
        %v3733 = vadd.f32 0.0, %v3732
        %v3734 = vpop.f32.mrf.mxu0
        %v3735 = vadd.f32 0.0, %v3734
        %3736 = vmatmul.bf16.gmra.mxu0 %v3654
        %v3737 = vpop.f32.mrf.mxu0
        %v3738 = vadd.f32 0.0, %v3737
        %v3739 = vpop.f32.mrf.mxu0
        %v3740 = vadd.f32 0.0, %v3739
        %3741 = vmatmul.bf16.gmra.mxu0 %v3657
        %v3742 = vpop.f32.mrf.mxu0
        %v3743 = vadd.f32 0.0, %v3742
        %v3744 = vpop.f32.mrf.mxu0
        %v3745 = vadd.f32 0.0, %v3744
        %3746 = vmatmul.bf16.gmra.mxu0 %v3660
        %v3747 = vpop.f32.mrf.mxu0
        %v3748 = vadd.f32 0.0, %v3747
        %v3749 = vpop.f32.mrf.mxu0
        %v3750 = vadd.f32 0.0, %v3749
        %3751 = vmatmul.bf16.gmra.mxu0 %v3663
        %v3752 = vpop.f32.mrf.mxu0
        %v3753 = vadd.f32 0.0, %v3752
        %v3754 = vpop.f32.mrf.mxu0
        %v3755 = vadd.f32 0.0, %v3754
        %3756 = vmatmul.bf16.gmra.mxu0 %v3666
        %v3757 = vpop.f32.mrf.mxu0
        %v3758 = vadd.f32 0.0, %v3757
        %v3759 = vpop.f32.mrf.mxu0
        %v3760 = vadd.f32 0.0, %v3759
        %3761 = vmatmul.bf16.gmra.mxu0 %v3669
        %v3762 = vpop.f32.mrf.mxu0
        %v3763 = vadd.f32 0.0, %v3762
        %v3764 = vpop.f32.mrf.mxu0
        %v3765 = vadd.f32 0.0, %v3764
        %3766 = vmatmul.bf16.gmra.mxu0 %v3672
        %v3767 = vpop.f32.mrf.mxu0
        %v3768 = vadd.f32 0.0, %v3767
        %v3769 = vpop.f32.mrf.mxu0
        %v3770 = vadd.f32 0.0, %v3769
        %3771 = vdwg.mxu0
        %3772 = vmatpush.bf16.msra.mxu0 0
        %3773 = vmatpush.bf16.msra.mxu0 0
        %3774 = vmatpush.bf16.msra.mxu0 0
        %3775 = vmatpush.bf16.msra.mxu0 0
        %3776 = vmatpush.bf16.msra.mxu0 %v3678
        %3777 = vmatpush.bf16.msra.mxu0 %v3614
        %3778 = vmatpush.bf16.msra.mxu0 %v3612
        %3779 = vmatpush.bf16.msra.mxu0 %v3610
        %3780 = vmatmul.bf16.gmra.mxu0 %v3627
        %v3781 = vpop.f32.mrf.mxu0
        %v3782 = vadd.f32 0.0, %v3781
        %v3783 = vpop.f32.mrf.mxu0
        %v3784 = vadd.f32 0.0, %v3783
        %3785 = vmatmul.bf16.gmra.mxu0 %v3630
        %v3786 = vpop.f32.mrf.mxu0
        %v3787 = vadd.f32 0.0, %v3786
        %v3788 = vpop.f32.mrf.mxu0
        %v3789 = vadd.f32 0.0, %v3788
        %3790 = vmatmul.bf16.gmra.mxu0 %v3633
        %v3791 = vpop.f32.mrf.mxu0
        %v3792 = vadd.f32 0.0, %v3791
        %v3793 = vpop.f32.mrf.mxu0
        %v3794 = vadd.f32 0.0, %v3793
        %3795 = vmatmul.bf16.gmra.mxu0 %v3636
        %v3796 = vpop.f32.mrf.mxu0
        %v3797 = vadd.f32 0.0, %v3796
        %v3798 = vpop.f32.mrf.mxu0
        %v3799 = vadd.f32 0.0, %v3798
        %3800 = vmatmul.bf16.gmra.mxu0 %v3639
        %v3801 = vpop.f32.mrf.mxu0
        %v3802 = vadd.f32 0.0, %v3801
        %v3803 = vpop.f32.mrf.mxu0
        %v3804 = vadd.f32 0.0, %v3803
        %3805 = vmatmul.bf16.gmra.mxu0 %v3642
        %v3806 = vpop.f32.mrf.mxu0
        %v3807 = vadd.f32 0.0, %v3806
        %v3808 = vpop.f32.mrf.mxu0
        %v3809 = vadd.f32 0.0, %v3808
        %3810 = vmatmul.bf16.gmra.mxu0 %v3645
        %v3811 = vpop.f32.mrf.mxu0
        %v3812 = vadd.f32 0.0, %v3811
        %v3813 = vpop.f32.mrf.mxu0
        %v3814 = vadd.f32 0.0, %v3813
        %3815 = vmatmul.bf16.gmra.mxu0 %v3648
        %v3816 = vpop.f32.mrf.mxu0
        %v3817 = vadd.f32 0.0, %v3816
        %v3818 = vpop.f32.mrf.mxu0
        %v3819 = vadd.f32 0.0, %v3818
        %3820 = vmatmul.bf16.gmra.mxu0 %v3651
        %v3821 = vpop.f32.mrf.mxu0
        %v3822 = vadd.f32 0.0, %v3821
        %v3823 = vpop.f32.mrf.mxu0
        %v3824 = vadd.f32 0.0, %v3823
        %3825 = vmatmul.bf16.gmra.mxu0 %v3654
        %v3826 = vpop.f32.mrf.mxu0
        %v3827 = vadd.f32 0.0, %v3826
        %v3828 = vpop.f32.mrf.mxu0
        %v3829 = vadd.f32 0.0, %v3828
        %3830 = vmatmul.bf16.gmra.mxu0 %v3657
        %v3831 = vpop.f32.mrf.mxu0
        %v3832 = vadd.f32 0.0, %v3831
        %v3833 = vpop.f32.mrf.mxu0
        %v3834 = vadd.f32 0.0, %v3833
        %3835 = vmatmul.bf16.gmra.mxu0 %v3660
        %v3836 = vpop.f32.mrf.mxu0
        %v3837 = vadd.f32 0.0, %v3836
        %v3838 = vpop.f32.mrf.mxu0
        %v3839 = vadd.f32 0.0, %v3838
        %3840 = vmatmul.bf16.gmra.mxu0 %v3663
        %v3841 = vpop.f32.mrf.mxu0
        %v3842 = vadd.f32 0.0, %v3841
        %v3843 = vpop.f32.mrf.mxu0
        %v3844 = vadd.f32 0.0, %v3843
        %3845 = vmatmul.bf16.gmra.mxu0 %v3666
        %v3846 = vpop.f32.mrf.mxu0
        %v3847 = vadd.f32 0.0, %v3846
        %v3848 = vpop.f32.mrf.mxu0
        %v3849 = vadd.f32 0.0, %v3848
        %3850 = vmatmul.bf16.gmra.mxu0 %v3669
        %v3851 = vpop.f32.mrf.mxu0
        %v3852 = vadd.f32 0.0, %v3851
        %v3853 = vpop.f32.mrf.mxu0
        %v3854 = vadd.f32 0.0, %v3853
        %3855 = vmatmul.bf16.gmra.mxu0 %v3672
        %v3856 = vpop.f32.mrf.mxu0
        %v3857 = vadd.f32 0.0, %v3856
        %v3858 = vpop.f32.mrf.mxu0
        %v3859 = vadd.f32 0.0, %v3858
        %3860 = vdwg.mxu0
        %3861 = vmatpush.bf16.msra.mxu0 0
        %3862 = vmatpush.bf16.msra.mxu0 0
        %3863 = vmatpush.bf16.msra.mxu0 0
        %3864 = vmatpush.bf16.msra.mxu0 0
        %3865 = vmatpush.bf16.msra.mxu0 %v3681
        %3866 = vmatpush.bf16.msra.mxu0 %v3601
        %3867 = vmatpush.bf16.msra.mxu0 %v3595
        %3868 = vmatpush.bf16.msra.mxu0 %v3589
        %3869 = vmatmul.bf16.gmra.mxu0 %v3627
        %v3870 = vpop.f32.mrf.mxu0
        %v3871 = vadd.f32 0.0, %v3870
        %v3872 = vpop.f32.mrf.mxu0
        %v3873 = vadd.f32 0.0, %v3872
        %3874 = vmatmul.bf16.gmra.mxu0 %v3630
        %v3875 = vpop.f32.mrf.mxu0
        %v3876 = vadd.f32 0.0, %v3875
        %v3877 = vpop.f32.mrf.mxu0
        %v3878 = vadd.f32 0.0, %v3877
        %3879 = vmatmul.bf16.gmra.mxu0 %v3633
        %v3880 = vpop.f32.mrf.mxu0
        %v3881 = vadd.f32 0.0, %v3880
        %v3882 = vpop.f32.mrf.mxu0
        %v3883 = vadd.f32 0.0, %v3882
        %3884 = vmatmul.bf16.gmra.mxu0 %v3636
        %v3885 = vpop.f32.mrf.mxu0
        %v3886 = vadd.f32 0.0, %v3885
        %v3887 = vpop.f32.mrf.mxu0
        %v3888 = vadd.f32 0.0, %v3887
        %3889 = vmatmul.bf16.gmra.mxu0 %v3639
        %v3890 = vpop.f32.mrf.mxu0
        %v3891 = vadd.f32 0.0, %v3890
        %v3892 = vpop.f32.mrf.mxu0
        %v3893 = vadd.f32 0.0, %v3892
        %3894 = vmatmul.bf16.gmra.mxu0 %v3642
        %v3895 = vpop.f32.mrf.mxu0
        %v3896 = vadd.f32 0.0, %v3895
        %v3897 = vpop.f32.mrf.mxu0
        %v3898 = vadd.f32 0.0, %v3897
        %3899 = vmatmul.bf16.gmra.mxu0 %v3645
        %v3900 = vpop.f32.mrf.mxu0
        %v3901 = vadd.f32 0.0, %v3900
        %v3902 = vpop.f32.mrf.mxu0
        %v3903 = vadd.f32 0.0, %v3902
        %3904 = vmatmul.bf16.gmra.mxu0 %v3648
        %v3905 = vpop.f32.mrf.mxu0
        %v3906 = vadd.f32 0.0, %v3905
        %v3907 = vpop.f32.mrf.mxu0
        %v3908 = vadd.f32 0.0, %v3907
        %3909 = vmatmul.bf16.gmra.mxu0 %v3651
        %v3910 = vpop.f32.mrf.mxu0
        %v3911 = vadd.f32 0.0, %v3910
        %v3912 = vpop.f32.mrf.mxu0
        %v3913 = vadd.f32 0.0, %v3912
        %3914 = vmatmul.bf16.gmra.mxu0 %v3654
        %v3915 = vpop.f32.mrf.mxu0
        %v3916 = vadd.f32 0.0, %v3915
        %v3917 = vpop.f32.mrf.mxu0
        %v3918 = vadd.f32 0.0, %v3917
        %3919 = vmatmul.bf16.gmra.mxu0 %v3657
        %v3920 = vpop.f32.mrf.mxu0
        %v3921 = vadd.f32 0.0, %v3920
        %v3922 = vpop.f32.mrf.mxu0
        %v3923 = vadd.f32 0.0, %v3922
        %3924 = vmatmul.bf16.gmra.mxu0 %v3660
        %v3925 = vpop.f32.mrf.mxu0
        %v3926 = vadd.f32 0.0, %v3925
        %v3927 = vpop.f32.mrf.mxu0
        %v3928 = vadd.f32 0.0, %v3927
        %3929 = vmatmul.bf16.gmra.mxu0 %v3663
        %v3930 = vpop.f32.mrf.mxu0
        %v3931 = vadd.f32 0.0, %v3930
        %v3932 = vpop.f32.mrf.mxu0
        %v3933 = vadd.f32 0.0, %v3932
        %3934 = vmatmul.bf16.gmra.mxu0 %v3666
        %v3935 = vpop.f32.mrf.mxu0
        %v3936 = vadd.f32 0.0, %v3935
        %v3937 = vpop.f32.mrf.mxu0
        %v3938 = vadd.f32 0.0, %v3937
        %3939 = vmatmul.bf16.gmra.mxu0 %v3669
        %v3940 = vpop.f32.mrf.mxu0
        %v3941 = vadd.f32 0.0, %v3940
        %v3942 = vpop.f32.mrf.mxu0
        %v3943 = vadd.f32 0.0, %v3942
        %3944 = vmatmul.bf16.gmra.mxu0 %v3672
        %v3945 = vpop.f32.mrf.mxu0
        %v3946 = vadd.f32 0.0, %v3945
        %v3947 = vpop.f32.mrf.mxu0
        %v3948 = vadd.f32 0.0, %v3947
        %3949 = vdwg.mxu0
        %v3950 = vadd.f32 %v3314, %v3693
        %v3951 = vadd.f32 %v3315, %v3782
        %v3952 = vadd.f32 %v3316, %v3871
        %v3953 = vadd.f32 %v3317, %v3695
        %v3954 = vadd.f32 %v3318, %v3784
        %v3955 = vadd.f32 %v3319, %v3873
        %v3956 = vadd.f32 %v3320, %v3698
        %v3957 = vadd.f32 %v3321, %v3787
        %v3958 = vadd.f32 %v3322, %v3876
        %v3959 = vadd.f32 %v3323, %v3700
        %v3960 = vadd.f32 %v3324, %v3789
        %v3961 = vadd.f32 %v3325, %v3878
        %v3962 = vadd.f32 %v3326, %v3703
        %v3963 = vadd.f32 %v3327, %v3792
        %v3964 = vadd.f32 %v3328, %v3881
        %v3965 = vadd.f32 %v3329, %v3705
        %v3966 = vadd.f32 %v3330, %v3794
        %v3967 = vadd.f32 %v3331, %v3883
        %v3968 = vadd.f32 %v3332, %v3708
        %v3969 = vadd.f32 %v3333, %v3797
        %v3970 = vadd.f32 %v3334, %v3886
        %v3971 = vadd.f32 %v3335, %v3710
        %v3972 = vadd.f32 %v3336, %v3799
        %v3973 = vadd.f32 %v3337, %v3888
        %v3974 = vadd.f32 %v3338, %v3713
        %v3975 = vadd.f32 %v3339, %v3802
        %v3976 = vadd.f32 %v3340, %v3891
        %v3977 = vadd.f32 %v3341, %v3715
        %v3978 = vadd.f32 %v3342, %v3804
        %v3979 = vadd.f32 %v3343, %v3893
        %v3980 = vadd.f32 %v3344, %v3718
        %v3981 = vadd.f32 %v3345, %v3807
        %v3982 = vadd.f32 %v3346, %v3896
        %v3983 = vadd.f32 %v3347, %v3720
        %v3984 = vadd.f32 %v3348, %v3809
        %v3985 = vadd.f32 %v3349, %v3898
        %v3986 = vadd.f32 %v3350, %v3723
        %v3987 = vadd.f32 %v3351, %v3812
        %v3988 = vadd.f32 %v3352, %v3901
        %v3989 = vadd.f32 %v3353, %v3725
        %v3990 = vadd.f32 %v3354, %v3814
        %v3991 = vadd.f32 %v3355, %v3903
        %v3992 = vadd.f32 %v3356, %v3728
        %v3993 = vadd.f32 %v3357, %v3817
        %v3994 = vadd.f32 %v3358, %v3906
        %v3995 = vadd.f32 %v3359, %v3730
        %v3996 = vadd.f32 %v3360, %v3819
        %v3997 = vadd.f32 %v3361, %v3908
        %v3998 = vadd.f32 %v3362, %v3733
        %v3999 = vadd.f32 %v3363, %v3822
        %v4000 = vadd.f32 %v3364, %v3911
        %v4001 = vadd.f32 %v3365, %v3735
        %v4002 = vadd.f32 %v3366, %v3824
        %v4003 = vadd.f32 %v3367, %v3913
        %v4004 = vadd.f32 %v3368, %v3738
        %v4005 = vadd.f32 %v3369, %v3827
        %v4006 = vadd.f32 %v3370, %v3916
        %v4007 = vadd.f32 %v3371, %v3740
        %v4008 = vadd.f32 %v3372, %v3829
        %v4009 = vadd.f32 %v3373, %v3918
        %v4010 = vadd.f32 %v3374, %v3743
        %v4011 = vadd.f32 %v3375, %v3832
        %v4012 = vadd.f32 %v3376, %v3921
        %v4013 = vadd.f32 %v3377, %v3745
        %v4014 = vadd.f32 %v3378, %v3834
        %v4015 = vadd.f32 %v3379, %v3923
        %v4016 = vadd.f32 %v3380, %v3748
        %v4017 = vadd.f32 %v3381, %v3837
        %v4018 = vadd.f32 %v3382, %v3926
        %v4019 = vadd.f32 %v3383, %v3750
        %v4020 = vadd.f32 %v3384, %v3839
        %v4021 = vadd.f32 %v3385, %v3928
        %v4022 = vadd.f32 %v3386, %v3753
        %v4023 = vadd.f32 %v3387, %v3842
        %v4024 = vadd.f32 %v3388, %v3931
        %v4025 = vadd.f32 %v3389, %v3755
        %v4026 = vadd.f32 %v3390, %v3844
        %v4027 = vadd.f32 %v3391, %v3933
        %v4028 = vadd.f32 %v3392, %v3758
        %v4029 = vadd.f32 %v3393, %v3847
        %v4030 = vadd.f32 %v3394, %v3936
        %v4031 = vadd.f32 %v3395, %v3760
        %v4032 = vadd.f32 %v3396, %v3849
        %v4033 = vadd.f32 %v3397, %v3938
        %v4034 = vadd.f32 %v3398, %v3763
        %v4035 = vadd.f32 %v3399, %v3852
        %v4036 = vadd.f32 %v3400, %v3941
        %v4037 = vadd.f32 %v3401, %v3765
        %v4038 = vadd.f32 %v3402, %v3854
        %v4039 = vadd.f32 %v3403, %v3943
        %v4040 = vadd.f32 %v3404, %v3768
        %v4041 = vadd.f32 %v3405, %v3857
        %v4042 = vadd.f32 %v3406, %v3946
        %v4043 = vadd.f32 %v3407, %v3770
        %v4044 = vadd.f32 %v3408, %v3859
        %v4045 = vadd.f32 %v3409, %v3948
        %4046 = vst [vmem:[#allocation2] sm:$0xff] %v3950
        %4047 = vst [vmem:[#allocation2 + $0x8] sm:$0xff] %v3951
        %4048 = vst.msk [vmem:[#allocation2 + $0x10] sm:$0xff] %vm735, %v3952
        %4049 = vst [vmem:[#allocation2 + $0x18] sm:$0xff] %v3953
        %4050 = vst [vmem:[#allocation2 + $0x20] sm:$0xff] %v3954
        %4051 = vst.msk [vmem:[#allocation2 + $0x28] sm:$0xff] %vm735, %v3955
        %4052 = vst [vmem:[#allocation2 + $0x30] sm:$0xff] %v3956
        %4053 = vst [vmem:[#allocation2 + $0x38] sm:$0xff] %v3957
        %4054 = vst.msk [vmem:[#allocation2 + $0x40] sm:$0xff] %vm735, %v3958
        %4055 = vst [vmem:[#allocation2 + $0x48] sm:$0xff] %v3959
        %4056 = vst [vmem:[#allocation2 + $0x50] sm:$0xff] %v3960
        %4057 = vst.msk [vmem:[#allocation2 + $0x58] sm:$0xff] %vm735, %v3961
        %4058 = vst [vmem:[#allocation2 + $0x60] sm:$0xff] %v3962
        %4059 = vst [vmem:[#allocation2 + $0x68] sm:$0xff] %v3963
        %4060 = vst.msk [vmem:[#allocation2 + $0x70] sm:$0xff] %vm735, %v3964
        %4061 = vst [vmem:[#allocation2 + $0x78] sm:$0xff] %v3965
        %4062 = vst [vmem:[#allocation2 + $0x80] sm:$0xff] %v3966
        %4063 = vst.msk [vmem:[#allocation2 + $0x88] sm:$0xff] %vm735, %v3967
        %4064 = vst [vmem:[#allocation2 + $0x90] sm:$0xff] %v3968
        %4065 = vst [vmem:[#allocation2 + $0x98] sm:$0xff] %v3969
        %4066 = vst.msk [vmem:[#allocation2 + $0xa0] sm:$0xff] %vm735, %v3970
        %4067 = vst [vmem:[#allocation2 + $0xa8] sm:$0xff] %v3971
        %4068 = vst [vmem:[#allocation2 + $0xb0] sm:$0xff] %v3972
        %4069 = vst.msk [vmem:[#allocation2 + $0xb8] sm:$0xff] %vm735, %v3973
        %4070 = vst [vmem:[#allocation2 + $0xc0] sm:$0xff] %v3974
        %4071 = vst [vmem:[#allocation2 + $0xc8] sm:$0xff] %v3975
        %4072 = vst.msk [vmem:[#allocation2 + $0xd0] sm:$0xff] %vm735, %v3976
        %4073 = vst [vmem:[#allocation2 + $0xd8] sm:$0xff] %v3977
        %4074 = vst [vmem:[#allocation2 + $0xe0] sm:$0xff] %v3978
        %4075 = vst.msk [vmem:[#allocation2 + $0xe8] sm:$0xff] %vm735, %v3979
        %4076 = vst [vmem:[#allocation2 + $0xf0] sm:$0xff] %v3980
        %4077 = vst [vmem:[#allocation2 + $0xf8] sm:$0xff] %v3981
        %4078 = vst.msk [vmem:[#allocation2 + $0x100] sm:$0xff] %vm735, %v3982
        %4079 = vst [vmem:[#allocation2 + $0x108] sm:$0xff] %v3983
        %4080 = vst [vmem:[#allocation2 + $0x110] sm:$0xff] %v3984
        %4081 = vst.msk [vmem:[#allocation2 + $0x118] sm:$0xff] %vm735, %v3985
        %4082 = vst [vmem:[#allocation2 + $0x120] sm:$0xff] %v3986
        %4083 = vst [vmem:[#allocation2 + $0x128] sm:$0xff] %v3987
        %4084 = vst.msk [vmem:[#allocation2 + $0x130] sm:$0xff] %vm735, %v3988
        %4085 = vst [vmem:[#allocation2 + $0x138] sm:$0xff] %v3989
        %4086 = vst [vmem:[#allocation2 + $0x140] sm:$0xff] %v3990
        %4087 = vst.msk [vmem:[#allocation2 + $0x148] sm:$0xff] %vm735, %v3991
        %4088 = vst [vmem:[#allocation2 + $0x150] sm:$0xff] %v3992
        %4089 = vst [vmem:[#allocation2 + $0x158] sm:$0xff] %v3993
        %4090 = vst.msk [vmem:[#allocation2 + $0x160] sm:$0xff] %vm735, %v3994
        %4091 = vst [vmem:[#allocation2 + $0x168] sm:$0xff] %v3995
        %4092 = vst [vmem:[#allocation2 + $0x170] sm:$0xff] %v3996
        %4093 = vst.msk [vmem:[#allocation2 + $0x178] sm:$0xff] %vm735, %v3997
        %4094 = vst [vmem:[#allocation2 + $0x180] sm:$0xff] %v3998
        %4095 = vst [vmem:[#allocation2 + $0x188] sm:$0xff] %v3999
        %4096 = vst.msk [vmem:[#allocation2 + $0x190] sm:$0xff] %vm735, %v4000
        %4097 = vst [vmem:[#allocation2 + $0x198] sm:$0xff] %v4001
        %4098 = vst [vmem:[#allocation2 + $0x1a0] sm:$0xff] %v4002
        %4099 = vst.msk [vmem:[#allocation2 + $0x1a8] sm:$0xff] %vm735, %v4003
        %4100 = vst [vmem:[#allocation2 + $0x1b0] sm:$0xff] %v4004
        %4101 = vst [vmem:[#allocation2 + $0x1b8] sm:$0xff] %v4005
        %4102 = vst.msk [vmem:[#allocation2 + $0x1c0] sm:$0xff] %vm735, %v4006
        %4103 = vst [vmem:[#allocation2 + $0x1c8] sm:$0xff] %v4007
        %4104 = vst [vmem:[#allocation2 + $0x1d0] sm:$0xff] %v4008
        %4105 = vst.msk [vmem:[#allocation2 + $0x1d8] sm:$0xff] %vm735, %v4009
        %4106 = vst [vmem:[#allocation2 + $0x1e0] sm:$0xff] %v4010
        %4107 = vst [vmem:[#allocation2 + $0x1e8] sm:$0xff] %v4011
        %4108 = vst.msk [vmem:[#allocation2 + $0x1f0] sm:$0xff] %vm735, %v4012
        %4109 = vst [vmem:[#allocation2 + $0x1f8] sm:$0xff] %v4013
        %4110 = vst [vmem:[#allocation2 + $0x200] sm:$0xff] %v4014
        %4111 = vst.msk [vmem:[#allocation2 + $0x208] sm:$0xff] %vm735, %v4015
        %4112 = vst [vmem:[#allocation2 + $0x210] sm:$0xff] %v4016
        %4113 = vst [vmem:[#allocation2 + $0x218] sm:$0xff] %v4017
        %4114 = vst.msk [vmem:[#allocation2 + $0x220] sm:$0xff] %vm735, %v4018
        %4115 = vst [vmem:[#allocation2 + $0x228] sm:$0xff] %v4019
        %4116 = vst [vmem:[#allocation2 + $0x230] sm:$0xff] %v4020
        %4117 = vst.msk [vmem:[#allocation2 + $0x238] sm:$0xff] %vm735, %v4021
        %4118 = vst [vmem:[#allocation2 + $0x240] sm:$0xff] %v4022
        %4119 = vst [vmem:[#allocation2 + $0x248] sm:$0xff] %v4023
        %4120 = vst.msk [vmem:[#allocation2 + $0x250] sm:$0xff] %vm735, %v4024
        %4121 = vst [vmem:[#allocation2 + $0x258] sm:$0xff] %v4025
        %4122 = vst [vmem:[#allocation2 + $0x260] sm:$0xff] %v4026
        %4123 = vst.msk [vmem:[#allocation2 + $0x268] sm:$0xff] %vm735, %v4027
        %4124 = vst [vmem:[#allocation2 + $0x270] sm:$0xff] %v4028
        %4125 = vst [vmem:[#allocation2 + $0x278] sm:$0xff] %v4029
        %4126 = vst.msk [vmem:[#allocation2 + $0x280] sm:$0xff] %vm735, %v4030
        %4127 = vst [vmem:[#allocation2 + $0x288] sm:$0xff] %v4031
        %4128 = vst [vmem:[#allocation2 + $0x290] sm:$0xff] %v4032
        %4129 = vst.msk [vmem:[#allocation2 + $0x298] sm:$0xff] %vm735, %v4033
        %4130 = vst [vmem:[#allocation2 + $0x2a0] sm:$0xff] %v4034
        %4131 = vst [vmem:[#allocation2 + $0x2a8] sm:$0xff] %v4035
        %4132 = vst.msk [vmem:[#allocation2 + $0x2b0] sm:$0xff] %vm735, %v4036
        %4133 = vst [vmem:[#allocation2 + $0x2b8] sm:$0xff] %v4037
        %4134 = vst [vmem:[#allocation2 + $0x2c0] sm:$0xff] %v4038
        %4135 = vst.msk [vmem:[#allocation2 + $0x2c8] sm:$0xff] %vm735, %v4039
        %4136 = vst [vmem:[#allocation2 + $0x2d0] sm:$0xff] %v4040
        %4137 = vst [vmem:[#allocation2 + $0x2d8] sm:$0xff] %v4041
        %4138 = vst.msk [vmem:[#allocation2 + $0x2e0] sm:$0xff] %vm735, %v4042
        %4139 = vst [vmem:[#allocation2 + $0x2e8] sm:$0xff] %v4043
        %4140 = vst [vmem:[#allocation2 + $0x2f0] sm:$0xff] %v4044
        %4141 = vst.msk [vmem:[#allocation2 + $0x2f8] sm:$0xff] %vm735, %v4045
        %v4142 = vld [vmem:[#allocation2] sm:$0xff]
        %v4143 = vld [vmem:[#allocation2 + $0x8] sm:$0xff]
        %v4144 = vld [vmem:[#allocation2 + $0x10] sm:$0xff]
        %v4145 = vld [vmem:[#allocation2 + $0x18] sm:$0xff]
        %v4146 = vld [vmem:[#allocation2 + $0x20] sm:$0xff]
        %v4147 = vld [vmem:[#allocation2 + $0x28] sm:$0xff]
        %v4148 = vld [vmem:[#allocation2 + $0x30] sm:$0xff]
        %v4149 = vld [vmem:[#allocation2 + $0x38] sm:$0xff]
        %v4150 = vld [vmem:[#allocation2 + $0x40] sm:$0xff]
        %v4151 = vld [vmem:[#allocation2 + $0x48] sm:$0xff]
        %v4152 = vld [vmem:[#allocation2 + $0x50] sm:$0xff]
        %v4153 = vld [vmem:[#allocation2 + $0x58] sm:$0xff]
        %v4154 = vld [vmem:[#allocation2 + $0x60] sm:$0xff]
        %v4155 = vld [vmem:[#allocation2 + $0x68] sm:$0xff]
        %v4156 = vld [vmem:[#allocation2 + $0x70] sm:$0xff]
        %v4157 = vld [vmem:[#allocation2 + $0x78] sm:$0xff]
        %v4158 = vld [vmem:[#allocation2 + $0x80] sm:$0xff]
        %v4159 = vld [vmem:[#allocation2 + $0x88] sm:$0xff]
        %v4160 = vld [vmem:[#allocation2 + $0x90] sm:$0xff]
        %v4161 = vld [vmem:[#allocation2 + $0x98] sm:$0xff]
        %v4162 = vld [vmem:[#allocation2 + $0xa0] sm:$0xff]
        %v4163 = vld [vmem:[#allocation2 + $0xa8] sm:$0xff]
        %v4164 = vld [vmem:[#allocation2 + $0xb0] sm:$0xff]
        %v4165 = vld [vmem:[#allocation2 + $0xb8] sm:$0xff]
        %v4166 = vld [vmem:[#allocation2 + $0xc0] sm:$0xff]
        %v4167 = vld [vmem:[#allocation2 + $0xc8] sm:$0xff]
        %v4168 = vld [vmem:[#allocation2 + $0xd0] sm:$0xff]
        %v4169 = vld [vmem:[#allocation2 + $0xd8] sm:$0xff]
        %v4170 = vld [vmem:[#allocation2 + $0xe0] sm:$0xff]
        %v4171 = vld [vmem:[#allocation2 + $0xe8] sm:$0xff]
        %v4172 = vld [vmem:[#allocation2 + $0xf0] sm:$0xff]
        %v4173 = vld [vmem:[#allocation2 + $0xf8] sm:$0xff]
        %v4174 = vld [vmem:[#allocation2 + $0x100] sm:$0xff]
        %v4175 = vld [vmem:[#allocation2 + $0x108] sm:$0xff]
        %v4176 = vld [vmem:[#allocation2 + $0x110] sm:$0xff]
        %v4177 = vld [vmem:[#allocation2 + $0x118] sm:$0xff]
        %v4178 = vld [vmem:[#allocation2 + $0x120] sm:$0xff]
        %v4179 = vld [vmem:[#allocation2 + $0x128] sm:$0xff]
        %v4180 = vld [vmem:[#allocation2 + $0x130] sm:$0xff]
        %v4181 = vld [vmem:[#allocation2 + $0x138] sm:$0xff]
        %v4182 = vld [vmem:[#allocation2 + $0x140] sm:$0xff]
        %v4183 = vld [vmem:[#allocation2 + $0x148] sm:$0xff]
        %v4184 = vld [vmem:[#allocation2 + $0x150] sm:$0xff]
        %v4185 = vld [vmem:[#allocation2 + $0x158] sm:$0xff]
        %v4186 = vld [vmem:[#allocation2 + $0x160] sm:$0xff]
        %v4187 = vld [vmem:[#allocation2 + $0x168] sm:$0xff]
        %v4188 = vld [vmem:[#allocation2 + $0x170] sm:$0xff]
        %v4189 = vld [vmem:[#allocation2 + $0x178] sm:$0xff]
        %v4190 = vld [vmem:[#allocation2 + $0x180] sm:$0xff]
        %v4191 = vld [vmem:[#allocation2 + $0x188] sm:$0xff]
        %v4192 = vld [vmem:[#allocation2 + $0x190] sm:$0xff]
        %v4193 = vld [vmem:[#allocation2 + $0x198] sm:$0xff]
        %v4194 = vld [vmem:[#allocation2 + $0x1a0] sm:$0xff]
        %v4195 = vld [vmem:[#allocation2 + $0x1a8] sm:$0xff]
        %v4196 = vld [vmem:[#allocation2 + $0x1b0] sm:$0xff]
        %v4197 = vld [vmem:[#allocation2 + $0x1b8] sm:$0xff]
        %v4198 = vld [vmem:[#allocation2 + $0x1c0] sm:$0xff]
        %v4199 = vld [vmem:[#allocation2 + $0x1c8] sm:$0xff]
        %v4200 = vld [vmem:[#allocation2 + $0x1d0] sm:$0xff]
        %v4201 = vld [vmem:[#allocation2 + $0x1d8] sm:$0xff]
        %v4202 = vld [vmem:[#allocation2 + $0x1e0] sm:$0xff]
        %v4203 = vld [vmem:[#allocation2 + $0x1e8] sm:$0xff]
        %v4204 = vld [vmem:[#allocation2 + $0x1f0] sm:$0xff]
        %v4205 = vld [vmem:[#allocation2 + $0x1f8] sm:$0xff]
        %v4206 = vld [vmem:[#allocation2 + $0x200] sm:$0xff]
        %v4207 = vld [vmem:[#allocation2 + $0x208] sm:$0xff]
        %v4208 = vld [vmem:[#allocation2 + $0x210] sm:$0xff]
        %v4209 = vld [vmem:[#allocation2 + $0x218] sm:$0xff]
        %v4210 = vld [vmem:[#allocation2 + $0x220] sm:$0xff]
        %v4211 = vld [vmem:[#allocation2 + $0x228] sm:$0xff]
        %v4212 = vld [vmem:[#allocation2 + $0x230] sm:$0xff]
        %v4213 = vld [vmem:[#allocation2 + $0x238] sm:$0xff]
        %v4214 = vld [vmem:[#allocation2 + $0x240] sm:$0xff]
        %v4215 = vld [vmem:[#allocation2 + $0x248] sm:$0xff]
        %v4216 = vld [vmem:[#allocation2 + $0x250] sm:$0xff]
        %v4217 = vld [vmem:[#allocation2 + $0x258] sm:$0xff]
        %v4218 = vld [vmem:[#allocation2 + $0x260] sm:$0xff]
        %v4219 = vld [vmem:[#allocation2 + $0x268] sm:$0xff]
        %v4220 = vld [vmem:[#allocation2 + $0x270] sm:$0xff]
        %v4221 = vld [vmem:[#allocation2 + $0x278] sm:$0xff]
        %v4222 = vld [vmem:[#allocation2 + $0x280] sm:$0xff]
        %v4223 = vld [vmem:[#allocation2 + $0x288] sm:$0xff]
        %v4224 = vld [vmem:[#allocation2 + $0x290] sm:$0xff]
        %v4225 = vld [vmem:[#allocation2 + $0x298] sm:$0xff]
        %v4226 = vld [vmem:[#allocation2 + $0x2a0] sm:$0xff]
        %v4227 = vld [vmem:[#allocation2 + $0x2a8] sm:$0xff]
        %v4228 = vld [vmem:[#allocation2 + $0x2b0] sm:$0xff]
        %v4229 = vld [vmem:[#allocation2 + $0x2b8] sm:$0xff]
        %v4230 = vld [vmem:[#allocation2 + $0x2c0] sm:$0xff]
        %v4231 = vld [vmem:[#allocation2 + $0x2c8] sm:$0xff]
        %v4232 = vld [vmem:[#allocation2 + $0x2d0] sm:$0xff]
        %v4233 = vld [vmem:[#allocation2 + $0x2d8] sm:$0xff]
        %v4234 = vld [vmem:[#allocation2 + $0x2e0] sm:$0xff]
        %v4235 = vld [vmem:[#allocation2 + $0x2e8] sm:$0xff]
        %v4236 = vld [vmem:[#allocation2 + $0x2f0] sm:$0xff]
        %v4237 = vld [vmem:[#allocation2 + $0x2f8] sm:$0xff]
        %s4238 = scalar_lea.vmem %s1, 640
        %v4239 = vld [vmem:[%s4238] sm:$0xf]
        %v4240 = vld [vmem:[%s4238 + $0x4] sm:$0xf]
        %v4241 = vld [vmem:[%s4238 + $0x8] sm:$0xf]
        %v4242 = vld [vmem:[%s4238 + $0xc] sm:$0xf]
        %v4243 = vld [vmem:[%s4238 + $0x10] sm:$0xf]
        %v4244 = vld [vmem:[%s4238 + $0x14] sm:$0xf]
        %v4245 = vld [vmem:[%s4238 + $0x18] sm:$0xf]
        %v4246 = vld [vmem:[%s4238 + $0x1c] sm:$0xf]
        %v4247 = vld [vmem:[%s4238 + $0x20] sm:$0xf]
        %v4248 = vld [vmem:[%s4238 + $0x24] sm:$0xf]
        %v4249 = vld [vmem:[%s4238 + $0x28] sm:$0xf]
        %v4250 = vld [vmem:[%s4238 + $0x2c] sm:$0xf]
        %v4251 = vld [vmem:[%s4238 + $0x30] sm:$0xf]
        %v4252 = vld [vmem:[%s4238 + $0x34] sm:$0xf]
        %v4253 = vld [vmem:[%s4238 + $0x38] sm:$0xf]
        %v4254 = vld [vmem:[%s4238 + $0x3c] sm:$0xf]
        %v4255 = vld [vmem:[%s4238 + $0x40] sm:$0xf]
        %v4256 = vld [vmem:[%s4238 + $0x44] sm:$0xf]
        %v4257 = vld [vmem:[%s4238 + $0x48] sm:$0xf]
        %v4258 = vld [vmem:[%s4238 + $0x4c] sm:$0xf]
        %v4259 = vld [vmem:[%s4238 + $0x50] sm:$0xf]
        %v4260 = vld [vmem:[%s4238 + $0x54] sm:$0xf]
        %v4261 = vld [vmem:[%s4238 + $0x58] sm:$0xf]
        %v4262 = vld [vmem:[%s4238 + $0x5c] sm:$0xf]
        %v4263 = vld [vmem:[%s4238 + $0x60] sm:$0xf]
        %v4264 = vld [vmem:[%s4238 + $0x64] sm:$0xf]
        %v4265 = vld [vmem:[%s4238 + $0x68] sm:$0xf]
        %v4266 = vld [vmem:[%s4238 + $0x6c] sm:$0xf]
        %v4267 = vld [vmem:[%s4238 + $0x70] sm:$0xf]
        %v4268 = vld [vmem:[%s4238 + $0x74] sm:$0xf]
        %v4269 = vld [vmem:[%s4238 + $0x78] sm:$0xf]
        %v4270 = vld [vmem:[%s4238 + $0x7c] sm:$0xf]
        %v4271 = vld [vmem:[%s183] sm:$0xff]
        %v4272 = vld [vmem:[%s183 + $0x8] sm:$0xf]
        %v4273 = vld [vmem:[%s183 + $0xc] sm:$0xff]
        %v4274 = vld [vmem:[%s183 + $0x14] sm:$0xf]
        %v4275 = vld [vmem:[%s183 + $0x18] sm:$0xff]
        %v4276 = vld [vmem:[%s183 + $0x20] sm:$0xf]
        %v4277 = vld [vmem:[%s183 + $0x24] sm:$0xff]
        %v4278 = vld [vmem:[%s183 + $0x2c] sm:$0xf]
        %v4279 = vld [vmem:[%s183 + $0x30] sm:$0xff]
        %v4280 = vld [vmem:[%s183 + $0x38] sm:$0xf]
        %v4281 = vld [vmem:[%s183 + $0x3c] sm:$0xff]
        %v4282 = vld [vmem:[%s183 + $0x44] sm:$0xf]
        %v4283 = vld [vmem:[%s183 + $0x48] sm:$0x11]
        %v4284 = vld [vmem:[%s183 + $0x50] sm:$0x1]
        %v4317 = vunpack.c.l.b16 %v4239
        %v4318 = vunpack.c.l.b16 %v4240
        %v4319 = vunpack.c.l.b16 %v4241
        %v4320 = vunpack.c.l.b16 %v4242
        %v4321 = vunpack.c.l.b16 %v4243
        %v4322 = vunpack.c.l.b16 %v4244
        %v4323 = vunpack.c.l.b16 %v4245
        %v4324 = vunpack.c.l.b16 %v4246
        %v4325 = vunpack.c.l.b16 %v4247
        %v4326 = vunpack.c.l.b16 %v4248
        %v4327 = vunpack.c.l.b16 %v4249
        %v4328 = vunpack.c.l.b16 %v4250
        %v4329 = vunpack.c.l.b16 %v4251
        %v4330 = vunpack.c.l.b16 %v4252
        %v4331 = vunpack.c.l.b16 %v4253
        %v4332 = vunpack.c.l.b16 %v4254
        %v4333 = vunpack.c.l.b16 %v4255
        %v4334 = vunpack.c.l.b16 %v4256
        %v4335 = vunpack.c.l.b16 %v4257
        %v4336 = vunpack.c.l.b16 %v4258
        %v4337 = vunpack.c.l.b16 %v4259
        %v4338 = vunpack.c.l.b16 %v4260
        %v4339 = vunpack.c.l.b16 %v4261
        %v4340 = vunpack.c.l.b16 %v4262
        %v4341 = vunpack.c.l.b16 %v4263
        %v4342 = vunpack.c.l.b16 %v4264
        %v4343 = vunpack.c.l.b16 %v4265
        %v4344 = vunpack.c.l.b16 %v4266
        %v4345 = vunpack.c.l.b16 %v4267
        %v4346 = vunpack.c.l.b16 %v4268
        %v4347 = vunpack.c.l.b16 %v4269
        %v4348 = vunpack.c.l.b16 %v4270
        %v4349 = vpack.c.b16 %v4318, %v4317
        %v4350 = vpack.c.b16 %v4320, %v4319
        %v4351 = vpack.c.b16 %v4322, %v4321
        %v4352 = vpack.c.b16 %v4324, %v4323
        %v4353 = vpack.c.b16 %v4326, %v4325
        %v4354 = vpack.c.b16 %v4328, %v4327
        %v4355 = vpack.c.b16 %v4330, %v4329
        %v4356 = vpack.c.b16 %v4332, %v4331
        %v4357 = vpack.c.b16 %v4334, %v4333
        %v4358 = vpack.c.b16 %v4336, %v4335
        %v4359 = vpack.c.b16 %v4338, %v4337
        %v4360 = vpack.c.b16 %v4340, %v4339
        %v4361 = vpack.c.b16 %v4342, %v4341
        %v4362 = vpack.c.b16 %v4344, %v4343
        %v4363 = vpack.c.b16 %v4346, %v4345
        %v4364 = vpack.c.b16 %v4348, %v4347
        %v4379 = vunpack.c.l.b16 %v4271
        %v4380 = vunpack.c.h.b16 %v4271
        %v4381 = vunpack.c.l.b16 %v4272
        %v4382 = vunpack.c.l.b16 %v4273
        %v4383 = vunpack.c.h.b16 %v4273
        %v4384 = vunpack.c.l.b16 %v4274
        %v4385 = vunpack.c.l.b16 %v4275
        %v4386 = vunpack.c.h.b16 %v4275
        %v4387 = vunpack.c.l.b16 %v4276
        %v4388 = vunpack.c.l.b16 %v4277
        %v4389 = vunpack.c.h.b16 %v4277
        %v4390 = vunpack.c.l.b16 %v4278
        %v4391 = vunpack.c.l.b16 %v4279
        %v4392 = vunpack.c.h.b16 %v4279
        %v4393 = vunpack.c.l.b16 %v4280
        %v4394 = vunpack.c.l.b16 %v4281
        %v4395 = vunpack.c.h.b16 %v4281
        %v4396 = vunpack.c.l.b16 %v4282
        %v4397 = vunpack.c.l.b16 %v4283
        %v4398 = vunpack.c.h.b16 %v4283
        %v4399 = vunpack.c.l.b16 %v4284
        %v4400 = vpack.c.b16 %v4382, %v4379
        %v4401 = vpack.c.b16 %v4383, %v4380
        %v4402 = vpack.c.b16 %v4384, %v4381
        %v4403 = vpack.c.b16 %v4388, %v4385
        %v4404 = vpack.c.b16 %v4389, %v4386
        %v4405 = vpack.c.b16 %v4390, %v4387
        %v4406 = vpack.c.b16 %v4394, %v4391
        %v4407 = vpack.c.b16 %v4395, %v4392
        %v4408 = vpack.c.b16 %v4396, %v4393
        %v4409 = vpack.c.b16 %v4397, %v4397
        %v4410 = vpack.c.b16 %v4398, %v4398
        %v4411 = vpack.c.b16 %v4399, %v4399
        %4412 = vrot.lane.b32.xlu0 %v4400, 95
        %v4413 = vpop.permute.xlu0 %4412
        %4414 = vrot.lane.b32.xlu0 %v4401, 95
        %v4415 = vpop.permute.xlu0 %4414
        %4416 = vrot.lane.b32.xlu0 %v4402, 95
        %v4417 = vpop.permute.xlu0 %4416
        %4418 = vrot.lane.b32.xlu0 %v4403, 95
        %v4419 = vpop.permute.xlu0 %4418
        %4420 = vrot.lane.b32.xlu0 %v4404, 95
        %v4421 = vpop.permute.xlu0 %4420
        %4422 = vrot.lane.b32.xlu0 %v4405, 95
        %v4423 = vpop.permute.xlu0 %4422
        %4424 = vrot.lane.b32.xlu0 %v4406, 95
        %v4425 = vpop.permute.xlu0 %4424
        %4426 = vrot.lane.b32.xlu0 %v4407, 95
        %v4427 = vpop.permute.xlu0 %4426
        %4428 = vrot.lane.b32.xlu0 %v4408, 95
        %v4429 = vpop.permute.xlu0 %4428
        %4430 = vrot.lane.b32.xlu0 %v4409, 95
        %v4431 = vpop.permute.xlu0 %4430
        %4432 = vrot.lane.b32.xlu0 %v4410, 95
        %v4433 = vpop.permute.xlu0 %4432
        %4434 = vrot.lane.b32.xlu0 %v4411, 95
        %v4435 = vpop.permute.xlu0 %4434
        %vm4436 = vcmask 777216
        %v4437 = vsel %vm4436, %v4413, %v4415
        %v4438 = vsel %vm4436, %v4415, %v4417
        %v4439 = vsel %vm4436, %v4419, %v4421
        %v4440 = vsel %vm4436, %v4421, %v4423
        %v4441 = vsel %vm4436, %v4425, %v4427
        %v4442 = vsel %vm4436, %v4427, %v4429
        %v4443 = vsel %vm4436, %v4431, %v4433
        %v4444 = vsel %vm4436, %v4433, %v4435
        %v4455 = vsel %vm405, %v4349, 0
        %v4458 = vsel %vm405, %v4350, 0
        %v4461 = vsel %vm405, %v4351, 0
        %v4464 = vsel %vm405, %v4352, 0
        %v4467 = vsel %vm405, %v4353, 0
        %v4470 = vsel %vm405, %v4354, 0
        %v4473 = vsel %vm405, %v4355, 0
        %v4476 = vsel %vm405, %v4356, 0
        %v4479 = vsel %vm405, %v4357, 0
        %v4482 = vsel %vm405, %v4358, 0
        %v4485 = vsel %vm405, %v4359, 0
        %v4488 = vsel %vm405, %v4360, 0
        %v4491 = vsel %vm405, %v4361, 0
        %v4494 = vsel %vm405, %v4362, 0
        %v4497 = vsel %vm405, %v4363, 0
        %v4500 = vsel %vm405, %v4364, 0
        %v4503 = vand.u32 %v4443, %v456
        %v4506 = vand.u32 %v4444, %v456
        %v4509 = vand.u32 %v4435, %v456
        %4511 = vmatpush.bf16.msra.mxu0 0
        %4512 = vmatpush.bf16.msra.mxu0 0
        %4513 = vmatpush.bf16.msra.mxu0 0
        %4514 = vmatpush.bf16.msra.mxu0 0
        %4515 = vmatpush.bf16.msra.mxu0 %v4503
        %4516 = vmatpush.bf16.msra.mxu0 %v4441
        %4517 = vmatpush.bf16.msra.mxu0 %v4439
        %4518 = vmatpush.bf16.msra.mxu0 %v4437
        %4519 = vmatmul.bf16.gmra.mxu0 %v4455
        %v4520 = vpop.f32.mrf.mxu0
        %v4521 = vadd.f32 0.0, %v4520
        %v4522 = vpop.f32.mrf.mxu0
        %v4523 = vadd.f32 0.0, %v4522
        %4524 = vmatmul.bf16.gmra.mxu0 %v4458
        %v4525 = vpop.f32.mrf.mxu0
        %v4526 = vadd.f32 0.0, %v4525
        %v4527 = vpop.f32.mrf.mxu0
        %v4528 = vadd.f32 0.0, %v4527
        %4529 = vmatmul.bf16.gmra.mxu0 %v4461
        %v4530 = vpop.f32.mrf.mxu0
        %v4531 = vadd.f32 0.0, %v4530
        %v4532 = vpop.f32.mrf.mxu0
        %v4533 = vadd.f32 0.0, %v4532
        %4534 = vmatmul.bf16.gmra.mxu0 %v4464
        %v4535 = vpop.f32.mrf.mxu0
        %v4536 = vadd.f32 0.0, %v4535
        %v4537 = vpop.f32.mrf.mxu0
        %v4538 = vadd.f32 0.0, %v4537
        %4539 = vmatmul.bf16.gmra.mxu0 %v4467
        %v4540 = vpop.f32.mrf.mxu0
        %v4541 = vadd.f32 0.0, %v4540
        %v4542 = vpop.f32.mrf.mxu0
        %v4543 = vadd.f32 0.0, %v4542
        %4544 = vmatmul.bf16.gmra.mxu0 %v4470
        %v4545 = vpop.f32.mrf.mxu0
        %v4546 = vadd.f32 0.0, %v4545
        %v4547 = vpop.f32.mrf.mxu0
        %v4548 = vadd.f32 0.0, %v4547
        %4549 = vmatmul.bf16.gmra.mxu0 %v4473
        %v4550 = vpop.f32.mrf.mxu0
        %v4551 = vadd.f32 0.0, %v4550
        %v4552 = vpop.f32.mrf.mxu0
        %v4553 = vadd.f32 0.0, %v4552
        %4554 = vmatmul.bf16.gmra.mxu0 %v4476
        %v4555 = vpop.f32.mrf.mxu0
        %v4556 = vadd.f32 0.0, %v4555
        %v4557 = vpop.f32.mrf.mxu0
        %v4558 = vadd.f32 0.0, %v4557
        %4559 = vmatmul.bf16.gmra.mxu0 %v4479
        %v4560 = vpop.f32.mrf.mxu0
        %v4561 = vadd.f32 0.0, %v4560
        %v4562 = vpop.f32.mrf.mxu0
        %v4563 = vadd.f32 0.0, %v4562
        %4564 = vmatmul.bf16.gmra.mxu0 %v4482
        %v4565 = vpop.f32.mrf.mxu0
        %v4566 = vadd.f32 0.0, %v4565
        %v4567 = vpop.f32.mrf.mxu0
        %v4568 = vadd.f32 0.0, %v4567
        %4569 = vmatmul.bf16.gmra.mxu0 %v4485
        %v4570 = vpop.f32.mrf.mxu0
        %v4571 = vadd.f32 0.0, %v4570
        %v4572 = vpop.f32.mrf.mxu0
        %v4573 = vadd.f32 0.0, %v4572
        %4574 = vmatmul.bf16.gmra.mxu0 %v4488
        %v4575 = vpop.f32.mrf.mxu0
        %v4576 = vadd.f32 0.0, %v4575
        %v4577 = vpop.f32.mrf.mxu0
        %v4578 = vadd.f32 0.0, %v4577
        %4579 = vmatmul.bf16.gmra.mxu0 %v4491
        %v4580 = vpop.f32.mrf.mxu0
        %v4581 = vadd.f32 0.0, %v4580
        %v4582 = vpop.f32.mrf.mxu0
        %v4583 = vadd.f32 0.0, %v4582
        %4584 = vmatmul.bf16.gmra.mxu0 %v4494
        %v4585 = vpop.f32.mrf.mxu0
        %v4586 = vadd.f32 0.0, %v4585
        %v4587 = vpop.f32.mrf.mxu0
        %v4588 = vadd.f32 0.0, %v4587
        %4589 = vmatmul.bf16.gmra.mxu0 %v4497
        %v4590 = vpop.f32.mrf.mxu0
        %v4591 = vadd.f32 0.0, %v4590
        %v4592 = vpop.f32.mrf.mxu0
        %v4593 = vadd.f32 0.0, %v4592
        %4594 = vmatmul.bf16.gmra.mxu0 %v4500
        %v4595 = vpop.f32.mrf.mxu0
        %v4596 = vadd.f32 0.0, %v4595
        %v4597 = vpop.f32.mrf.mxu0
        %v4598 = vadd.f32 0.0, %v4597
        %4599 = vdwg.mxu0
        %4600 = vmatpush.bf16.msra.mxu0 0
        %4601 = vmatpush.bf16.msra.mxu0 0
        %4602 = vmatpush.bf16.msra.mxu0 0
        %4603 = vmatpush.bf16.msra.mxu0 0
        %4604 = vmatpush.bf16.msra.mxu0 %v4506
        %4605 = vmatpush.bf16.msra.mxu0 %v4442
        %4606 = vmatpush.bf16.msra.mxu0 %v4440
        %4607 = vmatpush.bf16.msra.mxu0 %v4438
        %4608 = vmatmul.bf16.gmra.mxu0 %v4455
        %v4609 = vpop.f32.mrf.mxu0
        %v4610 = vadd.f32 0.0, %v4609
        %v4611 = vpop.f32.mrf.mxu0
        %v4612 = vadd.f32 0.0, %v4611
        %4613 = vmatmul.bf16.gmra.mxu0 %v4458
        %v4614 = vpop.f32.mrf.mxu0
        %v4615 = vadd.f32 0.0, %v4614
        %v4616 = vpop.f32.mrf.mxu0
        %v4617 = vadd.f32 0.0, %v4616
        %4618 = vmatmul.bf16.gmra.mxu0 %v4461
        %v4619 = vpop.f32.mrf.mxu0
        %v4620 = vadd.f32 0.0, %v4619
        %v4621 = vpop.f32.mrf.mxu0
        %v4622 = vadd.f32 0.0, %v4621
        %4623 = vmatmul.bf16.gmra.mxu0 %v4464
        %v4624 = vpop.f32.mrf.mxu0
        %v4625 = vadd.f32 0.0, %v4624
        %v4626 = vpop.f32.mrf.mxu0
        %v4627 = vadd.f32 0.0, %v4626
        %4628 = vmatmul.bf16.gmra.mxu0 %v4467
        %v4629 = vpop.f32.mrf.mxu0
        %v4630 = vadd.f32 0.0, %v4629
        %v4631 = vpop.f32.mrf.mxu0
        %v4632 = vadd.f32 0.0, %v4631
        %4633 = vmatmul.bf16.gmra.mxu0 %v4470
        %v4634 = vpop.f32.mrf.mxu0
        %v4635 = vadd.f32 0.0, %v4634
        %v4636 = vpop.f32.mrf.mxu0
        %v4637 = vadd.f32 0.0, %v4636
        %4638 = vmatmul.bf16.gmra.mxu0 %v4473
        %v4639 = vpop.f32.mrf.mxu0
        %v4640 = vadd.f32 0.0, %v4639
        %v4641 = vpop.f32.mrf.mxu0
        %v4642 = vadd.f32 0.0, %v4641
        %4643 = vmatmul.bf16.gmra.mxu0 %v4476
        %v4644 = vpop.f32.mrf.mxu0
        %v4645 = vadd.f32 0.0, %v4644
        %v4646 = vpop.f32.mrf.mxu0
        %v4647 = vadd.f32 0.0, %v4646
        %4648 = vmatmul.bf16.gmra.mxu0 %v4479
        %v4649 = vpop.f32.mrf.mxu0
        %v4650 = vadd.f32 0.0, %v4649
        %v4651 = vpop.f32.mrf.mxu0
        %v4652 = vadd.f32 0.0, %v4651
        %4653 = vmatmul.bf16.gmra.mxu0 %v4482
        %v4654 = vpop.f32.mrf.mxu0
        %v4655 = vadd.f32 0.0, %v4654
        %v4656 = vpop.f32.mrf.mxu0
        %v4657 = vadd.f32 0.0, %v4656
        %4658 = vmatmul.bf16.gmra.mxu0 %v4485
        %v4659 = vpop.f32.mrf.mxu0
        %v4660 = vadd.f32 0.0, %v4659
        %v4661 = vpop.f32.mrf.mxu0
        %v4662 = vadd.f32 0.0, %v4661
        %4663 = vmatmul.bf16.gmra.mxu0 %v4488
        %v4664 = vpop.f32.mrf.mxu0
        %v4665 = vadd.f32 0.0, %v4664
        %v4666 = vpop.f32.mrf.mxu0
        %v4667 = vadd.f32 0.0, %v4666
        %4668 = vmatmul.bf16.gmra.mxu0 %v4491
        %v4669 = vpop.f32.mrf.mxu0
        %v4670 = vadd.f32 0.0, %v4669
        %v4671 = vpop.f32.mrf.mxu0
        %v4672 = vadd.f32 0.0, %v4671
        %4673 = vmatmul.bf16.gmra.mxu0 %v4494
        %v4674 = vpop.f32.mrf.mxu0
        %v4675 = vadd.f32 0.0, %v4674
        %v4676 = vpop.f32.mrf.mxu0
        %v4677 = vadd.f32 0.0, %v4676
        %4678 = vmatmul.bf16.gmra.mxu0 %v4497
        %v4679 = vpop.f32.mrf.mxu0
        %v4680 = vadd.f32 0.0, %v4679
        %v4681 = vpop.f32.mrf.mxu0
        %v4682 = vadd.f32 0.0, %v4681
        %4683 = vmatmul.bf16.gmra.mxu0 %v4500
        %v4684 = vpop.f32.mrf.mxu0
        %v4685 = vadd.f32 0.0, %v4684
        %v4686 = vpop.f32.mrf.mxu0
        %v4687 = vadd.f32 0.0, %v4686
        %4688 = vdwg.mxu0
        %4689 = vmatpush.bf16.msra.mxu0 0
        %4690 = vmatpush.bf16.msra.mxu0 0
        %4691 = vmatpush.bf16.msra.mxu0 0
        %4692 = vmatpush.bf16.msra.mxu0 0
        %4693 = vmatpush.bf16.msra.mxu0 %v4509
        %4694 = vmatpush.bf16.msra.mxu0 %v4429
        %4695 = vmatpush.bf16.msra.mxu0 %v4423
        %4696 = vmatpush.bf16.msra.mxu0 %v4417
        %4697 = vmatmul.bf16.gmra.mxu0 %v4455
        %v4698 = vpop.f32.mrf.mxu0
        %v4699 = vadd.f32 0.0, %v4698
        %v4700 = vpop.f32.mrf.mxu0
        %v4701 = vadd.f32 0.0, %v4700
        %4702 = vmatmul.bf16.gmra.mxu0 %v4458
        %v4703 = vpop.f32.mrf.mxu0
        %v4704 = vadd.f32 0.0, %v4703
        %v4705 = vpop.f32.mrf.mxu0
        %v4706 = vadd.f32 0.0, %v4705
        %4707 = vmatmul.bf16.gmra.mxu0 %v4461
        %v4708 = vpop.f32.mrf.mxu0
        %v4709 = vadd.f32 0.0, %v4708
        %v4710 = vpop.f32.mrf.mxu0
        %v4711 = vadd.f32 0.0, %v4710
        %4712 = vmatmul.bf16.gmra.mxu0 %v4464
        %v4713 = vpop.f32.mrf.mxu0
        %v4714 = vadd.f32 0.0, %v4713
        %v4715 = vpop.f32.mrf.mxu0
        %v4716 = vadd.f32 0.0, %v4715
        %4717 = vmatmul.bf16.gmra.mxu0 %v4467
        %v4718 = vpop.f32.mrf.mxu0
        %v4719 = vadd.f32 0.0, %v4718
        %v4720 = vpop.f32.mrf.mxu0
        %v4721 = vadd.f32 0.0, %v4720
        %4722 = vmatmul.bf16.gmra.mxu0 %v4470
        %v4723 = vpop.f32.mrf.mxu0
        %v4724 = vadd.f32 0.0, %v4723
        %v4725 = vpop.f32.mrf.mxu0
        %v4726 = vadd.f32 0.0, %v4725
        %4727 = vmatmul.bf16.gmra.mxu0 %v4473
        %v4728 = vpop.f32.mrf.mxu0
        %v4729 = vadd.f32 0.0, %v4728
        %v4730 = vpop.f32.mrf.mxu0
        %v4731 = vadd.f32 0.0, %v4730
        %4732 = vmatmul.bf16.gmra.mxu0 %v4476
        %v4733 = vpop.f32.mrf.mxu0
        %v4734 = vadd.f32 0.0, %v4733
        %v4735 = vpop.f32.mrf.mxu0
        %v4736 = vadd.f32 0.0, %v4735
        %4737 = vmatmul.bf16.gmra.mxu0 %v4479
        %v4738 = vpop.f32.mrf.mxu0
        %v4739 = vadd.f32 0.0, %v4738
        %v4740 = vpop.f32.mrf.mxu0
        %v4741 = vadd.f32 0.0, %v4740
        %4742 = vmatmul.bf16.gmra.mxu0 %v4482
        %v4743 = vpop.f32.mrf.mxu0
        %v4744 = vadd.f32 0.0, %v4743
        %v4745 = vpop.f32.mrf.mxu0
        %v4746 = vadd.f32 0.0, %v4745
        %4747 = vmatmul.bf16.gmra.mxu0 %v4485
        %v4748 = vpop.f32.mrf.mxu0
        %v4749 = vadd.f32 0.0, %v4748
        %v4750 = vpop.f32.mrf.mxu0
        %v4751 = vadd.f32 0.0, %v4750
        %4752 = vmatmul.bf16.gmra.mxu0 %v4488
        %v4753 = vpop.f32.mrf.mxu0
        %v4754 = vadd.f32 0.0, %v4753
        %v4755 = vpop.f32.mrf.mxu0
        %v4756 = vadd.f32 0.0, %v4755
        %4757 = vmatmul.bf16.gmra.mxu0 %v4491
        %v4758 = vpop.f32.mrf.mxu0
        %v4759 = vadd.f32 0.0, %v4758
        %v4760 = vpop.f32.mrf.mxu0
        %v4761 = vadd.f32 0.0, %v4760
        %4762 = vmatmul.bf16.gmra.mxu0 %v4494
        %v4763 = vpop.f32.mrf.mxu0
        %v4764 = vadd.f32 0.0, %v4763
        %v4765 = vpop.f32.mrf.mxu0
        %v4766 = vadd.f32 0.0, %v4765
        %4767 = vmatmul.bf16.gmra.mxu0 %v4497
        %v4768 = vpop.f32.mrf.mxu0
        %v4769 = vadd.f32 0.0, %v4768
        %v4770 = vpop.f32.mrf.mxu0
        %v4771 = vadd.f32 0.0, %v4770
        %4772 = vmatmul.bf16.gmra.mxu0 %v4500
        %v4773 = vpop.f32.mrf.mxu0
        %v4774 = vadd.f32 0.0, %v4773
        %v4775 = vpop.f32.mrf.mxu0
        %v4776 = vadd.f32 0.0, %v4775
        %4777 = vdwg.mxu0
        %v4778 = vadd.f32 %v4142, %v4521
        %v4779 = vadd.f32 %v4143, %v4610
        %v4780 = vadd.f32 %v4144, %v4699
        %v4781 = vadd.f32 %v4145, %v4523
        %v4782 = vadd.f32 %v4146, %v4612
        %v4783 = vadd.f32 %v4147, %v4701
        %v4784 = vadd.f32 %v4148, %v4526
        %v4785 = vadd.f32 %v4149, %v4615
        %v4786 = vadd.f32 %v4150, %v4704
        %v4787 = vadd.f32 %v4151, %v4528
        %v4788 = vadd.f32 %v4152, %v4617
        %v4789 = vadd.f32 %v4153, %v4706
        %v4790 = vadd.f32 %v4154, %v4531
        %v4791 = vadd.f32 %v4155, %v4620
        %v4792 = vadd.f32 %v4156, %v4709
        %v4793 = vadd.f32 %v4157, %v4533
        %v4794 = vadd.f32 %v4158, %v4622
        %v4795 = vadd.f32 %v4159, %v4711
        %v4796 = vadd.f32 %v4160, %v4536
        %v4797 = vadd.f32 %v4161, %v4625
        %v4798 = vadd.f32 %v4162, %v4714
        %v4799 = vadd.f32 %v4163, %v4538
        %v4800 = vadd.f32 %v4164, %v4627
        %v4801 = vadd.f32 %v4165, %v4716
        %v4802 = vadd.f32 %v4166, %v4541
        %v4803 = vadd.f32 %v4167, %v4630
        %v4804 = vadd.f32 %v4168, %v4719
        %v4805 = vadd.f32 %v4169, %v4543
        %v4806 = vadd.f32 %v4170, %v4632
        %v4807 = vadd.f32 %v4171, %v4721
        %v4808 = vadd.f32 %v4172, %v4546
        %v4809 = vadd.f32 %v4173, %v4635
        %v4810 = vadd.f32 %v4174, %v4724
        %v4811 = vadd.f32 %v4175, %v4548
        %v4812 = vadd.f32 %v4176, %v4637
        %v4813 = vadd.f32 %v4177, %v4726
        %v4814 = vadd.f32 %v4178, %v4551
        %v4815 = vadd.f32 %v4179, %v4640
        %v4816 = vadd.f32 %v4180, %v4729
        %v4817 = vadd.f32 %v4181, %v4553
        %v4818 = vadd.f32 %v4182, %v4642
        %v4819 = vadd.f32 %v4183, %v4731
        %v4820 = vadd.f32 %v4184, %v4556
        %v4821 = vadd.f32 %v4185, %v4645
        %v4822 = vadd.f32 %v4186, %v4734
        %v4823 = vadd.f32 %v4187, %v4558
        %v4824 = vadd.f32 %v4188, %v4647
        %v4825 = vadd.f32 %v4189, %v4736
        %v4826 = vadd.f32 %v4190, %v4561
        %v4827 = vadd.f32 %v4191, %v4650
        %v4828 = vadd.f32 %v4192, %v4739
        %v4829 = vadd.f32 %v4193, %v4563
        %v4830 = vadd.f32 %v4194, %v4652
        %v4831 = vadd.f32 %v4195, %v4741
        %v4832 = vadd.f32 %v4196, %v4566
        %v4833 = vadd.f32 %v4197, %v4655
        %v4834 = vadd.f32 %v4198, %v4744
        %v4835 = vadd.f32 %v4199, %v4568
        %v4836 = vadd.f32 %v4200, %v4657
        %v4837 = vadd.f32 %v4201, %v4746
        %v4838 = vadd.f32 %v4202, %v4571
        %v4839 = vadd.f32 %v4203, %v4660
        %v4840 = vadd.f32 %v4204, %v4749
        %v4841 = vadd.f32 %v4205, %v4573
        %v4842 = vadd.f32 %v4206, %v4662
        %v4843 = vadd.f32 %v4207, %v4751
        %v4844 = vadd.f32 %v4208, %v4576
        %v4845 = vadd.f32 %v4209, %v4665
        %v4846 = vadd.f32 %v4210, %v4754
        %v4847 = vadd.f32 %v4211, %v4578
        %v4848 = vadd.f32 %v4212, %v4667
        %v4849 = vadd.f32 %v4213, %v4756
        %v4850 = vadd.f32 %v4214, %v4581
        %v4851 = vadd.f32 %v4215, %v4670
        %v4852 = vadd.f32 %v4216, %v4759
        %v4853 = vadd.f32 %v4217, %v4583
        %v4854 = vadd.f32 %v4218, %v4672
        %v4855 = vadd.f32 %v4219, %v4761
        %v4856 = vadd.f32 %v4220, %v4586
        %v4857 = vadd.f32 %v4221, %v4675
        %v4858 = vadd.f32 %v4222, %v4764
        %v4859 = vadd.f32 %v4223, %v4588
        %v4860 = vadd.f32 %v4224, %v4677
        %v4861 = vadd.f32 %v4225, %v4766
        %v4862 = vadd.f32 %v4226, %v4591
        %v4863 = vadd.f32 %v4227, %v4680
        %v4864 = vadd.f32 %v4228, %v4769
        %v4865 = vadd.f32 %v4229, %v4593
        %v4866 = vadd.f32 %v4230, %v4682
        %v4867 = vadd.f32 %v4231, %v4771
        %v4868 = vadd.f32 %v4232, %v4596
        %v4869 = vadd.f32 %v4233, %v4685
        %v4870 = vadd.f32 %v4234, %v4774
        %v4871 = vadd.f32 %v4235, %v4598
        %v4872 = vadd.f32 %v4236, %v4687
        %v4873 = vadd.f32 %v4237, %v4776
        %4874 = vst [vmem:[#allocation2] sm:$0xff] %v4778
        %4875 = vst [vmem:[#allocation2 + $0x8] sm:$0xff] %v4779
        %4876 = vst.msk [vmem:[#allocation2 + $0x10] sm:$0xff] %vm735, %v4780
        %4877 = vst [vmem:[#allocation2 + $0x18] sm:$0xff] %v4781
        %4878 = vst [vmem:[#allocation2 + $0x20] sm:$0xff] %v4782
        %4879 = vst.msk [vmem:[#allocation2 + $0x28] sm:$0xff] %vm735, %v4783
        %4880 = vst [vmem:[#allocation2 + $0x30] sm:$0xff] %v4784
        %4881 = vst [vmem:[#allocation2 + $0x38] sm:$0xff] %v4785
        %4882 = vst.msk [vmem:[#allocation2 + $0x40] sm:$0xff] %vm735, %v4786
        %4883 = vst [vmem:[#allocation2 + $0x48] sm:$0xff] %v4787
        %4884 = vst [vmem:[#allocation2 + $0x50] sm:$0xff] %v4788
        %4885 = vst.msk [vmem:[#allocation2 + $0x58] sm:$0xff] %vm735, %v4789
        %4886 = vst [vmem:[#allocation2 + $0x60] sm:$0xff] %v4790
        %4887 = vst [vmem:[#allocation2 + $0x68] sm:$0xff] %v4791
        %4888 = vst.msk [vmem:[#allocation2 + $0x70] sm:$0xff] %vm735, %v4792
        %4889 = vst [vmem:[#allocation2 + $0x78] sm:$0xff] %v4793
        %4890 = vst [vmem:[#allocation2 + $0x80] sm:$0xff] %v4794
        %4891 = vst.msk [vmem:[#allocation2 + $0x88] sm:$0xff] %vm735, %v4795
        %4892 = vst [vmem:[#allocation2 + $0x90] sm:$0xff] %v4796
        %4893 = vst [vmem:[#allocation2 + $0x98] sm:$0xff] %v4797
        %4894 = vst.msk [vmem:[#allocation2 + $0xa0] sm:$0xff] %vm735, %v4798
        %4895 = vst [vmem:[#allocation2 + $0xa8] sm:$0xff] %v4799
        %4896 = vst [vmem:[#allocation2 + $0xb0] sm:$0xff] %v4800
        %4897 = vst.msk [vmem:[#allocation2 + $0xb8] sm:$0xff] %vm735, %v4801
        %4898 = vst [vmem:[#allocation2 + $0xc0] sm:$0xff] %v4802
        %4899 = vst [vmem:[#allocation2 + $0xc8] sm:$0xff] %v4803
        %4900 = vst.msk [vmem:[#allocation2 + $0xd0] sm:$0xff] %vm735, %v4804
        %4901 = vst [vmem:[#allocation2 + $0xd8] sm:$0xff] %v4805
        %4902 = vst [vmem:[#allocation2 + $0xe0] sm:$0xff] %v4806
        %4903 = vst.msk [vmem:[#allocation2 + $0xe8] sm:$0xff] %vm735, %v4807
        %4904 = vst [vmem:[#allocation2 + $0xf0] sm:$0xff] %v4808
        %4905 = vst [vmem:[#allocation2 + $0xf8] sm:$0xff] %v4809
        %4906 = vst.msk [vmem:[#allocation2 + $0x100] sm:$0xff] %vm735, %v4810
        %4907 = vst [vmem:[#allocation2 + $0x108] sm:$0xff] %v4811
        %4908 = vst [vmem:[#allocation2 + $0x110] sm:$0xff] %v4812
        %4909 = vst.msk [vmem:[#allocation2 + $0x118] sm:$0xff] %vm735, %v4813
        %4910 = vst [vmem:[#allocation2 + $0x120] sm:$0xff] %v4814
        %4911 = vst [vmem:[#allocation2 + $0x128] sm:$0xff] %v4815
        %4912 = vst.msk [vmem:[#allocation2 + $0x130] sm:$0xff] %vm735, %v4816
        %4913 = vst [vmem:[#allocation2 + $0x138] sm:$0xff] %v4817
        %4914 = vst [vmem:[#allocation2 + $0x140] sm:$0xff] %v4818
        %4915 = vst.msk [vmem:[#allocation2 + $0x148] sm:$0xff] %vm735, %v4819
        %4916 = vst [vmem:[#allocation2 + $0x150] sm:$0xff] %v4820
        %4917 = vst [vmem:[#allocation2 + $0x158] sm:$0xff] %v4821
        %4918 = vst.msk [vmem:[#allocation2 + $0x160] sm:$0xff] %vm735, %v4822
        %4919 = vst [vmem:[#allocation2 + $0x168] sm:$0xff] %v4823
        %4920 = vst [vmem:[#allocation2 + $0x170] sm:$0xff] %v4824
        %4921 = vst.msk [vmem:[#allocation2 + $0x178] sm:$0xff] %vm735, %v4825
        %4922 = vst [vmem:[#allocation2 + $0x180] sm:$0xff] %v4826
        %4923 = vst [vmem:[#allocation2 + $0x188] sm:$0xff] %v4827
        %4924 = vst.msk [vmem:[#allocation2 + $0x190] sm:$0xff] %vm735, %v4828
        %4925 = vst [vmem:[#allocation2 + $0x198] sm:$0xff] %v4829
        %4926 = vst [vmem:[#allocation2 + $0x1a0] sm:$0xff] %v4830
        %4927 = vst.msk [vmem:[#allocation2 + $0x1a8] sm:$0xff] %vm735, %v4831
        %4928 = vst [vmem:[#allocation2 + $0x1b0] sm:$0xff] %v4832
        %4929 = vst [vmem:[#allocation2 + $0x1b8] sm:$0xff] %v4833
        %4930 = vst.msk [vmem:[#allocation2 + $0x1c0] sm:$0xff] %vm735, %v4834
        %4931 = vst [vmem:[#allocation2 + $0x1c8] sm:$0xff] %v4835
        %4932 = vst [vmem:[#allocation2 + $0x1d0] sm:$0xff] %v4836
        %4933 = vst.msk [vmem:[#allocation2 + $0x1d8] sm:$0xff] %vm735, %v4837
        %4934 = vst [vmem:[#allocation2 + $0x1e0] sm:$0xff] %v4838
        %4935 = vst [vmem:[#allocation2 + $0x1e8] sm:$0xff] %v4839
        %4936 = vst.msk [vmem:[#allocation2 + $0x1f0] sm:$0xff] %vm735, %v4840
        %4937 = vst [vmem:[#allocation2 + $0x1f8] sm:$0xff] %v4841
        %4938 = vst [vmem:[#allocation2 + $0x200] sm:$0xff] %v4842
        %4939 = vst.msk [vmem:[#allocation2 + $0x208] sm:$0xff] %vm735, %v4843
        %4940 = vst [vmem:[#allocation2 + $0x210] sm:$0xff] %v4844
        %4941 = vst [vmem:[#allocation2 + $0x218] sm:$0xff] %v4845
        %4942 = vst.msk [vmem:[#allocation2 + $0x220] sm:$0xff] %vm735, %v4846
        %4943 = vst [vmem:[#allocation2 + $0x228] sm:$0xff] %v4847
        %4944 = vst [vmem:[#allocation2 + $0x230] sm:$0xff] %v4848
        %4945 = vst.msk [vmem:[#allocation2 + $0x238] sm:$0xff] %vm735, %v4849
        %4946 = vst [vmem:[#allocation2 + $0x240] sm:$0xff] %v4850
        %4947 = vst [vmem:[#allocation2 + $0x248] sm:$0xff] %v4851
        %4948 = vst.msk [vmem:[#allocation2 + $0x250] sm:$0xff] %vm735, %v4852
        %4949 = vst [vmem:[#allocation2 + $0x258] sm:$0xff] %v4853
        %4950 = vst [vmem:[#allocation2 + $0x260] sm:$0xff] %v4854
        %4951 = vst.msk [vmem:[#allocation2 + $0x268] sm:$0xff] %vm735, %v4855
        %4952 = vst [vmem:[#allocation2 + $0x270] sm:$0xff] %v4856
        %4953 = vst [vmem:[#allocation2 + $0x278] sm:$0xff] %v4857
        %4954 = vst.msk [vmem:[#allocation2 + $0x280] sm:$0xff] %vm735, %v4858
        %4955 = vst [vmem:[#allocation2 + $0x288] sm:$0xff] %v4859
        %4956 = vst [vmem:[#allocation2 + $0x290] sm:$0xff] %v4860
        %4957 = vst.msk [vmem:[#allocation2 + $0x298] sm:$0xff] %vm735, %v4861
        %4958 = vst [vmem:[#allocation2 + $0x2a0] sm:$0xff] %v4862
        %4959 = vst [vmem:[#allocation2 + $0x2a8] sm:$0xff] %v4863
        %4960 = vst.msk [vmem:[#allocation2 + $0x2b0] sm:$0xff] %vm735, %v4864
        %4961 = vst [vmem:[#allocation2 + $0x2b8] sm:$0xff] %v4865
        %4962 = vst [vmem:[#allocation2 + $0x2c0] sm:$0xff] %v4866
        %4963 = vst.msk [vmem:[#allocation2 + $0x2c8] sm:$0xff] %vm735, %v4867
        %4964 = vst [vmem:[#allocation2 + $0x2d0] sm:$0xff] %v4868
        %4965 = vst [vmem:[#allocation2 + $0x2d8] sm:$0xff] %v4869
        %4966 = vst.msk [vmem:[#allocation2 + $0x2e0] sm:$0xff] %vm735, %v4870
        %4967 = vst [vmem:[#allocation2 + $0x2e8] sm:$0xff] %v4871
        %4968 = vst [vmem:[#allocation2 + $0x2f0] sm:$0xff] %v4872
        %4969 = vst.msk [vmem:[#allocation2 + $0x2f8] sm:$0xff] %vm735, %v4873
        %v4970 = vld [vmem:[#allocation2] sm:$0xff]
        %v4971 = vld [vmem:[#allocation2 + $0x8] sm:$0xff]
        %v4972 = vld [vmem:[#allocation2 + $0x10] sm:$0xff]
        %v4973 = vld [vmem:[#allocation2 + $0x18] sm:$0xff]
        %v4974 = vld [vmem:[#allocation2 + $0x20] sm:$0xff]
        %v4975 = vld [vmem:[#allocation2 + $0x28] sm:$0xff]
        %v4976 = vld [vmem:[#allocation2 + $0x30] sm:$0xff]
        %v4977 = vld [vmem:[#allocation2 + $0x38] sm:$0xff]
        %v4978 = vld [vmem:[#allocation2 + $0x40] sm:$0xff]
        %v4979 = vld [vmem:[#allocation2 + $0x48] sm:$0xff]
        %v4980 = vld [vmem:[#allocation2 + $0x50] sm:$0xff]
        %v4981 = vld [vmem:[#allocation2 + $0x58] sm:$0xff]
        %v4982 = vld [vmem:[#allocation2 + $0x60] sm:$0xff]
        %v4983 = vld [vmem:[#allocation2 + $0x68] sm:$0xff]
        %v4984 = vld [vmem:[#allocation2 + $0x70] sm:$0xff]
        %v4985 = vld [vmem:[#allocation2 + $0x78] sm:$0xff]
        %v4986 = vld [vmem:[#allocation2 + $0x80] sm:$0xff]
        %v4987 = vld [vmem:[#allocation2 + $0x88] sm:$0xff]
        %v4988 = vld [vmem:[#allocation2 + $0x90] sm:$0xff]
        %v4989 = vld [vmem:[#allocation2 + $0x98] sm:$0xff]
        %v4990 = vld [vmem:[#allocation2 + $0xa0] sm:$0xff]
        %v4991 = vld [vmem:[#allocation2 + $0xa8] sm:$0xff]
        %v4992 = vld [vmem:[#allocation2 + $0xb0] sm:$0xff]
        %v4993 = vld [vmem:[#allocation2 + $0xb8] sm:$0xff]
        %v4994 = vld [vmem:[#allocation2 + $0xc0] sm:$0xff]
        %v4995 = vld [vmem:[#allocation2 + $0xc8] sm:$0xff]
        %v4996 = vld [vmem:[#allocation2 + $0xd0] sm:$0xff]
        %v4997 = vld [vmem:[#allocation2 + $0xd8] sm:$0xff]
        %v4998 = vld [vmem:[#allocation2 + $0xe0] sm:$0xff]
        %v4999 = vld [vmem:[#allocation2 + $0xe8] sm:$0xff]
        %v5000 = vld [vmem:[#allocation2 + $0xf0] sm:$0xff]
        %v5001 = vld [vmem:[#allocation2 + $0xf8] sm:$0xff]
        %v5002 = vld [vmem:[#allocation2 + $0x100] sm:$0xff]
        %v5003 = vld [vmem:[#allocation2 + $0x108] sm:$0xff]
        %v5004 = vld [vmem:[#allocation2 + $0x110] sm:$0xff]
        %v5005 = vld [vmem:[#allocation2 + $0x118] sm:$0xff]
        %v5006 = vld [vmem:[#allocation2 + $0x120] sm:$0xff]
        %v5007 = vld [vmem:[#allocation2 + $0x128] sm:$0xff]
        %v5008 = vld [vmem:[#allocation2 + $0x130] sm:$0xff]
        %v5009 = vld [vmem:[#allocation2 + $0x138] sm:$0xff]
        %v5010 = vld [vmem:[#allocation2 + $0x140] sm:$0xff]
        %v5011 = vld [vmem:[#allocation2 + $0x148] sm:$0xff]
        %v5012 = vld [vmem:[#allocation2 + $0x150] sm:$0xff]
        %v5013 = vld [vmem:[#allocation2 + $0x158] sm:$0xff]
        %v5014 = vld [vmem:[#allocation2 + $0x160] sm:$0xff]
        %v5015 = vld [vmem:[#allocation2 + $0x168] sm:$0xff]
        %v5016 = vld [vmem:[#allocation2 + $0x170] sm:$0xff]
        %v5017 = vld [vmem:[#allocation2 + $0x178] sm:$0xff]
        %v5018 = vld [vmem:[#allocation2 + $0x180] sm:$0xff]
        %v5019 = vld [vmem:[#allocation2 + $0x188] sm:$0xff]
        %v5020 = vld [vmem:[#allocation2 + $0x190] sm:$0xff]
        %v5021 = vld [vmem:[#allocation2 + $0x198] sm:$0xff]
        %v5022 = vld [vmem:[#allocation2 + $0x1a0] sm:$0xff]
        %v5023 = vld [vmem:[#allocation2 + $0x1a8] sm:$0xff]
        %v5024 = vld [vmem:[#allocation2 + $0x1b0] sm:$0xff]
        %v5025 = vld [vmem:[#allocation2 + $0x1b8] sm:$0xff]
        %v5026 = vld [vmem:[#allocation2 + $0x1c0] sm:$0xff]
        %v5027 = vld [vmem:[#allocation2 + $0x1c8] sm:$0xff]
        %v5028 = vld [vmem:[#allocation2 + $0x1d0] sm:$0xff]
        %v5029 = vld [vmem:[#allocation2 + $0x1d8] sm:$0xff]
        %v5030 = vld [vmem:[#allocation2 + $0x1e0] sm:$0xff]
        %v5031 = vld [vmem:[#allocation2 + $0x1e8] sm:$0xff]
        %v5032 = vld [vmem:[#allocation2 + $0x1f0] sm:$0xff]
        %v5033 = vld [vmem:[#allocation2 + $0x1f8] sm:$0xff]
        %v5034 = vld [vmem:[#allocation2 + $0x200] sm:$0xff]
        %v5035 = vld [vmem:[#allocation2 + $0x208] sm:$0xff]
        %v5036 = vld [vmem:[#allocation2 + $0x210] sm:$0xff]
        %v5037 = vld [vmem:[#allocation2 + $0x218] sm:$0xff]
        %v5038 = vld [vmem:[#allocation2 + $0x220] sm:$0xff]
        %v5039 = vld [vmem:[#allocation2 + $0x228] sm:$0xff]
        %v5040 = vld [vmem:[#allocation2 + $0x230] sm:$0xff]
        %v5041 = vld [vmem:[#allocation2 + $0x238] sm:$0xff]
        %v5042 = vld [vmem:[#allocation2 + $0x240] sm:$0xff]
        %v5043 = vld [vmem:[#allocation2 + $0x248] sm:$0xff]
        %v5044 = vld [vmem:[#allocation2 + $0x250] sm:$0xff]
        %v5045 = vld [vmem:[#allocation2 + $0x258] sm:$0xff]
        %v5046 = vld [vmem:[#allocation2 + $0x260] sm:$0xff]
        %v5047 = vld [vmem:[#allocation2 + $0x268] sm:$0xff]
        %v5048 = vld [vmem:[#allocation2 + $0x270] sm:$0xff]
        %v5049 = vld [vmem:[#allocation2 + $0x278] sm:$0xff]
        %v5050 = vld [vmem:[#allocation2 + $0x280] sm:$0xff]
        %v5051 = vld [vmem:[#allocation2 + $0x288] sm:$0xff]
        %v5052 = vld [vmem:[#allocation2 + $0x290] sm:$0xff]
        %v5053 = vld [vmem:[#allocation2 + $0x298] sm:$0xff]
        %v5054 = vld [vmem:[#allocation2 + $0x2a0] sm:$0xff]
        %v5055 = vld [vmem:[#allocation2 + $0x2a8] sm:$0xff]
        %v5056 = vld [vmem:[#allocation2 + $0x2b0] sm:$0xff]
        %v5057 = vld [vmem:[#allocation2 + $0x2b8] sm:$0xff]
        %v5058 = vld [vmem:[#allocation2 + $0x2c0] sm:$0xff]
        %v5059 = vld [vmem:[#allocation2 + $0x2c8] sm:$0xff]
        %v5060 = vld [vmem:[#allocation2 + $0x2d0] sm:$0xff]
        %v5061 = vld [vmem:[#allocation2 + $0x2d8] sm:$0xff]
        %v5062 = vld [vmem:[#allocation2 + $0x2e0] sm:$0xff]
        %v5063 = vld [vmem:[#allocation2 + $0x2e8] sm:$0xff]
        %v5064 = vld [vmem:[#allocation2 + $0x2f0] sm:$0xff]
        %v5065 = vld [vmem:[#allocation2 + $0x2f8] sm:$0xff]
        %s5066 = scalar_lea.vmem %s1, 768
        %v5067 = vld [vmem:[%s5066] sm:$0xf]
        %v5068 = vld [vmem:[%s5066 + $0x4] sm:$0xf]
        %v5069 = vld [vmem:[%s5066 + $0x8] sm:$0xf]
        %v5070 = vld [vmem:[%s5066 + $0xc] sm:$0xf]
        %v5071 = vld [vmem:[%s5066 + $0x10] sm:$0xf]
        %v5072 = vld [vmem:[%s5066 + $0x14] sm:$0xf]
        %v5073 = vld [vmem:[%s5066 + $0x18] sm:$0xf]
        %v5074 = vld [vmem:[%s5066 + $0x1c] sm:$0xf]
        %v5075 = vld [vmem:[%s5066 + $0x20] sm:$0xf]
        %v5076 = vld [vmem:[%s5066 + $0x24] sm:$0xf]
        %v5077 = vld [vmem:[%s5066 + $0x28] sm:$0xf]
        %v5078 = vld [vmem:[%s5066 + $0x2c] sm:$0xf]
        %v5079 = vld [vmem:[%s5066 + $0x30] sm:$0xf]
        %v5080 = vld [vmem:[%s5066 + $0x34] sm:$0xf]
        %v5081 = vld [vmem:[%s5066 + $0x38] sm:$0xf]
        %v5082 = vld [vmem:[%s5066 + $0x3c] sm:$0xf]
        %v5083 = vld [vmem:[%s5066 + $0x40] sm:$0xf]
        %v5084 = vld [vmem:[%s5066 + $0x44] sm:$0xf]
        %v5085 = vld [vmem:[%s5066 + $0x48] sm:$0xf]
        %v5086 = vld [vmem:[%s5066 + $0x4c] sm:$0xf]
        %v5087 = vld [vmem:[%s5066 + $0x50] sm:$0xf]
        %v5088 = vld [vmem:[%s5066 + $0x54] sm:$0xf]
        %v5089 = vld [vmem:[%s5066 + $0x58] sm:$0xf]
        %v5090 = vld [vmem:[%s5066 + $0x5c] sm:$0xf]
        %v5091 = vld [vmem:[%s5066 + $0x60] sm:$0xf]
        %v5092 = vld [vmem:[%s5066 + $0x64] sm:$0xf]
        %v5093 = vld [vmem:[%s5066 + $0x68] sm:$0xf]
        %v5094 = vld [vmem:[%s5066 + $0x6c] sm:$0xf]
        %v5095 = vld [vmem:[%s5066 + $0x70] sm:$0xf]
        %v5096 = vld [vmem:[%s5066 + $0x74] sm:$0xf]
        %v5097 = vld [vmem:[%s5066 + $0x78] sm:$0xf]
        %v5098 = vld [vmem:[%s5066 + $0x7c] sm:$0xf]
        %v5099 = vld [vmem:[%s183] sm:$0xff]
        %v5100 = vld [vmem:[%s183 + $0x8] sm:$0xf]
        %v5101 = vld [vmem:[%s183 + $0xc] sm:$0xff]
        %v5102 = vld [vmem:[%s183 + $0x14] sm:$0xf]
        %v5103 = vld [vmem:[%s183 + $0x18] sm:$0xff]
        %v5104 = vld [vmem:[%s183 + $0x20] sm:$0xf]
        %v5105 = vld [vmem:[%s183 + $0x24] sm:$0xff]
        %v5106 = vld [vmem:[%s183 + $0x2c] sm:$0xf]
        %v5107 = vld [vmem:[%s183 + $0x30] sm:$0xff]
        %v5108 = vld [vmem:[%s183 + $0x38] sm:$0xf]
        %v5109 = vld [vmem:[%s183 + $0x3c] sm:$0xff]
        %v5110 = vld [vmem:[%s183 + $0x44] sm:$0xf]
        %v5111 = vld [vmem:[%s183 + $0x48] sm:$0x11]
        %v5112 = vld [vmem:[%s183 + $0x50] sm:$0x1]
        %v5145 = vunpack.c.l.b16 %v5067
        %v5146 = vunpack.c.l.b16 %v5068
        %v5147 = vunpack.c.l.b16 %v5069
        %v5148 = vunpack.c.l.b16 %v5070
        %v5149 = vunpack.c.l.b16 %v5071
        %v5150 = vunpack.c.l.b16 %v5072
        %v5151 = vunpack.c.l.b16 %v5073
        %v5152 = vunpack.c.l.b16 %v5074
        %v5153 = vunpack.c.l.b16 %v5075
        %v5154 = vunpack.c.l.b16 %v5076
        %v5155 = vunpack.c.l.b16 %v5077
        %v5156 = vunpack.c.l.b16 %v5078
        %v5157 = vunpack.c.l.b16 %v5079
        %v5158 = vunpack.c.l.b16 %v5080
        %v5159 = vunpack.c.l.b16 %v5081
        %v5160 = vunpack.c.l.b16 %v5082
        %v5161 = vunpack.c.l.b16 %v5083
        %v5162 = vunpack.c.l.b16 %v5084
        %v5163 = vunpack.c.l.b16 %v5085
        %v5164 = vunpack.c.l.b16 %v5086
        %v5165 = vunpack.c.l.b16 %v5087
        %v5166 = vunpack.c.l.b16 %v5088
        %v5167 = vunpack.c.l.b16 %v5089
        %v5168 = vunpack.c.l.b16 %v5090
        %v5169 = vunpack.c.l.b16 %v5091
        %v5170 = vunpack.c.l.b16 %v5092
        %v5171 = vunpack.c.l.b16 %v5093
        %v5172 = vunpack.c.l.b16 %v5094
        %v5173 = vunpack.c.l.b16 %v5095
        %v5174 = vunpack.c.l.b16 %v5096
        %v5175 = vunpack.c.l.b16 %v5097
        %v5176 = vunpack.c.l.b16 %v5098
        %v5177 = vpack.c.b16 %v5146, %v5145
        %v5178 = vpack.c.b16 %v5148, %v5147
        %v5179 = vpack.c.b16 %v5150, %v5149
        %v5180 = vpack.c.b16 %v5152, %v5151
        %v5181 = vpack.c.b16 %v5154, %v5153
        %v5182 = vpack.c.b16 %v5156, %v5155
        %v5183 = vpack.c.b16 %v5158, %v5157
        %v5184 = vpack.c.b16 %v5160, %v5159
        %v5185 = vpack.c.b16 %v5162, %v5161
        %v5186 = vpack.c.b16 %v5164, %v5163
        %v5187 = vpack.c.b16 %v5166, %v5165
        %v5188 = vpack.c.b16 %v5168, %v5167
        %v5189 = vpack.c.b16 %v5170, %v5169
        %v5190 = vpack.c.b16 %v5172, %v5171
        %v5191 = vpack.c.b16 %v5174, %v5173
        %v5192 = vpack.c.b16 %v5176, %v5175
        %v5207 = vunpack.c.l.b16 %v5099
        %v5208 = vunpack.c.h.b16 %v5099
        %v5209 = vunpack.c.l.b16 %v5100
        %v5210 = vunpack.c.l.b16 %v5101
        %v5211 = vunpack.c.h.b16 %v5101
        %v5212 = vunpack.c.l.b16 %v5102
        %v5213 = vunpack.c.l.b16 %v5103
        %v5214 = vunpack.c.h.b16 %v5103
        %v5215 = vunpack.c.l.b16 %v5104
        %v5216 = vunpack.c.l.b16 %v5105
        %v5217 = vunpack.c.h.b16 %v5105
        %v5218 = vunpack.c.l.b16 %v5106
        %v5219 = vunpack.c.l.b16 %v5107
        %v5220 = vunpack.c.h.b16 %v5107
        %v5221 = vunpack.c.l.b16 %v5108
        %v5222 = vunpack.c.l.b16 %v5109
        %v5223 = vunpack.c.h.b16 %v5109
        %v5224 = vunpack.c.l.b16 %v5110
        %v5225 = vunpack.c.l.b16 %v5111
        %v5226 = vunpack.c.h.b16 %v5111
        %v5227 = vunpack.c.l.b16 %v5112
        %v5228 = vpack.c.b16 %v5210, %v5207
        %v5229 = vpack.c.b16 %v5211, %v5208
        %v5230 = vpack.c.b16 %v5212, %v5209
        %v5231 = vpack.c.b16 %v5216, %v5213
        %v5232 = vpack.c.b16 %v5217, %v5214
        %v5233 = vpack.c.b16 %v5218, %v5215
        %v5234 = vpack.c.b16 %v5222, %v5219
        %v5235 = vpack.c.b16 %v5223, %v5220
        %v5236 = vpack.c.b16 %v5224, %v5221
        %v5237 = vpack.c.b16 %v5225, %v5225
        %v5238 = vpack.c.b16 %v5226, %v5226
        %v5239 = vpack.c.b16 %v5227, %v5227
        %5240 = vrot.lane.b32.xlu0 %v5228, 79
        %v5241 = vpop.permute.xlu0 %5240
        %5242 = vrot.lane.b32.xlu0 %v5229, 79
        %v5243 = vpop.permute.xlu0 %5242
        %5244 = vrot.lane.b32.xlu0 %v5230, 79
        %v5245 = vpop.permute.xlu0 %5244
        %5246 = vrot.lane.b32.xlu0 %v5231, 79
        %v5247 = vpop.permute.xlu0 %5246
        %5248 = vrot.lane.b32.xlu0 %v5232, 79
        %v5249 = vpop.permute.xlu0 %5248
        %5250 = vrot.lane.b32.xlu0 %v5233, 79
        %v5251 = vpop.permute.xlu0 %5250
        %5252 = vrot.lane.b32.xlu0 %v5234, 79
        %v5253 = vpop.permute.xlu0 %5252
        %5254 = vrot.lane.b32.xlu0 %v5235, 79
        %v5255 = vpop.permute.xlu0 %5254
        %5256 = vrot.lane.b32.xlu0 %v5236, 79
        %v5257 = vpop.permute.xlu0 %5256
        %5258 = vrot.lane.b32.xlu0 %v5237, 79
        %v5259 = vpop.permute.xlu0 %5258
        %5260 = vrot.lane.b32.xlu0 %v5238, 79
        %v5261 = vpop.permute.xlu0 %5260
        %5262 = vrot.lane.b32.xlu0 %v5239, 79
        %v5263 = vpop.permute.xlu0 %5262
        %vm5264 = vcmask 646144
        %v5265 = vsel %vm5264, %v5241, %v5243
        %v5266 = vsel %vm5264, %v5243, %v5245
        %v5267 = vsel %vm5264, %v5247, %v5249
        %v5268 = vsel %vm5264, %v5249, %v5251
        %v5269 = vsel %vm5264, %v5253, %v5255
        %v5270 = vsel %vm5264, %v5255, %v5257
        %v5271 = vsel %vm5264, %v5259, %v5261
        %v5272 = vsel %vm5264, %v5261, %v5263
        %v5283 = vsel %vm405, %v5177, 0
        %v5286 = vsel %vm405, %v5178, 0
        %v5289 = vsel %vm405, %v5179, 0
        %v5292 = vsel %vm405, %v5180, 0
        %v5295 = vsel %vm405, %v5181, 0
        %v5298 = vsel %vm405, %v5182, 0
        %v5301 = vsel %vm405, %v5183, 0
        %v5304 = vsel %vm405, %v5184, 0
        %v5307 = vsel %vm405, %v5185, 0
        %v5310 = vsel %vm405, %v5186, 0
        %v5313 = vsel %vm405, %v5187, 0
        %v5316 = vsel %vm405, %v5188, 0
        %v5319 = vsel %vm405, %v5189, 0
        %v5322 = vsel %vm405, %v5190, 0
        %v5325 = vsel %vm405, %v5191, 0
        %v5328 = vsel %vm405, %v5192, 0
        %v5331 = vand.u32 %v5271, %v456
        %v5334 = vand.u32 %v5272, %v456
        %v5337 = vand.u32 %v5263, %v456
        %5339 = vmatpush.bf16.msra.mxu0 0
        %5340 = vmatpush.bf16.msra.mxu0 0
        %5341 = vmatpush.bf16.msra.mxu0 0
        %5342 = vmatpush.bf16.msra.mxu0 0
        %5343 = vmatpush.bf16.msra.mxu0 %v5331
        %5344 = vmatpush.bf16.msra.mxu0 %v5269
        %5345 = vmatpush.bf16.msra.mxu0 %v5267
        %5346 = vmatpush.bf16.msra.mxu0 %v5265
        %5347 = vmatmul.bf16.gmra.mxu0 %v5283
        %v5348 = vpop.f32.mrf.mxu0
        %v5349 = vadd.f32 0.0, %v5348
        %v5350 = vpop.f32.mrf.mxu0
        %v5351 = vadd.f32 0.0, %v5350
        %5352 = vmatmul.bf16.gmra.mxu0 %v5286
        %v5353 = vpop.f32.mrf.mxu0
        %v5354 = vadd.f32 0.0, %v5353
        %v5355 = vpop.f32.mrf.mxu0
        %v5356 = vadd.f32 0.0, %v5355
        %5357 = vmatmul.bf16.gmra.mxu0 %v5289
        %v5358 = vpop.f32.mrf.mxu0
        %v5359 = vadd.f32 0.0, %v5358
        %v5360 = vpop.f32.mrf.mxu0
        %v5361 = vadd.f32 0.0, %v5360
        %5362 = vmatmul.bf16.gmra.mxu0 %v5292
        %v5363 = vpop.f32.mrf.mxu0
        %v5364 = vadd.f32 0.0, %v5363
        %v5365 = vpop.f32.mrf.mxu0
        %v5366 = vadd.f32 0.0, %v5365
        %5367 = vmatmul.bf16.gmra.mxu0 %v5295
        %v5368 = vpop.f32.mrf.mxu0
        %v5369 = vadd.f32 0.0, %v5368
        %v5370 = vpop.f32.mrf.mxu0
        %v5371 = vadd.f32 0.0, %v5370
        %5372 = vmatmul.bf16.gmra.mxu0 %v5298
        %v5373 = vpop.f32.mrf.mxu0
        %v5374 = vadd.f32 0.0, %v5373
        %v5375 = vpop.f32.mrf.mxu0
        %v5376 = vadd.f32 0.0, %v5375
        %5377 = vmatmul.bf16.gmra.mxu0 %v5301
        %v5378 = vpop.f32.mrf.mxu0
        %v5379 = vadd.f32 0.0, %v5378
        %v5380 = vpop.f32.mrf.mxu0
        %v5381 = vadd.f32 0.0, %v5380
        %5382 = vmatmul.bf16.gmra.mxu0 %v5304
        %v5383 = vpop.f32.mrf.mxu0
        %v5384 = vadd.f32 0.0, %v5383
        %v5385 = vpop.f32.mrf.mxu0
        %v5386 = vadd.f32 0.0, %v5385
        %5387 = vmatmul.bf16.gmra.mxu0 %v5307
        %v5388 = vpop.f32.mrf.mxu0
        %v5389 = vadd.f32 0.0, %v5388
        %v5390 = vpop.f32.mrf.mxu0
        %v5391 = vadd.f32 0.0, %v5390
        %5392 = vmatmul.bf16.gmra.mxu0 %v5310
        %v5393 = vpop.f32.mrf.mxu0
        %v5394 = vadd.f32 0.0, %v5393
        %v5395 = vpop.f32.mrf.mxu0
        %v5396 = vadd.f32 0.0, %v5395
        %5397 = vmatmul.bf16.gmra.mxu0 %v5313
        %v5398 = vpop.f32.mrf.mxu0
        %v5399 = vadd.f32 0.0, %v5398
        %v5400 = vpop.f32.mrf.mxu0
        %v5401 = vadd.f32 0.0, %v5400
        %5402 = vmatmul.bf16.gmra.mxu0 %v5316
        %v5403 = vpop.f32.mrf.mxu0
        %v5404 = vadd.f32 0.0, %v5403
        %v5405 = vpop.f32.mrf.mxu0
        %v5406 = vadd.f32 0.0, %v5405
        %5407 = vmatmul.bf16.gmra.mxu0 %v5319
        %v5408 = vpop.f32.mrf.mxu0
        %v5409 = vadd.f32 0.0, %v5408
        %v5410 = vpop.f32.mrf.mxu0
        %v5411 = vadd.f32 0.0, %v5410
        %5412 = vmatmul.bf16.gmra.mxu0 %v5322
        %v5413 = vpop.f32.mrf.mxu0
        %v5414 = vadd.f32 0.0, %v5413
        %v5415 = vpop.f32.mrf.mxu0
        %v5416 = vadd.f32 0.0, %v5415
        %5417 = vmatmul.bf16.gmra.mxu0 %v5325
        %v5418 = vpop.f32.mrf.mxu0
        %v5419 = vadd.f32 0.0, %v5418
        %v5420 = vpop.f32.mrf.mxu0
        %v5421 = vadd.f32 0.0, %v5420
        %5422 = vmatmul.bf16.gmra.mxu0 %v5328
        %v5423 = vpop.f32.mrf.mxu0
        %v5424 = vadd.f32 0.0, %v5423
        %v5425 = vpop.f32.mrf.mxu0
        %v5426 = vadd.f32 0.0, %v5425
        %5427 = vdwg.mxu0
        %5428 = vmatpush.bf16.msra.mxu0 0
        %5429 = vmatpush.bf16.msra.mxu0 0
        %5430 = vmatpush.bf16.msra.mxu0 0
        %5431 = vmatpush.bf16.msra.mxu0 0
        %5432 = vmatpush.bf16.msra.mxu0 %v5334
        %5433 = vmatpush.bf16.msra.mxu0 %v5270
        %5434 = vmatpush.bf16.msra.mxu0 %v5268
        %5435 = vmatpush.bf16.msra.mxu0 %v5266
        %5436 = vmatmul.bf16.gmra.mxu0 %v5283
        %v5437 = vpop.f32.mrf.mxu0
        %v5438 = vadd.f32 0.0, %v5437
        %v5439 = vpop.f32.mrf.mxu0
        %v5440 = vadd.f32 0.0, %v5439
        %5441 = vmatmul.bf16.gmra.mxu0 %v5286
        %v5442 = vpop.f32.mrf.mxu0
        %v5443 = vadd.f32 0.0, %v5442
        %v5444 = vpop.f32.mrf.mxu0
        %v5445 = vadd.f32 0.0, %v5444
        %5446 = vmatmul.bf16.gmra.mxu0 %v5289
        %v5447 = vpop.f32.mrf.mxu0
        %v5448 = vadd.f32 0.0, %v5447
        %v5449 = vpop.f32.mrf.mxu0
        %v5450 = vadd.f32 0.0, %v5449
        %5451 = vmatmul.bf16.gmra.mxu0 %v5292
        %v5452 = vpop.f32.mrf.mxu0
        %v5453 = vadd.f32 0.0, %v5452
        %v5454 = vpop.f32.mrf.mxu0
        %v5455 = vadd.f32 0.0, %v5454
        %5456 = vmatmul.bf16.gmra.mxu0 %v5295
        %v5457 = vpop.f32.mrf.mxu0
        %v5458 = vadd.f32 0.0, %v5457
        %v5459 = vpop.f32.mrf.mxu0
        %v5460 = vadd.f32 0.0, %v5459
        %5461 = vmatmul.bf16.gmra.mxu0 %v5298
        %v5462 = vpop.f32.mrf.mxu0
        %v5463 = vadd.f32 0.0, %v5462
        %v5464 = vpop.f32.mrf.mxu0
        %v5465 = vadd.f32 0.0, %v5464
        %5466 = vmatmul.bf16.gmra.mxu0 %v5301
        %v5467 = vpop.f32.mrf.mxu0
        %v5468 = vadd.f32 0.0, %v5467
        %v5469 = vpop.f32.mrf.mxu0
        %v5470 = vadd.f32 0.0, %v5469
        %5471 = vmatmul.bf16.gmra.mxu0 %v5304
        %v5472 = vpop.f32.mrf.mxu0
        %v5473 = vadd.f32 0.0, %v5472
        %v5474 = vpop.f32.mrf.mxu0
        %v5475 = vadd.f32 0.0, %v5474
        %5476 = vmatmul.bf16.gmra.mxu0 %v5307
        %v5477 = vpop.f32.mrf.mxu0
        %v5478 = vadd.f32 0.0, %v5477
        %v5479 = vpop.f32.mrf.mxu0
        %v5480 = vadd.f32 0.0, %v5479
        %5481 = vmatmul.bf16.gmra.mxu0 %v5310
        %v5482 = vpop.f32.mrf.mxu0
        %v5483 = vadd.f32 0.0, %v5482
        %v5484 = vpop.f32.mrf.mxu0
        %v5485 = vadd.f32 0.0, %v5484
        %5486 = vmatmul.bf16.gmra.mxu0 %v5313
        %v5487 = vpop.f32.mrf.mxu0
        %v5488 = vadd.f32 0.0, %v5487
        %v5489 = vpop.f32.mrf.mxu0
        %v5490 = vadd.f32 0.0, %v5489
        %5491 = vmatmul.bf16.gmra.mxu0 %v5316
        %v5492 = vpop.f32.mrf.mxu0
        %v5493 = vadd.f32 0.0, %v5492
        %v5494 = vpop.f32.mrf.mxu0
        %v5495 = vadd.f32 0.0, %v5494
        %5496 = vmatmul.bf16.gmra.mxu0 %v5319
        %v5497 = vpop.f32.mrf.mxu0
        %v5498 = vadd.f32 0.0, %v5497
        %v5499 = vpop.f32.mrf.mxu0
        %v5500 = vadd.f32 0.0, %v5499
        %5501 = vmatmul.bf16.gmra.mxu0 %v5322
        %v5502 = vpop.f32.mrf.mxu0
        %v5503 = vadd.f32 0.0, %v5502
        %v5504 = vpop.f32.mrf.mxu0
        %v5505 = vadd.f32 0.0, %v5504
        %5506 = vmatmul.bf16.gmra.mxu0 %v5325
        %v5507 = vpop.f32.mrf.mxu0
        %v5508 = vadd.f32 0.0, %v5507
        %v5509 = vpop.f32.mrf.mxu0
        %v5510 = vadd.f32 0.0, %v5509
        %5511 = vmatmul.bf16.gmra.mxu0 %v5328
        %v5512 = vpop.f32.mrf.mxu0
        %v5513 = vadd.f32 0.0, %v5512
        %v5514 = vpop.f32.mrf.mxu0
        %v5515 = vadd.f32 0.0, %v5514
        %5516 = vdwg.mxu0
        %5517 = vmatpush.bf16.msra.mxu0 0
        %5518 = vmatpush.bf16.msra.mxu0 0
        %5519 = vmatpush.bf16.msra.mxu0 0
        %5520 = vmatpush.bf16.msra.mxu0 0
        %5521 = vmatpush.bf16.msra.mxu0 %v5337
        %5522 = vmatpush.bf16.msra.mxu0 %v5257
        %5523 = vmatpush.bf16.msra.mxu0 %v5251
        %5524 = vmatpush.bf16.msra.mxu0 %v5245
        %5525 = vmatmul.bf16.gmra.mxu0 %v5283
        %v5526 = vpop.f32.mrf.mxu0
        %v5527 = vadd.f32 0.0, %v5526
        %v5528 = vpop.f32.mrf.mxu0
        %v5529 = vadd.f32 0.0, %v5528
        %5530 = vmatmul.bf16.gmra.mxu0 %v5286
        %v5531 = vpop.f32.mrf.mxu0
        %v5532 = vadd.f32 0.0, %v5531
        %v5533 = vpop.f32.mrf.mxu0
        %v5534 = vadd.f32 0.0, %v5533
        %5535 = vmatmul.bf16.gmra.mxu0 %v5289
        %v5536 = vpop.f32.mrf.mxu0
        %v5537 = vadd.f32 0.0, %v5536
        %v5538 = vpop.f32.mrf.mxu0
        %v5539 = vadd.f32 0.0, %v5538
        %5540 = vmatmul.bf16.gmra.mxu0 %v5292
        %v5541 = vpop.f32.mrf.mxu0
        %v5542 = vadd.f32 0.0, %v5541
        %v5543 = vpop.f32.mrf.mxu0
        %v5544 = vadd.f32 0.0, %v5543
        %5545 = vmatmul.bf16.gmra.mxu0 %v5295
        %v5546 = vpop.f32.mrf.mxu0
        %v5547 = vadd.f32 0.0, %v5546
        %v5548 = vpop.f32.mrf.mxu0
        %v5549 = vadd.f32 0.0, %v5548
        %5550 = vmatmul.bf16.gmra.mxu0 %v5298
        %v5551 = vpop.f32.mrf.mxu0
        %v5552 = vadd.f32 0.0, %v5551
        %v5553 = vpop.f32.mrf.mxu0
        %v5554 = vadd.f32 0.0, %v5553
        %5555 = vmatmul.bf16.gmra.mxu0 %v5301
        %v5556 = vpop.f32.mrf.mxu0
        %v5557 = vadd.f32 0.0, %v5556
        %v5558 = vpop.f32.mrf.mxu0
        %v5559 = vadd.f32 0.0, %v5558
        %5560 = vmatmul.bf16.gmra.mxu0 %v5304
        %v5561 = vpop.f32.mrf.mxu0
        %v5562 = vadd.f32 0.0, %v5561
        %v5563 = vpop.f32.mrf.mxu0
        %v5564 = vadd.f32 0.0, %v5563
        %5565 = vmatmul.bf16.gmra.mxu0 %v5307
        %v5566 = vpop.f32.mrf.mxu0
        %v5567 = vadd.f32 0.0, %v5566
        %v5568 = vpop.f32.mrf.mxu0
        %v5569 = vadd.f32 0.0, %v5568
        %5570 = vmatmul.bf16.gmra.mxu0 %v5310
        %v5571 = vpop.f32.mrf.mxu0
        %v5572 = vadd.f32 0.0, %v5571
        %v5573 = vpop.f32.mrf.mxu0
        %v5574 = vadd.f32 0.0, %v5573
        %5575 = vmatmul.bf16.gmra.mxu0 %v5313
        %v5576 = vpop.f32.mrf.mxu0
        %v5577 = vadd.f32 0.0, %v5576
        %v5578 = vpop.f32.mrf.mxu0
        %v5579 = vadd.f32 0.0, %v5578
        %5580 = vmatmul.bf16.gmra.mxu0 %v5316
        %v5581 = vpop.f32.mrf.mxu0
        %v5582 = vadd.f32 0.0, %v5581
        %v5583 = vpop.f32.mrf.mxu0
        %v5584 = vadd.f32 0.0, %v5583
        %5585 = vmatmul.bf16.gmra.mxu0 %v5319
        %v5586 = vpop.f32.mrf.mxu0
        %v5587 = vadd.f32 0.0, %v5586
        %v5588 = vpop.f32.mrf.mxu0
        %v5589 = vadd.f32 0.0, %v5588
        %5590 = vmatmul.bf16.gmra.mxu0 %v5322
        %v5591 = vpop.f32.mrf.mxu0
        %v5592 = vadd.f32 0.0, %v5591
        %v5593 = vpop.f32.mrf.mxu0
        %v5594 = vadd.f32 0.0, %v5593
        %5595 = vmatmul.bf16.gmra.mxu0 %v5325
        %v5596 = vpop.f32.mrf.mxu0
        %v5597 = vadd.f32 0.0, %v5596
        %v5598 = vpop.f32.mrf.mxu0
        %v5599 = vadd.f32 0.0, %v5598
        %5600 = vmatmul.bf16.gmra.mxu0 %v5328
        %v5601 = vpop.f32.mrf.mxu0
        %v5602 = vadd.f32 0.0, %v5601
        %v5603 = vpop.f32.mrf.mxu0
        %v5604 = vadd.f32 0.0, %v5603
        %5605 = vdwg.mxu0
        %v5606 = vadd.f32 %v4970, %v5349
        %v5607 = vadd.f32 %v4971, %v5438
        %v5608 = vadd.f32 %v4972, %v5527
        %v5609 = vadd.f32 %v4973, %v5351
        %v5610 = vadd.f32 %v4974, %v5440
        %v5611 = vadd.f32 %v4975, %v5529
        %v5612 = vadd.f32 %v4976, %v5354
        %v5613 = vadd.f32 %v4977, %v5443
        %v5614 = vadd.f32 %v4978, %v5532
        %v5615 = vadd.f32 %v4979, %v5356
        %v5616 = vadd.f32 %v4980, %v5445
        %v5617 = vadd.f32 %v4981, %v5534
        %v5618 = vadd.f32 %v4982, %v5359
        %v5619 = vadd.f32 %v4983, %v5448
        %v5620 = vadd.f32 %v4984, %v5537
        %v5621 = vadd.f32 %v4985, %v5361
        %v5622 = vadd.f32 %v4986, %v5450
        %v5623 = vadd.f32 %v4987, %v5539
        %v5624 = vadd.f32 %v4988, %v5364
        %v5625 = vadd.f32 %v4989, %v5453
        %v5626 = vadd.f32 %v4990, %v5542
        %v5627 = vadd.f32 %v4991, %v5366
        %v5628 = vadd.f32 %v4992, %v5455
        %v5629 = vadd.f32 %v4993, %v5544
        %v5630 = vadd.f32 %v4994, %v5369
        %v5631 = vadd.f32 %v4995, %v5458
        %v5632 = vadd.f32 %v4996, %v5547
        %v5633 = vadd.f32 %v4997, %v5371
        %v5634 = vadd.f32 %v4998, %v5460
        %v5635 = vadd.f32 %v4999, %v5549
        %v5636 = vadd.f32 %v5000, %v5374
        %v5637 = vadd.f32 %v5001, %v5463
        %v5638 = vadd.f32 %v5002, %v5552
        %v5639 = vadd.f32 %v5003, %v5376
        %v5640 = vadd.f32 %v5004, %v5465
        %v5641 = vadd.f32 %v5005, %v5554
        %v5642 = vadd.f32 %v5006, %v5379
        %v5643 = vadd.f32 %v5007, %v5468
        %v5644 = vadd.f32 %v5008, %v5557
        %v5645 = vadd.f32 %v5009, %v5381
        %v5646 = vadd.f32 %v5010, %v5470
        %v5647 = vadd.f32 %v5011, %v5559
        %v5648 = vadd.f32 %v5012, %v5384
        %v5649 = vadd.f32 %v5013, %v5473
        %v5650 = vadd.f32 %v5014, %v5562
        %v5651 = vadd.f32 %v5015, %v5386
        %v5652 = vadd.f32 %v5016, %v5475
        %v5653 = vadd.f32 %v5017, %v5564
        %v5654 = vadd.f32 %v5018, %v5389
        %v5655 = vadd.f32 %v5019, %v5478
        %v5656 = vadd.f32 %v5020, %v5567
        %v5657 = vadd.f32 %v5021, %v5391
        %v5658 = vadd.f32 %v5022, %v5480
        %v5659 = vadd.f32 %v5023, %v5569
        %v5660 = vadd.f32 %v5024, %v5394
        %v5661 = vadd.f32 %v5025, %v5483
        %v5662 = vadd.f32 %v5026, %v5572
        %v5663 = vadd.f32 %v5027, %v5396
        %v5664 = vadd.f32 %v5028, %v5485
        %v5665 = vadd.f32 %v5029, %v5574
        %v5666 = vadd.f32 %v5030, %v5399
        %v5667 = vadd.f32 %v5031, %v5488
        %v5668 = vadd.f32 %v5032, %v5577
        %v5669 = vadd.f32 %v5033, %v5401
        %v5670 = vadd.f32 %v5034, %v5490
        %v5671 = vadd.f32 %v5035, %v5579
        %v5672 = vadd.f32 %v5036, %v5404
        %v5673 = vadd.f32 %v5037, %v5493
        %v5674 = vadd.f32 %v5038, %v5582
        %v5675 = vadd.f32 %v5039, %v5406
        %v5676 = vadd.f32 %v5040, %v5495
        %v5677 = vadd.f32 %v5041, %v5584
        %v5678 = vadd.f32 %v5042, %v5409
        %v5679 = vadd.f32 %v5043, %v5498
        %v5680 = vadd.f32 %v5044, %v5587
        %v5681 = vadd.f32 %v5045, %v5411
        %v5682 = vadd.f32 %v5046, %v5500
        %v5683 = vadd.f32 %v5047, %v5589
        %v5684 = vadd.f32 %v5048, %v5414
        %v5685 = vadd.f32 %v5049, %v5503
        %v5686 = vadd.f32 %v5050, %v5592
        %v5687 = vadd.f32 %v5051, %v5416
        %v5688 = vadd.f32 %v5052, %v5505
        %v5689 = vadd.f32 %v5053, %v5594
        %v5690 = vadd.f32 %v5054, %v5419
        %v5691 = vadd.f32 %v5055, %v5508
        %v5692 = vadd.f32 %v5056, %v5597
        %v5693 = vadd.f32 %v5057, %v5421
        %v5694 = vadd.f32 %v5058, %v5510
        %v5695 = vadd.f32 %v5059, %v5599
        %v5696 = vadd.f32 %v5060, %v5424
        %v5697 = vadd.f32 %v5061, %v5513
        %v5698 = vadd.f32 %v5062, %v5602
        %v5699 = vadd.f32 %v5063, %v5426
        %v5700 = vadd.f32 %v5064, %v5515
        %v5701 = vadd.f32 %v5065, %v5604
        %5702 = vst [vmem:[#allocation2] sm:$0xff] %v5606
        %5703 = vst [vmem:[#allocation2 + $0x8] sm:$0xff] %v5607
        %5704 = vst.msk [vmem:[#allocation2 + $0x10] sm:$0xff] %vm735, %v5608
        %5705 = vst [vmem:[#allocation2 + $0x18] sm:$0xff] %v5609
        %5706 = vst [vmem:[#allocation2 + $0x20] sm:$0xff] %v5610
        %5707 = vst.msk [vmem:[#allocation2 + $0x28] sm:$0xff] %vm735, %v5611
        %5708 = vst [vmem:[#allocation2 + $0x30] sm:$0xff] %v5612
        %5709 = vst [vmem:[#allocation2 + $0x38] sm:$0xff] %v5613
        %5710 = vst.msk [vmem:[#allocation2 + $0x40] sm:$0xff] %vm735, %v5614
        %5711 = vst [vmem:[#allocation2 + $0x48] sm:$0xff] %v5615
        %5712 = vst [vmem:[#allocation2 + $0x50] sm:$0xff] %v5616
        %5713 = vst.msk [vmem:[#allocation2 + $0x58] sm:$0xff] %vm735, %v5617
        %5714 = vst [vmem:[#allocation2 + $0x60] sm:$0xff] %v5618
        %5715 = vst [vmem:[#allocation2 + $0x68] sm:$0xff] %v5619
        %5716 = vst.msk [vmem:[#allocation2 + $0x70] sm:$0xff] %vm735, %v5620
        %5717 = vst [vmem:[#allocation2 + $0x78] sm:$0xff] %v5621
        %5718 = vst [vmem:[#allocation2 + $0x80] sm:$0xff] %v5622
        %5719 = vst.msk [vmem:[#allocation2 + $0x88] sm:$0xff] %vm735, %v5623
        %5720 = vst [vmem:[#allocation2 + $0x90] sm:$0xff] %v5624
        %5721 = vst [vmem:[#allocation2 + $0x98] sm:$0xff] %v5625
        %5722 = vst.msk [vmem:[#allocation2 + $0xa0] sm:$0xff] %vm735, %v5626
        %5723 = vst [vmem:[#allocation2 + $0xa8] sm:$0xff] %v5627
        %5724 = vst [vmem:[#allocation2 + $0xb0] sm:$0xff] %v5628
        %5725 = vst.msk [vmem:[#allocation2 + $0xb8] sm:$0xff] %vm735, %v5629
        %5726 = vst [vmem:[#allocation2 + $0xc0] sm:$0xff] %v5630
        %5727 = vst [vmem:[#allocation2 + $0xc8] sm:$0xff] %v5631
        %5728 = vst.msk [vmem:[#allocation2 + $0xd0] sm:$0xff] %vm735, %v5632
        %5729 = vst [vmem:[#allocation2 + $0xd8] sm:$0xff] %v5633
        %5730 = vst [vmem:[#allocation2 + $0xe0] sm:$0xff] %v5634
        %5731 = vst.msk [vmem:[#allocation2 + $0xe8] sm:$0xff] %vm735, %v5635
        %5732 = vst [vmem:[#allocation2 + $0xf0] sm:$0xff] %v5636
        %5733 = vst [vmem:[#allocation2 + $0xf8] sm:$0xff] %v5637
        %5734 = vst.msk [vmem:[#allocation2 + $0x100] sm:$0xff] %vm735, %v5638
        %5735 = vst [vmem:[#allocation2 + $0x108] sm:$0xff] %v5639
        %5736 = vst [vmem:[#allocation2 + $0x110] sm:$0xff] %v5640
        %5737 = vst.msk [vmem:[#allocation2 + $0x118] sm:$0xff] %vm735, %v5641
        %5738 = vst [vmem:[#allocation2 + $0x120] sm:$0xff] %v5642
        %5739 = vst [vmem:[#allocation2 + $0x128] sm:$0xff] %v5643
        %5740 = vst.msk [vmem:[#allocation2 + $0x130] sm:$0xff] %vm735, %v5644
        %5741 = vst [vmem:[#allocation2 + $0x138] sm:$0xff] %v5645
        %5742 = vst [vmem:[#allocation2 + $0x140] sm:$0xff] %v5646
        %5743 = vst.msk [vmem:[#allocation2 + $0x148] sm:$0xff] %vm735, %v5647
        %5744 = vst [vmem:[#allocation2 + $0x150] sm:$0xff] %v5648
        %5745 = vst [vmem:[#allocation2 + $0x158] sm:$0xff] %v5649
        %5746 = vst.msk [vmem:[#allocation2 + $0x160] sm:$0xff] %vm735, %v5650
        %5747 = vst [vmem:[#allocation2 + $0x168] sm:$0xff] %v5651
        %5748 = vst [vmem:[#allocation2 + $0x170] sm:$0xff] %v5652
        %5749 = vst.msk [vmem:[#allocation2 + $0x178] sm:$0xff] %vm735, %v5653
        %5750 = vst [vmem:[#allocation2 + $0x180] sm:$0xff] %v5654
        %5751 = vst [vmem:[#allocation2 + $0x188] sm:$0xff] %v5655
        %5752 = vst.msk [vmem:[#allocation2 + $0x190] sm:$0xff] %vm735, %v5656
        %5753 = vst [vmem:[#allocation2 + $0x198] sm:$0xff] %v5657
        %5754 = vst [vmem:[#allocation2 + $0x1a0] sm:$0xff] %v5658
        %5755 = vst.msk [vmem:[#allocation2 + $0x1a8] sm:$0xff] %vm735, %v5659
        %5756 = vst [vmem:[#allocation2 + $0x1b0] sm:$0xff] %v5660
        %5757 = vst [vmem:[#allocation2 + $0x1b8] sm:$0xff] %v5661
        %5758 = vst.msk [vmem:[#allocation2 + $0x1c0] sm:$0xff] %vm735, %v5662
        %5759 = vst [vmem:[#allocation2 + $0x1c8] sm:$0xff] %v5663
        %5760 = vst [vmem:[#allocation2 + $0x1d0] sm:$0xff] %v5664
        %5761 = vst.msk [vmem:[#allocation2 + $0x1d8] sm:$0xff] %vm735, %v5665
        %5762 = vst [vmem:[#allocation2 + $0x1e0] sm:$0xff] %v5666
        %5763 = vst [vmem:[#allocation2 + $0x1e8] sm:$0xff] %v5667
        %5764 = vst.msk [vmem:[#allocation2 + $0x1f0] sm:$0xff] %vm735, %v5668
        %5765 = vst [vmem:[#allocation2 + $0x1f8] sm:$0xff] %v5669
        %5766 = vst [vmem:[#allocation2 + $0x200] sm:$0xff] %v5670
        %5767 = vst.msk [vmem:[#allocation2 + $0x208] sm:$0xff] %vm735, %v5671
        %5768 = vst [vmem:[#allocation2 + $0x210] sm:$0xff] %v5672
        %5769 = vst [vmem:[#allocation2 + $0x218] sm:$0xff] %v5673
        %5770 = vst.msk [vmem:[#allocation2 + $0x220] sm:$0xff] %vm735, %v5674
        %5771 = vst [vmem:[#allocation2 + $0x228] sm:$0xff] %v5675
        %5772 = vst [vmem:[#allocation2 + $0x230] sm:$0xff] %v5676
        %5773 = vst.msk [vmem:[#allocation2 + $0x238] sm:$0xff] %vm735, %v5677
        %5774 = vst [vmem:[#allocation2 + $0x240] sm:$0xff] %v5678
        %5775 = vst [vmem:[#allocation2 + $0x248] sm:$0xff] %v5679
        %5776 = vst.msk [vmem:[#allocation2 + $0x250] sm:$0xff] %vm735, %v5680
        %5777 = vst [vmem:[#allocation2 + $0x258] sm:$0xff] %v5681
        %5778 = vst [vmem:[#allocation2 + $0x260] sm:$0xff] %v5682
        %5779 = vst.msk [vmem:[#allocation2 + $0x268] sm:$0xff] %vm735, %v5683
        %5780 = vst [vmem:[#allocation2 + $0x270] sm:$0xff] %v5684
        %5781 = vst [vmem:[#allocation2 + $0x278] sm:$0xff] %v5685
        %5782 = vst.msk [vmem:[#allocation2 + $0x280] sm:$0xff] %vm735, %v5686
        %5783 = vst [vmem:[#allocation2 + $0x288] sm:$0xff] %v5687
        %5784 = vst [vmem:[#allocation2 + $0x290] sm:$0xff] %v5688
        %5785 = vst.msk [vmem:[#allocation2 + $0x298] sm:$0xff] %vm735, %v5689
        %5786 = vst [vmem:[#allocation2 + $0x2a0] sm:$0xff] %v5690
        %5787 = vst [vmem:[#allocation2 + $0x2a8] sm:$0xff] %v5691
        %5788 = vst.msk [vmem:[#allocation2 + $0x2b0] sm:$0xff] %vm735, %v5692
        %5789 = vst [vmem:[#allocation2 + $0x2b8] sm:$0xff] %v5693
        %5790 = vst [vmem:[#allocation2 + $0x2c0] sm:$0xff] %v5694
        %5791 = vst.msk [vmem:[#allocation2 + $0x2c8] sm:$0xff] %vm735, %v5695
        %5792 = vst [vmem:[#allocation2 + $0x2d0] sm:$0xff] %v5696
        %5793 = vst [vmem:[#allocation2 + $0x2d8] sm:$0xff] %v5697
        %5794 = vst.msk [vmem:[#allocation2 + $0x2e0] sm:$0xff] %vm735, %v5698
        %5795 = vst [vmem:[#allocation2 + $0x2e8] sm:$0xff] %v5699
        %5796 = vst [vmem:[#allocation2 + $0x2f0] sm:$0xff] %v5700
        %5797 = vst.msk [vmem:[#allocation2 + $0x2f8] sm:$0xff] %vm735, %v5701
        %v5798 = vld [vmem:[#allocation2] sm:$0xff]
        %v5799 = vld [vmem:[#allocation2 + $0x8] sm:$0xff]
        %v5800 = vld [vmem:[#allocation2 + $0x10] sm:$0xff]
        %v5801 = vld [vmem:[#allocation2 + $0x18] sm:$0xff]
        %v5802 = vld [vmem:[#allocation2 + $0x20] sm:$0xff]
        %v5803 = vld [vmem:[#allocation2 + $0x28] sm:$0xff]
        %v5804 = vld [vmem:[#allocation2 + $0x30] sm:$0xff]
        %v5805 = vld [vmem:[#allocation2 + $0x38] sm:$0xff]
        %v5806 = vld [vmem:[#allocation2 + $0x40] sm:$0xff]
        %v5807 = vld [vmem:[#allocation2 + $0x48] sm:$0xff]
        %v5808 = vld [vmem:[#allocation2 + $0x50] sm:$0xff]
        %v5809 = vld [vmem:[#allocation2 + $0x58] sm:$0xff]
        %v5810 = vld [vmem:[#allocation2 + $0x60] sm:$0xff]
        %v5811 = vld [vmem:[#allocation2 + $0x68] sm:$0xff]
        %v5812 = vld [vmem:[#allocation2 + $0x70] sm:$0xff]
        %v5813 = vld [vmem:[#allocation2 + $0x78] sm:$0xff]
        %v5814 = vld [vmem:[#allocation2 + $0x80] sm:$0xff]
        %v5815 = vld [vmem:[#allocation2 + $0x88] sm:$0xff]
        %v5816 = vld [vmem:[#allocation2 + $0x90] sm:$0xff]
        %v5817 = vld [vmem:[#allocation2 + $0x98] sm:$0xff]
        %v5818 = vld [vmem:[#allocation2 + $0xa0] sm:$0xff]
        %v5819 = vld [vmem:[#allocation2 + $0xa8] sm:$0xff]
        %v5820 = vld [vmem:[#allocation2 + $0xb0] sm:$0xff]
        %v5821 = vld [vmem:[#allocation2 + $0xb8] sm:$0xff]
        %v5822 = vld [vmem:[#allocation2 + $0xc0] sm:$0xff]
        %v5823 = vld [vmem:[#allocation2 + $0xc8] sm:$0xff]
        %v5824 = vld [vmem:[#allocation2 + $0xd0] sm:$0xff]
        %v5825 = vld [vmem:[#allocation2 + $0xd8] sm:$0xff]
        %v5826 = vld [vmem:[#allocation2 + $0xe0] sm:$0xff]
        %v5827 = vld [vmem:[#allocation2 + $0xe8] sm:$0xff]
        %v5828 = vld [vmem:[#allocation2 + $0xf0] sm:$0xff]
        %v5829 = vld [vmem:[#allocation2 + $0xf8] sm:$0xff]
        %v5830 = vld [vmem:[#allocation2 + $0x100] sm:$0xff]
        %v5831 = vld [vmem:[#allocation2 + $0x108] sm:$0xff]
        %v5832 = vld [vmem:[#allocation2 + $0x110] sm:$0xff]
        %v5833 = vld [vmem:[#allocation2 + $0x118] sm:$0xff]
        %v5834 = vld [vmem:[#allocation2 + $0x120] sm:$0xff]
        %v5835 = vld [vmem:[#allocation2 + $0x128] sm:$0xff]
        %v5836 = vld [vmem:[#allocation2 + $0x130] sm:$0xff]
        %v5837 = vld [vmem:[#allocation2 + $0x138] sm:$0xff]
        %v5838 = vld [vmem:[#allocation2 + $0x140] sm:$0xff]
        %v5839 = vld [vmem:[#allocation2 + $0x148] sm:$0xff]
        %v5840 = vld [vmem:[#allocation2 + $0x150] sm:$0xff]
        %v5841 = vld [vmem:[#allocation2 + $0x158] sm:$0xff]
        %v5842 = vld [vmem:[#allocation2 + $0x160] sm:$0xff]
        %v5843 = vld [vmem:[#allocation2 + $0x168] sm:$0xff]
        %v5844 = vld [vmem:[#allocation2 + $0x170] sm:$0xff]
        %v5845 = vld [vmem:[#allocation2 + $0x178] sm:$0xff]
        %v5846 = vld [vmem:[#allocation2 + $0x180] sm:$0xff]
        %v5847 = vld [vmem:[#allocation2 + $0x188] sm:$0xff]
        %v5848 = vld [vmem:[#allocation2 + $0x190] sm:$0xff]
        %v5849 = vld [vmem:[#allocation2 + $0x198] sm:$0xff]
        %v5850 = vld [vmem:[#allocation2 + $0x1a0] sm:$0xff]
        %v5851 = vld [vmem:[#allocation2 + $0x1a8] sm:$0xff]
        %v5852 = vld [vmem:[#allocation2 + $0x1b0] sm:$0xff]
        %v5853 = vld [vmem:[#allocation2 + $0x1b8] sm:$0xff]
        %v5854 = vld [vmem:[#allocation2 + $0x1c0] sm:$0xff]
        %v5855 = vld [vmem:[#allocation2 + $0x1c8] sm:$0xff]
        %v5856 = vld [vmem:[#allocation2 + $0x1d0] sm:$0xff]
        %v5857 = vld [vmem:[#allocation2 + $0x1d8] sm:$0xff]
        %v5858 = vld [vmem:[#allocation2 + $0x1e0] sm:$0xff]
        %v5859 = vld [vmem:[#allocation2 + $0x1e8] sm:$0xff]
        %v5860 = vld [vmem:[#allocation2 + $0x1f0] sm:$0xff]
        %v5861 = vld [vmem:[#allocation2 + $0x1f8] sm:$0xff]
        %v5862 = vld [vmem:[#allocation2 + $0x200] sm:$0xff]
        %v5863 = vld [vmem:[#allocation2 + $0x208] sm:$0xff]
        %v5864 = vld [vmem:[#allocation2 + $0x210] sm:$0xff]
        %v5865 = vld [vmem:[#allocation2 + $0x218] sm:$0xff]
        %v5866 = vld [vmem:[#allocation2 + $0x220] sm:$0xff]
        %v5867 = vld [vmem:[#allocation2 + $0x228] sm:$0xff]
        %v5868 = vld [vmem:[#allocation2 + $0x230] sm:$0xff]
        %v5869 = vld [vmem:[#allocation2 + $0x238] sm:$0xff]
        %v5870 = vld [vmem:[#allocation2 + $0x240] sm:$0xff]
        %v5871 = vld [vmem:[#allocation2 + $0x248] sm:$0xff]
        %v5872 = vld [vmem:[#allocation2 + $0x250] sm:$0xff]
        %v5873 = vld [vmem:[#allocation2 + $0x258] sm:$0xff]
        %v5874 = vld [vmem:[#allocation2 + $0x260] sm:$0xff]
        %v5875 = vld [vmem:[#allocation2 + $0x268] sm:$0xff]
        %v5876 = vld [vmem:[#allocation2 + $0x270] sm:$0xff]
        %v5877 = vld [vmem:[#allocation2 + $0x278] sm:$0xff]
        %v5878 = vld [vmem:[#allocation2 + $0x280] sm:$0xff]
        %v5879 = vld [vmem:[#allocation2 + $0x288] sm:$0xff]
        %v5880 = vld [vmem:[#allocation2 + $0x290] sm:$0xff]
        %v5881 = vld [vmem:[#allocation2 + $0x298] sm:$0xff]
        %v5882 = vld [vmem:[#allocation2 + $0x2a0] sm:$0xff]
        %v5883 = vld [vmem:[#allocation2 + $0x2a8] sm:$0xff]
        %v5884 = vld [vmem:[#allocation2 + $0x2b0] sm:$0xff]
        %v5885 = vld [vmem:[#allocation2 + $0x2b8] sm:$0xff]
        %v5886 = vld [vmem:[#allocation2 + $0x2c0] sm:$0xff]
        %v5887 = vld [vmem:[#allocation2 + $0x2c8] sm:$0xff]
        %v5888 = vld [vmem:[#allocation2 + $0x2d0] sm:$0xff]
        %v5889 = vld [vmem:[#allocation2 + $0x2d8] sm:$0xff]
        %v5890 = vld [vmem:[#allocation2 + $0x2e0] sm:$0xff]
        %v5891 = vld [vmem:[#allocation2 + $0x2e8] sm:$0xff]
        %v5892 = vld [vmem:[#allocation2 + $0x2f0] sm:$0xff]
        %v5893 = vld [vmem:[#allocation2 + $0x2f8] sm:$0xff]
        %s5894 = scalar_lea.vmem %s1, 896
        %v5895 = vld [vmem:[%s5894] sm:$0xf]
        %v5896 = vld [vmem:[%s5894 + $0x4] sm:$0xf]
        %v5897 = vld [vmem:[%s5894 + $0x8] sm:$0xf]
        %v5898 = vld [vmem:[%s5894 + $0xc] sm:$0xf]
        %v5899 = vld [vmem:[%s5894 + $0x10] sm:$0xf]
        %v5900 = vld [vmem:[%s5894 + $0x14] sm:$0xf]
        %v5901 = vld [vmem:[%s5894 + $0x18] sm:$0xf]
        %v5902 = vld [vmem:[%s5894 + $0x1c] sm:$0xf]
        %v5903 = vld [vmem:[%s5894 + $0x20] sm:$0xf]
        %v5904 = vld [vmem:[%s5894 + $0x24] sm:$0xf]
        %v5905 = vld [vmem:[%s5894 + $0x28] sm:$0xf]
        %v5906 = vld [vmem:[%s5894 + $0x2c] sm:$0xf]
        %v5907 = vld [vmem:[%s5894 + $0x30] sm:$0xf]
        %v5908 = vld [vmem:[%s5894 + $0x34] sm:$0xf]
        %v5909 = vld [vmem:[%s5894 + $0x38] sm:$0xf]
        %v5910 = vld [vmem:[%s5894 + $0x3c] sm:$0xf]
        %v5911 = vld [vmem:[%s5894 + $0x40] sm:$0xf]
        %v5912 = vld [vmem:[%s5894 + $0x44] sm:$0xf]
        %v5913 = vld [vmem:[%s5894 + $0x48] sm:$0xf]
        %v5914 = vld [vmem:[%s5894 + $0x4c] sm:$0xf]
        %v5915 = vld [vmem:[%s5894 + $0x50] sm:$0xf]
        %v5916 = vld [vmem:[%s5894 + $0x54] sm:$0xf]
        %v5917 = vld [vmem:[%s5894 + $0x58] sm:$0xf]
        %v5918 = vld [vmem:[%s5894 + $0x5c] sm:$0xf]
        %v5919 = vld [vmem:[%s5894 + $0x60] sm:$0xf]
        %v5920 = vld [vmem:[%s5894 + $0x64] sm:$0xf]
        %v5921 = vld [vmem:[%s5894 + $0x68] sm:$0xf]
        %v5922 = vld [vmem:[%s5894 + $0x6c] sm:$0xf]
        %v5923 = vld [vmem:[%s5894 + $0x70] sm:$0xf]
        %v5924 = vld [vmem:[%s5894 + $0x74] sm:$0xf]
        %v5925 = vld [vmem:[%s5894 + $0x78] sm:$0xf]
        %v5926 = vld [vmem:[%s5894 + $0x7c] sm:$0xf]
        %v5927 = vld [vmem:[%s183] sm:$0xff]
        %v5928 = vld [vmem:[%s183 + $0x8] sm:$0xf]
        %v5929 = vld [vmem:[%s183 + $0xc] sm:$0xff]
        %v5930 = vld [vmem:[%s183 + $0x14] sm:$0xf]
        %v5931 = vld [vmem:[%s183 + $0x18] sm:$0xff]
        %v5932 = vld [vmem:[%s183 + $0x20] sm:$0xf]
        %v5933 = vld [vmem:[%s183 + $0x24] sm:$0xff]
        %v5934 = vld [vmem:[%s183 + $0x2c] sm:$0xf]
        %v5935 = vld [vmem:[%s183 + $0x30] sm:$0xff]
        %v5936 = vld [vmem:[%s183 + $0x38] sm:$0xf]
        %v5937 = vld [vmem:[%s183 + $0x3c] sm:$0xff]
        %v5938 = vld [vmem:[%s183 + $0x44] sm:$0xf]
        %v5939 = vld [vmem:[%s183 + $0x48] sm:$0x11]
        %v5940 = vld [vmem:[%s183 + $0x50] sm:$0x1]
        %v5973 = vunpack.c.l.b16 %v5895
        %v5974 = vunpack.c.l.b16 %v5896
        %v5975 = vunpack.c.l.b16 %v5897
        %v5976 = vunpack.c.l.b16 %v5898
        %v5977 = vunpack.c.l.b16 %v5899
        %v5978 = vunpack.c.l.b16 %v5900
        %v5979 = vunpack.c.l.b16 %v5901
        %v5980 = vunpack.c.l.b16 %v5902
        %v5981 = vunpack.c.l.b16 %v5903
        %v5982 = vunpack.c.l.b16 %v5904
        %v5983 = vunpack.c.l.b16 %v5905
        %v5984 = vunpack.c.l.b16 %v5906
        %v5985 = vunpack.c.l.b16 %v5907
        %v5986 = vunpack.c.l.b16 %v5908
        %v5987 = vunpack.c.l.b16 %v5909
        %v5988 = vunpack.c.l.b16 %v5910
        %v5989 = vunpack.c.l.b16 %v5911
        %v5990 = vunpack.c.l.b16 %v5912
        %v5991 = vunpack.c.l.b16 %v5913
        %v5992 = vunpack.c.l.b16 %v5914
        %v5993 = vunpack.c.l.b16 %v5915
        %v5994 = vunpack.c.l.b16 %v5916
        %v5995 = vunpack.c.l.b16 %v5917
        %v5996 = vunpack.c.l.b16 %v5918
        %v5997 = vunpack.c.l.b16 %v5919
        %v5998 = vunpack.c.l.b16 %v5920
        %v5999 = vunpack.c.l.b16 %v5921
        %v6000 = vunpack.c.l.b16 %v5922
        %v6001 = vunpack.c.l.b16 %v5923
        %v6002 = vunpack.c.l.b16 %v5924
        %v6003 = vunpack.c.l.b16 %v5925
        %v6004 = vunpack.c.l.b16 %v5926
        %v6005 = vpack.c.b16 %v5974, %v5973
        %v6006 = vpack.c.b16 %v5976, %v5975
        %v6007 = vpack.c.b16 %v5978, %v5977
        %v6008 = vpack.c.b16 %v5980, %v5979
        %v6009 = vpack.c.b16 %v5982, %v5981
        %v6010 = vpack.c.b16 %v5984, %v5983
        %v6011 = vpack.c.b16 %v5986, %v5985
        %v6012 = vpack.c.b16 %v5988, %v5987
        %v6013 = vpack.c.b16 %v5990, %v5989
        %v6014 = vpack.c.b16 %v5992, %v5991
        %v6015 = vpack.c.b16 %v5994, %v5993
        %v6016 = vpack.c.b16 %v5996, %v5995
        %v6017 = vpack.c.b16 %v5998, %v5997
        %v6018 = vpack.c.b16 %v6000, %v5999
        %v6019 = vpack.c.b16 %v6002, %v6001
        %v6020 = vpack.c.b16 %v6004, %v6003
        %v6035 = vunpack.c.l.b16 %v5927
        %v6036 = vunpack.c.h.b16 %v5927
        %v6037 = vunpack.c.l.b16 %v5928
        %v6038 = vunpack.c.l.b16 %v5929
        %v6039 = vunpack.c.h.b16 %v5929
        %v6040 = vunpack.c.l.b16 %v5930
        %v6041 = vunpack.c.l.b16 %v5931
        %v6042 = vunpack.c.h.b16 %v5931
        %v6043 = vunpack.c.l.b16 %v5932
        %v6044 = vunpack.c.l.b16 %v5933
        %v6045 = vunpack.c.h.b16 %v5933
        %v6046 = vunpack.c.l.b16 %v5934
        %v6047 = vunpack.c.l.b16 %v5935
        %v6048 = vunpack.c.h.b16 %v5935
        %v6049 = vunpack.c.l.b16 %v5936
        %v6050 = vunpack.c.l.b16 %v5937
        %v6051 = vunpack.c.h.b16 %v5937
        %v6052 = vunpack.c.l.b16 %v5938
        %v6053 = vunpack.c.l.b16 %v5939
        %v6054 = vunpack.c.h.b16 %v5939
        %v6055 = vunpack.c.l.b16 %v5940
        %v6056 = vpack.c.b16 %v6038, %v6035
        %v6057 = vpack.c.b16 %v6039, %v6036
        %v6058 = vpack.c.b16 %v6040, %v6037
        %v6059 = vpack.c.b16 %v6044, %v6041
        %v6060 = vpack.c.b16 %v6045, %v6042
        %v6061 = vpack.c.b16 %v6046, %v6043
        %v6062 = vpack.c.b16 %v6050, %v6047
        %v6063 = vpack.c.b16 %v6051, %v6048
        %v6064 = vpack.c.b16 %v6052, %v6049
        %v6065 = vpack.c.b16 %v6053, %v6053
        %v6066 = vpack.c.b16 %v6054, %v6054
        %v6067 = vpack.c.b16 %v6055, %v6055
        %6068 = vrot.lane.b32.xlu0 %v6056, 78
        %v6069 = vpop.permute.xlu0 %6068
        %6070 = vrot.lane.b32.xlu0 %v6057, 78
        %v6071 = vpop.permute.xlu0 %6070
        %6072 = vrot.lane.b32.xlu0 %v6058, 78
        %v6073 = vpop.permute.xlu0 %6072
        %6074 = vrot.lane.b32.xlu0 %v6059, 78
        %v6075 = vpop.permute.xlu0 %6074
        %6076 = vrot.lane.b32.xlu0 %v6060, 78
        %v6077 = vpop.permute.xlu0 %6076
        %6078 = vrot.lane.b32.xlu0 %v6061, 78
        %v6079 = vpop.permute.xlu0 %6078
        %6080 = vrot.lane.b32.xlu0 %v6062, 78
        %v6081 = vpop.permute.xlu0 %6080
        %6082 = vrot.lane.b32.xlu0 %v6063, 78
        %v6083 = vpop.permute.xlu0 %6082
        %6084 = vrot.lane.b32.xlu0 %v6064, 78
        %v6085 = vpop.permute.xlu0 %6084
        %6086 = vrot.lane.b32.xlu0 %v6065, 78
        %v6087 = vpop.permute.xlu0 %6086
        %6088 = vrot.lane.b32.xlu0 %v6066, 78
        %v6089 = vpop.permute.xlu0 %6088
        %6090 = vrot.lane.b32.xlu0 %v6067, 78
        %v6091 = vpop.permute.xlu0 %6090
        %vm6092 = vcmask 637952
        %v6093 = vsel %vm6092, %v6069, %v6071
        %v6094 = vsel %vm6092, %v6071, %v6073
        %v6095 = vsel %vm6092, %v6075, %v6077
        %v6096 = vsel %vm6092, %v6077, %v6079
        %v6097 = vsel %vm6092, %v6081, %v6083
        %v6098 = vsel %vm6092, %v6083, %v6085
        %v6099 = vsel %vm6092, %v6087, %v6089
        %v6100 = vsel %vm6092, %v6089, %v6091
        %v6111 = vsel %vm405, %v6005, 0
        %v6114 = vsel %vm405, %v6006, 0
        %v6117 = vsel %vm405, %v6007, 0
        %v6120 = vsel %vm405, %v6008, 0
        %v6123 = vsel %vm405, %v6009, 0
        %v6126 = vsel %vm405, %v6010, 0
        %v6129 = vsel %vm405, %v6011, 0
        %v6132 = vsel %vm405, %v6012, 0
        %v6135 = vsel %vm405, %v6013, 0
        %v6138 = vsel %vm405, %v6014, 0
        %v6141 = vsel %vm405, %v6015, 0
        %v6144 = vsel %vm405, %v6016, 0
        %v6147 = vsel %vm405, %v6017, 0
        %v6150 = vsel %vm405, %v6018, 0
        %v6153 = vsel %vm405, %v6019, 0
        %v6156 = vsel %vm405, %v6020, 0
        %v6159 = vand.u32 %v6099, %v456
        %v6162 = vand.u32 %v6100, %v456
        %v6165 = vand.u32 %v6091, %v456
        %6167 = vmatpush.bf16.msra.mxu0 0
        %6168 = vmatpush.bf16.msra.mxu0 0
        %6169 = vmatpush.bf16.msra.mxu0 0
        %6170 = vmatpush.bf16.msra.mxu0 0
        %6171 = vmatpush.bf16.msra.mxu0 %v6159
        %6172 = vmatpush.bf16.msra.mxu0 %v6097
        %6173 = vmatpush.bf16.msra.mxu0 %v6095
        %6174 = vmatpush.bf16.msra.mxu0 %v6093
        %6175 = vmatmul.bf16.gmra.mxu0 %v6111
        %v6176 = vpop.f32.mrf.mxu0
        %v6177 = vadd.f32 0.0, %v6176
        %v6178 = vpop.f32.mrf.mxu0
        %v6179 = vadd.f32 0.0, %v6178
        %6180 = vmatmul.bf16.gmra.mxu0 %v6114
        %v6181 = vpop.f32.mrf.mxu0
        %v6182 = vadd.f32 0.0, %v6181
        %v6183 = vpop.f32.mrf.mxu0
        %v6184 = vadd.f32 0.0, %v6183
        %6185 = vmatmul.bf16.gmra.mxu0 %v6117
        %v6186 = vpop.f32.mrf.mxu0
        %v6187 = vadd.f32 0.0, %v6186
        %v6188 = vpop.f32.mrf.mxu0
        %v6189 = vadd.f32 0.0, %v6188
        %6190 = vmatmul.bf16.gmra.mxu0 %v6120
        %v6191 = vpop.f32.mrf.mxu0
        %v6192 = vadd.f32 0.0, %v6191
        %v6193 = vpop.f32.mrf.mxu0
        %v6194 = vadd.f32 0.0, %v6193
        %6195 = vmatmul.bf16.gmra.mxu0 %v6123
        %v6196 = vpop.f32.mrf.mxu0
        %v6197 = vadd.f32 0.0, %v6196
        %v6198 = vpop.f32.mrf.mxu0
        %v6199 = vadd.f32 0.0, %v6198
        %6200 = vmatmul.bf16.gmra.mxu0 %v6126
        %v6201 = vpop.f32.mrf.mxu0
        %v6202 = vadd.f32 0.0, %v6201
        %v6203 = vpop.f32.mrf.mxu0
        %v6204 = vadd.f32 0.0, %v6203
        %6205 = vmatmul.bf16.gmra.mxu0 %v6129
        %v6206 = vpop.f32.mrf.mxu0
        %v6207 = vadd.f32 0.0, %v6206
        %v6208 = vpop.f32.mrf.mxu0
        %v6209 = vadd.f32 0.0, %v6208
        %6210 = vmatmul.bf16.gmra.mxu0 %v6132
        %v6211 = vpop.f32.mrf.mxu0
        %v6212 = vadd.f32 0.0, %v6211
        %v6213 = vpop.f32.mrf.mxu0
        %v6214 = vadd.f32 0.0, %v6213
        %6215 = vmatmul.bf16.gmra.mxu0 %v6135
        %v6216 = vpop.f32.mrf.mxu0
        %v6217 = vadd.f32 0.0, %v6216
        %v6218 = vpop.f32.mrf.mxu0
        %v6219 = vadd.f32 0.0, %v6218
        %6220 = vmatmul.bf16.gmra.mxu0 %v6138
        %v6221 = vpop.f32.mrf.mxu0
        %v6222 = vadd.f32 0.0, %v6221
        %v6223 = vpop.f32.mrf.mxu0
        %v6224 = vadd.f32 0.0, %v6223
        %6225 = vmatmul.bf16.gmra.mxu0 %v6141
        %v6226 = vpop.f32.mrf.mxu0
        %v6227 = vadd.f32 0.0, %v6226
        %v6228 = vpop.f32.mrf.mxu0
        %v6229 = vadd.f32 0.0, %v6228
        %6230 = vmatmul.bf16.gmra.mxu0 %v6144
        %v6231 = vpop.f32.mrf.mxu0
        %v6232 = vadd.f32 0.0, %v6231
        %v6233 = vpop.f32.mrf.mxu0
        %v6234 = vadd.f32 0.0, %v6233
        %6235 = vmatmul.bf16.gmra.mxu0 %v6147
        %v6236 = vpop.f32.mrf.mxu0
        %v6237 = vadd.f32 0.0, %v6236
        %v6238 = vpop.f32.mrf.mxu0
        %v6239 = vadd.f32 0.0, %v6238
        %6240 = vmatmul.bf16.gmra.mxu0 %v6150
        %v6241 = vpop.f32.mrf.mxu0
        %v6242 = vadd.f32 0.0, %v6241
        %v6243 = vpop.f32.mrf.mxu0
        %v6244 = vadd.f32 0.0, %v6243
        %6245 = vmatmul.bf16.gmra.mxu0 %v6153
        %v6246 = vpop.f32.mrf.mxu0
        %v6247 = vadd.f32 0.0, %v6246
        %v6248 = vpop.f32.mrf.mxu0
        %v6249 = vadd.f32 0.0, %v6248
        %6250 = vmatmul.bf16.gmra.mxu0 %v6156
        %v6251 = vpop.f32.mrf.mxu0
        %v6252 = vadd.f32 0.0, %v6251
        %v6253 = vpop.f32.mrf.mxu0
        %v6254 = vadd.f32 0.0, %v6253
        %6255 = vdwg.mxu0
        %6256 = vmatpush.bf16.msra.mxu0 0
        %6257 = vmatpush.bf16.msra.mxu0 0
        %6258 = vmatpush.bf16.msra.mxu0 0
        %6259 = vmatpush.bf16.msra.mxu0 0
        %6260 = vmatpush.bf16.msra.mxu0 %v6162
        %6261 = vmatpush.bf16.msra.mxu0 %v6098
        %6262 = vmatpush.bf16.msra.mxu0 %v6096
        %6263 = vmatpush.bf16.msra.mxu0 %v6094
        %6264 = vmatmul.bf16.gmra.mxu0 %v6111
        %v6265 = vpop.f32.mrf.mxu0
        %v6266 = vadd.f32 0.0, %v6265
        %v6267 = vpop.f32.mrf.mxu0
        %v6268 = vadd.f32 0.0, %v6267
        %6269 = vmatmul.bf16.gmra.mxu0 %v6114
        %v6270 = vpop.f32.mrf.mxu0
        %v6271 = vadd.f32 0.0, %v6270
        %v6272 = vpop.f32.mrf.mxu0
        %v6273 = vadd.f32 0.0, %v6272
        %6274 = vmatmul.bf16.gmra.mxu0 %v6117
        %v6275 = vpop.f32.mrf.mxu0
        %v6276 = vadd.f32 0.0, %v6275
        %v6277 = vpop.f32.mrf.mxu0
        %v6278 = vadd.f32 0.0, %v6277
        %6279 = vmatmul.bf16.gmra.mxu0 %v6120
        %v6280 = vpop.f32.mrf.mxu0
        %v6281 = vadd.f32 0.0, %v6280
        %v6282 = vpop.f32.mrf.mxu0
        %v6283 = vadd.f32 0.0, %v6282
        %6284 = vmatmul.bf16.gmra.mxu0 %v6123
        %v6285 = vpop.f32.mrf.mxu0
        %v6286 = vadd.f32 0.0, %v6285
        %v6287 = vpop.f32.mrf.mxu0
        %v6288 = vadd.f32 0.0, %v6287
        %6289 = vmatmul.bf16.gmra.mxu0 %v6126
        %v6290 = vpop.f32.mrf.mxu0
        %v6291 = vadd.f32 0.0, %v6290
        %v6292 = vpop.f32.mrf.mxu0
        %v6293 = vadd.f32 0.0, %v6292
        %6294 = vmatmul.bf16.gmra.mxu0 %v6129
        %v6295 = vpop.f32.mrf.mxu0
        %v6296 = vadd.f32 0.0, %v6295
        %v6297 = vpop.f32.mrf.mxu0
        %v6298 = vadd.f32 0.0, %v6297
        %6299 = vmatmul.bf16.gmra.mxu0 %v6132
        %v6300 = vpop.f32.mrf.mxu0
        %v6301 = vadd.f32 0.0, %v6300
        %v6302 = vpop.f32.mrf.mxu0
        %v6303 = vadd.f32 0.0, %v6302
        %6304 = vmatmul.bf16.gmra.mxu0 %v6135
        %v6305 = vpop.f32.mrf.mxu0
        %v6306 = vadd.f32 0.0, %v6305
        %v6307 = vpop.f32.mrf.mxu0
        %v6308 = vadd.f32 0.0, %v6307
        %6309 = vmatmul.bf16.gmra.mxu0 %v6138
        %v6310 = vpop.f32.mrf.mxu0
        %v6311 = vadd.f32 0.0, %v6310
        %v6312 = vpop.f32.mrf.mxu0
        %v6313 = vadd.f32 0.0, %v6312
        %6314 = vmatmul.bf16.gmra.mxu0 %v6141
        %v6315 = vpop.f32.mrf.mxu0
        %v6316 = vadd.f32 0.0, %v6315
        %v6317 = vpop.f32.mrf.mxu0
        %v6318 = vadd.f32 0.0, %v6317
        %6319 = vmatmul.bf16.gmra.mxu0 %v6144
        %v6320 = vpop.f32.mrf.mxu0
        %v6321 = vadd.f32 0.0, %v6320
        %v6322 = vpop.f32.mrf.mxu0
        %v6323 = vadd.f32 0.0, %v6322
        %6324 = vmatmul.bf16.gmra.mxu0 %v6147
        %v6325 = vpop.f32.mrf.mxu0
        %v6326 = vadd.f32 0.0, %v6325
        %v6327 = vpop.f32.mrf.mxu0
        %v6328 = vadd.f32 0.0, %v6327
        %6329 = vmatmul.bf16.gmra.mxu0 %v6150
        %v6330 = vpop.f32.mrf.mxu0
        %v6331 = vadd.f32 0.0, %v6330
        %v6332 = vpop.f32.mrf.mxu0
        %v6333 = vadd.f32 0.0, %v6332
        %6334 = vmatmul.bf16.gmra.mxu0 %v6153
        %v6335 = vpop.f32.mrf.mxu0
        %v6336 = vadd.f32 0.0, %v6335
        %v6337 = vpop.f32.mrf.mxu0
        %v6338 = vadd.f32 0.0, %v6337
        %6339 = vmatmul.bf16.gmra.mxu0 %v6156
        %v6340 = vpop.f32.mrf.mxu0
        %v6341 = vadd.f32 0.0, %v6340
        %v6342 = vpop.f32.mrf.mxu0
        %v6343 = vadd.f32 0.0, %v6342
        %6344 = vdwg.mxu0
        %6345 = vmatpush.bf16.msra.mxu0 0
        %6346 = vmatpush.bf16.msra.mxu0 0
        %6347 = vmatpush.bf16.msra.mxu0 0
        %6348 = vmatpush.bf16.msra.mxu0 0
        %6349 = vmatpush.bf16.msra.mxu0 %v6165
        %6350 = vmatpush.bf16.msra.mxu0 %v6085
        %6351 = vmatpush.bf16.msra.mxu0 %v6079
        %6352 = vmatpush.bf16.msra.mxu0 %v6073
        %6353 = vmatmul.bf16.gmra.mxu0 %v6111
        %v6354 = vpop.f32.mrf.mxu0
        %v6355 = vadd.f32 0.0, %v6354
        %v6356 = vpop.f32.mrf.mxu0
        %v6357 = vadd.f32 0.0, %v6356
        %6358 = vmatmul.bf16.gmra.mxu0 %v6114
        %v6359 = vpop.f32.mrf.mxu0
        %v6360 = vadd.f32 0.0, %v6359
        %v6361 = vpop.f32.mrf.mxu0
        %v6362 = vadd.f32 0.0, %v6361
        %6363 = vmatmul.bf16.gmra.mxu0 %v6117
        %v6364 = vpop.f32.mrf.mxu0
        %v6365 = vadd.f32 0.0, %v6364
        %v6366 = vpop.f32.mrf.mxu0
        %v6367 = vadd.f32 0.0, %v6366
        %6368 = vmatmul.bf16.gmra.mxu0 %v6120
        %v6369 = vpop.f32.mrf.mxu0
        %v6370 = vadd.f32 0.0, %v6369
        %v6371 = vpop.f32.mrf.mxu0
        %v6372 = vadd.f32 0.0, %v6371
        %6373 = vmatmul.bf16.gmra.mxu0 %v6123
        %v6374 = vpop.f32.mrf.mxu0
        %v6375 = vadd.f32 0.0, %v6374
        %v6376 = vpop.f32.mrf.mxu0
        %v6377 = vadd.f32 0.0, %v6376
        %6378 = vmatmul.bf16.gmra.mxu0 %v6126
        %v6379 = vpop.f32.mrf.mxu0
        %v6380 = vadd.f32 0.0, %v6379
        %v6381 = vpop.f32.mrf.mxu0
        %v6382 = vadd.f32 0.0, %v6381
        %6383 = vmatmul.bf16.gmra.mxu0 %v6129
        %v6384 = vpop.f32.mrf.mxu0
        %v6385 = vadd.f32 0.0, %v6384
        %v6386 = vpop.f32.mrf.mxu0
        %v6387 = vadd.f32 0.0, %v6386
        %6388 = vmatmul.bf16.gmra.mxu0 %v6132
        %v6389 = vpop.f32.mrf.mxu0
        %v6390 = vadd.f32 0.0, %v6389
        %v6391 = vpop.f32.mrf.mxu0
        %v6392 = vadd.f32 0.0, %v6391
        %6393 = vmatmul.bf16.gmra.mxu0 %v6135
        %v6394 = vpop.f32.mrf.mxu0
        %v6395 = vadd.f32 0.0, %v6394
        %v6396 = vpop.f32.mrf.mxu0
        %v6397 = vadd.f32 0.0, %v6396
        %6398 = vmatmul.bf16.gmra.mxu0 %v6138
        %v6399 = vpop.f32.mrf.mxu0
        %v6400 = vadd.f32 0.0, %v6399
        %v6401 = vpop.f32.mrf.mxu0
        %v6402 = vadd.f32 0.0, %v6401
        %6403 = vmatmul.bf16.gmra.mxu0 %v6141
        %v6404 = vpop.f32.mrf.mxu0
        %v6405 = vadd.f32 0.0, %v6404
        %v6406 = vpop.f32.mrf.mxu0
        %v6407 = vadd.f32 0.0, %v6406
        %6408 = vmatmul.bf16.gmra.mxu0 %v6144
        %v6409 = vpop.f32.mrf.mxu0
        %v6410 = vadd.f32 0.0, %v6409
        %v6411 = vpop.f32.mrf.mxu0
        %v6412 = vadd.f32 0.0, %v6411
        %6413 = vmatmul.bf16.gmra.mxu0 %v6147
        %v6414 = vpop.f32.mrf.mxu0
        %v6415 = vadd.f32 0.0, %v6414
        %v6416 = vpop.f32.mrf.mxu0
        %v6417 = vadd.f32 0.0, %v6416
        %6418 = vmatmul.bf16.gmra.mxu0 %v6150
        %v6419 = vpop.f32.mrf.mxu0
        %v6420 = vadd.f32 0.0, %v6419
        %v6421 = vpop.f32.mrf.mxu0
        %v6422 = vadd.f32 0.0, %v6421
        %6423 = vmatmul.bf16.gmra.mxu0 %v6153
        %v6424 = vpop.f32.mrf.mxu0
        %v6425 = vadd.f32 0.0, %v6424
        %v6426 = vpop.f32.mrf.mxu0
        %v6427 = vadd.f32 0.0, %v6426
        %6428 = vmatmul.bf16.gmra.mxu0 %v6156
        %v6429 = vpop.f32.mrf.mxu0
        %v6430 = vadd.f32 0.0, %v6429
        %v6431 = vpop.f32.mrf.mxu0
        %v6432 = vadd.f32 0.0, %v6431
        %6433 = vdwg.mxu0
        %v6434 = vadd.f32 %v5798, %v6177
        %v6435 = vadd.f32 %v5799, %v6266
        %v6436 = vadd.f32 %v5800, %v6355
        %v6437 = vadd.f32 %v5801, %v6179
        %v6438 = vadd.f32 %v5802, %v6268
        %v6439 = vadd.f32 %v5803, %v6357
        %v6440 = vadd.f32 %v5804, %v6182
        %v6441 = vadd.f32 %v5805, %v6271
        %v6442 = vadd.f32 %v5806, %v6360
        %v6443 = vadd.f32 %v5807, %v6184
        %v6444 = vadd.f32 %v5808, %v6273
        %v6445 = vadd.f32 %v5809, %v6362
        %v6446 = vadd.f32 %v5810, %v6187
        %v6447 = vadd.f32 %v5811, %v6276
        %v6448 = vadd.f32 %v5812, %v6365
        %v6449 = vadd.f32 %v5813, %v6189
        %v6450 = vadd.f32 %v5814, %v6278
        %v6451 = vadd.f32 %v5815, %v6367
        %v6452 = vadd.f32 %v5816, %v6192
        %v6453 = vadd.f32 %v5817, %v6281
        %v6454 = vadd.f32 %v5818, %v6370
        %v6455 = vadd.f32 %v5819, %v6194
        %v6456 = vadd.f32 %v5820, %v6283
        %v6457 = vadd.f32 %v5821, %v6372
        %v6458 = vadd.f32 %v5822, %v6197
        %v6459 = vadd.f32 %v5823, %v6286
        %v6460 = vadd.f32 %v5824, %v6375
        %v6461 = vadd.f32 %v5825, %v6199
        %v6462 = vadd.f32 %v5826, %v6288
        %v6463 = vadd.f32 %v5827, %v6377
        %v6464 = vadd.f32 %v5828, %v6202
        %v6465 = vadd.f32 %v5829, %v6291
        %v6466 = vadd.f32 %v5830, %v6380
        %v6467 = vadd.f32 %v5831, %v6204
        %v6468 = vadd.f32 %v5832, %v6293
        %v6469 = vadd.f32 %v5833, %v6382
        %v6470 = vadd.f32 %v5834, %v6207
        %v6471 = vadd.f32 %v5835, %v6296
        %v6472 = vadd.f32 %v5836, %v6385
        %v6473 = vadd.f32 %v5837, %v6209
        %v6474 = vadd.f32 %v5838, %v6298
        %v6475 = vadd.f32 %v5839, %v6387
        %v6476 = vadd.f32 %v5840, %v6212
        %v6477 = vadd.f32 %v5841, %v6301
        %v6478 = vadd.f32 %v5842, %v6390
        %v6479 = vadd.f32 %v5843, %v6214
        %v6480 = vadd.f32 %v5844, %v6303
        %v6481 = vadd.f32 %v5845, %v6392
        %v6482 = vadd.f32 %v5846, %v6217
        %v6483 = vadd.f32 %v5847, %v6306
        %v6484 = vadd.f32 %v5848, %v6395
        %v6485 = vadd.f32 %v5849, %v6219
        %v6486 = vadd.f32 %v5850, %v6308
        %v6487 = vadd.f32 %v5851, %v6397
        %v6488 = vadd.f32 %v5852, %v6222
        %v6489 = vadd.f32 %v5853, %v6311
        %v6490 = vadd.f32 %v5854, %v6400
        %v6491 = vadd.f32 %v5855, %v6224
        %v6492 = vadd.f32 %v5856, %v6313
        %v6493 = vadd.f32 %v5857, %v6402
        %v6494 = vadd.f32 %v5858, %v6227
        %v6495 = vadd.f32 %v5859, %v6316
        %v6496 = vadd.f32 %v5860, %v6405
        %v6497 = vadd.f32 %v5861, %v6229
        %v6498 = vadd.f32 %v5862, %v6318
        %v6499 = vadd.f32 %v5863, %v6407
        %v6500 = vadd.f32 %v5864, %v6232
        %v6501 = vadd.f32 %v5865, %v6321
        %v6502 = vadd.f32 %v5866, %v6410
        %v6503 = vadd.f32 %v5867, %v6234
        %v6504 = vadd.f32 %v5868, %v6323
        %v6505 = vadd.f32 %v5869, %v6412
        %v6506 = vadd.f32 %v5870, %v6237
        %v6507 = vadd.f32 %v5871, %v6326
        %v6508 = vadd.f32 %v5872, %v6415
        %v6509 = vadd.f32 %v5873, %v6239
        %v6510 = vadd.f32 %v5874, %v6328
        %v6511 = vadd.f32 %v5875, %v6417
        %v6512 = vadd.f32 %v5876, %v6242
        %v6513 = vadd.f32 %v5877, %v6331
        %v6514 = vadd.f32 %v5878, %v6420
        %v6515 = vadd.f32 %v5879, %v6244
        %v6516 = vadd.f32 %v5880, %v6333
        %v6517 = vadd.f32 %v5881, %v6422
        %v6518 = vadd.f32 %v5882, %v6247
        %v6519 = vadd.f32 %v5883, %v6336
        %v6520 = vadd.f32 %v5884, %v6425
        %v6521 = vadd.f32 %v5885, %v6249
        %v6522 = vadd.f32 %v5886, %v6338
        %v6523 = vadd.f32 %v5887, %v6427
        %v6524 = vadd.f32 %v5888, %v6252
        %v6525 = vadd.f32 %v5889, %v6341
        %v6526 = vadd.f32 %v5890, %v6430
        %v6527 = vadd.f32 %v5891, %v6254
        %v6528 = vadd.f32 %v5892, %v6343
        %v6529 = vadd.f32 %v5893, %v6432
        %6530 = vst [vmem:[#allocation2] sm:$0xff] %v6434
        %6531 = vst [vmem:[#allocation2 + $0x8] sm:$0xff] %v6435
        %6532 = vst.msk [vmem:[#allocation2 + $0x10] sm:$0xff] %vm735, %v6436
        %6533 = vst [vmem:[#allocation2 + $0x18] sm:$0xff] %v6437
        %6534 = vst [vmem:[#allocation2 + $0x20] sm:$0xff] %v6438
        %6535 = vst.msk [vmem:[#allocation2 + $0x28] sm:$0xff] %vm735, %v6439
        %6536 = vst [vmem:[#allocation2 + $0x30] sm:$0xff] %v6440
        %6537 = vst [vmem:[#allocation2 + $0x38] sm:$0xff] %v6441
        %6538 = vst.msk [vmem:[#allocation2 + $0x40] sm:$0xff] %vm735, %v6442
        %6539 = vst [vmem:[#allocation2 + $0x48] sm:$0xff] %v6443
        %6540 = vst [vmem:[#allocation2 + $0x50] sm:$0xff] %v6444
        %6541 = vst.msk [vmem:[#allocation2 + $0x58] sm:$0xff] %vm735, %v6445
        %6542 = vst [vmem:[#allocation2 + $0x60] sm:$0xff] %v6446
        %6543 = vst [vmem:[#allocation2 + $0x68] sm:$0xff] %v6447
        %6544 = vst.msk [vmem:[#allocation2 + $0x70] sm:$0xff] %vm735, %v6448
        %6545 = vst [vmem:[#allocation2 + $0x78] sm:$0xff] %v6449
        %6546 = vst [vmem:[#allocation2 + $0x80] sm:$0xff] %v6450
        %6547 = vst.msk [vmem:[#allocation2 + $0x88] sm:$0xff] %vm735, %v6451
        %6548 = vst [vmem:[#allocation2 + $0x90] sm:$0xff] %v6452
        %6549 = vst [vmem:[#allocation2 + $0x98] sm:$0xff] %v6453
        %6550 = vst.msk [vmem:[#allocation2 + $0xa0] sm:$0xff] %vm735, %v6454
        %6551 = vst [vmem:[#allocation2 + $0xa8] sm:$0xff] %v6455
        %6552 = vst [vmem:[#allocation2 + $0xb0] sm:$0xff] %v6456
        %6553 = vst.msk [vmem:[#allocation2 + $0xb8] sm:$0xff] %vm735, %v6457
        %6554 = vst [vmem:[#allocation2 + $0xc0] sm:$0xff] %v6458
        %6555 = vst [vmem:[#allocation2 + $0xc8] sm:$0xff] %v6459
        %6556 = vst.msk [vmem:[#allocation2 + $0xd0] sm:$0xff] %vm735, %v6460
        %6557 = vst [vmem:[#allocation2 + $0xd8] sm:$0xff] %v6461
        %6558 = vst [vmem:[#allocation2 + $0xe0] sm:$0xff] %v6462
        %6559 = vst.msk [vmem:[#allocation2 + $0xe8] sm:$0xff] %vm735, %v6463
        %6560 = vst [vmem:[#allocation2 + $0xf0] sm:$0xff] %v6464
        %6561 = vst [vmem:[#allocation2 + $0xf8] sm:$0xff] %v6465
        %6562 = vst.msk [vmem:[#allocation2 + $0x100] sm:$0xff] %vm735, %v6466
        %6563 = vst [vmem:[#allocation2 + $0x108] sm:$0xff] %v6467
        %6564 = vst [vmem:[#allocation2 + $0x110] sm:$0xff] %v6468
        %6565 = vst.msk [vmem:[#allocation2 + $0x118] sm:$0xff] %vm735, %v6469
        %6566 = vst [vmem:[#allocation2 + $0x120] sm:$0xff] %v6470
        %6567 = vst [vmem:[#allocation2 + $0x128] sm:$0xff] %v6471
        %6568 = vst.msk [vmem:[#allocation2 + $0x130] sm:$0xff] %vm735, %v6472
        %6569 = vst [vmem:[#allocation2 + $0x138] sm:$0xff] %v6473
        %6570 = vst [vmem:[#allocation2 + $0x140] sm:$0xff] %v6474
        %6571 = vst.msk [vmem:[#allocation2 + $0x148] sm:$0xff] %vm735, %v6475
        %6572 = vst [vmem:[#allocation2 + $0x150] sm:$0xff] %v6476
        %6573 = vst [vmem:[#allocation2 + $0x158] sm:$0xff] %v6477
        %6574 = vst.msk [vmem:[#allocation2 + $0x160] sm:$0xff] %vm735, %v6478
        %6575 = vst [vmem:[#allocation2 + $0x168] sm:$0xff] %v6479
        %6576 = vst [vmem:[#allocation2 + $0x170] sm:$0xff] %v6480
        %6577 = vst.msk [vmem:[#allocation2 + $0x178] sm:$0xff] %vm735, %v6481
        %6578 = vst [vmem:[#allocation2 + $0x180] sm:$0xff] %v6482
        %6579 = vst [vmem:[#allocation2 + $0x188] sm:$0xff] %v6483
        %6580 = vst.msk [vmem:[#allocation2 + $0x190] sm:$0xff] %vm735, %v6484
        %6581 = vst [vmem:[#allocation2 + $0x198] sm:$0xff] %v6485
        %6582 = vst [vmem:[#allocation2 + $0x1a0] sm:$0xff] %v6486
        %6583 = vst.msk [vmem:[#allocation2 + $0x1a8] sm:$0xff] %vm735, %v6487
        %6584 = vst [vmem:[#allocation2 + $0x1b0] sm:$0xff] %v6488
        %6585 = vst [vmem:[#allocation2 + $0x1b8] sm:$0xff] %v6489
        %6586 = vst.msk [vmem:[#allocation2 + $0x1c0] sm:$0xff] %vm735, %v6490
        %6587 = vst [vmem:[#allocation2 + $0x1c8] sm:$0xff] %v6491
        %6588 = vst [vmem:[#allocation2 + $0x1d0] sm:$0xff] %v6492
        %6589 = vst.msk [vmem:[#allocation2 + $0x1d8] sm:$0xff] %vm735, %v6493
        %6590 = vst [vmem:[#allocation2 + $0x1e0] sm:$0xff] %v6494
        %6591 = vst [vmem:[#allocation2 + $0x1e8] sm:$0xff] %v6495
        %6592 = vst.msk [vmem:[#allocation2 + $0x1f0] sm:$0xff] %vm735, %v6496
        %6593 = vst [vmem:[#allocation2 + $0x1f8] sm:$0xff] %v6497
        %6594 = vst [vmem:[#allocation2 + $0x200] sm:$0xff] %v6498
        %6595 = vst.msk [vmem:[#allocation2 + $0x208] sm:$0xff] %vm735, %v6499
        %6596 = vst [vmem:[#allocation2 + $0x210] sm:$0xff] %v6500
        %6597 = vst [vmem:[#allocation2 + $0x218] sm:$0xff] %v6501
        %6598 = vst.msk [vmem:[#allocation2 + $0x220] sm:$0xff] %vm735, %v6502
        %6599 = vst [vmem:[#allocation2 + $0x228] sm:$0xff] %v6503
        %6600 = vst [vmem:[#allocation2 + $0x230] sm:$0xff] %v6504
        %6601 = vst.msk [vmem:[#allocation2 + $0x238] sm:$0xff] %vm735, %v6505
        %6602 = vst [vmem:[#allocation2 + $0x240] sm:$0xff] %v6506
        %6603 = vst [vmem:[#allocation2 + $0x248] sm:$0xff] %v6507
        %6604 = vst.msk [vmem:[#allocation2 + $0x250] sm:$0xff] %vm735, %v6508
        %6605 = vst [vmem:[#allocation2 + $0x258] sm:$0xff] %v6509
        %6606 = vst [vmem:[#allocation2 + $0x260] sm:$0xff] %v6510
        %6607 = vst.msk [vmem:[#allocation2 + $0x268] sm:$0xff] %vm735, %v6511
        %6608 = vst [vmem:[#allocation2 + $0x270] sm:$0xff] %v6512
        %6609 = vst [vmem:[#allocation2 + $0x278] sm:$0xff] %v6513
        %6610 = vst.msk [vmem:[#allocation2 + $0x280] sm:$0xff] %vm735, %v6514
        %6611 = vst [vmem:[#allocation2 + $0x288] sm:$0xff] %v6515
        %6612 = vst [vmem:[#allocation2 + $0x290] sm:$0xff] %v6516
        %6613 = vst.msk [vmem:[#allocation2 + $0x298] sm:$0xff] %vm735, %v6517
        %6614 = vst [vmem:[#allocation2 + $0x2a0] sm:$0xff] %v6518
        %6615 = vst [vmem:[#allocation2 + $0x2a8] sm:$0xff] %v6519
        %6616 = vst.msk [vmem:[#allocation2 + $0x2b0] sm:$0xff] %vm735, %v6520
        %6617 = vst [vmem:[#allocation2 + $0x2b8] sm:$0xff] %v6521
        %6618 = vst [vmem:[#allocation2 + $0x2c0] sm:$0xff] %v6522
        %6619 = vst.msk [vmem:[#allocation2 + $0x2c8] sm:$0xff] %vm735, %v6523
        %6620 = vst [vmem:[#allocation2 + $0x2d0] sm:$0xff] %v6524
        %6621 = vst [vmem:[#allocation2 + $0x2d8] sm:$0xff] %v6525
        %6622 = vst.msk [vmem:[#allocation2 + $0x2e0] sm:$0xff] %vm735, %v6526
        %6623 = vst [vmem:[#allocation2 + $0x2e8] sm:$0xff] %v6527
        %6624 = vst [vmem:[#allocation2 + $0x2f0] sm:$0xff] %v6528
        %6625 = vst.msk [vmem:[#allocation2 + $0x2f8] sm:$0xff] %vm735, %v6529
        %v6626 = vld [vmem:[#allocation2] sm:$0xff]
        %v6627 = vld [vmem:[#allocation2 + $0x8] sm:$0xff]
        %v6628 = vld [vmem:[#allocation2 + $0x10] sm:$0xff]
        %v6629 = vld [vmem:[#allocation2 + $0x18] sm:$0xff]
        %v6630 = vld [vmem:[#allocation2 + $0x20] sm:$0xff]
        %v6631 = vld [vmem:[#allocation2 + $0x28] sm:$0xff]
        %v6632 = vld [vmem:[#allocation2 + $0x30] sm:$0xff]
        %v6633 = vld [vmem:[#allocation2 + $0x38] sm:$0xff]
        %v6634 = vld [vmem:[#allocation2 + $0x40] sm:$0xff]
        %v6635 = vld [vmem:[#allocation2 + $0x48] sm:$0xff]
        %v6636 = vld [vmem:[#allocation2 + $0x50] sm:$0xff]
        %v6637 = vld [vmem:[#allocation2 + $0x58] sm:$0xff]
        %v6638 = vld [vmem:[#allocation2 + $0x60] sm:$0xff]
        %v6639 = vld [vmem:[#allocation2 + $0x68] sm:$0xff]
        %v6640 = vld [vmem:[#allocation2 + $0x70] sm:$0xff]
        %v6641 = vld [vmem:[#allocation2 + $0x78] sm:$0xff]
        %v6642 = vld [vmem:[#allocation2 + $0x80] sm:$0xff]
        %v6643 = vld [vmem:[#allocation2 + $0x88] sm:$0xff]
        %v6644 = vld [vmem:[#allocation2 + $0x90] sm:$0xff]
        %v6645 = vld [vmem:[#allocation2 + $0x98] sm:$0xff]
        %v6646 = vld [vmem:[#allocation2 + $0xa0] sm:$0xff]
        %v6647 = vld [vmem:[#allocation2 + $0xa8] sm:$0xff]
        %v6648 = vld [vmem:[#allocation2 + $0xb0] sm:$0xff]
        %v6649 = vld [vmem:[#allocation2 + $0xb8] sm:$0xff]
        %v6650 = vld [vmem:[#allocation2 + $0xc0] sm:$0xff]
        %v6651 = vld [vmem:[#allocation2 + $0xc8] sm:$0xff]
        %v6652 = vld [vmem:[#allocation2 + $0xd0] sm:$0xff]
        %v6653 = vld [vmem:[#allocation2 + $0xd8] sm:$0xff]
        %v6654 = vld [vmem:[#allocation2 + $0xe0] sm:$0xff]
        %v6655 = vld [vmem:[#allocation2 + $0xe8] sm:$0xff]
        %v6656 = vld [vmem:[#allocation2 + $0xf0] sm:$0xff]
        %v6657 = vld [vmem:[#allocation2 + $0xf8] sm:$0xff]
        %v6658 = vld [vmem:[#allocation2 + $0x100] sm:$0xff]
        %v6659 = vld [vmem:[#allocation2 + $0x108] sm:$0xff]
        %v6660 = vld [vmem:[#allocation2 + $0x110] sm:$0xff]
        %v6661 = vld [vmem:[#allocation2 + $0x118] sm:$0xff]
        %v6662 = vld [vmem:[#allocation2 + $0x120] sm:$0xff]
        %v6663 = vld [vmem:[#allocation2 + $0x128] sm:$0xff]
        %v6664 = vld [vmem:[#allocation2 + $0x130] sm:$0xff]
        %v6665 = vld [vmem:[#allocation2 + $0x138] sm:$0xff]
        %v6666 = vld [vmem:[#allocation2 + $0x140] sm:$0xff]
        %v6667 = vld [vmem:[#allocation2 + $0x148] sm:$0xff]
        %v6668 = vld [vmem:[#allocation2 + $0x150] sm:$0xff]
        %v6669 = vld [vmem:[#allocation2 + $0x158] sm:$0xff]
        %v6670 = vld [vmem:[#allocation2 + $0x160] sm:$0xff]
        %v6671 = vld [vmem:[#allocation2 + $0x168] sm:$0xff]
        %v6672 = vld [vmem:[#allocation2 + $0x170] sm:$0xff]
        %v6673 = vld [vmem:[#allocation2 + $0x178] sm:$0xff]
        %v6674 = vld [vmem:[#allocation2 + $0x180] sm:$0xff]
        %v6675 = vld [vmem:[#allocation2 + $0x188] sm:$0xff]
        %v6676 = vld [vmem:[#allocation2 + $0x190] sm:$0xff]
        %v6677 = vld [vmem:[#allocation2 + $0x198] sm:$0xff]
        %v6678 = vld [vmem:[#allocation2 + $0x1a0] sm:$0xff]
        %v6679 = vld [vmem:[#allocation2 + $0x1a8] sm:$0xff]
        %v6680 = vld [vmem:[#allocation2 + $0x1b0] sm:$0xff]
        %v6681 = vld [vmem:[#allocation2 + $0x1b8] sm:$0xff]
        %v6682 = vld [vmem:[#allocation2 + $0x1c0] sm:$0xff]
        %v6683 = vld [vmem:[#allocation2 + $0x1c8] sm:$0xff]
        %v6684 = vld [vmem:[#allocation2 + $0x1d0] sm:$0xff]
        %v6685 = vld [vmem:[#allocation2 + $0x1d8] sm:$0xff]
        %v6686 = vld [vmem:[#allocation2 + $0x1e0] sm:$0xff]
        %v6687 = vld [vmem:[#allocation2 + $0x1e8] sm:$0xff]
        %v6688 = vld [vmem:[#allocation2 + $0x1f0] sm:$0xff]
        %v6689 = vld [vmem:[#allocation2 + $0x1f8] sm:$0xff]
        %v6690 = vld [vmem:[#allocation2 + $0x200] sm:$0xff]
        %v6691 = vld [vmem:[#allocation2 + $0x208] sm:$0xff]
        %v6692 = vld [vmem:[#allocation2 + $0x210] sm:$0xff]
        %v6693 = vld [vmem:[#allocation2 + $0x218] sm:$0xff]
        %v6694 = vld [vmem:[#allocation2 + $0x220] sm:$0xff]
        %v6695 = vld [vmem:[#allocation2 + $0x228] sm:$0xff]
        %v6696 = vld [vmem:[#allocation2 + $0x230] sm:$0xff]
        %v6697 = vld [vmem:[#allocation2 + $0x238] sm:$0xff]
        %v6698 = vld [vmem:[#allocation2 + $0x240] sm:$0xff]
        %v6699 = vld [vmem:[#allocation2 + $0x248] sm:$0xff]
        %v6700 = vld [vmem:[#allocation2 + $0x250] sm:$0xff]
        %v6701 = vld [vmem:[#allocation2 + $0x258] sm:$0xff]
        %v6702 = vld [vmem:[#allocation2 + $0x260] sm:$0xff]
        %v6703 = vld [vmem:[#allocation2 + $0x268] sm:$0xff]
        %v6704 = vld [vmem:[#allocation2 + $0x270] sm:$0xff]
        %v6705 = vld [vmem:[#allocation2 + $0x278] sm:$0xff]
        %v6706 = vld [vmem:[#allocation2 + $0x280] sm:$0xff]
        %v6707 = vld [vmem:[#allocation2 + $0x288] sm:$0xff]
        %v6708 = vld [vmem:[#allocation2 + $0x290] sm:$0xff]
        %v6709 = vld [vmem:[#allocation2 + $0x298] sm:$0xff]
        %v6710 = vld [vmem:[#allocation2 + $0x2a0] sm:$0xff]
        %v6711 = vld [vmem:[#allocation2 + $0x2a8] sm:$0xff]
        %v6712 = vld [vmem:[#allocation2 + $0x2b0] sm:$0xff]
        %v6713 = vld [vmem:[#allocation2 + $0x2b8] sm:$0xff]
        %v6714 = vld [vmem:[#allocation2 + $0x2c0] sm:$0xff]
        %v6715 = vld [vmem:[#allocation2 + $0x2c8] sm:$0xff]
        %v6716 = vld [vmem:[#allocation2 + $0x2d0] sm:$0xff]
        %v6717 = vld [vmem:[#allocation2 + $0x2d8] sm:$0xff]
        %v6718 = vld [vmem:[#allocation2 + $0x2e0] sm:$0xff]
        %v6719 = vld [vmem:[#allocation2 + $0x2e8] sm:$0xff]
        %v6720 = vld [vmem:[#allocation2 + $0x2f0] sm:$0xff]
        %v6721 = vld [vmem:[#allocation2 + $0x2f8] sm:$0xff]
        %s6722 = scalar_lea.vmem %s1, 1024
        %v6723 = vld [vmem:[%s6722] sm:$0xf]
        %v6724 = vld [vmem:[%s6722 + $0x4] sm:$0xf]
        %v6725 = vld [vmem:[%s6722 + $0x8] sm:$0xf]
        %v6726 = vld [vmem:[%s6722 + $0xc] sm:$0xf]
        %v6727 = vld [vmem:[%s6722 + $0x10] sm:$0xf]
        %v6728 = vld [vmem:[%s6722 + $0x14] sm:$0xf]
        %v6729 = vld [vmem:[%s6722 + $0x18] sm:$0xf]
        %v6730 = vld [vmem:[%s6722 + $0x1c] sm:$0xf]
        %v6731 = vld [vmem:[%s6722 + $0x20] sm:$0xf]
        %v6732 = vld [vmem:[%s6722 + $0x24] sm:$0xf]
        %v6733 = vld [vmem:[%s6722 + $0x28] sm:$0xf]
        %v6734 = vld [vmem:[%s6722 + $0x2c] sm:$0xf]
        %v6735 = vld [vmem:[%s6722 + $0x30] sm:$0xf]
        %v6736 = vld [vmem:[%s6722 + $0x34] sm:$0xf]
        %v6737 = vld [vmem:[%s6722 + $0x38] sm:$0xf]
        %v6738 = vld [vmem:[%s6722 + $0x3c] sm:$0xf]
        %v6739 = vld [vmem:[%s6722 + $0x40] sm:$0xf]
        %v6740 = vld [vmem:[%s6722 + $0x44] sm:$0xf]
        %v6741 = vld [vmem:[%s6722 + $0x48] sm:$0xf]
        %v6742 = vld [vmem:[%s6722 + $0x4c] sm:$0xf]
        %v6743 = vld [vmem:[%s6722 + $0x50] sm:$0xf]
        %v6744 = vld [vmem:[%s6722 + $0x54] sm:$0xf]
        %v6745 = vld [vmem:[%s6722 + $0x58] sm:$0xf]
        %v6746 = vld [vmem:[%s6722 + $0x5c] sm:$0xf]
        %v6747 = vld [vmem:[%s6722 + $0x60] sm:$0xf]
        %v6748 = vld [vmem:[%s6722 + $0x64] sm:$0xf]
        %v6749 = vld [vmem:[%s6722 + $0x68] sm:$0xf]
        %v6750 = vld [vmem:[%s6722 + $0x6c] sm:$0xf]
        %v6751 = vld [vmem:[%s6722 + $0x70] sm:$0xf]
        %v6752 = vld [vmem:[%s6722 + $0x74] sm:$0xf]
        %v6753 = vld [vmem:[%s6722 + $0x78] sm:$0xf]
        %v6754 = vld [vmem:[%s6722 + $0x7c] sm:$0xf]
        %v6755 = vld [vmem:[%s183] sm:$0xff]
        %v6756 = vld [vmem:[%s183 + $0x8] sm:$0xf]
        %v6757 = vld [vmem:[%s183 + $0xc] sm:$0xff]
        %v6758 = vld [vmem:[%s183 + $0x14] sm:$0xf]
        %v6759 = vld [vmem:[%s183 + $0x18] sm:$0xff]
        %v6760 = vld [vmem:[%s183 + $0x20] sm:$0xf]
        %v6761 = vld [vmem:[%s183 + $0x24] sm:$0xff]
        %v6762 = vld [vmem:[%s183 + $0x2c] sm:$0xf]
        %v6763 = vld [vmem:[%s183 + $0x30] sm:$0xff]
        %v6764 = vld [vmem:[%s183 + $0x38] sm:$0xf]
        %v6765 = vld [vmem:[%s183 + $0x3c] sm:$0xff]
        %v6766 = vld [vmem:[%s183 + $0x44] sm:$0xf]
        %v6767 = vld [vmem:[%s183 + $0x48] sm:$0x11]
        %v6768 = vld [vmem:[%s183 + $0x50] sm:$0x1]
        %v6801 = vunpack.c.l.b16 %v6723
        %v6802 = vunpack.c.l.b16 %v6724
        %v6803 = vunpack.c.l.b16 %v6725
        %v6804 = vunpack.c.l.b16 %v6726
        %v6805 = vunpack.c.l.b16 %v6727
        %v6806 = vunpack.c.l.b16 %v6728
        %v6807 = vunpack.c.l.b16 %v6729
        %v6808 = vunpack.c.l.b16 %v6730
        %v6809 = vunpack.c.l.b16 %v6731
        %v6810 = vunpack.c.l.b16 %v6732
        %v6811 = vunpack.c.l.b16 %v6733
        %v6812 = vunpack.c.l.b16 %v6734
        %v6813 = vunpack.c.l.b16 %v6735
        %v6814 = vunpack.c.l.b16 %v6736
        %v6815 = vunpack.c.l.b16 %v6737
        %v6816 = vunpack.c.l.b16 %v6738
        %v6817 = vunpack.c.l.b16 %v6739
        %v6818 = vunpack.c.l.b16 %v6740
        %v6819 = vunpack.c.l.b16 %v6741
        %v6820 = vunpack.c.l.b16 %v6742
        %v6821 = vunpack.c.l.b16 %v6743
        %v6822 = vunpack.c.l.b16 %v6744
        %v6823 = vunpack.c.l.b16 %v6745
        %v6824 = vunpack.c.l.b16 %v6746
        %v6825 = vunpack.c.l.b16 %v6747
        %v6826 = vunpack.c.l.b16 %v6748
        %v6827 = vunpack.c.l.b16 %v6749
        %v6828 = vunpack.c.l.b16 %v6750
        %v6829 = vunpack.c.l.b16 %v6751
        %v6830 = vunpack.c.l.b16 %v6752
        %v6831 = vunpack.c.l.b16 %v6753
        %v6832 = vunpack.c.l.b16 %v6754
        %v6833 = vpack.c.b16 %v6802, %v6801
        %v6834 = vpack.c.b16 %v6804, %v6803
        %v6835 = vpack.c.b16 %v6806, %v6805
        %v6836 = vpack.c.b16 %v6808, %v6807
        %v6837 = vpack.c.b16 %v6810, %v6809
        %v6838 = vpack.c.b16 %v6812, %v6811
        %v6839 = vpack.c.b16 %v6814, %v6813
        %v6840 = vpack.c.b16 %v6816, %v6815
        %v6841 = vpack.c.b16 %v6818, %v6817
        %v6842 = vpack.c.b16 %v6820, %v6819
        %v6843 = vpack.c.b16 %v6822, %v6821
        %v6844 = vpack.c.b16 %v6824, %v6823
        %v6845 = vpack.c.b16 %v6826, %v6825
        %v6846 = vpack.c.b16 %v6828, %v6827
        %v6847 = vpack.c.b16 %v6830, %v6829
        %v6848 = vpack.c.b16 %v6832, %v6831
        %v6863 = vunpack.c.l.b16 %v6755
        %v6864 = vunpack.c.h.b16 %v6755
        %v6865 = vunpack.c.l.b16 %v6756
        %v6866 = vunpack.c.l.b16 %v6757
        %v6867 = vunpack.c.h.b16 %v6757
        %v6868 = vunpack.c.l.b16 %v6758
        %v6869 = vunpack.c.l.b16 %v6759
        %v6870 = vunpack.c.h.b16 %v6759
        %v6871 = vunpack.c.l.b16 %v6760
        %v6872 = vunpack.c.l.b16 %v6761
        %v6873 = vunpack.c.h.b16 %v6761
        %v6874 = vunpack.c.l.b16 %v6762
        %v6875 = vunpack.c.l.b16 %v6763
        %v6876 = vunpack.c.h.b16 %v6763
        %v6877 = vunpack.c.l.b16 %v6764
        %v6878 = vunpack.c.l.b16 %v6765
        %v6879 = vunpack.c.h.b16 %v6765
        %v6880 = vunpack.c.l.b16 %v6766
        %v6881 = vunpack.c.l.b16 %v6767
        %v6882 = vunpack.c.h.b16 %v6767
        %v6883 = vunpack.c.l.b16 %v6768
        %v6884 = vpack.c.b16 %v6866, %v6863
        %v6885 = vpack.c.b16 %v6867, %v6864
        %v6886 = vpack.c.b16 %v6868, %v6865
        %v6887 = vpack.c.b16 %v6872, %v6869
        %v6888 = vpack.c.b16 %v6873, %v6870
        %v6889 = vpack.c.b16 %v6874, %v6871
        %v6890 = vpack.c.b16 %v6878, %v6875
        %v6891 = vpack.c.b16 %v6879, %v6876
        %v6892 = vpack.c.b16 %v6880, %v6877
        %v6893 = vpack.c.b16 %v6881, %v6881
        %v6894 = vpack.c.b16 %v6882, %v6882
        %v6895 = vpack.c.b16 %v6883, %v6883
        %6896 = vrot.lane.b32.xlu0 %v6884, 77
        %v6897 = vpop.permute.xlu0 %6896
        %6898 = vrot.lane.b32.xlu0 %v6885, 77
        %v6899 = vpop.permute.xlu0 %6898
        %6900 = vrot.lane.b32.xlu0 %v6886, 77
        %v6901 = vpop.permute.xlu0 %6900
        %6902 = vrot.lane.b32.xlu0 %v6887, 77
        %v6903 = vpop.permute.xlu0 %6902
        %6904 = vrot.lane.b32.xlu0 %v6888, 77
        %v6905 = vpop.permute.xlu0 %6904
        %6906 = vrot.lane.b32.xlu0 %v6889, 77
        %v6907 = vpop.permute.xlu0 %6906
        %6908 = vrot.lane.b32.xlu0 %v6890, 77
        %v6909 = vpop.permute.xlu0 %6908
        %6910 = vrot.lane.b32.xlu0 %v6891, 77
        %v6911 = vpop.permute.xlu0 %6910
        %6912 = vrot.lane.b32.xlu0 %v6892, 77
        %v6913 = vpop.permute.xlu0 %6912
        %6914 = vrot.lane.b32.xlu0 %v6893, 77
        %v6915 = vpop.permute.xlu0 %6914
        %6916 = vrot.lane.b32.xlu0 %v6894, 77
        %v6917 = vpop.permute.xlu0 %6916
        %6918 = vrot.lane.b32.xlu0 %v6895, 77
        %v6919 = vpop.permute.xlu0 %6918
        %vm6920 = vcmask 629760
        %v6921 = vsel %vm6920, %v6897, %v6899
        %v6922 = vsel %vm6920, %v6899, %v6901
        %v6923 = vsel %vm6920, %v6903, %v6905
        %v6924 = vsel %vm6920, %v6905, %v6907
        %v6925 = vsel %vm6920, %v6909, %v6911
        %v6926 = vsel %vm6920, %v6911, %v6913
        %v6927 = vsel %vm6920, %v6915, %v6917
        %v6928 = vsel %vm6920, %v6917, %v6919
        %v6939 = vsel %vm405, %v6833, 0
        %v6942 = vsel %vm405, %v6834, 0
        %v6945 = vsel %vm405, %v6835, 0
        %v6948 = vsel %vm405, %v6836, 0
        %v6951 = vsel %vm405, %v6837, 0
        %v6954 = vsel %vm405, %v6838, 0
        %v6957 = vsel %vm405, %v6839, 0
        %v6960 = vsel %vm405, %v6840, 0
        %v6963 = vsel %vm405, %v6841, 0
        %v6966 = vsel %vm405, %v6842, 0
        %v6969 = vsel %vm405, %v6843, 0
        %v6972 = vsel %vm405, %v6844, 0
        %v6975 = vsel %vm405, %v6845, 0
        %v6978 = vsel %vm405, %v6846, 0
        %v6981 = vsel %vm405, %v6847, 0
        %v6984 = vsel %vm405, %v6848, 0
        %v6987 = vand.u32 %v6927, %v456
        %v6990 = vand.u32 %v6928, %v456
        %v6993 = vand.u32 %v6919, %v456
        %6995 = vmatpush.bf16.msra.mxu0 0
        %6996 = vmatpush.bf16.msra.mxu0 0
        %6997 = vmatpush.bf16.msra.mxu0 0
        %6998 = vmatpush.bf16.msra.mxu0 0
        %6999 = vmatpush.bf16.msra.mxu0 %v6987
        %7000 = vmatpush.bf16.msra.mxu0 %v6925
        %7001 = vmatpush.bf16.msra.mxu0 %v6923
        %7002 = vmatpush.bf16.msra.mxu0 %v6921
        %7003 = vmatmul.bf16.gmra.mxu0 %v6939
        %v7004 = vpop.f32.mrf.mxu0
        %v7005 = vadd.f32 0.0, %v7004
        %v7006 = vpop.f32.mrf.mxu0
        %v7007 = vadd.f32 0.0, %v7006
        %7008 = vmatmul.bf16.gmra.mxu0 %v6942
        %v7009 = vpop.f32.mrf.mxu0
        %v7010 = vadd.f32 0.0, %v7009
        %v7011 = vpop.f32.mrf.mxu0
        %v7012 = vadd.f32 0.0, %v7011
        %7013 = vmatmul.bf16.gmra.mxu0 %v6945
        %v7014 = vpop.f32.mrf.mxu0
        %v7015 = vadd.f32 0.0, %v7014
        %v7016 = vpop.f32.mrf.mxu0
        %v7017 = vadd.f32 0.0, %v7016
        %7018 = vmatmul.bf16.gmra.mxu0 %v6948
        %v7019 = vpop.f32.mrf.mxu0
        %v7020 = vadd.f32 0.0, %v7019
        %v7021 = vpop.f32.mrf.mxu0
        %v7022 = vadd.f32 0.0, %v7021
        %7023 = vmatmul.bf16.gmra.mxu0 %v6951
        %v7024 = vpop.f32.mrf.mxu0
        %v7025 = vadd.f32 0.0, %v7024
        %v7026 = vpop.f32.mrf.mxu0
        %v7027 = vadd.f32 0.0, %v7026
        %7028 = vmatmul.bf16.gmra.mxu0 %v6954
        %v7029 = vpop.f32.mrf.mxu0
        %v7030 = vadd.f32 0.0, %v7029
        %v7031 = vpop.f32.mrf.mxu0
        %v7032 = vadd.f32 0.0, %v7031
        %7033 = vmatmul.bf16.gmra.mxu0 %v6957
        %v7034 = vpop.f32.mrf.mxu0
        %v7035 = vadd.f32 0.0, %v7034
        %v7036 = vpop.f32.mrf.mxu0
        %v7037 = vadd.f32 0.0, %v7036
        %7038 = vmatmul.bf16.gmra.mxu0 %v6960
        %v7039 = vpop.f32.mrf.mxu0
        %v7040 = vadd.f32 0.0, %v7039
        %v7041 = vpop.f32.mrf.mxu0
        %v7042 = vadd.f32 0.0, %v7041
        %7043 = vmatmul.bf16.gmra.mxu0 %v6963
        %v7044 = vpop.f32.mrf.mxu0
        %v7045 = vadd.f32 0.0, %v7044
        %v7046 = vpop.f32.mrf.mxu0
        %v7047 = vadd.f32 0.0, %v7046
        %7048 = vmatmul.bf16.gmra.mxu0 %v6966
        %v7049 = vpop.f32.mrf.mxu0
        %v7050 = vadd.f32 0.0, %v7049
        %v7051 = vpop.f32.mrf.mxu0
        %v7052 = vadd.f32 0.0, %v7051
        %7053 = vmatmul.bf16.gmra.mxu0 %v6969
        %v7054 = vpop.f32.mrf.mxu0
        %v7055 = vadd.f32 0.0, %v7054
        %v7056 = vpop.f32.mrf.mxu0
        %v7057 = vadd.f32 0.0, %v7056
        %7058 = vmatmul.bf16.gmra.mxu0 %v6972
        %v7059 = vpop.f32.mrf.mxu0
        %v7060 = vadd.f32 0.0, %v7059
        %v7061 = vpop.f32.mrf.mxu0
        %v7062 = vadd.f32 0.0, %v7061
        %7063 = vmatmul.bf16.gmra.mxu0 %v6975
        %v7064 = vpop.f32.mrf.mxu0
        %v7065 = vadd.f32 0.0, %v7064
        %v7066 = vpop.f32.mrf.mxu0
        %v7067 = vadd.f32 0.0, %v7066
        %7068 = vmatmul.bf16.gmra.mxu0 %v6978
        %v7069 = vpop.f32.mrf.mxu0
        %v7070 = vadd.f32 0.0, %v7069
        %v7071 = vpop.f32.mrf.mxu0
        %v7072 = vadd.f32 0.0, %v7071
        %7073 = vmatmul.bf16.gmra.mxu0 %v6981
        %v7074 = vpop.f32.mrf.mxu0
        %v7075 = vadd.f32 0.0, %v7074
        %v7076 = vpop.f32.mrf.mxu0
        %v7077 = vadd.f32 0.0, %v7076
        %7078 = vmatmul.bf16.gmra.mxu0 %v6984
        %v7079 = vpop.f32.mrf.mxu0
        %v7080 = vadd.f32 0.0, %v7079
        %v7081 = vpop.f32.mrf.mxu0
        %v7082 = vadd.f32 0.0, %v7081
        %7083 = vdwg.mxu0
        %7084 = vmatpush.bf16.msra.mxu0 0
        %7085 = vmatpush.bf16.msra.mxu0 0
        %7086 = vmatpush.bf16.msra.mxu0 0
        %7087 = vmatpush.bf16.msra.mxu0 0
        %7088 = vmatpush.bf16.msra.mxu0 %v6990
        %7089 = vmatpush.bf16.msra.mxu0 %v6926
        %7090 = vmatpush.bf16.msra.mxu0 %v6924
        %7091 = vmatpush.bf16.msra.mxu0 %v6922
        %7092 = vmatmul.bf16.gmra.mxu0 %v6939
        %v7093 = vpop.f32.mrf.mxu0
        %v7094 = vadd.f32 0.0, %v7093
        %v7095 = vpop.f32.mrf.mxu0
        %v7096 = vadd.f32 0.0, %v7095
        %7097 = vmatmul.bf16.gmra.mxu0 %v6942
        %v7098 = vpop.f32.mrf.mxu0
        %v7099 = vadd.f32 0.0, %v7098
        %v7100 = vpop.f32.mrf.mxu0
        %v7101 = vadd.f32 0.0, %v7100
        %7102 = vmatmul.bf16.gmra.mxu0 %v6945
        %v7103 = vpop.f32.mrf.mxu0
        %v7104 = vadd.f32 0.0, %v7103
        %v7105 = vpop.f32.mrf.mxu0
        %v7106 = vadd.f32 0.0, %v7105
        %7107 = vmatmul.bf16.gmra.mxu0 %v6948
        %v7108 = vpop.f32.mrf.mxu0
        %v7109 = vadd.f32 0.0, %v7108
        %v7110 = vpop.f32.mrf.mxu0
        %v7111 = vadd.f32 0.0, %v7110
        %7112 = vmatmul.bf16.gmra.mxu0 %v6951
        %v7113 = vpop.f32.mrf.mxu0
        %v7114 = vadd.f32 0.0, %v7113
        %v7115 = vpop.f32.mrf.mxu0
        %v7116 = vadd.f32 0.0, %v7115
        %7117 = vmatmul.bf16.gmra.mxu0 %v6954
        %v7118 = vpop.f32.mrf.mxu0
        %v7119 = vadd.f32 0.0, %v7118
        %v7120 = vpop.f32.mrf.mxu0
        %v7121 = vadd.f32 0.0, %v7120
        %7122 = vmatmul.bf16.gmra.mxu0 %v6957
        %v7123 = vpop.f32.mrf.mxu0
        %v7124 = vadd.f32 0.0, %v7123
        %v7125 = vpop.f32.mrf.mxu0
        %v7126 = vadd.f32 0.0, %v7125
        %7127 = vmatmul.bf16.gmra.mxu0 %v6960
        %v7128 = vpop.f32.mrf.mxu0
        %v7129 = vadd.f32 0.0, %v7128
        %v7130 = vpop.f32.mrf.mxu0
        %v7131 = vadd.f32 0.0, %v7130
        %7132 = vmatmul.bf16.gmra.mxu0 %v6963
        %v7133 = vpop.f32.mrf.mxu0
        %v7134 = vadd.f32 0.0, %v7133
        %v7135 = vpop.f32.mrf.mxu0
        %v7136 = vadd.f32 0.0, %v7135
        %7137 = vmatmul.bf16.gmra.mxu0 %v6966
        %v7138 = vpop.f32.mrf.mxu0
        %v7139 = vadd.f32 0.0, %v7138
        %v7140 = vpop.f32.mrf.mxu0
        %v7141 = vadd.f32 0.0, %v7140
        %7142 = vmatmul.bf16.gmra.mxu0 %v6969
        %v7143 = vpop.f32.mrf.mxu0
        %v7144 = vadd.f32 0.0, %v7143
        %v7145 = vpop.f32.mrf.mxu0
        %v7146 = vadd.f32 0.0, %v7145
        %7147 = vmatmul.bf16.gmra.mxu0 %v6972
        %v7148 = vpop.f32.mrf.mxu0
        %v7149 = vadd.f32 0.0, %v7148
        %v7150 = vpop.f32.mrf.mxu0
        %v7151 = vadd.f32 0.0, %v7150
        %7152 = vmatmul.bf16.gmra.mxu0 %v6975
        %v7153 = vpop.f32.mrf.mxu0
        %v7154 = vadd.f32 0.0, %v7153
        %v7155 = vpop.f32.mrf.mxu0
        %v7156 = vadd.f32 0.0, %v7155
        %7157 = vmatmul.bf16.gmra.mxu0 %v6978
        %v7158 = vpop.f32.mrf.mxu0
        %v7159 = vadd.f32 0.0, %v7158
        %v7160 = vpop.f32.mrf.mxu0
        %v7161 = vadd.f32 0.0, %v7160
        %7162 = vmatmul.bf16.gmra.mxu0 %v6981
        %v7163 = vpop.f32.mrf.mxu0
        %v7164 = vadd.f32 0.0, %v7163
        %v7165 = vpop.f32.mrf.mxu0
        %v7166 = vadd.f32 0.0, %v7165
        %7167 = vmatmul.bf16.gmra.mxu0 %v6984
        %v7168 = vpop.f32.mrf.mxu0
        %v7169 = vadd.f32 0.0, %v7168
        %v7170 = vpop.f32.mrf.mxu0
        %v7171 = vadd.f32 0.0, %v7170
        %7172 = vdwg.mxu0
        %7173 = vmatpush.bf16.msra.mxu0 0
        %7174 = vmatpush.bf16.msra.mxu0 0
        %7175 = vmatpush.bf16.msra.mxu0 0
        %7176 = vmatpush.bf16.msra.mxu0 0
        %7177 = vmatpush.bf16.msra.mxu0 %v6993
        %7178 = vmatpush.bf16.msra.mxu0 %v6913
        %7179 = vmatpush.bf16.msra.mxu0 %v6907
        %7180 = vmatpush.bf16.msra.mxu0 %v6901
        %7181 = vmatmul.bf16.gmra.mxu0 %v6939
        %v7182 = vpop.f32.mrf.mxu0
        %v7183 = vadd.f32 0.0, %v7182
        %v7184 = vpop.f32.mrf.mxu0
        %v7185 = vadd.f32 0.0, %v7184
        %7186 = vmatmul.bf16.gmra.mxu0 %v6942
        %v7187 = vpop.f32.mrf.mxu0
        %v7188 = vadd.f32 0.0, %v7187
        %v7189 = vpop.f32.mrf.mxu0
        %v7190 = vadd.f32 0.0, %v7189
        %7191 = vmatmul.bf16.gmra.mxu0 %v6945
        %v7192 = vpop.f32.mrf.mxu0
        %v7193 = vadd.f32 0.0, %v7192
        %v7194 = vpop.f32.mrf.mxu0
        %v7195 = vadd.f32 0.0, %v7194
        %7196 = vmatmul.bf16.gmra.mxu0 %v6948
        %v7197 = vpop.f32.mrf.mxu0
        %v7198 = vadd.f32 0.0, %v7197
        %v7199 = vpop.f32.mrf.mxu0
        %v7200 = vadd.f32 0.0, %v7199
        %7201 = vmatmul.bf16.gmra.mxu0 %v6951
        %v7202 = vpop.f32.mrf.mxu0
        %v7203 = vadd.f32 0.0, %v7202
        %v7204 = vpop.f32.mrf.mxu0
        %v7205 = vadd.f32 0.0, %v7204
        %7206 = vmatmul.bf16.gmra.mxu0 %v6954
        %v7207 = vpop.f32.mrf.mxu0
        %v7208 = vadd.f32 0.0, %v7207
        %v7209 = vpop.f32.mrf.mxu0
        %v7210 = vadd.f32 0.0, %v7209
        %7211 = vmatmul.bf16.gmra.mxu0 %v6957
        %v7212 = vpop.f32.mrf.mxu0
        %v7213 = vadd.f32 0.0, %v7212
        %v7214 = vpop.f32.mrf.mxu0
        %v7215 = vadd.f32 0.0, %v7214
        %7216 = vmatmul.bf16.gmra.mxu0 %v6960
        %v7217 = vpop.f32.mrf.mxu0
        %v7218 = vadd.f32 0.0, %v7217
        %v7219 = vpop.f32.mrf.mxu0
        %v7220 = vadd.f32 0.0, %v7219
        %7221 = vmatmul.bf16.gmra.mxu0 %v6963
        %v7222 = vpop.f32.mrf.mxu0
        %v7223 = vadd.f32 0.0, %v7222
        %v7224 = vpop.f32.mrf.mxu0
        %v7225 = vadd.f32 0.0, %v7224
        %7226 = vmatmul.bf16.gmra.mxu0 %v6966
        %v7227 = vpop.f32.mrf.mxu0
        %v7228 = vadd.f32 0.0, %v7227
        %v7229 = vpop.f32.mrf.mxu0
        %v7230 = vadd.f32 0.0, %v7229
        %7231 = vmatmul.bf16.gmra.mxu0 %v6969
        %v7232 = vpop.f32.mrf.mxu0
        %v7233 = vadd.f32 0.0, %v7232
        %v7234 = vpop.f32.mrf.mxu0
        %v7235 = vadd.f32 0.0, %v7234
        %7236 = vmatmul.bf16.gmra.mxu0 %v6972
        %v7237 = vpop.f32.mrf.mxu0
        %v7238 = vadd.f32 0.0, %v7237
        %v7239 = vpop.f32.mrf.mxu0
        %v7240 = vadd.f32 0.0, %v7239
        %7241 = vmatmul.bf16.gmra.mxu0 %v6975
        %v7242 = vpop.f32.mrf.mxu0
        %v7243 = vadd.f32 0.0, %v7242
        %v7244 = vpop.f32.mrf.mxu0
        %v7245 = vadd.f32 0.0, %v7244
        %7246 = vmatmul.bf16.gmra.mxu0 %v6978
        %v7247 = vpop.f32.mrf.mxu0
        %v7248 = vadd.f32 0.0, %v7247
        %v7249 = vpop.f32.mrf.mxu0
        %v7250 = vadd.f32 0.0, %v7249
        %7251 = vmatmul.bf16.gmra.mxu0 %v6981
        %v7252 = vpop.f32.mrf.mxu0
        %v7253 = vadd.f32 0.0, %v7252
        %v7254 = vpop.f32.mrf.mxu0
        %v7255 = vadd.f32 0.0, %v7254
        %7256 = vmatmul.bf16.gmra.mxu0 %v6984
        %v7257 = vpop.f32.mrf.mxu0
        %v7258 = vadd.f32 0.0, %v7257
        %v7259 = vpop.f32.mrf.mxu0
        %v7260 = vadd.f32 0.0, %v7259
        %7261 = vdwg.mxu0
        %v7262 = vadd.f32 %v6626, %v7005
        %v7263 = vadd.f32 %v6627, %v7094
        %v7264 = vadd.f32 %v6628, %v7183
        %v7265 = vadd.f32 %v6629, %v7007
        %v7266 = vadd.f32 %v6630, %v7096
        %v7267 = vadd.f32 %v6631, %v7185
        %v7268 = vadd.f32 %v6632, %v7010
        %v7269 = vadd.f32 %v6633, %v7099
        %v7270 = vadd.f32 %v6634, %v7188
        %v7271 = vadd.f32 %v6635, %v7012
        %v7272 = vadd.f32 %v6636, %v7101
        %v7273 = vadd.f32 %v6637, %v7190
        %v7274 = vadd.f32 %v6638, %v7015
        %v7275 = vadd.f32 %v6639, %v7104
        %v7276 = vadd.f32 %v6640, %v7193
        %v7277 = vadd.f32 %v6641, %v7017
        %v7278 = vadd.f32 %v6642, %v7106
        %v7279 = vadd.f32 %v6643, %v7195
        %v7280 = vadd.f32 %v6644, %v7020
        %v7281 = vadd.f32 %v6645, %v7109
        %v7282 = vadd.f32 %v6646, %v7198
        %v7283 = vadd.f32 %v6647, %v7022
        %v7284 = vadd.f32 %v6648, %v7111
        %v7285 = vadd.f32 %v6649, %v7200
        %v7286 = vadd.f32 %v6650, %v7025
        %v7287 = vadd.f32 %v6651, %v7114
        %v7288 = vadd.f32 %v6652, %v7203
        %v7289 = vadd.f32 %v6653, %v7027
        %v7290 = vadd.f32 %v6654, %v7116
        %v7291 = vadd.f32 %v6655, %v7205
        %v7292 = vadd.f32 %v6656, %v7030
        %v7293 = vadd.f32 %v6657, %v7119
        %v7294 = vadd.f32 %v6658, %v7208
        %v7295 = vadd.f32 %v6659, %v7032
        %v7296 = vadd.f32 %v6660, %v7121
        %v7297 = vadd.f32 %v6661, %v7210
        %v7298 = vadd.f32 %v6662, %v7035
        %v7299 = vadd.f32 %v6663, %v7124
        %v7300 = vadd.f32 %v6664, %v7213
        %v7301 = vadd.f32 %v6665, %v7037
        %v7302 = vadd.f32 %v6666, %v7126
        %v7303 = vadd.f32 %v6667, %v7215
        %v7304 = vadd.f32 %v6668, %v7040
        %v7305 = vadd.f32 %v6669, %v7129
        %v7306 = vadd.f32 %v6670, %v7218
        %v7307 = vadd.f32 %v6671, %v7042
        %v7308 = vadd.f32 %v6672, %v7131
        %v7309 = vadd.f32 %v6673, %v7220
        %v7310 = vadd.f32 %v6674, %v7045
        %v7311 = vadd.f32 %v6675, %v7134
        %v7312 = vadd.f32 %v6676, %v7223
        %v7313 = vadd.f32 %v6677, %v7047
        %v7314 = vadd.f32 %v6678, %v7136
        %v7315 = vadd.f32 %v6679, %v7225
        %v7316 = vadd.f32 %v6680, %v7050
        %v7317 = vadd.f32 %v6681, %v7139
        %v7318 = vadd.f32 %v6682, %v7228
        %v7319 = vadd.f32 %v6683, %v7052
        %v7320 = vadd.f32 %v6684, %v7141
        %v7321 = vadd.f32 %v6685, %v7230
        %v7322 = vadd.f32 %v6686, %v7055
        %v7323 = vadd.f32 %v6687, %v7144
        %v7324 = vadd.f32 %v6688, %v7233
        %v7325 = vadd.f32 %v6689, %v7057
        %v7326 = vadd.f32 %v6690, %v7146
        %v7327 = vadd.f32 %v6691, %v7235
        %v7328 = vadd.f32 %v6692, %v7060
        %v7329 = vadd.f32 %v6693, %v7149
        %v7330 = vadd.f32 %v6694, %v7238
        %v7331 = vadd.f32 %v6695, %v7062
        %v7332 = vadd.f32 %v6696, %v7151
        %v7333 = vadd.f32 %v6697, %v7240
        %v7334 = vadd.f32 %v6698, %v7065
        %v7335 = vadd.f32 %v6699, %v7154
        %v7336 = vadd.f32 %v6700, %v7243
        %v7337 = vadd.f32 %v6701, %v7067
        %v7338 = vadd.f32 %v6702, %v7156
        %v7339 = vadd.f32 %v6703, %v7245
        %v7340 = vadd.f32 %v6704, %v7070
        %v7341 = vadd.f32 %v6705, %v7159
        %v7342 = vadd.f32 %v6706, %v7248
        %v7343 = vadd.f32 %v6707, %v7072
        %v7344 = vadd.f32 %v6708, %v7161
        %v7345 = vadd.f32 %v6709, %v7250
        %v7346 = vadd.f32 %v6710, %v7075
        %v7347 = vadd.f32 %v6711, %v7164
        %v7348 = vadd.f32 %v6712, %v7253
        %v7349 = vadd.f32 %v6713, %v7077
        %v7350 = vadd.f32 %v6714, %v7166
        %v7351 = vadd.f32 %v6715, %v7255
        %v7352 = vadd.f32 %v6716, %v7080
        %v7353 = vadd.f32 %v6717, %v7169
        %v7354 = vadd.f32 %v6718, %v7258
        %v7355 = vadd.f32 %v6719, %v7082
        %v7356 = vadd.f32 %v6720, %v7171
        %v7357 = vadd.f32 %v6721, %v7260
        %7358 = vst [vmem:[#allocation2] sm:$0xff] %v7262
        %7359 = vst [vmem:[#allocation2 + $0x8] sm:$0xff] %v7263
        %7360 = vst.msk [vmem:[#allocation2 + $0x10] sm:$0xff] %vm735, %v7264
        %7361 = vst [vmem:[#allocation2 + $0x18] sm:$0xff] %v7265
        %7362 = vst [vmem:[#allocation2 + $0x20] sm:$0xff] %v7266
        %7363 = vst.msk [vmem:[#allocation2 + $0x28] sm:$0xff] %vm735, %v7267
        %7364 = vst [vmem:[#allocation2 + $0x30] sm:$0xff] %v7268
        %7365 = vst [vmem:[#allocation2 + $0x38] sm:$0xff] %v7269
        %7366 = vst.msk [vmem:[#allocation2 + $0x40] sm:$0xff] %vm735, %v7270
        %7367 = vst [vmem:[#allocation2 + $0x48] sm:$0xff] %v7271
        %7368 = vst [vmem:[#allocation2 + $0x50] sm:$0xff] %v7272
        %7369 = vst.msk [vmem:[#allocation2 + $0x58] sm:$0xff] %vm735, %v7273
        %7370 = vst [vmem:[#allocation2 + $0x60] sm:$0xff] %v7274
        %7371 = vst [vmem:[#allocation2 + $0x68] sm:$0xff] %v7275
        %7372 = vst.msk [vmem:[#allocation2 + $0x70] sm:$0xff] %vm735, %v7276
        %7373 = vst [vmem:[#allocation2 + $0x78] sm:$0xff] %v7277
        %7374 = vst [vmem:[#allocation2 + $0x80] sm:$0xff] %v7278
        %7375 = vst.msk [vmem:[#allocation2 + $0x88] sm:$0xff] %vm735, %v7279
        %7376 = vst [vmem:[#allocation2 + $0x90] sm:$0xff] %v7280
        %7377 = vst [vmem:[#allocation2 + $0x98] sm:$0xff] %v7281
        %7378 = vst.msk [vmem:[#allocation2 + $0xa0] sm:$0xff] %vm735, %v7282
        %7379 = vst [vmem:[#allocation2 + $0xa8] sm:$0xff] %v7283
        %7380 = vst [vmem:[#allocation2 + $0xb0] sm:$0xff] %v7284
        %7381 = vst.msk [vmem:[#allocation2 + $0xb8] sm:$0xff] %vm735, %v7285
        %7382 = vst [vmem:[#allocation2 + $0xc0] sm:$0xff] %v7286
        %7383 = vst [vmem:[#allocation2 + $0xc8] sm:$0xff] %v7287
        %7384 = vst.msk [vmem:[#allocation2 + $0xd0] sm:$0xff] %vm735, %v7288
        %7385 = vst [vmem:[#allocation2 + $0xd8] sm:$0xff] %v7289
        %7386 = vst [vmem:[#allocation2 + $0xe0] sm:$0xff] %v7290
        %7387 = vst.msk [vmem:[#allocation2 + $0xe8] sm:$0xff] %vm735, %v7291
        %7388 = vst [vmem:[#allocation2 + $0xf0] sm:$0xff] %v7292
        %7389 = vst [vmem:[#allocation2 + $0xf8] sm:$0xff] %v7293
        %7390 = vst.msk [vmem:[#allocation2 + $0x100] sm:$0xff] %vm735, %v7294
        %7391 = vst [vmem:[#allocation2 + $0x108] sm:$0xff] %v7295
        %7392 = vst [vmem:[#allocation2 + $0x110] sm:$0xff] %v7296
        %7393 = vst.msk [vmem:[#allocation2 + $0x118] sm:$0xff] %vm735, %v7297
        %7394 = vst [vmem:[#allocation2 + $0x120] sm:$0xff] %v7298
        %7395 = vst [vmem:[#allocation2 + $0x128] sm:$0xff] %v7299
        %7396 = vst.msk [vmem:[#allocation2 + $0x130] sm:$0xff] %vm735, %v7300
        %7397 = vst [vmem:[#allocation2 + $0x138] sm:$0xff] %v7301
        %7398 = vst [vmem:[#allocation2 + $0x140] sm:$0xff] %v7302
        %7399 = vst.msk [vmem:[#allocation2 + $0x148] sm:$0xff] %vm735, %v7303
        %7400 = vst [vmem:[#allocation2 + $0x150] sm:$0xff] %v7304
        %7401 = vst [vmem:[#allocation2 + $0x158] sm:$0xff] %v7305
        %7402 = vst.msk [vmem:[#allocation2 + $0x160] sm:$0xff] %vm735, %v7306
        %7403 = vst [vmem:[#allocation2 + $0x168] sm:$0xff] %v7307
        %7404 = vst [vmem:[#allocation2 + $0x170] sm:$0xff] %v7308
        %7405 = vst.msk [vmem:[#allocation2 + $0x178] sm:$0xff] %vm735, %v7309
        %7406 = vst [vmem:[#allocation2 + $0x180] sm:$0xff] %v7310
        %7407 = vst [vmem:[#allocation2 + $0x188] sm:$0xff] %v7311
        %7408 = vst.msk [vmem:[#allocation2 + $0x190] sm:$0xff] %vm735, %v7312
        %7409 = vst [vmem:[#allocation2 + $0x198] sm:$0xff] %v7313
        %7410 = vst [vmem:[#allocation2 + $0x1a0] sm:$0xff] %v7314
        %7411 = vst.msk [vmem:[#allocation2 + $0x1a8] sm:$0xff] %vm735, %v7315
        %7412 = vst [vmem:[#allocation2 + $0x1b0] sm:$0xff] %v7316
        %7413 = vst [vmem:[#allocation2 + $0x1b8] sm:$0xff] %v7317
        %7414 = vst.msk [vmem:[#allocation2 + $0x1c0] sm:$0xff] %vm735, %v7318
        %7415 = vst [vmem:[#allocation2 + $0x1c8] sm:$0xff] %v7319
        %7416 = vst [vmem:[#allocation2 + $0x1d0] sm:$0xff] %v7320
        %7417 = vst.msk [vmem:[#allocation2 + $0x1d8] sm:$0xff] %vm735, %v7321
        %7418 = vst [vmem:[#allocation2 + $0x1e0] sm:$0xff] %v7322
        %7419 = vst [vmem:[#allocation2 + $0x1e8] sm:$0xff] %v7323
        %7420 = vst.msk [vmem:[#allocation2 + $0x1f0] sm:$0xff] %vm735, %v7324
        %7421 = vst [vmem:[#allocation2 + $0x1f8] sm:$0xff] %v7325
        %7422 = vst [vmem:[#allocation2 + $0x200] sm:$0xff] %v7326
        %7423 = vst.msk [vmem:[#allocation2 + $0x208] sm:$0xff] %vm735, %v7327
        %7424 = vst [vmem:[#allocation2 + $0x210] sm:$0xff] %v7328
        %7425 = vst [vmem:[#allocation2 + $0x218] sm:$0xff] %v7329
        %7426 = vst.msk [vmem:[#allocation2 + $0x220] sm:$0xff] %vm735, %v7330
        %7427 = vst [vmem:[#allocation2 + $0x228] sm:$0xff] %v7331
        %7428 = vst [vmem:[#allocation2 + $0x230] sm:$0xff] %v7332
        %7429 = vst.msk [vmem:[#allocation2 + $0x238] sm:$0xff] %vm735, %v7333
        %7430 = vst [vmem:[#allocation2 + $0x240] sm:$0xff] %v7334
        %7431 = vst [vmem:[#allocation2 + $0x248] sm:$0xff] %v7335
        %7432 = vst.msk [vmem:[#allocation2 + $0x250] sm:$0xff] %vm735, %v7336
        %7433 = vst [vmem:[#allocation2 + $0x258] sm:$0xff] %v7337
        %7434 = vst [vmem:[#allocation2 + $0x260] sm:$0xff] %v7338
        %7435 = vst.msk [vmem:[#allocation2 + $0x268] sm:$0xff] %vm735, %v7339
        %7436 = vst [vmem:[#allocation2 + $0x270] sm:$0xff] %v7340
        %7437 = vst [vmem:[#allocation2 + $0x278] sm:$0xff] %v7341
        %7438 = vst.msk [vmem:[#allocation2 + $0x280] sm:$0xff] %vm735, %v7342
        %7439 = vst [vmem:[#allocation2 + $0x288] sm:$0xff] %v7343
        %7440 = vst [vmem:[#allocation2 + $0x290] sm:$0xff] %v7344
        %7441 = vst.msk [vmem:[#allocation2 + $0x298] sm:$0xff] %vm735, %v7345
        %7442 = vst [vmem:[#allocation2 + $0x2a0] sm:$0xff] %v7346
        %7443 = vst [vmem:[#allocation2 + $0x2a8] sm:$0xff] %v7347
        %7444 = vst.msk [vmem:[#allocation2 + $0x2b0] sm:$0xff] %vm735, %v7348
        %7445 = vst [vmem:[#allocation2 + $0x2b8] sm:$0xff] %v7349
        %7446 = vst [vmem:[#allocation2 + $0x2c0] sm:$0xff] %v7350
        %7447 = vst.msk [vmem:[#allocation2 + $0x2c8] sm:$0xff] %vm735, %v7351
        %7448 = vst [vmem:[#allocation2 + $0x2d0] sm:$0xff] %v7352
        %7449 = vst [vmem:[#allocation2 + $0x2d8] sm:$0xff] %v7353
        %7450 = vst.msk [vmem:[#allocation2 + $0x2e0] sm:$0xff] %vm735, %v7354
        %7451 = vst [vmem:[#allocation2 + $0x2e8] sm:$0xff] %v7355
        %7452 = vst [vmem:[#allocation2 + $0x2f0] sm:$0xff] %v7356
        %7453 = vst.msk [vmem:[#allocation2 + $0x2f8] sm:$0xff] %vm735, %v7357
        %v7454 = vld [vmem:[#allocation2] sm:$0xff]
        %v7455 = vld [vmem:[#allocation2 + $0x8] sm:$0xff]
        %v7456 = vld [vmem:[#allocation2 + $0x10] sm:$0xff]
        %v7457 = vld [vmem:[#allocation2 + $0x18] sm:$0xff]
        %v7458 = vld [vmem:[#allocation2 + $0x20] sm:$0xff]
        %v7459 = vld [vmem:[#allocation2 + $0x28] sm:$0xff]
        %v7460 = vld [vmem:[#allocation2 + $0x30] sm:$0xff]
        %v7461 = vld [vmem:[#allocation2 + $0x38] sm:$0xff]
        %v7462 = vld [vmem:[#allocation2 + $0x40] sm:$0xff]
        %v7463 = vld [vmem:[#allocation2 + $0x48] sm:$0xff]
        %v7464 = vld [vmem:[#allocation2 + $0x50] sm:$0xff]
        %v7465 = vld [vmem:[#allocation2 + $0x58] sm:$0xff]
        %v7466 = vld [vmem:[#allocation2 + $0x60] sm:$0xff]
        %v7467 = vld [vmem:[#allocation2 + $0x68] sm:$0xff]
        %v7468 = vld [vmem:[#allocation2 + $0x70] sm:$0xff]
        %v7469 = vld [vmem:[#allocation2 + $0x78] sm:$0xff]
        %v7470 = vld [vmem:[#allocation2 + $0x80] sm:$0xff]
        %v7471 = vld [vmem:[#allocation2 + $0x88] sm:$0xff]
        %v7472 = vld [vmem:[#allocation2 + $0x90] sm:$0xff]
        %v7473 = vld [vmem:[#allocation2 + $0x98] sm:$0xff]
        %v7474 = vld [vmem:[#allocation2 + $0xa0] sm:$0xff]
        %v7475 = vld [vmem:[#allocation2 + $0xa8] sm:$0xff]
        %v7476 = vld [vmem:[#allocation2 + $0xb0] sm:$0xff]
        %v7477 = vld [vmem:[#allocation2 + $0xb8] sm:$0xff]
        %v7478 = vld [vmem:[#allocation2 + $0xc0] sm:$0xff]
        %v7479 = vld [vmem:[#allocation2 + $0xc8] sm:$0xff]
        %v7480 = vld [vmem:[#allocation2 + $0xd0] sm:$0xff]
        %v7481 = vld [vmem:[#allocation2 + $0xd8] sm:$0xff]
        %v7482 = vld [vmem:[#allocation2 + $0xe0] sm:$0xff]
        %v7483 = vld [vmem:[#allocation2 + $0xe8] sm:$0xff]
        %v7484 = vld [vmem:[#allocation2 + $0xf0] sm:$0xff]
        %v7485 = vld [vmem:[#allocation2 + $0xf8] sm:$0xff]
        %v7486 = vld [vmem:[#allocation2 + $0x100] sm:$0xff]
        %v7487 = vld [vmem:[#allocation2 + $0x108] sm:$0xff]
        %v7488 = vld [vmem:[#allocation2 + $0x110] sm:$0xff]
        %v7489 = vld [vmem:[#allocation2 + $0x118] sm:$0xff]
        %v7490 = vld [vmem:[#allocation2 + $0x120] sm:$0xff]
        %v7491 = vld [vmem:[#allocation2 + $0x128] sm:$0xff]
        %v7492 = vld [vmem:[#allocation2 + $0x130] sm:$0xff]
        %v7493 = vld [vmem:[#allocation2 + $0x138] sm:$0xff]
        %v7494 = vld [vmem:[#allocation2 + $0x140] sm:$0xff]
        %v7495 = vld [vmem:[#allocation2 + $0x148] sm:$0xff]
        %v7496 = vld [vmem:[#allocation2 + $0x150] sm:$0xff]
        %v7497 = vld [vmem:[#allocation2 + $0x158] sm:$0xff]
        %v7498 = vld [vmem:[#allocation2 + $0x160] sm:$0xff]
        %v7499 = vld [vmem:[#allocation2 + $0x168] sm:$0xff]
        %v7500 = vld [vmem:[#allocation2 + $0x170] sm:$0xff]
        %v7501 = vld [vmem:[#allocation2 + $0x178] sm:$0xff]
        %v7502 = vld [vmem:[#allocation2 + $0x180] sm:$0xff]
        %v7503 = vld [vmem:[#allocation2 + $0x188] sm:$0xff]
        %v7504 = vld [vmem:[#allocation2 + $0x190] sm:$0xff]
        %v7505 = vld [vmem:[#allocation2 + $0x198] sm:$0xff]
        %v7506 = vld [vmem:[#allocation2 + $0x1a0] sm:$0xff]
        %v7507 = vld [vmem:[#allocation2 + $0x1a8] sm:$0xff]
        %v7508 = vld [vmem:[#allocation2 + $0x1b0] sm:$0xff]
        %v7509 = vld [vmem:[#allocation2 + $0x1b8] sm:$0xff]
        %v7510 = vld [vmem:[#allocation2 + $0x1c0] sm:$0xff]
        %v7511 = vld [vmem:[#allocation2 + $0x1c8] sm:$0xff]
        %v7512 = vld [vmem:[#allocation2 + $0x1d0] sm:$0xff]
        %v7513 = vld [vmem:[#allocation2 + $0x1d8] sm:$0xff]
        %v7514 = vld [vmem:[#allocation2 + $0x1e0] sm:$0xff]
        %v7515 = vld [vmem:[#allocation2 + $0x1e8] sm:$0xff]
        %v7516 = vld [vmem:[#allocation2 + $0x1f0] sm:$0xff]
        %v7517 = vld [vmem:[#allocation2 + $0x1f8] sm:$0xff]
        %v7518 = vld [vmem:[#allocation2 + $0x200] sm:$0xff]
        %v7519 = vld [vmem:[#allocation2 + $0x208] sm:$0xff]
        %v7520 = vld [vmem:[#allocation2 + $0x210] sm:$0xff]
        %v7521 = vld [vmem:[#allocation2 + $0x218] sm:$0xff]
        %v7522 = vld [vmem:[#allocation2 + $0x220] sm:$0xff]
        %v7523 = vld [vmem:[#allocation2 + $0x228] sm:$0xff]
        %v7524 = vld [vmem:[#allocation2 + $0x230] sm:$0xff]
        %v7525 = vld [vmem:[#allocation2 + $0x238] sm:$0xff]
        %v7526 = vld [vmem:[#allocation2 + $0x240] sm:$0xff]
        %v7527 = vld [vmem:[#allocation2 + $0x248] sm:$0xff]
        %v7528 = vld [vmem:[#allocation2 + $0x250] sm:$0xff]
        %v7529 = vld [vmem:[#allocation2 + $0x258] sm:$0xff]
        %v7530 = vld [vmem:[#allocation2 + $0x260] sm:$0xff]
        %v7531 = vld [vmem:[#allocation2 + $0x268] sm:$0xff]
        %v7532 = vld [vmem:[#allocation2 + $0x270] sm:$0xff]
        %v7533 = vld [vmem:[#allocation2 + $0x278] sm:$0xff]
        %v7534 = vld [vmem:[#allocation2 + $0x280] sm:$0xff]
        %v7535 = vld [vmem:[#allocation2 + $0x288] sm:$0xff]
        %v7536 = vld [vmem:[#allocation2 + $0x290] sm:$0xff]
        %v7537 = vld [vmem:[#allocation2 + $0x298] sm:$0xff]
        %v7538 = vld [vmem:[#allocation2 + $0x2a0] sm:$0xff]
        %v7539 = vld [vmem:[#allocation2 + $0x2a8] sm:$0xff]
        %v7540 = vld [vmem:[#allocation2 + $0x2b0] sm:$0xff]
        %v7541 = vld [vmem:[#allocation2 + $0x2b8] sm:$0xff]
        %v7542 = vld [vmem:[#allocation2 + $0x2c0] sm:$0xff]
        %v7543 = vld [vmem:[#allocation2 + $0x2c8] sm:$0xff]
        %v7544 = vld [vmem:[#allocation2 + $0x2d0] sm:$0xff]
        %v7545 = vld [vmem:[#allocation2 + $0x2d8] sm:$0xff]
        %v7546 = vld [vmem:[#allocation2 + $0x2e0] sm:$0xff]
        %v7547 = vld [vmem:[#allocation2 + $0x2e8] sm:$0xff]
        %v7548 = vld [vmem:[#allocation2 + $0x2f0] sm:$0xff]
        %v7549 = vld [vmem:[#allocation2 + $0x2f8] sm:$0xff]
        %v7550 = vmax.f32 %v7454, 0.0
        %v7551 = vmax.f32 %v7455, 0.0
        %v7552 = vmax.f32 %v7456, 0.0
        %v7553 = vmax.f32 %v7457, 0.0
        %v7554 = vmax.f32 %v7458, 0.0
        %v7555 = vmax.f32 %v7459, 0.0
        %v7556 = vmax.f32 %v7460, 0.0
        %v7557 = vmax.f32 %v7461, 0.0
        %v7558 = vmax.f32 %v7462, 0.0
        %v7559 = vmax.f32 %v7463, 0.0
        %v7560 = vmax.f32 %v7464, 0.0
        %v7561 = vmax.f32 %v7465, 0.0
        %v7562 = vmax.f32 %v7466, 0.0
        %v7563 = vmax.f32 %v7467, 0.0
        %v7564 = vmax.f32 %v7468, 0.0
        %v7565 = vmax.f32 %v7469, 0.0
        %v7566 = vmax.f32 %v7470, 0.0
        %v7567 = vmax.f32 %v7471, 0.0
        %v7568 = vmax.f32 %v7472, 0.0
        %v7569 = vmax.f32 %v7473, 0.0
        %v7570 = vmax.f32 %v7474, 0.0
        %v7571 = vmax.f32 %v7475, 0.0
        %v7572 = vmax.f32 %v7476, 0.0
        %v7573 = vmax.f32 %v7477, 0.0
        %v7574 = vmax.f32 %v7478, 0.0
        %v7575 = vmax.f32 %v7479, 0.0
        %v7576 = vmax.f32 %v7480, 0.0
        %v7577 = vmax.f32 %v7481, 0.0
        %v7578 = vmax.f32 %v7482, 0.0
        %v7579 = vmax.f32 %v7483, 0.0
        %v7580 = vmax.f32 %v7484, 0.0
        %v7581 = vmax.f32 %v7485, 0.0
        %v7582 = vmax.f32 %v7486, 0.0
        %v7583 = vmax.f32 %v7487, 0.0
        %v7584 = vmax.f32 %v7488, 0.0
        %v7585 = vmax.f32 %v7489, 0.0
        %v7586 = vmax.f32 %v7490, 0.0
        %v7587 = vmax.f32 %v7491, 0.0
        %v7588 = vmax.f32 %v7492, 0.0
        %v7589 = vmax.f32 %v7493, 0.0
        %v7590 = vmax.f32 %v7494, 0.0
        %v7591 = vmax.f32 %v7495, 0.0
        %v7592 = vmax.f32 %v7496, 0.0
        %v7593 = vmax.f32 %v7497, 0.0
        %v7594 = vmax.f32 %v7498, 0.0
        %v7595 = vmax.f32 %v7499, 0.0
        %v7596 = vmax.f32 %v7500, 0.0
        %v7597 = vmax.f32 %v7501, 0.0
        %v7598 = vmax.f32 %v7502, 0.0
        %v7599 = vmax.f32 %v7503, 0.0
        %v7600 = vmax.f32 %v7504, 0.0
        %v7601 = vmax.f32 %v7505, 0.0
        %v7602 = vmax.f32 %v7506, 0.0
        %v7603 = vmax.f32 %v7507, 0.0
        %v7604 = vmax.f32 %v7508, 0.0
        %v7605 = vmax.f32 %v7509, 0.0
        %v7606 = vmax.f32 %v7510, 0.0
        %v7607 = vmax.f32 %v7511, 0.0
        %v7608 = vmax.f32 %v7512, 0.0
        %v7609 = vmax.f32 %v7513, 0.0
        %v7610 = vmax.f32 %v7514, 0.0
        %v7611 = vmax.f32 %v7515, 0.0
        %v7612 = vmax.f32 %v7516, 0.0
        %v7613 = vmax.f32 %v7517, 0.0
        %v7614 = vmax.f32 %v7518, 0.0
        %v7615 = vmax.f32 %v7519, 0.0
        %v7616 = vmax.f32 %v7520, 0.0
        %v7617 = vmax.f32 %v7521, 0.0
        %v7618 = vmax.f32 %v7522, 0.0
        %v7619 = vmax.f32 %v7523, 0.0
        %v7620 = vmax.f32 %v7524, 0.0
        %v7621 = vmax.f32 %v7525, 0.0
        %v7622 = vmax.f32 %v7526, 0.0
        %v7623 = vmax.f32 %v7527, 0.0
        %v7624 = vmax.f32 %v7528, 0.0
        %v7625 = vmax.f32 %v7529, 0.0
        %v7626 = vmax.f32 %v7530, 0.0
        %v7627 = vmax.f32 %v7531, 0.0
        %v7628 = vmax.f32 %v7532, 0.0
        %v7629 = vmax.f32 %v7533, 0.0
        %v7630 = vmax.f32 %v7534, 0.0
        %v7631 = vmax.f32 %v7535, 0.0
        %v7632 = vmax.f32 %v7536, 0.0
        %v7633 = vmax.f32 %v7537, 0.0
        %v7634 = vmax.f32 %v7538, 0.0
        %v7635 = vmax.f32 %v7539, 0.0
        %v7636 = vmax.f32 %v7540, 0.0
        %v7637 = vmax.f32 %v7541, 0.0
        %v7638 = vmax.f32 %v7542, 0.0
        %v7639 = vmax.f32 %v7543, 0.0
        %v7640 = vmax.f32 %v7544, 0.0
        %v7641 = vmax.f32 %v7545, 0.0
        %v7642 = vmax.f32 %v7546, 0.0
        %v7643 = vmax.f32 %v7547, 0.0
        %v7644 = vmax.f32 %v7548, 0.0
        %v7645 = vmax.f32 %v7549, 0.0
        %7646 = vst [vmem:[#allocation2] sm:$0xff] %v7550
        %7647 = vst [vmem:[#allocation2 + $0x8] sm:$0xff] %v7551
        %7648 = vst.msk [vmem:[#allocation2 + $0x10] sm:$0xff] %vm735, %v7552
        %7649 = vst [vmem:[#allocation2 + $0x18] sm:$0xff] %v7553
        %7650 = vst [vmem:[#allocation2 + $0x20] sm:$0xff] %v7554
        %7651 = vst.msk [vmem:[#allocation2 + $0x28] sm:$0xff] %vm735, %v7555
        %7652 = vst [vmem:[#allocation2 + $0x30] sm:$0xff] %v7556
        %7653 = vst [vmem:[#allocation2 + $0x38] sm:$0xff] %v7557
        %7654 = vst.msk [vmem:[#allocation2 + $0x40] sm:$0xff] %vm735, %v7558
        %7655 = vst [vmem:[#allocation2 + $0x48] sm:$0xff] %v7559
        %7656 = vst [vmem:[#allocation2 + $0x50] sm:$0xff] %v7560
        %7657 = vst.msk [vmem:[#allocation2 + $0x58] sm:$0xff] %vm735, %v7561
        %7658 = vst [vmem:[#allocation2 + $0x60] sm:$0xff] %v7562
        %7659 = vst [vmem:[#allocation2 + $0x68] sm:$0xff] %v7563
        %7660 = vst.msk [vmem:[#allocation2 + $0x70] sm:$0xff] %vm735, %v7564
        %7661 = vst [vmem:[#allocation2 + $0x78] sm:$0xff] %v7565
        %7662 = vst [vmem:[#allocation2 + $0x80] sm:$0xff] %v7566
        %7663 = vst.msk [vmem:[#allocation2 + $0x88] sm:$0xff] %vm735, %v7567
        %7664 = vst [vmem:[#allocation2 + $0x90] sm:$0xff] %v7568
        %7665 = vst [vmem:[#allocation2 + $0x98] sm:$0xff] %v7569
        %7666 = vst.msk [vmem:[#allocation2 + $0xa0] sm:$0xff] %vm735, %v7570
        %7667 = vst [vmem:[#allocation2 + $0xa8] sm:$0xff] %v7571
        %7668 = vst [vmem:[#allocation2 + $0xb0] sm:$0xff] %v7572
        %7669 = vst.msk [vmem:[#allocation2 + $0xb8] sm:$0xff] %vm735, %v7573
        %7670 = vst [vmem:[#allocation2 + $0xc0] sm:$0xff] %v7574
        %7671 = vst [vmem:[#allocation2 + $0xc8] sm:$0xff] %v7575
        %7672 = vst.msk [vmem:[#allocation2 + $0xd0] sm:$0xff] %vm735, %v7576
        %7673 = vst [vmem:[#allocation2 + $0xd8] sm:$0xff] %v7577
        %7674 = vst [vmem:[#allocation2 + $0xe0] sm:$0xff] %v7578
        %7675 = vst.msk [vmem:[#allocation2 + $0xe8] sm:$0xff] %vm735, %v7579
        %7676 = vst [vmem:[#allocation2 + $0xf0] sm:$0xff] %v7580
        %7677 = vst [vmem:[#allocation2 + $0xf8] sm:$0xff] %v7581
        %7678 = vst.msk [vmem:[#allocation2 + $0x100] sm:$0xff] %vm735, %v7582
        %7679 = vst [vmem:[#allocation2 + $0x108] sm:$0xff] %v7583
        %7680 = vst [vmem:[#allocation2 + $0x110] sm:$0xff] %v7584
        %7681 = vst.msk [vmem:[#allocation2 + $0x118] sm:$0xff] %vm735, %v7585
        %7682 = vst [vmem:[#allocation2 + $0x120] sm:$0xff] %v7586
        %7683 = vst [vmem:[#allocation2 + $0x128] sm:$0xff] %v7587
        %7684 = vst.msk [vmem:[#allocation2 + $0x130] sm:$0xff] %vm735, %v7588
        %7685 = vst [vmem:[#allocation2 + $0x138] sm:$0xff] %v7589
        %7686 = vst [vmem:[#allocation2 + $0x140] sm:$0xff] %v7590
        %7687 = vst.msk [vmem:[#allocation2 + $0x148] sm:$0xff] %vm735, %v7591
        %7688 = vst [vmem:[#allocation2 + $0x150] sm:$0xff] %v7592
        %7689 = vst [vmem:[#allocation2 + $0x158] sm:$0xff] %v7593
        %7690 = vst.msk [vmem:[#allocation2 + $0x160] sm:$0xff] %vm735, %v7594
        %7691 = vst [vmem:[#allocation2 + $0x168] sm:$0xff] %v7595
        %7692 = vst [vmem:[#allocation2 + $0x170] sm:$0xff] %v7596
        %7693 = vst.msk [vmem:[#allocation2 + $0x178] sm:$0xff] %vm735, %v7597
        %7694 = vst [vmem:[#allocation2 + $0x180] sm:$0xff] %v7598
        %7695 = vst [vmem:[#allocation2 + $0x188] sm:$0xff] %v7599
        %7696 = vst.msk [vmem:[#allocation2 + $0x190] sm:$0xff] %vm735, %v7600
        %7697 = vst [vmem:[#allocation2 + $0x198] sm:$0xff] %v7601
        %7698 = vst [vmem:[#allocation2 + $0x1a0] sm:$0xff] %v7602
        %7699 = vst.msk [vmem:[#allocation2 + $0x1a8] sm:$0xff] %vm735, %v7603
        %7700 = vst [vmem:[#allocation2 + $0x1b0] sm:$0xff] %v7604
        %7701 = vst [vmem:[#allocation2 + $0x1b8] sm:$0xff] %v7605
        %7702 = vst.msk [vmem:[#allocation2 + $0x1c0] sm:$0xff] %vm735, %v7606
        %7703 = vst [vmem:[#allocation2 + $0x1c8] sm:$0xff] %v7607
        %7704 = vst [vmem:[#allocation2 + $0x1d0] sm:$0xff] %v7608
        %7705 = vst.msk [vmem:[#allocation2 + $0x1d8] sm:$0xff] %vm735, %v7609
        %7706 = vst [vmem:[#allocation2 + $0x1e0] sm:$0xff] %v7610
        %7707 = vst [vmem:[#allocation2 + $0x1e8] sm:$0xff] %v7611
        %7708 = vst.msk [vmem:[#allocation2 + $0x1f0] sm:$0xff] %vm735, %v7612
        %7709 = vst [vmem:[#allocation2 + $0x1f8] sm:$0xff] %v7613
        %7710 = vst [vmem:[#allocation2 + $0x200] sm:$0xff] %v7614
        %7711 = vst.msk [vmem:[#allocation2 + $0x208] sm:$0xff] %vm735, %v7615
        %7712 = vst [vmem:[#allocation2 + $0x210] sm:$0xff] %v7616
        %7713 = vst [vmem:[#allocation2 + $0x218] sm:$0xff] %v7617
        %7714 = vst.msk [vmem:[#allocation2 + $0x220] sm:$0xff] %vm735, %v7618
        %7715 = vst [vmem:[#allocation2 + $0x228] sm:$0xff] %v7619
        %7716 = vst [vmem:[#allocation2 + $0x230] sm:$0xff] %v7620
        %7717 = vst.msk [vmem:[#allocation2 + $0x238] sm:$0xff] %vm735, %v7621
        %7718 = vst [vmem:[#allocation2 + $0x240] sm:$0xff] %v7622
        %7719 = vst [vmem:[#allocation2 + $0x248] sm:$0xff] %v7623
        %7720 = vst.msk [vmem:[#allocation2 + $0x250] sm:$0xff] %vm735, %v7624
        %7721 = vst [vmem:[#allocation2 + $0x258] sm:$0xff] %v7625
        %7722 = vst [vmem:[#allocation2 + $0x260] sm:$0xff] %v7626
        %7723 = vst.msk [vmem:[#allocation2 + $0x268] sm:$0xff] %vm735, %v7627
        %7724 = vst [vmem:[#allocation2 + $0x270] sm:$0xff] %v7628
        %7725 = vst [vmem:[#allocation2 + $0x278] sm:$0xff] %v7629
        %7726 = vst.msk [vmem:[#allocation2 + $0x280] sm:$0xff] %vm735, %v7630
        %7727 = vst [vmem:[#allocation2 + $0x288] sm:$0xff] %v7631
        %7728 = vst [vmem:[#allocation2 + $0x290] sm:$0xff] %v7632
        %7729 = vst.msk [vmem:[#allocation2 + $0x298] sm:$0xff] %vm735, %v7633
        %7730 = vst [vmem:[#allocation2 + $0x2a0] sm:$0xff] %v7634
        %7731 = vst [vmem:[#allocation2 + $0x2a8] sm:$0xff] %v7635
        %7732 = vst.msk [vmem:[#allocation2 + $0x2b0] sm:$0xff] %vm735, %v7636
        %7733 = vst [vmem:[#allocation2 + $0x2b8] sm:$0xff] %v7637
        %7734 = vst [vmem:[#allocation2 + $0x2c0] sm:$0xff] %v7638
        %7735 = vst.msk [vmem:[#allocation2 + $0x2c8] sm:$0xff] %vm735, %v7639
        %7736 = vst [vmem:[#allocation2 + $0x2d0] sm:$0xff] %v7640
        %7737 = vst [vmem:[#allocation2 + $0x2d8] sm:$0xff] %v7641
        %7738 = vst.msk [vmem:[#allocation2 + $0x2e0] sm:$0xff] %vm735, %v7642
        %7739 = vst [vmem:[#allocation2 + $0x2e8] sm:$0xff] %v7643
        %7740 = vst [vmem:[#allocation2 + $0x2f0] sm:$0xff] %v7644
        %7741 = vst.msk [vmem:[#allocation2 + $0x2f8] sm:$0xff] %vm735, %v7645
        %v7742 = vlaneseq
        %v7743 = vand.u32 %v7742, 127
        %v7744 = vadd.s32 %v7743, 128
        %v7745 = vadd.s32 %v7743, 256
        %vm7746 = vcmp.lt.s32.totalorder %v7743, 0
        %v7747 = vsub.s32 0, %v7743
        %v7748 = vsel %vm7746, %v7747, %v7743
        %v7749 = vand.u32 %v7748, 65535
        %v7750 = vshrl.u32 %v7748, 16
        %v7752 = vmul.u32 %v7749, 14564
        %v7753 = vmul.u32 %v7749, 58254
        %v7754 = vmul.u32 %v7750, 14564
        %v7755 = vmul.u32 %v7750, 58254
        %v7756 = vshll.u32 %v7753, 16
        %v7757 = vshrl.u32 %v7753, 16
        %v7758 = vshll.u32 %v7754, 16
        %v7759 = vshrl.u32 %v7754, 16
        %vm7760 = vc.u32 %v7752, %v7756
        %v7761 = vsel %vm7760, 1, 0
        %v7762 = vadd.s32 %v7752, %v7756
        %v7763 = vadd.s32 %v7755, %v7761
        %vm7764 = vc.u32 %v7762, %v7758
        %v7765 = vsel %vm7764, 1, 0
        %v7766 = vadd.s32 %v7762, %v7758
        %v7767 = vadd.s32 %v7763, %v7765
        %v7768 = vadd.s32 %v7767, %v7757
        %v7769 = vadd.s32 %v7768, %v7759
        %v7770 = vshrl.u32 %v7769, 4
        %v7771 = vmul.u32 %v7770, 18
        %v7772 = vsub.s32 %v7748, %v7771
        %v7773 = vsub.s32 0, %v7772
        %v7774 = vsel %vm7746, %v7773, %v7772
        %vm7775 = vcmp.lt.s32.totalorder %v7744, 0
        %v7776 = vsub.s32 0, %v7744
        %v7777 = vsel %vm7775, %v7776, %v7744
        %v7778 = vand.u32 %v7777, 65535
        %v7779 = vshrl.u32 %v7777, 16
        %v7781 = vmul.u32 %v7778, 14564
        %v7782 = vmul.u32 %v7778, 58254
        %v7783 = vmul.u32 %v7779, 14564
        %v7784 = vmul.u32 %v7779, 58254
        %v7785 = vshll.u32 %v7782, 16
        %v7786 = vshrl.u32 %v7782, 16
        %v7787 = vshll.u32 %v7783, 16
        %v7788 = vshrl.u32 %v7783, 16
        %vm7789 = vc.u32 %v7781, %v7785
        %v7790 = vsel %vm7789, 1, 0
        %v7791 = vadd.s32 %v7781, %v7785
        %v7792 = vadd.s32 %v7784, %v7790
        %vm7793 = vc.u32 %v7791, %v7787
        %v7794 = vsel %vm7793, 1, 0
        %v7795 = vadd.s32 %v7791, %v7787
        %v7796 = vadd.s32 %v7792, %v7794
        %v7797 = vadd.s32 %v7796, %v7786
        %v7798 = vadd.s32 %v7797, %v7788
        %v7799 = vshrl.u32 %v7798, 4
        %v7800 = vmul.u32 %v7799, 18
        %v7801 = vsub.s32 %v7777, %v7800
        %v7802 = vsub.s32 0, %v7801
        %v7803 = vsel %vm7775, %v7802, %v7801
        %vm7804 = vcmp.lt.s32.totalorder %v7745, 0
        %v7805 = vsub.s32 0, %v7745
        %v7806 = vsel %vm7804, %v7805, %v7745
        %v7807 = vand.u32 %v7806, 65535
        %v7808 = vshrl.u32 %v7806, 16
        %v7810 = vmul.u32 %v7807, 14564
        %v7811 = vmul.u32 %v7807, 58254
        %v7812 = vmul.u32 %v7808, 14564
        %v7813 = vmul.u32 %v7808, 58254
        %v7814 = vshll.u32 %v7811, 16
        %v7815 = vshrl.u32 %v7811, 16
        %v7816 = vshll.u32 %v7812, 16
        %v7817 = vshrl.u32 %v7812, 16
        %vm7818 = vc.u32 %v7810, %v7814
        %v7819 = vsel %vm7818, 1, 0
        %v7820 = vadd.s32 %v7810, %v7814
        %v7821 = vadd.s32 %v7813, %v7819
        %vm7822 = vc.u32 %v7820, %v7816
        %v7823 = vsel %vm7822, 1, 0
        %v7824 = vadd.s32 %v7820, %v7816
        %v7825 = vadd.s32 %v7821, %v7823
        %v7826 = vadd.s32 %v7825, %v7815
        %v7827 = vadd.s32 %v7826, %v7817
        %v7828 = vshrl.u32 %v7827, 4
        %v7829 = vmul.u32 %v7828, 18
        %v7830 = vsub.s32 %v7806, %v7829
        %v7831 = vsub.s32 0, %v7830
        %v7832 = vsel %vm7804, %v7831, %v7830
        %vm7833 = vcmp.ne.s32.totalorder %v7774, 0
        %vm7834 = vcmp.ne.s32.totalorder %v7803, 0
        %vm7835 = vcmp.ne.s32.totalorder %v7832, 0
        %vm7836 = vcmp.lt.s32.totalorder %v7774, 0
        %vm7837 = vcmp.lt.s32.totalorder %v7803, 0
        %vm7838 = vcmp.lt.s32.totalorder %v7832, 0
        %vm7839 = vmand %vm7836, %vm7833
        %vm7840 = vmand %vm7837, %vm7834
        %vm7841 = vmand %vm7838, %vm7835
        %v7842 = vadd.s32 %v7774, 18
        %v7843 = vadd.s32 %v7803, 18
        %v7844 = vadd.s32 %v7832, 18
        %v7845 = vsel %vm7839, %v7842, %v7774
        %v7846 = vsel %vm7840, %v7843, %v7803
        %v7847 = vsel %vm7841, %v7844, %v7832
        %vm7848 = vcmp.eq.s32.totalorder %v7845, 0
        %vm7849 = vcmp.eq.s32.totalorder %v7846, 0
        %vm7850 = vcmp.eq.s32.totalorder %v7847, 0
        %vm7851 = vcmp.lt.s32.totalorder %v7743, 18
        %vm7852 = vcmp.lt.s32.totalorder %v7744, 18
        %vm7853 = vcmp.lt.s32.totalorder %v7745, 18
        %v7854 = vld [vmem:[#allocation2] sm:$0xff]
        %v7855 = vld [vmem:[#allocation2 + $0x8] sm:$0xff]
        %v7856 = vld [vmem:[#allocation2 + $0x10] sm:$0xff]
        %v7857 = vld [vmem:[#allocation2 + $0x18] sm:$0xff]
        %v7858 = vld [vmem:[#allocation2 + $0x20] sm:$0xff]
        %v7859 = vld [vmem:[#allocation2 + $0x28] sm:$0xff]
        %v7860 = vld [vmem:[#allocation2 + $0x30] sm:$0xff]
        %v7861 = vld [vmem:[#allocation2 + $0x38] sm:$0xff]
        %v7862 = vld [vmem:[#allocation2 + $0x40] sm:$0xff]
        %v7863 = vld [vmem:[#allocation2 + $0x48] sm:$0xff]
        %v7864 = vld [vmem:[#allocation2 + $0x50] sm:$0xff]
        %v7865 = vld [vmem:[#allocation2 + $0x58] sm:$0xff]
        %v7866 = vld [vmem:[#allocation2 + $0x60] sm:$0xff]
        %v7867 = vld [vmem:[#allocation2 + $0x68] sm:$0xff]
        %v7868 = vld [vmem:[#allocation2 + $0x70] sm:$0xff]
        %v7869 = vld [vmem:[#allocation2 + $0x78] sm:$0xff]
        %v7870 = vld [vmem:[#allocation2 + $0x80] sm:$0xff]
        %v7871 = vld [vmem:[#allocation2 + $0x88] sm:$0xff]
        %v7872 = vld [vmem:[#allocation2 + $0x90] sm:$0xff]
        %v7873 = vld [vmem:[#allocation2 + $0x98] sm:$0xff]
        %v7874 = vld [vmem:[#allocation2 + $0xa0] sm:$0xff]
        %v7875 = vld [vmem:[#allocation2 + $0xa8] sm:$0xff]
        %v7876 = vld [vmem:[#allocation2 + $0xb0] sm:$0xff]
        %v7877 = vld [vmem:[#allocation2 + $0xb8] sm:$0xff]
        %v7878 = vld [vmem:[#allocation2 + $0xc0] sm:$0xff]
        %v7879 = vld [vmem:[#allocation2 + $0xc8] sm:$0xff]
        %v7880 = vld [vmem:[#allocation2 + $0xd0] sm:$0xff]
        %v7881 = vld [vmem:[#allocation2 + $0xd8] sm:$0xff]
        %v7882 = vld [vmem:[#allocation2 + $0xe0] sm:$0xff]
        %v7883 = vld [vmem:[#allocation2 + $0xe8] sm:$0xff]
        %v7884 = vld [vmem:[#allocation2 + $0xf0] sm:$0xff]
        %v7885 = vld [vmem:[#allocation2 + $0xf8] sm:$0xff]
        %v7886 = vld [vmem:[#allocation2 + $0x100] sm:$0xff]
        %v7887 = vld [vmem:[#allocation2 + $0x108] sm:$0xff]
        %v7888 = vld [vmem:[#allocation2 + $0x110] sm:$0xff]
        %v7889 = vld [vmem:[#allocation2 + $0x118] sm:$0xff]
        %v7890 = vld [vmem:[#allocation2 + $0x120] sm:$0xff]
        %v7891 = vld [vmem:[#allocation2 + $0x128] sm:$0xff]
        %v7892 = vld [vmem:[#allocation2 + $0x130] sm:$0xff]
        %v7893 = vld [vmem:[#allocation2 + $0x138] sm:$0xff]
        %v7894 = vld [vmem:[#allocation2 + $0x140] sm:$0xff]
        %v7895 = vld [vmem:[#allocation2 + $0x148] sm:$0xff]
        %v7896 = vld [vmem:[#allocation2 + $0x150] sm:$0xff]
        %v7897 = vld [vmem:[#allocation2 + $0x158] sm:$0xff]
        %v7898 = vld [vmem:[#allocation2 + $0x160] sm:$0xff]
        %v7899 = vld [vmem:[#allocation2 + $0x168] sm:$0xff]
        %v7900 = vld [vmem:[#allocation2 + $0x170] sm:$0xff]
        %v7901 = vld [vmem:[#allocation2 + $0x178] sm:$0xff]
        %v7902 = vmax.f32 %v7854, %v7878
        %v7903 = vmax.f32 %v7855, %v7879
        %v7904 = vmax.f32 %v7856, %v7880
        %v7905 = vmax.f32 %v7857, %v7881
        %v7906 = vmax.f32 %v7858, %v7882
        %v7907 = vmax.f32 %v7859, %v7883
        %v7908 = vmax.f32 %v7860, %v7884
        %v7909 = vmax.f32 %v7861, %v7885
        %v7910 = vmax.f32 %v7862, %v7886
        %v7911 = vmax.f32 %v7863, %v7887
        %v7912 = vmax.f32 %v7864, %v7888
        %v7913 = vmax.f32 %v7865, %v7889
        %v7914 = vmax.f32 %v7866, %v7890
        %v7915 = vmax.f32 %v7867, %v7891
        %v7916 = vmax.f32 %v7868, %v7892
        %v7917 = vmax.f32 %v7869, %v7893
        %v7918 = vmax.f32 %v7870, %v7894
        %v7919 = vmax.f32 %v7871, %v7895
        %v7920 = vmax.f32 %v7872, %v7896
        %v7921 = vmax.f32 %v7873, %v7897
        %v7922 = vmax.f32 %v7874, %v7898
        %v7923 = vmax.f32 %v7875, %v7899
        %v7924 = vmax.f32 %v7876, %v7900
        %v7925 = vmax.f32 %v7877, %v7901
        %v7926 = vld [vmem:[#allocation2 + $0x180] sm:$0xff]
        %v7927 = vld [vmem:[#allocation2 + $0x188] sm:$0xff]
        %v7928 = vld [vmem:[#allocation2 + $0x190] sm:$0xff]
        %v7929 = vld [vmem:[#allocation2 + $0x198] sm:$0xff]
        %v7930 = vld [vmem:[#allocation2 + $0x1a0] sm:$0xff]
        %v7931 = vld [vmem:[#allocation2 + $0x1a8] sm:$0xff]
        %v7932 = vld [vmem:[#allocation2 + $0x1b0] sm:$0xff]
        %v7933 = vld [vmem:[#allocation2 + $0x1b8] sm:$0xff]
        %v7934 = vld [vmem:[#allocation2 + $0x1c0] sm:$0xff]
        %v7935 = vld [vmem:[#allocation2 + $0x1c8] sm:$0xff]
        %v7936 = vld [vmem:[#allocation2 + $0x1d0] sm:$0xff]
        %v7937 = vld [vmem:[#allocation2 + $0x1d8] sm:$0xff]
        %v7938 = vld [vmem:[#allocation2 + $0x1e0] sm:$0xff]
        %v7939 = vld [vmem:[#allocation2 + $0x1e8] sm:$0xff]
        %v7940 = vld [vmem:[#allocation2 + $0x1f0] sm:$0xff]
        %v7941 = vld [vmem:[#allocation2 + $0x1f8] sm:$0xff]
        %v7942 = vld [vmem:[#allocation2 + $0x200] sm:$0xff]
        %v7943 = vld [vmem:[#allocation2 + $0x208] sm:$0xff]
        %v7944 = vld [vmem:[#allocation2 + $0x210] sm:$0xff]
        %v7945 = vld [vmem:[#allocation2 + $0x218] sm:$0xff]
        %v7946 = vld [vmem:[#allocation2 + $0x220] sm:$0xff]
        %v7947 = vld [vmem:[#allocation2 + $0x228] sm:$0xff]
        %v7948 = vld [vmem:[#allocation2 + $0x230] sm:$0xff]
        %v7949 = vld [vmem:[#allocation2 + $0x238] sm:$0xff]
        %v7950 = vmax.f32 %v7902, %v7926
        %v7951 = vmax.f32 %v7903, %v7927
        %v7952 = vmax.f32 %v7904, %v7928
        %v7953 = vmax.f32 %v7905, %v7929
        %v7954 = vmax.f32 %v7906, %v7930
        %v7955 = vmax.f32 %v7907, %v7931
        %v7956 = vmax.f32 %v7908, %v7932
        %v7957 = vmax.f32 %v7909, %v7933
        %v7958 = vmax.f32 %v7910, %v7934
        %v7959 = vmax.f32 %v7911, %v7935
        %v7960 = vmax.f32 %v7912, %v7936
        %v7961 = vmax.f32 %v7913, %v7937
        %v7962 = vmax.f32 %v7914, %v7938
        %v7963 = vmax.f32 %v7915, %v7939
        %v7964 = vmax.f32 %v7916, %v7940
        %v7965 = vmax.f32 %v7917, %v7941
        %v7966 = vmax.f32 %v7918, %v7942
        %v7967 = vmax.f32 %v7919, %v7943
        %v7968 = vmax.f32 %v7920, %v7944
        %v7969 = vmax.f32 %v7921, %v7945
        %v7970 = vmax.f32 %v7922, %v7946
        %v7971 = vmax.f32 %v7923, %v7947
        %v7972 = vmax.f32 %v7924, %v7948
        %v7973 = vmax.f32 %v7925, %v7949
        %v7974 = vld [vmem:[#allocation2 + $0x240] sm:$0xff]
        %v7975 = vld [vmem:[#allocation2 + $0x248] sm:$0xff]
        %v7976 = vld [vmem:[#allocation2 + $0x250] sm:$0xff]
        %v7977 = vld [vmem:[#allocation2 + $0x258] sm:$0xff]
        %v7978 = vld [vmem:[#allocation2 + $0x260] sm:$0xff]
        %v7979 = vld [vmem:[#allocation2 + $0x268] sm:$0xff]
        %v7980 = vld [vmem:[#allocation2 + $0x270] sm:$0xff]
        %v7981 = vld [vmem:[#allocation2 + $0x278] sm:$0xff]
        %v7982 = vld [vmem:[#allocation2 + $0x280] sm:$0xff]
        %v7983 = vld [vmem:[#allocation2 + $0x288] sm:$0xff]
        %v7984 = vld [vmem:[#allocation2 + $0x290] sm:$0xff]
        %v7985 = vld [vmem:[#allocation2 + $0x298] sm:$0xff]
        %v7986 = vld [vmem:[#allocation2 + $0x2a0] sm:$0xff]
        %v7987 = vld [vmem:[#allocation2 + $0x2a8] sm:$0xff]
        %v7988 = vld [vmem:[#allocation2 + $0x2b0] sm:$0xff]
        %v7989 = vld [vmem:[#allocation2 + $0x2b8] sm:$0xff]
        %v7990 = vld [vmem:[#allocation2 + $0x2c0] sm:$0xff]
        %v7991 = vld [vmem:[#allocation2 + $0x2c8] sm:$0xff]
        %v7992 = vld [vmem:[#allocation2 + $0x2d0] sm:$0xff]
        %v7993 = vld [vmem:[#allocation2 + $0x2d8] sm:$0xff]
        %v7994 = vld [vmem:[#allocation2 + $0x2e0] sm:$0xff]
        %v7995 = vld [vmem:[#allocation2 + $0x2e8] sm:$0xff]
        %v7996 = vld [vmem:[#allocation2 + $0x2f0] sm:$0xff]
        %v7997 = vld [vmem:[#allocation2 + $0x2f8] sm:$0xff]
        %v7998 = vmax.f32 %v7950, %v7974
        %v7999 = vmax.f32 %v7951, %v7975
        %v8000 = vmax.f32 %v7952, %v7976
        %v8001 = vmax.f32 %v7953, %v7977
        %v8002 = vmax.f32 %v7954, %v7978
        %v8003 = vmax.f32 %v7955, %v7979
        %v8004 = vmax.f32 %v7956, %v7980
        %v8005 = vmax.f32 %v7957, %v7981
        %v8006 = vmax.f32 %v7958, %v7982
        %v8007 = vmax.f32 %v7959, %v7983
        %v8008 = vmax.f32 %v7960, %v7984
        %v8009 = vmax.f32 %v7961, %v7985
        %v8010 = vmax.f32 %v7962, %v7986
        %v8011 = vmax.f32 %v7963, %v7987
        %v8012 = vmax.f32 %v7964, %v7988
        %v8013 = vmax.f32 %v7965, %v7989
        %v8014 = vmax.f32 %v7966, %v7990
        %v8015 = vmax.f32 %v7967, %v7991
        %v8016 = vmax.f32 %v7968, %v7992
        %v8017 = vmax.f32 %v7969, %v7993
        %v8018 = vmax.f32 %v7970, %v7994
        %v8019 = vmax.f32 %v7971, %v7995
        %v8020 = vmax.f32 %v7972, %v7996
        %v8021 = vmax.f32 %v7973, %v7997
        %v8022 = vsel %vm7848, 1, 0
        %v8023 = vsel %vm7849, 1, 0
        %v8024 = vsel %vm7850, 1, 0
        %vm8025 = vcmp.eq.s32.totalorder %v8022, 1
        %vm8026 = vcmp.eq.s32.totalorder %v8023, 1
        %vm8027 = vcmp.eq.s32.totalorder %v8024, 1
        %8052 = vrot.lane.b32.xlu0 %v7878, 110
        %v8053 = vpop.permute.xlu0 %8052
        %8054 = vrot.lane.b32.xlu0 %v7879, 110
        %v8055 = vpop.permute.xlu0 %8054
        %8056 = vrot.lane.b32.xlu0 %v7880, 110
        %v8057 = vpop.permute.xlu0 %8056
        %8058 = vrot.lane.b32.xlu0 %v7881, 110
        %v8059 = vpop.permute.xlu0 %8058
        %8060 = vrot.lane.b32.xlu0 %v7882, 110
        %v8061 = vpop.permute.xlu0 %8060
        %8062 = vrot.lane.b32.xlu0 %v7883, 110
        %v8063 = vpop.permute.xlu0 %8062
        %8064 = vrot.lane.b32.xlu0 %v7884, 110
        %v8065 = vpop.permute.xlu0 %8064
        %8066 = vrot.lane.b32.xlu0 %v7885, 110
        %v8067 = vpop.permute.xlu0 %8066
        %8068 = vrot.lane.b32.xlu0 %v7886, 110
        %v8069 = vpop.permute.xlu0 %8068
        %8070 = vrot.lane.b32.xlu0 %v7887, 110
        %v8071 = vpop.permute.xlu0 %8070
        %8072 = vrot.lane.b32.xlu0 %v7888, 110
        %v8073 = vpop.permute.xlu0 %8072
        %8074 = vrot.lane.b32.xlu0 %v7889, 110
        %v8075 = vpop.permute.xlu0 %8074
        %8076 = vrot.lane.b32.xlu0 %v7890, 110
        %v8077 = vpop.permute.xlu0 %8076
        %8078 = vrot.lane.b32.xlu0 %v7891, 110
        %v8079 = vpop.permute.xlu0 %8078
        %8080 = vrot.lane.b32.xlu0 %v7892, 110
        %v8081 = vpop.permute.xlu0 %8080
        %8082 = vrot.lane.b32.xlu0 %v7893, 110
        %v8083 = vpop.permute.xlu0 %8082
        %8084 = vrot.lane.b32.xlu0 %v7894, 110
        %v8085 = vpop.permute.xlu0 %8084
        %8086 = vrot.lane.b32.xlu0 %v7895, 110
        %v8087 = vpop.permute.xlu0 %8086
        %8088 = vrot.lane.b32.xlu0 %v7896, 110
        %v8089 = vpop.permute.xlu0 %8088
        %8090 = vrot.lane.b32.xlu0 %v7897, 110
        %v8091 = vpop.permute.xlu0 %8090
        %8092 = vrot.lane.b32.xlu0 %v7898, 110
        %v8093 = vpop.permute.xlu0 %8092
        %8094 = vrot.lane.b32.xlu0 %v7899, 110
        %v8095 = vpop.permute.xlu0 %8094
        %8096 = vrot.lane.b32.xlu0 %v7900, 110
        %v8097 = vpop.permute.xlu0 %8096
        %8098 = vrot.lane.b32.xlu0 %v7901, 110
        %v8099 = vpop.permute.xlu0 %8098
        %vm8100 = vcmask 900096
        %v8101 = vsel %vm8100, %v8053, %v8055
        %v8102 = vsel %vm8100, %v8055, %v8057
        %v8103 = vsel %vm8100, %v8059, %v8061
        %v8104 = vsel %vm8100, %v8061, %v8063
        %v8105 = vsel %vm8100, %v8065, %v8067
        %v8106 = vsel %vm8100, %v8067, %v8069
        %v8107 = vsel %vm8100, %v8071, %v8073
        %v8108 = vsel %vm8100, %v8073, %v8075
        %v8109 = vsel %vm8100, %v8077, %v8079
        %v8110 = vsel %vm8100, %v8079, %v8081
        %v8111 = vsel %vm8100, %v8083, %v8085
        %v8112 = vsel %vm8100, %v8085, %v8087
        %v8113 = vsel %vm8100, %v8089, %v8091
        %v8114 = vsel %vm8100, %v8091, %v8093
        %v8115 = vsel %vm8100, %v8095, %v8097
        %v8116 = vsel %vm8100, %v8097, %v8099
        %v8141 = vsel %vm8025, 0.0, %v8101
        %v8142 = vsel %vm8026, 0.0, %v8102
        %v8143 = vsel %vm8027, 0.0, %v8057
        %v8144 = vsel %vm8025, 0.0, %v8103
        %v8145 = vsel %vm8026, 0.0, %v8104
        %v8146 = vsel %vm8027, 0.0, %v8063
        %v8147 = vsel %vm8025, 0.0, %v8105
        %v8148 = vsel %vm8026, 0.0, %v8106
        %v8149 = vsel %vm8027, 0.0, %v8069
        %v8150 = vsel %vm8025, 0.0, %v8107
        %v8151 = vsel %vm8026, 0.0, %v8108
        %v8152 = vsel %vm8027, 0.0, %v8075
        %v8153 = vsel %vm8025, 0.0, %v8109
        %v8154 = vsel %vm8026, 0.0, %v8110
        %v8155 = vsel %vm8027, 0.0, %v8081
        %v8156 = vsel %vm8025, 0.0, %v8111
        %v8157 = vsel %vm8026, 0.0, %v8112
        %v8158 = vsel %vm8027, 0.0, %v8087
        %v8159 = vsel %vm8025, 0.0, %v8113
        %v8160 = vsel %vm8026, 0.0, %v8114
        %v8161 = vsel %vm8027, 0.0, %v8093
        %v8162 = vsel %vm8025, 0.0, %v8115
        %v8163 = vsel %vm8026, 0.0, %v8116
        %v8164 = vsel %vm8027, 0.0, %v8099
        %8189 = vrot.lane.b32.xlu0 %v8141, 19
        %v8190 = vpop.permute.xlu0 %8189
        %8191 = vrot.lane.b32.xlu0 %v8142, 19
        %v8192 = vpop.permute.xlu0 %8191
        %8193 = vrot.lane.b32.xlu0 %v8143, 19
        %v8194 = vpop.permute.xlu0 %8193
        %8195 = vrot.lane.b32.xlu0 %v8144, 19
        %v8196 = vpop.permute.xlu0 %8195
        %8197 = vrot.lane.b32.xlu0 %v8145, 19
        %v8198 = vpop.permute.xlu0 %8197
        %8199 = vrot.lane.b32.xlu0 %v8146, 19
        %v8200 = vpop.permute.xlu0 %8199
        %8201 = vrot.lane.b32.xlu0 %v8147, 19
        %v8202 = vpop.permute.xlu0 %8201
        %8203 = vrot.lane.b32.xlu0 %v8148, 19
        %v8204 = vpop.permute.xlu0 %8203
        %8205 = vrot.lane.b32.xlu0 %v8149, 19
        %v8206 = vpop.permute.xlu0 %8205
        %8207 = vrot.lane.b32.xlu0 %v8150, 19
        %v8208 = vpop.permute.xlu0 %8207
        %8209 = vrot.lane.b32.xlu0 %v8151, 19
        %v8210 = vpop.permute.xlu0 %8209
        %8211 = vrot.lane.b32.xlu0 %v8152, 19
        %v8212 = vpop.permute.xlu0 %8211
        %8213 = vrot.lane.b32.xlu0 %v8153, 19
        %v8214 = vpop.permute.xlu0 %8213
        %8215 = vrot.lane.b32.xlu0 %v8154, 19
        %v8216 = vpop.permute.xlu0 %8215
        %8217 = vrot.lane.b32.xlu0 %v8155, 19
        %v8218 = vpop.permute.xlu0 %8217
        %8219 = vrot.lane.b32.xlu0 %v8156, 19
        %v8220 = vpop.permute.xlu0 %8219
        %8221 = vrot.lane.b32.xlu0 %v8157, 19
        %v8222 = vpop.permute.xlu0 %8221
        %8223 = vrot.lane.b32.xlu0 %v8158, 19
        %v8224 = vpop.permute.xlu0 %8223
        %8225 = vrot.lane.b32.xlu0 %v8159, 19
        %v8226 = vpop.permute.xlu0 %8225
        %8227 = vrot.lane.b32.xlu0 %v8160, 19
        %v8228 = vpop.permute.xlu0 %8227
        %8229 = vrot.lane.b32.xlu0 %v8161, 19
        %v8230 = vpop.permute.xlu0 %8229
        %8231 = vrot.lane.b32.xlu0 %v8162, 19
        %v8232 = vpop.permute.xlu0 %8231
        %8233 = vrot.lane.b32.xlu0 %v8163, 19
        %v8234 = vpop.permute.xlu0 %8233
        %8235 = vrot.lane.b32.xlu0 %v8164, 19
        %v8236 = vpop.permute.xlu0 %8235
        %vm8237 = vcmask 154624
        %v8238 = vsel %vm8237, %v8190, %v8192
        %v8239 = vsel %vm8237, %v8192, %v8194
        %v8240 = vsel %vm8237, %v8196, %v8198
        %v8241 = vsel %vm8237, %v8198, %v8200
        %v8242 = vsel %vm8237, %v8202, %v8204
        %v8243 = vsel %vm8237, %v8204, %v8206
        %v8244 = vsel %vm8237, %v8208, %v8210
        %v8245 = vsel %vm8237, %v8210, %v8212
        %v8246 = vsel %vm8237, %v8214, %v8216
        %v8247 = vsel %vm8237, %v8216, %v8218
        %v8248 = vsel %vm8237, %v8220, %v8222
        %v8249 = vsel %vm8237, %v8222, %v8224
        %v8250 = vsel %vm8237, %v8226, %v8228
        %v8251 = vsel %vm8237, %v8228, %v8230
        %v8252 = vsel %vm8237, %v8232, %v8234
        %v8253 = vsel %vm8237, %v8234, %v8236
        %v8278 = vmax.f32 %v7998, %v8190
        %v8279 = vmax.f32 %v7999, %v8238
        %v8280 = vmax.f32 %v8000, %v8239
        %v8281 = vmax.f32 %v8001, %v8196
        %v8282 = vmax.f32 %v8002, %v8240
        %v8283 = vmax.f32 %v8003, %v8241
        %v8284 = vmax.f32 %v8004, %v8202
        %v8285 = vmax.f32 %v8005, %v8242
        %v8286 = vmax.f32 %v8006, %v8243
        %v8287 = vmax.f32 %v8007, %v8208
        %v8288 = vmax.f32 %v8008, %v8244
        %v8289 = vmax.f32 %v8009, %v8245
        %v8290 = vmax.f32 %v8010, %v8214
        %v8291 = vmax.f32 %v8011, %v8246
        %v8292 = vmax.f32 %v8012, %v8247
        %v8293 = vmax.f32 %v8013, %v8220
        %v8294 = vmax.f32 %v8014, %v8248
        %v8295 = vmax.f32 %v8015, %v8249
        %v8296 = vmax.f32 %v8016, %v8226
        %v8297 = vmax.f32 %v8017, %v8250
        %v8298 = vmax.f32 %v8018, %v8251
        %v8299 = vmax.f32 %v8019, %v8232
        %v8300 = vmax.f32 %v8020, %v8252
        %v8301 = vmax.f32 %v8021, %v8253
        %8326 = vrot.lane.b32.xlu0 %v7974, 110
        %v8327 = vpop.permute.xlu0 %8326
        %8328 = vrot.lane.b32.xlu0 %v7975, 110
        %v8329 = vpop.permute.xlu0 %8328
        %8330 = vrot.lane.b32.xlu0 %v7976, 110
        %v8331 = vpop.permute.xlu0 %8330
        %8332 = vrot.lane.b32.xlu0 %v7977, 110
        %v8333 = vpop.permute.xlu0 %8332
        %8334 = vrot.lane.b32.xlu0 %v7978, 110
        %v8335 = vpop.permute.xlu0 %8334
        %8336 = vrot.lane.b32.xlu0 %v7979, 110
        %v8337 = vpop.permute.xlu0 %8336
        %8338 = vrot.lane.b32.xlu0 %v7980, 110
        %v8339 = vpop.permute.xlu0 %8338
        %8340 = vrot.lane.b32.xlu0 %v7981, 110
        %v8341 = vpop.permute.xlu0 %8340
        %8342 = vrot.lane.b32.xlu0 %v7982, 110
        %v8343 = vpop.permute.xlu0 %8342
        %8344 = vrot.lane.b32.xlu0 %v7983, 110
        %v8345 = vpop.permute.xlu0 %8344
        %8346 = vrot.lane.b32.xlu0 %v7984, 110
        %v8347 = vpop.permute.xlu0 %8346
        %8348 = vrot.lane.b32.xlu0 %v7985, 110
        %v8349 = vpop.permute.xlu0 %8348
        %8350 = vrot.lane.b32.xlu0 %v7986, 110
        %v8351 = vpop.permute.xlu0 %8350
        %8352 = vrot.lane.b32.xlu0 %v7987, 110
        %v8353 = vpop.permute.xlu0 %8352
        %8354 = vrot.lane.b32.xlu0 %v7988, 110
        %v8355 = vpop.permute.xlu0 %8354
        %8356 = vrot.lane.b32.xlu0 %v7989, 110
        %v8357 = vpop.permute.xlu0 %8356
        %8358 = vrot.lane.b32.xlu0 %v7990, 110
        %v8359 = vpop.permute.xlu0 %8358
        %8360 = vrot.lane.b32.xlu0 %v7991, 110
        %v8361 = vpop.permute.xlu0 %8360
        %8362 = vrot.lane.b32.xlu0 %v7992, 110
        %v8363 = vpop.permute.xlu0 %8362
        %8364 = vrot.lane.b32.xlu0 %v7993, 110
        %v8365 = vpop.permute.xlu0 %8364
        %8366 = vrot.lane.b32.xlu0 %v7994, 110
        %v8367 = vpop.permute.xlu0 %8366
        %8368 = vrot.lane.b32.xlu0 %v7995, 110
        %v8369 = vpop.permute.xlu0 %8368
        %8370 = vrot.lane.b32.xlu0 %v7996, 110
        %v8371 = vpop.permute.xlu0 %8370
        %8372 = vrot.lane.b32.xlu0 %v7997, 110
        %v8373 = vpop.permute.xlu0 %8372
        %v8374 = vsel %vm8100, %v8327, %v8329
        %v8375 = vsel %vm8100, %v8329, %v8331
        %v8376 = vsel %vm8100, %v8333, %v8335
        %v8377 = vsel %vm8100, %v8335, %v8337
        %v8378 = vsel %vm8100, %v8339, %v8341
        %v8379 = vsel %vm8100, %v8341, %v8343
        %v8380 = vsel %vm8100, %v8345, %v8347
        %v8381 = vsel %vm8100, %v8347, %v8349
        %v8382 = vsel %vm8100, %v8351, %v8353
        %v8383 = vsel %vm8100, %v8353, %v8355
        %v8384 = vsel %vm8100, %v8357, %v8359
        %v8385 = vsel %vm8100, %v8359, %v8361
        %v8386 = vsel %vm8100, %v8363, %v8365
        %v8387 = vsel %vm8100, %v8365, %v8367
        %v8388 = vsel %vm8100, %v8369, %v8371
        %v8389 = vsel %vm8100, %v8371, %v8373
        %v8414 = vsel %vm8025, 0.0, %v8374
        %v8415 = vsel %vm8026, 0.0, %v8375
        %v8416 = vsel %vm8027, 0.0, %v8331
        %v8417 = vsel %vm8025, 0.0, %v8376
        %v8418 = vsel %vm8026, 0.0, %v8377
        %v8419 = vsel %vm8027, 0.0, %v8337
        %v8420 = vsel %vm8025, 0.0, %v8378
        %v8421 = vsel %vm8026, 0.0, %v8379
        %v8422 = vsel %vm8027, 0.0, %v8343
        %v8423 = vsel %vm8025, 0.0, %v8380
        %v8424 = vsel %vm8026, 0.0, %v8381
        %v8425 = vsel %vm8027, 0.0, %v8349
        %v8426 = vsel %vm8025, 0.0, %v8382
        %v8427 = vsel %vm8026, 0.0, %v8383
        %v8428 = vsel %vm8027, 0.0, %v8355
        %v8429 = vsel %vm8025, 0.0, %v8384
        %v8430 = vsel %vm8026, 0.0, %v8385
        %v8431 = vsel %vm8027, 0.0, %v8361
        %v8432 = vsel %vm8025, 0.0, %v8386
        %v8433 = vsel %vm8026, 0.0, %v8387
        %v8434 = vsel %vm8027, 0.0, %v8367
        %v8435 = vsel %vm8025, 0.0, %v8388
        %v8436 = vsel %vm8026, 0.0, %v8389
        %v8437 = vsel %vm8027, 0.0, %v8373
        %8462 = vrot.lane.b32.xlu0 %v8414, 19
        %v8463 = vpop.permute.xlu0 %8462
        %8464 = vrot.lane.b32.xlu0 %v8415, 19
        %v8465 = vpop.permute.xlu0 %8464
        %8466 = vrot.lane.b32.xlu0 %v8416, 19
        %v8467 = vpop.permute.xlu0 %8466
        %8468 = vrot.lane.b32.xlu0 %v8417, 19
        %v8469 = vpop.permute.xlu0 %8468
        %8470 = vrot.lane.b32.xlu0 %v8418, 19
        %v8471 = vpop.permute.xlu0 %8470
        %8472 = vrot.lane.b32.xlu0 %v8419, 19
        %v8473 = vpop.permute.xlu0 %8472
        %8474 = vrot.lane.b32.xlu0 %v8420, 19
        %v8475 = vpop.permute.xlu0 %8474
        %8476 = vrot.lane.b32.xlu0 %v8421, 19
        %v8477 = vpop.permute.xlu0 %8476
        %8478 = vrot.lane.b32.xlu0 %v8422, 19
        %v8479 = vpop.permute.xlu0 %8478
        %8480 = vrot.lane.b32.xlu0 %v8423, 19
        %v8481 = vpop.permute.xlu0 %8480
        %8482 = vrot.lane.b32.xlu0 %v8424, 19
        %v8483 = vpop.permute.xlu0 %8482
        %8484 = vrot.lane.b32.xlu0 %v8425, 19
        %v8485 = vpop.permute.xlu0 %8484
        %8486 = vrot.lane.b32.xlu0 %v8426, 19
        %v8487 = vpop.permute.xlu0 %8486
        %8488 = vrot.lane.b32.xlu0 %v8427, 19
        %v8489 = vpop.permute.xlu0 %8488
        %8490 = vrot.lane.b32.xlu0 %v8428, 19
        %v8491 = vpop.permute.xlu0 %8490
        %8492 = vrot.lane.b32.xlu0 %v8429, 19
        %v8493 = vpop.permute.xlu0 %8492
        %8494 = vrot.lane.b32.xlu0 %v8430, 19
        %v8495 = vpop.permute.xlu0 %8494
        %8496 = vrot.lane.b32.xlu0 %v8431, 19
        %v8497 = vpop.permute.xlu0 %8496
        %8498 = vrot.lane.b32.xlu0 %v8432, 19
        %v8499 = vpop.permute.xlu0 %8498
        %8500 = vrot.lane.b32.xlu0 %v8433, 19
        %v8501 = vpop.permute.xlu0 %8500
        %8502 = vrot.lane.b32.xlu0 %v8434, 19
        %v8503 = vpop.permute.xlu0 %8502
        %8504 = vrot.lane.b32.xlu0 %v8435, 19
        %v8505 = vpop.permute.xlu0 %8504
        %8506 = vrot.lane.b32.xlu0 %v8436, 19
        %v8507 = vpop.permute.xlu0 %8506
        %8508 = vrot.lane.b32.xlu0 %v8437, 19
        %v8509 = vpop.permute.xlu0 %8508
        %v8510 = vsel %vm8237, %v8463, %v8465
        %v8511 = vsel %vm8237, %v8465, %v8467
        %v8512 = vsel %vm8237, %v8469, %v8471
        %v8513 = vsel %vm8237, %v8471, %v8473
        %v8514 = vsel %vm8237, %v8475, %v8477
        %v8515 = vsel %vm8237, %v8477, %v8479
        %v8516 = vsel %vm8237, %v8481, %v8483
        %v8517 = vsel %vm8237, %v8483, %v8485
        %v8518 = vsel %vm8237, %v8487, %v8489
        %v8519 = vsel %vm8237, %v8489, %v8491
        %v8520 = vsel %vm8237, %v8493, %v8495
        %v8521 = vsel %vm8237, %v8495, %v8497
        %v8522 = vsel %vm8237, %v8499, %v8501
        %v8523 = vsel %vm8237, %v8501, %v8503
        %v8524 = vsel %vm8237, %v8505, %v8507
        %v8525 = vsel %vm8237, %v8507, %v8509
        %v8550 = vmax.f32 %v8278, %v8463
        %v8551 = vmax.f32 %v8279, %v8510
        %v8552 = vmax.f32 %v8280, %v8511
        %v8553 = vmax.f32 %v8281, %v8469
        %v8554 = vmax.f32 %v8282, %v8512
        %v8555 = vmax.f32 %v8283, %v8513
        %v8556 = vmax.f32 %v8284, %v8475
        %v8557 = vmax.f32 %v8285, %v8514
        %v8558 = vmax.f32 %v8286, %v8515
        %v8559 = vmax.f32 %v8287, %v8481
        %v8560 = vmax.f32 %v8288, %v8516
        %v8561 = vmax.f32 %v8289, %v8517
        %v8562 = vmax.f32 %v8290, %v8487
        %v8563 = vmax.f32 %v8291, %v8518
        %v8564 = vmax.f32 %v8292, %v8519
        %v8565 = vmax.f32 %v8293, %v8493
        %v8566 = vmax.f32 %v8294, %v8520
        %v8567 = vmax.f32 %v8295, %v8521
        %v8568 = vmax.f32 %v8296, %v8499
        %v8569 = vmax.f32 %v8297, %v8522
        %v8570 = vmax.f32 %v8298, %v8523
        %v8571 = vmax.f32 %v8299, %v8505
        %v8572 = vmax.f32 %v8300, %v8524
        %v8573 = vmax.f32 %v8301, %v8525
        %v8574 = vsel %vm7851, 1, 0
        %v8575 = vsel %vm7852, 1, 0
        %v8576 = vsel %vm7853, 1, 0
        %vm8577 = vcmp.eq.s32.totalorder %v8574, 1
        %vm8578 = vcmp.eq.s32.totalorder %v8575, 1
        %vm8579 = vcmp.eq.s32.totalorder %v8576, 1
        %8604 = vrot.lane.b32.xlu0 %v7926, 127
        %v8605 = vpop.permute.xlu0 %8604
        %8606 = vrot.lane.b32.xlu0 %v7927, 127
        %v8607 = vpop.permute.xlu0 %8606
        %8608 = vrot.lane.b32.xlu0 %v7928, 127
        %v8609 = vpop.permute.xlu0 %8608
        %8610 = vrot.lane.b32.xlu0 %v7929, 127
        %v8611 = vpop.permute.xlu0 %8610
        %8612 = vrot.lane.b32.xlu0 %v7930, 127
        %v8613 = vpop.permute.xlu0 %8612
        %8614 = vrot.lane.b32.xlu0 %v7931, 127
        %v8615 = vpop.permute.xlu0 %8614
        %8616 = vrot.lane.b32.xlu0 %v7932, 127
        %v8617 = vpop.permute.xlu0 %8616
        %8618 = vrot.lane.b32.xlu0 %v7933, 127
        %v8619 = vpop.permute.xlu0 %8618
        %8620 = vrot.lane.b32.xlu0 %v7934, 127
        %v8621 = vpop.permute.xlu0 %8620
        %8622 = vrot.lane.b32.xlu0 %v7935, 127
        %v8623 = vpop.permute.xlu0 %8622
        %8624 = vrot.lane.b32.xlu0 %v7936, 127
        %v8625 = vpop.permute.xlu0 %8624
        %8626 = vrot.lane.b32.xlu0 %v7937, 127
        %v8627 = vpop.permute.xlu0 %8626
        %8628 = vrot.lane.b32.xlu0 %v7938, 127
        %v8629 = vpop.permute.xlu0 %8628
        %8630 = vrot.lane.b32.xlu0 %v7939, 127
        %v8631 = vpop.permute.xlu0 %8630
        %8632 = vrot.lane.b32.xlu0 %v7940, 127
        %v8633 = vpop.permute.xlu0 %8632
        %8634 = vrot.lane.b32.xlu0 %v7941, 127
        %v8635 = vpop.permute.xlu0 %8634
        %8636 = vrot.lane.b32.xlu0 %v7942, 127
        %v8637 = vpop.permute.xlu0 %8636
        %8638 = vrot.lane.b32.xlu0 %v7943, 127
        %v8639 = vpop.permute.xlu0 %8638
        %8640 = vrot.lane.b32.xlu0 %v7944, 127
        %v8641 = vpop.permute.xlu0 %8640
        %8642 = vrot.lane.b32.xlu0 %v7945, 127
        %v8643 = vpop.permute.xlu0 %8642
        %8644 = vrot.lane.b32.xlu0 %v7946, 127
        %v8645 = vpop.permute.xlu0 %8644
        %8646 = vrot.lane.b32.xlu0 %v7947, 127
        %v8647 = vpop.permute.xlu0 %8646
        %8648 = vrot.lane.b32.xlu0 %v7948, 127
        %v8649 = vpop.permute.xlu0 %8648
        %8650 = vrot.lane.b32.xlu0 %v7949, 127
        %v8651 = vpop.permute.xlu0 %8650
        %vm8652 = vcmask 1039360
        %v8653 = vsel %vm8652, %v8605, %v8607
        %v8654 = vsel %vm8652, %v8607, %v8609
        %v8655 = vsel %vm8652, %v8611, %v8613
        %v8656 = vsel %vm8652, %v8613, %v8615
        %v8657 = vsel %vm8652, %v8617, %v8619
        %v8658 = vsel %vm8652, %v8619, %v8621
        %v8659 = vsel %vm8652, %v8623, %v8625
        %v8660 = vsel %vm8652, %v8625, %v8627
        %v8661 = vsel %vm8652, %v8629, %v8631
        %v8662 = vsel %vm8652, %v8631, %v8633
        %v8663 = vsel %vm8652, %v8635, %v8637
        %v8664 = vsel %vm8652, %v8637, %v8639
        %v8665 = vsel %vm8652, %v8641, %v8643
        %v8666 = vsel %vm8652, %v8643, %v8645
        %v8667 = vsel %vm8652, %v8647, %v8649
        %v8668 = vsel %vm8652, %v8649, %v8651
        %v8693 = vsel %vm8577, 0.0, %v8653
        %v8694 = vsel %vm8578, 0.0, %v8654
        %v8695 = vsel %vm8579, 0.0, %v8609
        %v8696 = vsel %vm8577, 0.0, %v8655
        %v8697 = vsel %vm8578, 0.0, %v8656
        %v8698 = vsel %vm8579, 0.0, %v8615
        %v8699 = vsel %vm8577, 0.0, %v8657
        %v8700 = vsel %vm8578, 0.0, %v8658
        %v8701 = vsel %vm8579, 0.0, %v8621
        %v8702 = vsel %vm8577, 0.0, %v8659
        %v8703 = vsel %vm8578, 0.0, %v8660
        %v8704 = vsel %vm8579, 0.0, %v8627
        %v8705 = vsel %vm8577, 0.0, %v8661
        %v8706 = vsel %vm8578, 0.0, %v8662
        %v8707 = vsel %vm8579, 0.0, %v8633
        %v8708 = vsel %vm8577, 0.0, %v8663
        %v8709 = vsel %vm8578, 0.0, %v8664
        %v8710 = vsel %vm8579, 0.0, %v8639
        %v8711 = vsel %vm8577, 0.0, %v8665
        %v8712 = vsel %vm8578, 0.0, %v8666
        %v8713 = vsel %vm8579, 0.0, %v8645
        %v8714 = vsel %vm8577, 0.0, %v8667
        %v8715 = vsel %vm8578, 0.0, %v8668
        %v8716 = vsel %vm8579, 0.0, %v8651
        %8741 = vrot.lane.b32.xlu0 %v8693, 19
        %v8742 = vpop.permute.xlu0 %8741
        %8743 = vrot.lane.b32.xlu0 %v8694, 19
        %v8744 = vpop.permute.xlu0 %8743
        %8745 = vrot.lane.b32.xlu0 %v8695, 19
        %v8746 = vpop.permute.xlu0 %8745
        %8747 = vrot.lane.b32.xlu0 %v8696, 19
        %v8748 = vpop.permute.xlu0 %8747
        %8749 = vrot.lane.b32.xlu0 %v8697, 19
        %v8750 = vpop.permute.xlu0 %8749
        %8751 = vrot.lane.b32.xlu0 %v8698, 19
        %v8752 = vpop.permute.xlu0 %8751
        %8753 = vrot.lane.b32.xlu0 %v8699, 19
        %v8754 = vpop.permute.xlu0 %8753
        %8755 = vrot.lane.b32.xlu0 %v8700, 19
        %v8756 = vpop.permute.xlu0 %8755
        %8757 = vrot.lane.b32.xlu0 %v8701, 19
        %v8758 = vpop.permute.xlu0 %8757
        %8759 = vrot.lane.b32.xlu0 %v8702, 19
        %v8760 = vpop.permute.xlu0 %8759
        %8761 = vrot.lane.b32.xlu0 %v8703, 19
        %v8762 = vpop.permute.xlu0 %8761
        %8763 = vrot.lane.b32.xlu0 %v8704, 19
        %v8764 = vpop.permute.xlu0 %8763
        %8765 = vrot.lane.b32.xlu0 %v8705, 19
        %v8766 = vpop.permute.xlu0 %8765
        %8767 = vrot.lane.b32.xlu0 %v8706, 19
        %v8768 = vpop.permute.xlu0 %8767
        %8769 = vrot.lane.b32.xlu0 %v8707, 19
        %v8770 = vpop.permute.xlu0 %8769
        %8771 = vrot.lane.b32.xlu0 %v8708, 19
        %v8772 = vpop.permute.xlu0 %8771
        %8773 = vrot.lane.b32.xlu0 %v8709, 19
        %v8774 = vpop.permute.xlu0 %8773
        %8775 = vrot.lane.b32.xlu0 %v8710, 19
        %v8776 = vpop.permute.xlu0 %8775
        %8777 = vrot.lane.b32.xlu0 %v8711, 19
        %v8778 = vpop.permute.xlu0 %8777
        %8779 = vrot.lane.b32.xlu0 %v8712, 19
        %v8780 = vpop.permute.xlu0 %8779
        %8781 = vrot.lane.b32.xlu0 %v8713, 19
        %v8782 = vpop.permute.xlu0 %8781
        %8783 = vrot.lane.b32.xlu0 %v8714, 19
        %v8784 = vpop.permute.xlu0 %8783
        %8785 = vrot.lane.b32.xlu0 %v8715, 19
        %v8786 = vpop.permute.xlu0 %8785
        %8787 = vrot.lane.b32.xlu0 %v8716, 19
        %v8788 = vpop.permute.xlu0 %8787
        %v8789 = vsel %vm8237, %v8742, %v8744
        %v8790 = vsel %vm8237, %v8744, %v8746
        %v8791 = vsel %vm8237, %v8748, %v8750
        %v8792 = vsel %vm8237, %v8750, %v8752
        %v8793 = vsel %vm8237, %v8754, %v8756
        %v8794 = vsel %vm8237, %v8756, %v8758
        %v8795 = vsel %vm8237, %v8760, %v8762
        %v8796 = vsel %vm8237, %v8762, %v8764
        %v8797 = vsel %vm8237, %v8766, %v8768
        %v8798 = vsel %vm8237, %v8768, %v8770
        %v8799 = vsel %vm8237, %v8772, %v8774
        %v8800 = vsel %vm8237, %v8774, %v8776
        %v8801 = vsel %vm8237, %v8778, %v8780
        %v8802 = vsel %vm8237, %v8780, %v8782
        %v8803 = vsel %vm8237, %v8784, %v8786
        %v8804 = vsel %vm8237, %v8786, %v8788
        %v8829 = vmax.f32 %v8550, %v8742
        %v8830 = vmax.f32 %v8551, %v8789
        %v8831 = vmax.f32 %v8552, %v8790
        %v8832 = vmax.f32 %v8553, %v8748
        %v8833 = vmax.f32 %v8554, %v8791
        %v8834 = vmax.f32 %v8555, %v8792
        %v8835 = vmax.f32 %v8556, %v8754
        %v8836 = vmax.f32 %v8557, %v8793
        %v8837 = vmax.f32 %v8558, %v8794
        %v8838 = vmax.f32 %v8559, %v8760
        %v8839 = vmax.f32 %v8560, %v8795
        %v8840 = vmax.f32 %v8561, %v8796
        %v8841 = vmax.f32 %v8562, %v8766
        %v8842 = vmax.f32 %v8563, %v8797
        %v8843 = vmax.f32 %v8564, %v8798
        %v8844 = vmax.f32 %v8565, %v8772
        %v8845 = vmax.f32 %v8566, %v8799
        %v8846 = vmax.f32 %v8567, %v8800
        %v8847 = vmax.f32 %v8568, %v8778
        %v8848 = vmax.f32 %v8569, %v8801
        %v8849 = vmax.f32 %v8570, %v8802
        %v8850 = vmax.f32 %v8571, %v8784
        %v8851 = vmax.f32 %v8572, %v8803
        %v8852 = vmax.f32 %v8573, %v8804
        %8853 = vrot.lane.b32.xlu0 %v7974, 127
        %v8854 = vpop.permute.xlu0 %8853
        %8855 = vrot.lane.b32.xlu0 %v7975, 127
        %v8856 = vpop.permute.xlu0 %8855
        %8857 = vrot.lane.b32.xlu0 %v7976, 127
        %v8858 = vpop.permute.xlu0 %8857
        %8859 = vrot.lane.b32.xlu0 %v7977, 127
        %v8860 = vpop.permute.xlu0 %8859
        %8861 = vrot.lane.b32.xlu0 %v7978, 127
        %v8862 = vpop.permute.xlu0 %8861
        %8863 = vrot.lane.b32.xlu0 %v7979, 127
        %v8864 = vpop.permute.xlu0 %8863
        %8865 = vrot.lane.b32.xlu0 %v7980, 127
        %v8866 = vpop.permute.xlu0 %8865
        %8867 = vrot.lane.b32.xlu0 %v7981, 127
        %v8868 = vpop.permute.xlu0 %8867
        %8869 = vrot.lane.b32.xlu0 %v7982, 127
        %v8870 = vpop.permute.xlu0 %8869
        %8871 = vrot.lane.b32.xlu0 %v7983, 127
        %v8872 = vpop.permute.xlu0 %8871
        %8873 = vrot.lane.b32.xlu0 %v7984, 127
        %v8874 = vpop.permute.xlu0 %8873
        %8875 = vrot.lane.b32.xlu0 %v7985, 127
        %v8876 = vpop.permute.xlu0 %8875
        %8877 = vrot.lane.b32.xlu0 %v7986, 127
        %v8878 = vpop.permute.xlu0 %8877
        %8879 = vrot.lane.b32.xlu0 %v7987, 127
        %v8880 = vpop.permute.xlu0 %8879
        %8881 = vrot.lane.b32.xlu0 %v7988, 127
        %v8882 = vpop.permute.xlu0 %8881
        %8883 = vrot.lane.b32.xlu0 %v7989, 127
        %v8884 = vpop.permute.xlu0 %8883
        %8885 = vrot.lane.b32.xlu0 %v7990, 127
        %v8886 = vpop.permute.xlu0 %8885
        %8887 = vrot.lane.b32.xlu0 %v7991, 127
        %v8888 = vpop.permute.xlu0 %8887
        %8889 = vrot.lane.b32.xlu0 %v7992, 127
        %v8890 = vpop.permute.xlu0 %8889
        %8891 = vrot.lane.b32.xlu0 %v7993, 127
        %v8892 = vpop.permute.xlu0 %8891
        %8893 = vrot.lane.b32.xlu0 %v7994, 127
        %v8894 = vpop.permute.xlu0 %8893
        %8895 = vrot.lane.b32.xlu0 %v7995, 127
        %v8896 = vpop.permute.xlu0 %8895
        %8897 = vrot.lane.b32.xlu0 %v7996, 127
        %v8898 = vpop.permute.xlu0 %8897
        %8899 = vrot.lane.b32.xlu0 %v7997, 127
        %v8900 = vpop.permute.xlu0 %8899
        %v8901 = vsel %vm8652, %v8854, %v8856
        %v8902 = vsel %vm8652, %v8856, %v8858
        %v8903 = vsel %vm8652, %v8860, %v8862
        %v8904 = vsel %vm8652, %v8862, %v8864
        %v8905 = vsel %vm8652, %v8866, %v8868
        %v8906 = vsel %vm8652, %v8868, %v8870
        %v8907 = vsel %vm8652, %v8872, %v8874
        %v8908 = vsel %vm8652, %v8874, %v8876
        %v8909 = vsel %vm8652, %v8878, %v8880
        %v8910 = vsel %vm8652, %v8880, %v8882
        %v8911 = vsel %vm8652, %v8884, %v8886
        %v8912 = vsel %vm8652, %v8886, %v8888
        %v8913 = vsel %vm8652, %v8890, %v8892
        %v8914 = vsel %vm8652, %v8892, %v8894
        %v8915 = vsel %vm8652, %v8896, %v8898
        %v8916 = vsel %vm8652, %v8898, %v8900
        %v8941 = vsel %vm8577, 0.0, %v8901
        %v8942 = vsel %vm8578, 0.0, %v8902
        %v8943 = vsel %vm8579, 0.0, %v8858
        %v8944 = vsel %vm8577, 0.0, %v8903
        %v8945 = vsel %vm8578, 0.0, %v8904
        %v8946 = vsel %vm8579, 0.0, %v8864
        %v8947 = vsel %vm8577, 0.0, %v8905
        %v8948 = vsel %vm8578, 0.0, %v8906
        %v8949 = vsel %vm8579, 0.0, %v8870
        %v8950 = vsel %vm8577, 0.0, %v8907
        %v8951 = vsel %vm8578, 0.0, %v8908
        %v8952 = vsel %vm8579, 0.0, %v8876
        %v8953 = vsel %vm8577, 0.0, %v8909
        %v8954 = vsel %vm8578, 0.0, %v8910
        %v8955 = vsel %vm8579, 0.0, %v8882
        %v8956 = vsel %vm8577, 0.0, %v8911
        %v8957 = vsel %vm8578, 0.0, %v8912
        %v8958 = vsel %vm8579, 0.0, %v8888
        %v8959 = vsel %vm8577, 0.0, %v8913
        %v8960 = vsel %vm8578, 0.0, %v8914
        %v8961 = vsel %vm8579, 0.0, %v8894
        %v8962 = vsel %vm8577, 0.0, %v8915
        %v8963 = vsel %vm8578, 0.0, %v8916
        %v8964 = vsel %vm8579, 0.0, %v8900
        %8989 = vrot.lane.b32.xlu0 %v8941, 19
        %v8990 = vpop.permute.xlu0 %8989
        %8991 = vrot.lane.b32.xlu0 %v8942, 19
        %v8992 = vpop.permute.xlu0 %8991
        %8993 = vrot.lane.b32.xlu0 %v8943, 19
        %v8994 = vpop.permute.xlu0 %8993
        %8995 = vrot.lane.b32.xlu0 %v8944, 19
        %v8996 = vpop.permute.xlu0 %8995
        %8997 = vrot.lane.b32.xlu0 %v8945, 19
        %v8998 = vpop.permute.xlu0 %8997
        %8999 = vrot.lane.b32.xlu0 %v8946, 19
        %v9000 = vpop.permute.xlu0 %8999
        %9001 = vrot.lane.b32.xlu0 %v8947, 19
        %v9002 = vpop.permute.xlu0 %9001
        %9003 = vrot.lane.b32.xlu0 %v8948, 19
        %v9004 = vpop.permute.xlu0 %9003
        %9005 = vrot.lane.b32.xlu0 %v8949, 19
        %v9006 = vpop.permute.xlu0 %9005
        %9007 = vrot.lane.b32.xlu0 %v8950, 19
        %v9008 = vpop.permute.xlu0 %9007
        %9009 = vrot.lane.b32.xlu0 %v8951, 19
        %v9010 = vpop.permute.xlu0 %9009
        %9011 = vrot.lane.b32.xlu0 %v8952, 19
        %v9012 = vpop.permute.xlu0 %9011
        %9013 = vrot.lane.b32.xlu0 %v8953, 19
        %v9014 = vpop.permute.xlu0 %9013
        %9015 = vrot.lane.b32.xlu0 %v8954, 19
        %v9016 = vpop.permute.xlu0 %9015
        %9017 = vrot.lane.b32.xlu0 %v8955, 19
        %v9018 = vpop.permute.xlu0 %9017
        %9019 = vrot.lane.b32.xlu0 %v8956, 19
        %v9020 = vpop.permute.xlu0 %9019
        %9021 = vrot.lane.b32.xlu0 %v8957, 19
        %v9022 = vpop.permute.xlu0 %9021
        %9023 = vrot.lane.b32.xlu0 %v8958, 19
        %v9024 = vpop.permute.xlu0 %9023
        %9025 = vrot.lane.b32.xlu0 %v8959, 19
        %v9026 = vpop.permute.xlu0 %9025
        %9027 = vrot.lane.b32.xlu0 %v8960, 19
        %v9028 = vpop.permute.xlu0 %9027
        %9029 = vrot.lane.b32.xlu0 %v8961, 19
        %v9030 = vpop.permute.xlu0 %9029
        %9031 = vrot.lane.b32.xlu0 %v8962, 19
        %v9032 = vpop.permute.xlu0 %9031
        %9033 = vrot.lane.b32.xlu0 %v8963, 19
        %v9034 = vpop.permute.xlu0 %9033
        %9035 = vrot.lane.b32.xlu0 %v8964, 19
        %v9036 = vpop.permute.xlu0 %9035
        %v9037 = vsel %vm8237, %v8990, %v8992
        %v9038 = vsel %vm8237, %v8992, %v8994
        %v9039 = vsel %vm8237, %v8996, %v8998
        %v9040 = vsel %vm8237, %v8998, %v9000
        %v9041 = vsel %vm8237, %v9002, %v9004
        %v9042 = vsel %vm8237, %v9004, %v9006
        %v9043 = vsel %vm8237, %v9008, %v9010
        %v9044 = vsel %vm8237, %v9010, %v9012
        %v9045 = vsel %vm8237, %v9014, %v9016
        %v9046 = vsel %vm8237, %v9016, %v9018
        %v9047 = vsel %vm8237, %v9020, %v9022
        %v9048 = vsel %vm8237, %v9022, %v9024
        %v9049 = vsel %vm8237, %v9026, %v9028
        %v9050 = vsel %vm8237, %v9028, %v9030
        %v9051 = vsel %vm8237, %v9032, %v9034
        %v9052 = vsel %vm8237, %v9034, %v9036
        %v9077 = vmax.f32 %v8829, %v8990
        %v9078 = vmax.f32 %v8830, %v9037
        %v9079 = vmax.f32 %v8831, %v9038
        %v9080 = vmax.f32 %v8832, %v8996
        %v9081 = vmax.f32 %v8833, %v9039
        %v9082 = vmax.f32 %v8834, %v9040
        %v9083 = vmax.f32 %v8835, %v9002
        %v9084 = vmax.f32 %v8836, %v9041
        %v9085 = vmax.f32 %v8837, %v9042
        %v9086 = vmax.f32 %v8838, %v9008
        %v9087 = vmax.f32 %v8839, %v9043
        %v9088 = vmax.f32 %v8840, %v9044
        %v9089 = vmax.f32 %v8841, %v9014
        %v9090 = vmax.f32 %v8842, %v9045
        %v9091 = vmax.f32 %v8843, %v9046
        %v9092 = vmax.f32 %v8844, %v9020
        %v9093 = vmax.f32 %v8845, %v9047
        %v9094 = vmax.f32 %v8846, %v9048
        %v9095 = vmax.f32 %v8847, %v9026
        %v9096 = vmax.f32 %v8848, %v9049
        %v9097 = vmax.f32 %v8849, %v9050
        %v9098 = vmax.f32 %v8850, %v9032
        %v9099 = vmax.f32 %v8851, %v9051
        %v9100 = vmax.f32 %v8852, %v9052
        %vm9101 = vmor %vm7851, %vm7848
        %vm9102 = vmor %vm7852, %vm7849
        %vm9103 = vmor %vm7853, %vm7850
        %v9104 = vsel %vm9101, 1, 0
        %v9105 = vsel %vm9102, 1, 0
        %v9106 = vsel %vm9103, 1, 0
        %vm9107 = vcmp.eq.s32.totalorder %v9104, 1
        %vm9108 = vcmp.eq.s32.totalorder %v9105, 1
        %vm9109 = vcmp.eq.s32.totalorder %v9106, 1
        %v9110 = vsel %vm9107, 0.0, %v7974
        %v9111 = vsel %vm9108, 0.0, %v7975
        %v9112 = vsel %vm9109, 0.0, %v7976
        %v9113 = vsel %vm9107, 0.0, %v7977
        %v9114 = vsel %vm9108, 0.0, %v7978
        %v9115 = vsel %vm9109, 0.0, %v7979
        %v9116 = vsel %vm9107, 0.0, %v7980
        %v9117 = vsel %vm9108, 0.0, %v7981
        %v9118 = vsel %vm9109, 0.0, %v7982
        %v9119 = vsel %vm9107, 0.0, %v7983
        %v9120 = vsel %vm9108, 0.0, %v7984
        %v9121 = vsel %vm9109, 0.0, %v7985
        %v9122 = vsel %vm9107, 0.0, %v7986
        %v9123 = vsel %vm9108, 0.0, %v7987
        %v9124 = vsel %vm9109, 0.0, %v7988
        %v9125 = vsel %vm9107, 0.0, %v7989
        %v9126 = vsel %vm9108, 0.0, %v7990
        %v9127 = vsel %vm9109, 0.0, %v7991
        %v9128 = vsel %vm9107, 0.0, %v7992
        %v9129 = vsel %vm9108, 0.0, %v7993
        %v9130 = vsel %vm9109, 0.0, %v7994
        %v9131 = vsel %vm9107, 0.0, %v7995
        %v9132 = vsel %vm9108, 0.0, %v7996
        %v9133 = vsel %vm9109, 0.0, %v7997
        %9158 = vrot.lane.b32.xlu0 %v9110, 19
        %v9159 = vpop.permute.xlu0 %9158
        %9160 = vrot.lane.b32.xlu0 %v9111, 19
        %v9161 = vpop.permute.xlu0 %9160
        %9162 = vrot.lane.b32.xlu0 %v9112, 19
        %v9163 = vpop.permute.xlu0 %9162
        %9164 = vrot.lane.b32.xlu0 %v9113, 19
        %v9165 = vpop.permute.xlu0 %9164
        %9166 = vrot.lane.b32.xlu0 %v9114, 19
        %v9167 = vpop.permute.xlu0 %9166
        %9168 = vrot.lane.b32.xlu0 %v9115, 19
        %v9169 = vpop.permute.xlu0 %9168
        %9170 = vrot.lane.b32.xlu0 %v9116, 19
        %v9171 = vpop.permute.xlu0 %9170
        %9172 = vrot.lane.b32.xlu0 %v9117, 19
        %v9173 = vpop.permute.xlu0 %9172
        %9174 = vrot.lane.b32.xlu0 %v9118, 19
        %v9175 = vpop.permute.xlu0 %9174
        %9176 = vrot.lane.b32.xlu0 %v9119, 19
        %v9177 = vpop.permute.xlu0 %9176
        %9178 = vrot.lane.b32.xlu0 %v9120, 19
        %v9179 = vpop.permute.xlu0 %9178
        %9180 = vrot.lane.b32.xlu0 %v9121, 19
        %v9181 = vpop.permute.xlu0 %9180
        %9182 = vrot.lane.b32.xlu0 %v9122, 19
        %v9183 = vpop.permute.xlu0 %9182
        %9184 = vrot.lane.b32.xlu0 %v9123, 19
        %v9185 = vpop.permute.xlu0 %9184
        %9186 = vrot.lane.b32.xlu0 %v9124, 19
        %v9187 = vpop.permute.xlu0 %9186
        %9188 = vrot.lane.b32.xlu0 %v9125, 19
        %v9189 = vpop.permute.xlu0 %9188
        %9190 = vrot.lane.b32.xlu0 %v9126, 19
        %v9191 = vpop.permute.xlu0 %9190
        %9192 = vrot.lane.b32.xlu0 %v9127, 19
        %v9193 = vpop.permute.xlu0 %9192
        %9194 = vrot.lane.b32.xlu0 %v9128, 19
        %v9195 = vpop.permute.xlu0 %9194
        %9196 = vrot.lane.b32.xlu0 %v9129, 19
        %v9197 = vpop.permute.xlu0 %9196
        %9198 = vrot.lane.b32.xlu0 %v9130, 19
        %v9199 = vpop.permute.xlu0 %9198
        %9200 = vrot.lane.b32.xlu0 %v9131, 19
        %v9201 = vpop.permute.xlu0 %9200
        %9202 = vrot.lane.b32.xlu0 %v9132, 19
        %v9203 = vpop.permute.xlu0 %9202
        %9204 = vrot.lane.b32.xlu0 %v9133, 19
        %v9205 = vpop.permute.xlu0 %9204
        %v9206 = vsel %vm8237, %v9159, %v9161
        %v9207 = vsel %vm8237, %v9161, %v9163
        %v9208 = vsel %vm8237, %v9165, %v9167
        %v9209 = vsel %vm8237, %v9167, %v9169
        %v9210 = vsel %vm8237, %v9171, %v9173
        %v9211 = vsel %vm8237, %v9173, %v9175
        %v9212 = vsel %vm8237, %v9177, %v9179
        %v9213 = vsel %vm8237, %v9179, %v9181
        %v9214 = vsel %vm8237, %v9183, %v9185
        %v9215 = vsel %vm8237, %v9185, %v9187
        %v9216 = vsel %vm8237, %v9189, %v9191
        %v9217 = vsel %vm8237, %v9191, %v9193
        %v9218 = vsel %vm8237, %v9195, %v9197
        %v9219 = vsel %vm8237, %v9197, %v9199
        %v9220 = vsel %vm8237, %v9201, %v9203
        %v9221 = vsel %vm8237, %v9203, %v9205
        %v9246 = vmax.f32 %v9077, %v9159
        %v9247 = vmax.f32 %v9078, %v9206
        %v9248 = vmax.f32 %v9079, %v9207
        %v9249 = vmax.f32 %v9080, %v9165
        %v9250 = vmax.f32 %v9081, %v9208
        %v9251 = vmax.f32 %v9082, %v9209
        %v9252 = vmax.f32 %v9083, %v9171
        %v9253 = vmax.f32 %v9084, %v9210
        %v9254 = vmax.f32 %v9085, %v9211
        %v9255 = vmax.f32 %v9086, %v9177
        %v9256 = vmax.f32 %v9087, %v9212
        %v9257 = vmax.f32 %v9088, %v9213
        %v9258 = vmax.f32 %v9089, %v9183
        %v9259 = vmax.f32 %v9090, %v9214
        %v9260 = vmax.f32 %v9091, %v9215
        %v9261 = vmax.f32 %v9092, %v9189
        %v9262 = vmax.f32 %v9093, %v9216
        %v9263 = vmax.f32 %v9094, %v9217
        %v9264 = vmax.f32 %v9095, %v9195
        %v9265 = vmax.f32 %v9096, %v9218
        %v9266 = vmax.f32 %v9097, %v9219
        %v9267 = vmax.f32 %v9098, %v9201
        %v9268 = vmax.f32 %v9099, %v9220
        %v9269 = vmax.f32 %v9100, %v9221
        %v9270 = vld [vmem:[%s188] sm:$0xff]
        %v9271 = vld [vmem:[%s188 + $0x8] sm:$0xff]
        %v9272 = vld [vmem:[%s188 + $0x10] sm:$0xff]
        %9297 = vrot.lane.b32.xlu0 %v9246, 109
        %v9298 = vpop.permute.xlu0 %9297
        %9299 = vrot.lane.b32.xlu0 %v9247, 109
        %v9300 = vpop.permute.xlu0 %9299
        %9301 = vrot.lane.b32.xlu0 %v9248, 109
        %v9302 = vpop.permute.xlu0 %9301
        %9303 = vrot.lane.b32.xlu0 %v9249, 109
        %v9304 = vpop.permute.xlu0 %9303
        %9305 = vrot.lane.b32.xlu0 %v9250, 109
        %v9306 = vpop.permute.xlu0 %9305
        %9307 = vrot.lane.b32.xlu0 %v9251, 109
        %v9308 = vpop.permute.xlu0 %9307
        %9309 = vrot.lane.b32.xlu0 %v9252, 109
        %v9310 = vpop.permute.xlu0 %9309
        %9311 = vrot.lane.b32.xlu0 %v9253, 109
        %v9312 = vpop.permute.xlu0 %9311
        %9313 = vrot.lane.b32.xlu0 %v9254, 109
        %v9314 = vpop.permute.xlu0 %9313
        %9315 = vrot.lane.b32.xlu0 %v9255, 109
        %v9316 = vpop.permute.xlu0 %9315
        %9317 = vrot.lane.b32.xlu0 %v9256, 109
        %v9318 = vpop.permute.xlu0 %9317
        %9319 = vrot.lane.b32.xlu0 %v9257, 109
        %v9320 = vpop.permute.xlu0 %9319
        %9321 = vrot.lane.b32.xlu0 %v9258, 109
        %v9322 = vpop.permute.xlu0 %9321
        %9323 = vrot.lane.b32.xlu0 %v9259, 109
        %v9324 = vpop.permute.xlu0 %9323
        %9325 = vrot.lane.b32.xlu0 %v9260, 109
        %v9326 = vpop.permute.xlu0 %9325
        %9327 = vrot.lane.b32.xlu0 %v9261, 109
        %v9328 = vpop.permute.xlu0 %9327
        %9329 = vrot.lane.b32.xlu0 %v9262, 109
        %v9330 = vpop.permute.xlu0 %9329
        %9331 = vrot.lane.b32.xlu0 %v9263, 109
        %v9332 = vpop.permute.xlu0 %9331
        %9333 = vrot.lane.b32.xlu0 %v9264, 109
        %v9334 = vpop.permute.xlu0 %9333
        %9335 = vrot.lane.b32.xlu0 %v9265, 109
        %v9336 = vpop.permute.xlu0 %9335
        %9337 = vrot.lane.b32.xlu0 %v9266, 109
        %v9338 = vpop.permute.xlu0 %9337
        %9339 = vrot.lane.b32.xlu0 %v9267, 109
        %v9340 = vpop.permute.xlu0 %9339
        %9341 = vrot.lane.b32.xlu0 %v9268, 109
        %v9342 = vpop.permute.xlu0 %9341
        %9343 = vrot.lane.b32.xlu0 %v9269, 109
        %v9344 = vpop.permute.xlu0 %9343
        %vm9345 = vcmask 891904
        %v9346 = vsel %vm9345, %v9298, %v9300
        %v9347 = vsel %vm9345, %v9300, %v9302
        %v9348 = vsel %vm9345, %v9304, %v9306
        %v9349 = vsel %vm9345, %v9306, %v9308
        %v9350 = vsel %vm9345, %v9310, %v9312
        %v9351 = vsel %vm9345, %v9312, %v9314
        %v9352 = vsel %vm9345, %v9316, %v9318
        %v9353 = vsel %vm9345, %v9318, %v9320
        %v9354 = vsel %vm9345, %v9322, %v9324
        %v9355 = vsel %vm9345, %v9324, %v9326
        %v9356 = vsel %vm9345, %v9328, %v9330
        %v9357 = vsel %vm9345, %v9330, %v9332
        %v9358 = vsel %vm9345, %v9334, %v9336
        %v9359 = vsel %vm9345, %v9336, %v9338
        %v9360 = vsel %vm9345, %v9340, %v9342
        %v9361 = vsel %vm9345, %v9342, %v9344
        %vm9378 = vcmask 261120
        %v9380 = vsel %vm9378, %v9272, 0
        %v9382 = vsel %vm9378, %v9302, 0
        %v9384 = vsel %vm9378, %v9308, 0
        %v9386 = vsel %vm9378, %v9314, 0
        %v9388 = vsel %vm9378, %v9320, 0
        %v9390 = vsel %vm9378, %v9326, 0
        %v9392 = vsel %vm9378, %v9332, 0
        %v9394 = vsel %vm9378, %v9338, 0
        %v9396 = vsel %vm9378, %v9344, 0
        %9398 = vmatpush.xpose.msra.mxu0 0.0
        %9399 = vmatpush.xpose.msra.mxu0 0.0
        %9400 = vmatpush.xpose.msra.mxu0 0.0
        %9401 = vmatpush.xpose.msra.mxu0 0.0
        %9402 = vmatpush.xpose.msra.mxu0 0.0
        %9403 = vmatpush.xpose.msra.mxu0 0.0
        %9404 = vmatpush.xpose.msra.mxu0 0.0
        %9405 = vmatpush.xpose.msra.mxu0 0.0
        %9406 = vmatpush.xpose.msra.mxu0 %v9360
        %9407 = vmatpush.xpose.msra.mxu0 %v9358
        %9408 = vmatpush.xpose.msra.mxu0 %v9356
        %9409 = vmatpush.xpose.msra.mxu0 %v9354
        %9410 = vmatpush.xpose.msra.mxu0 %v9352
        %9411 = vmatpush.xpose.msra.mxu0 %v9350
        %9412 = vmatpush.xpose.msra.mxu0 %v9348
        %9413 = vmatpush.xpose.msra.mxu0 %v9346
        %9414 = vmatmul.f32.gmra.mxu0 %v9270
        %v9415 = vpop.f32.mrf.mxu0
        %v9416 = vadd.f32 0.0, %v9415
        %9417 = vdwg.mxu0
        %9418 = vmatpush.xpose.msra.mxu0 0.0
        %9419 = vmatpush.xpose.msra.mxu0 0.0
        %9420 = vmatpush.xpose.msra.mxu0 0.0
        %9421 = vmatpush.xpose.msra.mxu0 0.0
        %9422 = vmatpush.xpose.msra.mxu0 0.0
        %9423 = vmatpush.xpose.msra.mxu0 0.0
        %9424 = vmatpush.xpose.msra.mxu0 0.0
        %9425 = vmatpush.xpose.msra.mxu0 0.0
        %9426 = vmatpush.xpose.msra.mxu0 %v9361
        %9427 = vmatpush.xpose.msra.mxu0 %v9359
        %9428 = vmatpush.xpose.msra.mxu0 %v9357
        %9429 = vmatpush.xpose.msra.mxu0 %v9355
        %9430 = vmatpush.xpose.msra.mxu0 %v9353
        %9431 = vmatpush.xpose.msra.mxu0 %v9351
        %9432 = vmatpush.xpose.msra.mxu0 %v9349
        %9433 = vmatpush.xpose.msra.mxu0 %v9347
        %9434 = vmatmul.f32.gmra.mxu0 %v9271
        %v9435 = vpop.f32.mrf.mxu0
        %v9436 = vadd.f32 %v9416, %v9435
        %9437 = vdwg.mxu0
        %9438 = vmatpush.xpose.msra.mxu0 0.0
        %9439 = vmatpush.xpose.msra.mxu0 0.0
        %9440 = vmatpush.xpose.msra.mxu0 0.0
        %9441 = vmatpush.xpose.msra.mxu0 0.0
        %9442 = vmatpush.xpose.msra.mxu0 0.0
        %9443 = vmatpush.xpose.msra.mxu0 0.0
        %9444 = vmatpush.xpose.msra.mxu0 0.0
        %9445 = vmatpush.xpose.msra.mxu0 0.0
        %9446 = vmatpush.xpose.msra.mxu0 %v9396
        %9447 = vmatpush.xpose.msra.mxu0 %v9394
        %9448 = vmatpush.xpose.msra.mxu0 %v9392
        %9449 = vmatpush.xpose.msra.mxu0 %v9390
        %9450 = vmatpush.xpose.msra.mxu0 %v9388
        %9451 = vmatpush.xpose.msra.mxu0 %v9386
        %9452 = vmatpush.xpose.msra.mxu0 %v9384
        %9453 = vmatpush.xpose.msra.mxu0 %v9382
        %9454 = vmatmul.f32.gmra.mxu0 %v9380
        %v9455 = vpop.f32.mrf.mxu0
        %v9456 = vadd.f32 %v9436, %v9455
        %9457 = vdwg.mxu0
        %vm9458 = vcmask 523264
        %9459 = vst.msk [vmem:[%s178] sm:$0xff] %vm9458, %v9456
        %s9460 = sand.u32 %s98, 1
        %s9461 = scalar_lea.sflag [#allocation4], %s9460
        %s9462 = sand.u32 %s98, 1
        %s9463 = smul.addr %s9462, 8
        %s9464 = scalar_lea.vmem [#allocation3], %s9463
        // Predicated region
        $region33: #{forward.1} parent=31 // pred_check
          %p9465 = pneg %p108
        $region34: #{forward.1} parent=31 // pred_check_branch
          %9467 = sbr.rel (%p9465) target = $region36
        $region35: #{forward.1} parent=31 // pred_region
          %9469 = vsyncadd %s9461, 0
          %s9470 = smul.addr %s17, 8
          %s9471 = scalar_lea.hbm %s3, %s9470
          %s9473 = sshll.u32 %s9464, 4
          %s9474 = int_to_ptr.vmem [resolvable:$true] %s9473
          %s9475 = sshll.u32 %s9471, 4
          %s9476 = int_to_ptr.hbm [resolvable:$true] %s9475
          %9478 = dma.vmem_to_hbm [thread:$0]  %s9474, 128, %s9476, %s9461
        $region36: #{forward.1} parent=31 // pred_fallthru
          _
      $region32: #{forward.1} parent=5 // pred_fallthru
        _
      %p9479 = scmp.le.s32.totalorder 2, %s12
      // Predicated region
      $region37: #{forward.1} parent=5 // pred_check
        %p9480 = pneg %p9479
      $region38: #{forward.1} parent=5 // pred_check_branch
        %9482 = sbr.rel (%p9480) target = $region40
      $region39: #{forward.1} parent=5 // pred_region
        %s9483 = ssub.s32 %s12, 2
        // Predicated region
        $region41: #{forward.1} parent=39 // pred_check
          %p9484 = pneg %p114
        $region42: #{forward.1} parent=39 // pred_check_branch
          %9486 = sbr.rel (%p9484) target = $region44
        $region43: #{forward.1} parent=39 // pred_region
          %s9487 = sand.u32 %s99, 1
          %s9488 = scalar_lea.sflag [#allocation4], %s9487
          %s9489 = sand.u32 %s99, 1
          %s9490 = smul.addr %s9489, 8
          %s9491 = scalar_lea.vmem [#allocation3], %s9490
          %9493 = dma.done %s9488, 128
        $region44: #{forward.1} parent=39 // pred_fallthru
          _
      $region40: #{forward.1} parent=5 // pred_fallthru
        _
    $region6: #{forward.1} parent=1 // loop_footer
      %s16 = sadd.s32 1, %s12
    $region7: #{forward.1} parent=1 // loop_footer_branch
      %11 = sbr.rel target = $region3
    $region8: #{forward.1} parent=1 // loop_exit
      _
    %9494 = vsyncpa [#allocation4], 1
    %s9495 = scalar_lea.sflag [#allocation4], 1
    %9496 = vsyncpa %s9495, 1

</llo_original>
